<compile_context>
chip_gen: v5e
topology: v5e:2x2
jax: 0.10.0
libtpu: 0.0.40
codegen_flags: <defaults>
</compile_context>

<pallas_src>
import functools

import jax
import jax.numpy as jnp
from jax.experimental import pallas as pl
from jax.experimental.pallas import tpu as pltpu


def _omniv_kernel(x1_ref, x2_ref,
                  w1_ref, s1_ref, t1_ref,
                  w2_ref, s2_ref, t2_ref,
                  w3_ref, s3_ref, t3_ref,
                  w4_ref, s4_ref, t4_ref,
                  lw_ref, lb_ref, hw_ref, hb_ref,
                  out_ref,
                  pad1, pad2, pad3, pad4, col,
                  *, H, W, C):
    B = 2  # the two siamese branches of one sample, folded into the matmul M dim

    def bn_relu_pool(y, s_ref, t_ref, h, w):
        # y: (B*h*w, C) conv output -> fused BN(eval)+bias -> ReLU -> 2x2 maxpool
        y = jnp.maximum(y * s_ref[...] + t_ref[...], 0.0)
        y = y.reshape(B * (h // 2), 2, w // 2, 2, C)
        y = jnp.max(y, axis=3)
        y = jnp.max(y, axis=1)                      # (B*h//2, w//2, C)
        return y.reshape(B, h // 2, w // 2, C)

    def conv3x3(pad_ref, wk_ref, h, w):
        # im2col: write the 9 shifted windows into `col` (lane blocks of width C)
        # then contract with the (9*C, C) weight in ONE MXU matmul (K = 9*C).
        m = B * h * w
        xp = pad_ref[...]                           # (B, h+2, w+2, C), zero border
        for dh in range(3):
            for dw in range(3):
                k = dh * 3 + dw
                col[0:m, k * C:(k + 1) * C] = (
                    xp[:, dh:dh + h, dw:dw + w, :].reshape(m, C))
        return jnp.dot(col[0:m, :], wk_ref[...],
                       preferred_element_type=jnp.float32)

    # ---- stage the two input images into the zero-padded layer-1 buffer ----
    pad1[...] = jnp.zeros_like(pad1)
    pad1[0:1, 1:H + 1, 1:W + 1, :] = x1_ref[...]
    pad1[1:2, 1:H + 1, 1:W + 1, :] = x2_ref[...]

    # ---- layer 1 (Cin = 1): 9 VPU broadcast multiply-adds, no MXU ----
    xp1 = pad1[...]                                 # (B, H+2, W+2, 1)
    acc = jnp.zeros((B, H, W, C), jnp.float32)
    for dh in range(3):
        for dw in range(3):
            k = dh * 3 + dw
            acc = acc + xp1[:, dh:dh + H, dw:dw + W, :] * w1_ref[k:k + 1, :]
    p = bn_relu_pool(acc.reshape(B * H * W, C), s1_ref, t1_ref, H, W)

    # ---- layers 2..4: im2col + single K=9*C MXU matmul each ----
    h, w = H // 2, W // 2
    for pd, wk, sk, tk in ((pad2, w2_ref, s2_ref, t2_ref),
                           (pad3, w3_ref, s3_ref, t3_ref),
                           (pad4, w4_ref, s4_ref, t4_ref)):
        pd[...] = jnp.zeros_like(pd)
        pd[:, 1:h + 1, 1:w + 1, :] = p              # interior write; border stays 0
        p = bn_relu_pool(conv3x3(pd, wk, h, w), sk, tk, h, w)
        h, w = h // 2, w // 2

    # ---- classifier linear + siamese head:  head(|e1 - e2|^2) ----
    feat = p.reshape(B, C)                          # final spatial map is 1x1
    emb = (jnp.dot(feat, lw_ref[...], preferred_element_type=jnp.float32)
           + lb_ref[...])                           # (B, out)
    d = emb[0:1, :] - emb[1:2, :]
    d = d * d                                       # |e1 - e2|^2
    out = jnp.sum(d * hw_ref[...], axis=1, keepdims=True) + hb_ref[...]   # (1,1)
    out_ref[...] = out.reshape(1, 1, 1).astype(out_ref.dtype)


class OmniVPallas:
    """Forward-only Pallas port of OmniV (siamese Classifier + squared-diff head)."""

    def __init__(self, key, layer_size=32, output_shape=8, num_channels=1,
                 image_size=16):
        assert num_channels == 1, "first conv layer is specialized for 1 input channel"
        assert image_size % 16 == 0 and image_size // 16 == 1, \
            "kernel assumes 4 even 2x2 pools down to a 1x1 map (image_size == 16)"

        C = layer_size
        eps = 1e-5
        keys = jax.random.split(key, 11)

        def conv_block_params(kw, kb, cin):
            # AConv2d init: weight ~ N(0, 0.01), bias ~ N(0.5, 0.01)
            wgt = 0.01 * jax.random.normal(kw, (3, 3, cin, C), jnp.float32)
            bias = 0.5 + 0.01 * jax.random.normal(kb, (C,), jnp.float32)
            # eval-mode BatchNorm2d with default stats: gamma=1, beta=0, mean=0, var=1
            gamma = jnp.ones((C,), jnp.float32)
            beta = jnp.zeros((C,), jnp.float32)
            mean = jnp.zeros((C,), jnp.float32)
            var = jnp.ones((C,), jnp.float32)
            scale = gamma / jnp.sqrt(var + eps)
            shift = scale * (bias - mean) + beta     # conv bias folded into BN shift
            # im2col weight layout: row = (kh*3 + kw)*cin + ci, col = cout
            return (wgt.reshape(9 * cin, C),
                    scale.reshape(1, C), shift.reshape(1, C))

        cins = [num_channels, C, C, C]
        self.conv_params = [conv_block_params(keys[2 * i], keys[2 * i + 1], cins[i])
                            for i in range(4)]

        out_size = C  # final 1x1 spatial map -> layer_size features
        # classifier ALinear init: weight ~ N(0, 2*0.1), bias ~ N(0.5, 0.01)
        self.lin_w = 0.2 * jax.random.normal(keys[8], (out_size, output_shape),
                                             jnp.float32)
        self.lin_b = (0.5 + 0.01 * jax.random.normal(keys[9], (output_shape,),
                                                     jnp.float32)).reshape(1, -1)
        # OmniV head ALinear(., 1): not covered by Classifier._weight_init -> small init
        self.head_w = 0.1 * jax.random.normal(keys[10], (1, output_shape), jnp.float32)
        self.head_b = jnp.zeros((1, 1), jnp.float32)

        self.C = C
        self.H = image_size
        self.output_shape = output_shape
        self._forward = jax.jit(self._forward)       # single fused launch per call

    def _forward(self, x1_nchw, x2_nchw):
        H = W = self.H
        C = self.C
        N = x1_nchw.shape[0]
        # NCHW -> NHWC is a pure relabel for a single channel (no data movement)
        x1 = x1_nchw.reshape(N, H, W, 1).astype(jnp.float32)
        x2 = x2_nchw.reshape(N, H, W, 1).astype(jnp.float32)

        def full(shape):
            return pl.BlockSpec(shape, lambda n, _s=len(shape): (0,) * _s)

        (w1, s1, t1), (w2, s2, t2), (w3, s3, t3), (w4, s4, t4) = self.conv_params
        kernel = functools.partial(_omniv_kernel, H=H, W=W, C=C)

        out = pl.pallas_call(
            kernel,
            out_shape=jax.ShapeDtypeStruct((N, 1, 1), jnp.float32),
            grid=(N,),
            in_specs=[
                pl.BlockSpec((1, H, W, 1), lambda n: (n, 0, 0, 0)),
                pl.BlockSpec((1, H, W, 1), lambda n: (n, 0, 0, 0)),
                full((9, C)), full((1, C)), full((1, C)),
                full((9 * C, C)), full((1, C)), full((1, C)),
                full((9 * C, C)), full((1, C)), full((1, C)),
                full((9 * C, C)), full((1, C)), full((1, C)),
                full((C, self.output_shape)), full((1, self.output_shape)),
                full((1, self.output_shape)), full((1, 1)),
            ],
            out_specs=pl.BlockSpec((1, 1, 1), lambda n: (n, 0, 0)),
            scratch_shapes=[
                pltpu.VMEM((2, H + 2, W + 2, 1), jnp.float32),            # pad1
                pltpu.VMEM((2, H // 2 + 2, W // 2 + 2, C), jnp.float32),  # pad2
                pltpu.VMEM((2, H // 4 + 2, W // 4 + 2, C), jnp.float32),  # pad3
                pltpu.VMEM((2, H // 8 + 2, W // 8 + 2, C), jnp.float32),  # pad4
                pltpu.VMEM((2 * (H // 2) * (W // 2), 9 * C), jnp.float32),  # im2col
            ],
            compiler_params=pltpu.CompilerParams(
                dimension_semantics=("parallel",),   # v7x: one siamese pair per TC
            ),
        )(x1, x2, w1, s1, t1, w2, s2, t2, w3, s3, t3, w4, s4, t4,
          self.lin_w, self.lin_b, self.head_w, self.head_b)
        return out.reshape(N, 1)

    def __call__(self, x1_nchw, x2_nchw):
        return self._forward(x1_nchw, x2_nchw)


if __name__ == "__main__":
    key = jax.random.PRNGKey(0)
    k_param, k_x1, k_x2 = jax.random.split(key, 3)

    # small shapes: batch=2, num_channels=1, image_size=16, layer_size=32,
    # classifier output_shape=8, siamese head output = 1
    model = OmniVPallas(k_param, layer_size=32, output_shape=8,
                        num_channels=1, image_size=16)
    x1 = jax.random.normal(k_x1, (2, 1, 16, 16), jnp.float32)   # NCHW, like PyTorch
    x2 = jax.random.normal(k_x2, (2, 1, 16, 16), jnp.float32)

    out = model(x1, x2)
    jax.block_until_ready(out)
    assert out.shape == (2, 1)
    print("KERNEL_OK")
</pallas_src>

<mosaic_0001>
module attributes {stable_mosaic.version = 11 : i64} {
  func.func @_omniv_kernel(%arg0: i32, %arg1: memref<1x16x16x1xf32, #tpu.memory_space<vmem>>, %arg2: memref<1x16x16x1xf32, #tpu.memory_space<vmem>>, %arg3: memref<9x32xf32, #tpu.memory_space<vmem>>, %arg4: memref<1x32xf32, #tpu.memory_space<vmem>>, %arg5: memref<1x32xf32, #tpu.memory_space<vmem>>, %arg6: memref<288x32xf32, #tpu.memory_space<vmem>>, %arg7: memref<1x32xf32, #tpu.memory_space<vmem>>, %arg8: memref<1x32xf32, #tpu.memory_space<vmem>>, %arg9: memref<288x32xf32, #tpu.memory_space<vmem>>, %arg10: memref<1x32xf32, #tpu.memory_space<vmem>>, %arg11: memref<1x32xf32, #tpu.memory_space<vmem>>, %arg12: memref<288x32xf32, #tpu.memory_space<vmem>>, %arg13: memref<1x32xf32, #tpu.memory_space<vmem>>, %arg14: memref<1x32xf32, #tpu.memory_space<vmem>>, %arg15: memref<32x8xf32, #tpu.memory_space<vmem>>, %arg16: memref<1x8xf32, #tpu.memory_space<vmem>>, %arg17: memref<1x8xf32, #tpu.memory_space<vmem>>, %arg18: memref<1x1xf32, #tpu.memory_space<vmem>>, %arg19: memref<1x1x1xf32, #tpu.memory_space<vmem>>, %arg20: memref<2x18x18x1xf32, #tpu.memory_space<vmem>>, %arg21: memref<2x10x10x32xf32, #tpu.memory_space<vmem>>, %arg22: memref<2x6x6x32xf32, #tpu.memory_space<vmem>>, %arg23: memref<2x4x4x32xf32, #tpu.memory_space<vmem>>, %arg24: memref<128x288xf32, #tpu.memory_space<vmem>>) attributes {dimension_semantics = [#tpu.dimension_semantics<parallel>], iteration_bounds = array<i64: 2>, scalar_prefetch = 0 : i64, scratch_operands = 5 : i64, tpu.core_type = #tpu.core_type<tc>, window_params = [{transform_indices = @transform_0, window_bounds = array<i64: 1, 16, 16, 1>}, {transform_indices = @transform_1, window_bounds = array<i64: 1, 16, 16, 1>}, {pipeline_mode = #tpu.pipeline_mode<synchronous>, transform_indices = @transform_2, window_bounds = array<i64: 9, 32>}, {pipeline_mode = #tpu.pipeline_mode<synchronous>, transform_indices = @transform_3, window_bounds = array<i64: 1, 32>}, {pipeline_mode = #tpu.pipeline_mode<synchronous>, transform_indices = @transform_4, window_bounds = array<i64: 1, 32>}, {pipeline_mode = #tpu.pipeline_mode<synchronous>, transform_indices = @transform_5, window_bounds = array<i64: 288, 32>}, {pipeline_mode = #tpu.pipeline_mode<synchronous>, transform_indices = @transform_6, window_bounds = array<i64: 1, 32>}, {pipeline_mode = #tpu.pipeline_mode<synchronous>, transform_indices = @transform_7, window_bounds = array<i64: 1, 32>}, {pipeline_mode = #tpu.pipeline_mode<synchronous>, transform_indices = @transform_8, window_bounds = array<i64: 288, 32>}, {pipeline_mode = #tpu.pipeline_mode<synchronous>, transform_indices = @transform_9, window_bounds = array<i64: 1, 32>}, {pipeline_mode = #tpu.pipeline_mode<synchronous>, transform_indices = @transform_10, window_bounds = array<i64: 1, 32>}, {pipeline_mode = #tpu.pipeline_mode<synchronous>, transform_indices = @transform_11, window_bounds = array<i64: 288, 32>}, {pipeline_mode = #tpu.pipeline_mode<synchronous>, transform_indices = @transform_12, window_bounds = array<i64: 1, 32>}, {pipeline_mode = #tpu.pipeline_mode<synchronous>, transform_indices = @transform_13, window_bounds = array<i64: 1, 32>}, {pipeline_mode = #tpu.pipeline_mode<synchronous>, transform_indices = @transform_14, window_bounds = array<i64: 32, 8>}, {pipeline_mode = #tpu.pipeline_mode<synchronous>, transform_indices = @transform_15, window_bounds = array<i64: 1, 8>}, {pipeline_mode = #tpu.pipeline_mode<synchronous>, transform_indices = @transform_16, window_bounds = array<i64: 1, 8>}, {pipeline_mode = #tpu.pipeline_mode<synchronous>, transform_indices = @transform_17, window_bounds = array<i64: 1, 1>}, {transform_indices = @transform_18, window_bounds = array<i64: 1, 1, 1>}]} {
    %cst = arith.constant 0.000000e+00 : f32
    %0 = vector.broadcast %cst : f32 to vector<2x18x18x1xf32>
    %c0 = arith.constant 0 : index
    %c0_0 = arith.constant 0 : index
    %c0_1 = arith.constant 0 : index
    %c0_2 = arith.constant 0 : index
    %1 = vector.load %arg20[%c0, %c0_0, %c0_1, %c0_2] : memref<2x18x18x1xf32, #tpu.memory_space<vmem>>, vector<2x18x18x1xf32>
    tpu.vector_store %arg20[%c0, %c0_0, %c0_1, %c0_2], %0 {strides = array<i32>} : memref<2x18x18x1xf32, #tpu.memory_space<vmem>>, vector<2x18x18x1xf32>,
    %c0_3 = arith.constant 0 : index
    %c0_4 = arith.constant 0 : index
    %c0_5 = arith.constant 0 : index
    %c0_6 = arith.constant 0 : index
    %2 = vector.load %arg1[%c0_3, %c0_4, %c0_5, %c0_6] : memref<1x16x16x1xf32, #tpu.memory_space<vmem>>, vector<1x16x16x1xf32>
    %c0_7 = arith.constant 0 : index
    %c1 = arith.constant 1 : index
    %c1_8 = arith.constant 1 : index
    %c0_9 = arith.constant 0 : index
    %3 = vector.load %arg20[%c0_7, %c1, %c1_8, %c0_9] : memref<2x18x18x1xf32, #tpu.memory_space<vmem>>, vector<1x16x16x1xf32>
    tpu.vector_store %arg20[%c0_7, %c1, %c1_8, %c0_9], %2 {strides = array<i32>} : memref<2x18x18x1xf32, #tpu.memory_space<vmem>>, vector<1x16x16x1xf32>,
    %c0_10 = arith.constant 0 : index
    %c0_11 = arith.constant 0 : index
    %c0_12 = arith.constant 0 : index
    %c0_13 = arith.constant 0 : index
    %4 = vector.load %arg2[%c0_10, %c0_11, %c0_12, %c0_13] : memref<1x16x16x1xf32, #tpu.memory_space<vmem>>, vector<1x16x16x1xf32>
    %c1_14 = arith.constant 1 : index
    %c1_15 = arith.constant 1 : index
    %c1_16 = arith.constant 1 : index
    %c0_17 = arith.constant 0 : index
    %5 = vector.load %arg20[%c1_14, %c1_15, %c1_16, %c0_17] : memref<2x18x18x1xf32, #tpu.memory_space<vmem>>, vector<1x16x16x1xf32>
    tpu.vector_store %arg20[%c1_14, %c1_15, %c1_16, %c0_17], %4 {strides = array<i32>} : memref<2x18x18x1xf32, #tpu.memory_space<vmem>>, vector<1x16x16x1xf32>,
    %c0_18 = arith.constant 0 : index
    %c0_19 = arith.constant 0 : index
    %c0_20 = arith.constant 0 : index
    %c0_21 = arith.constant 0 : index
    %6 = vector.load %arg20[%c0_18, %c0_19, %c0_20, %c0_21] : memref<2x18x18x1xf32, #tpu.memory_space<vmem>>, vector<2x18x18x1xf32>
    %cst_22 = arith.constant 0.000000e+00 : f32
    %7 = vector.broadcast %cst_22 : f32 to vector<2x16x16x32xf32>
    %8 = vector.extract_strided_slice %6 {offsets = [0, 0, 0, 0], sizes = [2, 16, 16, 1], strides = [1, 1, 1, 1]} : vector<2x18x18x1xf32> to vector<2x16x16x1xf32>
    %c0_23 = arith.constant 0 : index
    %c0_24 = arith.constant 0 : index
    %9 = vector.load %arg3[%c0_23, %c0_24] : memref<9x32xf32, #tpu.memory_space<vmem>>, vector<1x32xf32>
    %10 = vector.shape_cast %9 : vector<1x32xf32> to vector<1x1x1x32xf32>
    %11 = vector.broadcast %8 : vector<2x16x16x1xf32> to vector<2x16x16x32xf32>
    %12 = vector.broadcast %10 : vector<1x1x1x32xf32> to vector<2x16x16x32xf32>
    %13 = arith.mulf %11, %12 : vector<2x16x16x32xf32>
    %14 = arith.addf %7, %13 : vector<2x16x16x32xf32>
    %15 = vector.extract_strided_slice %6 {offsets = [0, 0, 1, 0], sizes = [2, 16, 16, 1], strides = [1, 1, 1, 1]} : vector<2x18x18x1xf32> to vector<2x16x16x1xf32>
    %c1_25 = arith.constant 1 : index
    %c0_26 = arith.constant 0 : index
    %16 = vector.load %arg3[%c1_25, %c0_26] : memref<9x32xf32, #tpu.memory_space<vmem>>, vector<1x32xf32>
    %17 = vector.shape_cast %16 : vector<1x32xf32> to vector<1x1x1x32xf32>
    %18 = vector.broadcast %15 : vector<2x16x16x1xf32> to vector<2x16x16x32xf32>
    %19 = vector.broadcast %17 : vector<1x1x1x32xf32> to vector<2x16x16x32xf32>
    %20 = arith.mulf %18, %19 : vector<2x16x16x32xf32>
    %21 = arith.addf %14, %20 : vector<2x16x16x32xf32>
    %22 = vector.extract_strided_slice %6 {offsets = [0, 0, 2, 0], sizes = [2, 16, 16, 1], strides = [1, 1, 1, 1]} : vector<2x18x18x1xf32> to vector<2x16x16x1xf32>
    %c2 = arith.constant 2 : index
    %c0_27 = arith.constant 0 : index
    %23 = vector.load %arg3[%c2, %c0_27] : memref<9x32xf32, #tpu.memory_space<vmem>>, vector<1x32xf32>
    %24 = vector.shape_cast %23 : vector<1x32xf32> to vector<1x1x1x32xf32>
    %25 = vector.broadcast %22 : vector<2x16x16x1xf32> to vector<2x16x16x32xf32>
    %26 = vector.broadcast %24 : vector<1x1x1x32xf32> to vector<2x16x16x32xf32>
    %27 = arith.mulf %25, %26 : vector<2x16x16x32xf32>
    %28 = arith.addf %21, %27 : vector<2x16x16x32xf32>
    %29 = vector.extract_strided_slice %6 {offsets = [0, 1, 0, 0], sizes = [2, 16, 16, 1], strides = [1, 1, 1, 1]} : vector<2x18x18x1xf32> to vector<2x16x16x1xf32>
    %c3 = arith.constant 3 : index
    %c0_28 = arith.constant 0 : index
    %30 = vector.load %arg3[%c3, %c0_28] : memref<9x32xf32, #tpu.memory_space<vmem>>, vector<1x32xf32>
    %31 = vector.shape_cast %30 : vector<1x32xf32> to vector<1x1x1x32xf32>
    %32 = vector.broadcast %29 : vector<2x16x16x1xf32> to vector<2x16x16x32xf32>
    %33 = vector.broadcast %31 : vector<1x1x1x32xf32> to vector<2x16x16x32xf32>
    %34 = arith.mulf %32, %33 : vector<2x16x16x32xf32>
    %35 = arith.addf %28, %34 : vector<2x16x16x32xf32>
    %36 = vector.extract_strided_slice %6 {offsets = [0, 1, 1, 0], sizes = [2, 16, 16, 1], strides = [1, 1, 1, 1]} : vector<2x18x18x1xf32> to vector<2x16x16x1xf32>
    %c4 = arith.constant 4 : index
    %c0_29 = arith.constant 0 : index
    %37 = vector.load %arg3[%c4, %c0_29] : memref<9x32xf32, #tpu.memory_space<vmem>>, vector<1x32xf32>
    %38 = vector.shape_cast %37 : vector<1x32xf32> to vector<1x1x1x32xf32>
    %39 = vector.broadcast %36 : vector<2x16x16x1xf32> to vector<2x16x16x32xf32>
    %40 = vector.broadcast %38 : vector<1x1x1x32xf32> to vector<2x16x16x32xf32>
    %41 = arith.mulf %39, %40 : vector<2x16x16x32xf32>
    %42 = arith.addf %35, %41 : vector<2x16x16x32xf32>
    %43 = vector.extract_strided_slice %6 {offsets = [0, 1, 2, 0], sizes = [2, 16, 16, 1], strides = [1, 1, 1, 1]} : vector<2x18x18x1xf32> to vector<2x16x16x1xf32>
    %c5 = arith.constant 5 : index
    %c0_30 = arith.constant 0 : index
    %44 = vector.load %arg3[%c5, %c0_30] : memref<9x32xf32, #tpu.memory_space<vmem>>, vector<1x32xf32>
    %45 = vector.shape_cast %44 : vector<1x32xf32> to vector<1x1x1x32xf32>
    %46 = vector.broadcast %43 : vector<2x16x16x1xf32> to vector<2x16x16x32xf32>
    %47 = vector.broadcast %45 : vector<1x1x1x32xf32> to vector<2x16x16x32xf32>
    %48 = arith.mulf %46, %47 : vector<2x16x16x32xf32>
    %49 = arith.addf %42, %48 : vector<2x16x16x32xf32>
    %50 = vector.extract_strided_slice %6 {offsets = [0, 2, 0, 0], sizes = [2, 16, 16, 1], strides = [1, 1, 1, 1]} : vector<2x18x18x1xf32> to vector<2x16x16x1xf32>
    %c6 = arith.constant 6 : index
    %c0_31 = arith.constant 0 : index
    %51 = vector.load %arg3[%c6, %c0_31] : memref<9x32xf32, #tpu.memory_space<vmem>>, vector<1x32xf32>
    %52 = vector.shape_cast %51 : vector<1x32xf32> to vector<1x1x1x32xf32>
    %53 = vector.broadcast %50 : vector<2x16x16x1xf32> to vector<2x16x16x32xf32>
    %54 = vector.broadcast %52 : vector<1x1x1x32xf32> to vector<2x16x16x32xf32>
    %55 = arith.mulf %53, %54 : vector<2x16x16x32xf32>
    %56 = arith.addf %49, %55 : vector<2x16x16x32xf32>
    %57 = vector.extract_strided_slice %6 {offsets = [0, 2, 1, 0], sizes = [2, 16, 16, 1], strides = [1, 1, 1, 1]} : vector<2x18x18x1xf32> to vector<2x16x16x1xf32>
    %c7 = arith.constant 7 : index
    %c0_32 = arith.constant 0 : index
    %58 = vector.load %arg3[%c7, %c0_32] : memref<9x32xf32, #tpu.memory_space<vmem>>, vector<1x32xf32>
    %59 = vector.shape_cast %58 : vector<1x32xf32> to vector<1x1x1x32xf32>
    %60 = vector.broadcast %57 : vector<2x16x16x1xf32> to vector<2x16x16x32xf32>
    %61 = vector.broadcast %59 : vector<1x1x1x32xf32> to vector<2x16x16x32xf32>
    %62 = arith.mulf %60, %61 : vector<2x16x16x32xf32>
    %63 = arith.addf %56, %62 : vector<2x16x16x32xf32>
    %64 = vector.extract_strided_slice %6 {offsets = [0, 2, 2, 0], sizes = [2, 16, 16, 1], strides = [1, 1, 1, 1]} : vector<2x18x18x1xf32> to vector<2x16x16x1xf32>
    %c8 = arith.constant 8 : index
    %c0_33 = arith.constant 0 : index
    %65 = vector.load %arg3[%c8, %c0_33] : memref<9x32xf32, #tpu.memory_space<vmem>>, vector<1x32xf32>
    %66 = vector.shape_cast %65 : vector<1x32xf32> to vector<1x1x1x32xf32>
    %67 = vector.broadcast %64 : vector<2x16x16x1xf32> to vector<2x16x16x32xf32>
    %68 = vector.broadcast %66 : vector<1x1x1x32xf32> to vector<2x16x16x32xf32>
    %69 = arith.mulf %67, %68 : vector<2x16x16x32xf32>
    %70 = arith.addf %63, %69 : vector<2x16x16x32xf32>
    %71 = vector.shape_cast %70 : vector<2x16x16x32xf32> to vector<512x32xf32>
    %c0_34 = arith.constant 0 : index
    %c0_35 = arith.constant 0 : index
    %72 = vector.load %arg4[%c0_34, %c0_35] : memref<1x32xf32, #tpu.memory_space<vmem>>, vector<1x32xf32>
    %73 = vector.broadcast %72 : vector<1x32xf32> to vector<512x32xf32>
    %74 = arith.mulf %71, %73 : vector<512x32xf32>
    %c0_36 = arith.constant 0 : index
    %c0_37 = arith.constant 0 : index
    %75 = vector.load %arg5[%c0_36, %c0_37] : memref<1x32xf32, #tpu.memory_space<vmem>>, vector<1x32xf32>
    %76 = vector.broadcast %75 : vector<1x32xf32> to vector<512x32xf32>
    %77 = arith.addf %74, %76 : vector<512x32xf32>
    %cst_38 = arith.constant 0.000000e+00 : f32
    %78 = vector.broadcast %cst_38 : f32 to vector<512x32xf32>
    %79 = arith.maximumf %77, %78 : vector<512x32xf32>
    %80 = vector.shape_cast %79 : vector<512x32xf32> to vector<16x2x8x2x32xf32>
    %cst_39 = arith.constant dense<0xFF800000> : vector<16x2x8x32xf32>
    %81 = vector.multi_reduction <maximumf>, %80, %cst_39 [3] : vector<16x2x8x2x32xf32> to vector<16x2x8x32xf32>
    %cst_40 = arith.constant dense<0xFF800000> : vector<16x8x32xf32>
    %82 = vector.multi_reduction <maximumf>, %81, %cst_40 [1] : vector<16x2x8x32xf32> to vector<16x8x32xf32>
    %83 = vector.shape_cast %82 : vector<16x8x32xf32> to vector<2x8x8x32xf32>
    %cst_41 = arith.constant 0.000000e+00 : f32
    %84 = vector.broadcast %cst_41 : f32 to vector<2x10x10x32xf32>
    %c0_42 = arith.constant 0 : index
    %c0_43 = arith.constant 0 : index
    %c0_44 = arith.constant 0 : index
    %c0_45 = arith.constant 0 : index
    %85 = vector.load %arg21[%c0_42, %c0_43, %c0_44, %c0_45] : memref<2x10x10x32xf32, #tpu.memory_space<vmem>>, vector<2x10x10x32xf32>
    tpu.vector_store %arg21[%c0_42, %c0_43, %c0_44, %c0_45], %84 {strides = array<i32>} : memref<2x10x10x32xf32, #tpu.memory_space<vmem>>, vector<2x10x10x32xf32>,
    %c0_46 = arith.constant 0 : index
    %c1_47 = arith.constant 1 : index
    %c1_48 = arith.constant 1 : index
    %c0_49 = arith.constant 0 : index
    %86 = vector.load %arg21[%c0_46, %c1_47, %c1_48, %c0_49] : memref<2x10x10x32xf32, #tpu.memory_space<vmem>>, vector<2x8x8x32xf32>
    tpu.vector_store %arg21[%c0_46, %c1_47, %c1_48, %c0_49], %83 {strides = array<i32>} : memref<2x10x10x32xf32, #tpu.memory_space<vmem>>, vector<2x8x8x32xf32>,
    %c0_50 = arith.constant 0 : index
    %c0_51 = arith.constant 0 : index
    %c0_52 = arith.constant 0 : index
    %c0_53 = arith.constant 0 : index
    %87 = vector.load %arg21[%c0_50, %c0_51, %c0_52, %c0_53] : memref<2x10x10x32xf32, #tpu.memory_space<vmem>>, vector<2x10x10x32xf32>
    %88 = vector.extract_strided_slice %87 {offsets = [0, 0, 0, 0], sizes = [2, 8, 8, 32], strides = [1, 1, 1, 1]} : vector<2x10x10x32xf32> to vector<2x8x8x32xf32>
    %89 = vector.shape_cast %88 : vector<2x8x8x32xf32> to vector<128x32xf32>
    %c0_54 = arith.constant 0 : index
    %c0_55 = arith.constant 0 : index
    %90 = vector.load %arg24[%c0_54, %c0_55] : memref<128x288xf32, #tpu.memory_space<vmem>>, vector<128x32xf32>
    tpu.vector_store %arg24[%c0_54, %c0_55], %89 {strides = array<i32>} : memref<128x288xf32, #tpu.memory_space<vmem>>, vector<128x32xf32>,
    %91 = vector.extract_strided_slice %87 {offsets = [0, 0, 1, 0], sizes = [2, 8, 8, 32], strides = [1, 1, 1, 1]} : vector<2x10x10x32xf32> to vector<2x8x8x32xf32>
    %92 = vector.shape_cast %91 : vector<2x8x8x32xf32> to vector<128x32xf32>
    %c0_56 = arith.constant 0 : index
    %c32 = arith.constant 32 : index
    %93 = vector.load %arg24[%c0_56, %c32] : memref<128x288xf32, #tpu.memory_space<vmem>>, vector<128x32xf32>
    tpu.vector_store %arg24[%c0_56, %c32], %92 {strides = array<i32>} : memref<128x288xf32, #tpu.memory_space<vmem>>, vector<128x32xf32>,
    %94 = vector.extract_strided_slice %87 {offsets = [0, 0, 2, 0], sizes = [2, 8, 8, 32], strides = [1, 1, 1, 1]} : vector<2x10x10x32xf32> to vector<2x8x8x32xf32>
    %95 = vector.shape_cast %94 : vector<2x8x8x32xf32> to vector<128x32xf32>
    %c0_57 = arith.constant 0 : index
    %c64 = arith.constant 64 : index
    %96 = vector.load %arg24[%c0_57, %c64] : memref<128x288xf32, #tpu.memory_space<vmem>>, vector<128x32xf32>
    tpu.vector_store %arg24[%c0_57, %c64], %95 {strides = array<i32>} : memref<128x288xf32, #tpu.memory_space<vmem>>, vector<128x32xf32>,
    %97 = vector.extract_strided_slice %87 {offsets = [0, 1, 0, 0], sizes = [2, 8, 8, 32], strides = [1, 1, 1, 1]} : vector<2x10x10x32xf32> to vector<2x8x8x32xf32>
    %98 = vector.shape_cast %97 : vector<2x8x8x32xf32> to vector<128x32xf32>
    %c0_58 = arith.constant 0 : index
    %c96 = arith.constant 96 : index
    %99 = vector.load %arg24[%c0_58, %c96] : memref<128x288xf32, #tpu.memory_space<vmem>>, vector<128x32xf32>
    tpu.vector_store %arg24[%c0_58, %c96], %98 {strides = array<i32>} : memref<128x288xf32, #tpu.memory_space<vmem>>, vector<128x32xf32>,
    %100 = vector.extract_strided_slice %87 {offsets = [0, 1, 1, 0], sizes = [2, 8, 8, 32], strides = [1, 1, 1, 1]} : vector<2x10x10x32xf32> to vector<2x8x8x32xf32>
    %101 = vector.shape_cast %100 : vector<2x8x8x32xf32> to vector<128x32xf32>
    %c0_59 = arith.constant 0 : index
    %c128 = arith.constant 128 : index
    %102 = vector.load %arg24[%c0_59, %c128] : memref<128x288xf32, #tpu.memory_space<vmem>>, vector<128x32xf32>
    tpu.vector_store %arg24[%c0_59, %c128], %101 {strides = array<i32>} : memref<128x288xf32, #tpu.memory_space<vmem>>, vector<128x32xf32>,
    %103 = vector.extract_strided_slice %87 {offsets = [0, 1, 2, 0], sizes = [2, 8, 8, 32], strides = [1, 1, 1, 1]} : vector<2x10x10x32xf32> to vector<2x8x8x32xf32>
    %104 = vector.shape_cast %103 : vector<2x8x8x32xf32> to vector<128x32xf32>
    %c0_60 = arith.constant 0 : index
    %c160 = arith.constant 160 : index
    %105 = vector.load %arg24[%c0_60, %c160] : memref<128x288xf32, #tpu.memory_space<vmem>>, vector<128x32xf32>
    tpu.vector_store %arg24[%c0_60, %c160], %104 {strides = array<i32>} : memref<128x288xf32, #tpu.memory_space<vmem>>, vector<128x32xf32>,
    %106 = vector.extract_strided_slice %87 {offsets = [0, 2, 0, 0], sizes = [2, 8, 8, 32], strides = [1, 1, 1, 1]} : vector<2x10x10x32xf32> to vector<2x8x8x32xf32>
    %107 = vector.shape_cast %106 : vector<2x8x8x32xf32> to vector<128x32xf32>
    %c0_61 = arith.constant 0 : index
    %c192 = arith.constant 192 : index
    %108 = vector.load %arg24[%c0_61, %c192] : memref<128x288xf32, #tpu.memory_space<vmem>>, vector<128x32xf32>
    tpu.vector_store %arg24[%c0_61, %c192], %107 {strides = array<i32>} : memref<128x288xf32, #tpu.memory_space<vmem>>, vector<128x32xf32>,
    %109 = vector.extract_strided_slice %87 {offsets = [0, 2, 1, 0], sizes = [2, 8, 8, 32], strides = [1, 1, 1, 1]} : vector<2x10x10x32xf32> to vector<2x8x8x32xf32>
    %110 = vector.shape_cast %109 : vector<2x8x8x32xf32> to vector<128x32xf32>
    %c0_62 = arith.constant 0 : index
    %c224 = arith.constant 224 : index
    %111 = vector.load %arg24[%c0_62, %c224] : memref<128x288xf32, #tpu.memory_space<vmem>>, vector<128x32xf32>
    tpu.vector_store %arg24[%c0_62, %c224], %110 {strides = array<i32>} : memref<128x288xf32, #tpu.memory_space<vmem>>, vector<128x32xf32>,
    %112 = vector.extract_strided_slice %87 {offsets = [0, 2, 2, 0], sizes = [2, 8, 8, 32], strides = [1, 1, 1, 1]} : vector<2x10x10x32xf32> to vector<2x8x8x32xf32>
    %113 = vector.shape_cast %112 : vector<2x8x8x32xf32> to vector<128x32xf32>
    %c0_63 = arith.constant 0 : index
    %c256 = arith.constant 256 : index
    %114 = vector.load %arg24[%c0_63, %c256] : memref<128x288xf32, #tpu.memory_space<vmem>>, vector<128x32xf32>
    tpu.vector_store %arg24[%c0_63, %c256], %113 {strides = array<i32>} : memref<128x288xf32, #tpu.memory_space<vmem>>, vector<128x32xf32>,
    %c0_64 = arith.constant 0 : index
    %c0_65 = arith.constant 0 : index
    %115 = vector.load %arg24[%c0_64, %c0_65] : memref<128x288xf32, #tpu.memory_space<vmem>>, vector<128x288xf32>
    %c0_66 = arith.constant 0 : index
    %c0_67 = arith.constant 0 : index
    %116 = vector.load %arg6[%c0_66, %c0_67] : memref<288x32xf32, #tpu.memory_space<vmem>>, vector<288x32xf32>
    %cst_68 = arith.constant dense<0.000000e+00> : vector<128x32xf32>
    %117 = tpu.matmul %115, %116, %cst_68 {dimension_numbers = #tpu.dot_dimension_numbers<[1], [0], [0], [1], [0, 0, 1, 1], [], []>} : vector<128x288xf32>, vector<288x32xf32>, vector<128x32xf32> -> vector<128x32xf32>
    %c0_69 = arith.constant 0 : index
    %c0_70 = arith.constant 0 : index
    %118 = vector.load %arg7[%c0_69, %c0_70] : memref<1x32xf32, #tpu.memory_space<vmem>>, vector<1x32xf32>
    %119 = vector.broadcast %118 : vector<1x32xf32> to vector<128x32xf32>
    %120 = arith.mulf %117, %119 : vector<128x32xf32>
    %c0_71 = arith.constant 0 : index
    %c0_72 = arith.constant 0 : index
    %121 = vector.load %arg8[%c0_71, %c0_72] : memref<1x32xf32, #tpu.memory_space<vmem>>, vector<1x32xf32>
    %122 = vector.broadcast %121 : vector<1x32xf32> to vector<128x32xf32>
    %123 = arith.addf %120, %122 : vector<128x32xf32>
    %cst_73 = arith.constant 0.000000e+00 : f32
    %124 = vector.broadcast %cst_73 : f32 to vector<128x32xf32>
    %125 = arith.maximumf %123, %124 : vector<128x32xf32>
    %126 = vector.shape_cast %125 : vector<128x32xf32> to vector<8x2x4x2x32xf32>
    %cst_74 = arith.constant dense<0xFF800000> : vector<8x2x4x32xf32>
    %127 = vector.multi_reduction <maximumf>, %126, %cst_74 [3] : vector<8x2x4x2x32xf32> to vector<8x2x4x32xf32>
    %cst_75 = arith.constant dense<0xFF800000> : vector<8x4x32xf32>
    %128 = vector.multi_reduction <maximumf>, %127, %cst_75 [1] : vector<8x2x4x32xf32> to vector<8x4x32xf32>
    %129 = vector.shape_cast %128 : vector<8x4x32xf32> to vector<2x4x4x32xf32>
    %cst_76 = arith.constant 0.000000e+00 : f32
    %130 = vector.broadcast %cst_76 : f32 to vector<2x6x6x32xf32>
    %c0_77 = arith.constant 0 : index
    %c0_78 = arith.constant 0 : index
    %c0_79 = arith.constant 0 : index
    %c0_80 = arith.constant 0 : index
    %131 = vector.load %arg22[%c0_77, %c0_78, %c0_79, %c0_80] : memref<2x6x6x32xf32, #tpu.memory_space<vmem>>, vector<2x6x6x32xf32>
    tpu.vector_store %arg22[%c0_77, %c0_78, %c0_79, %c0_80], %130 {strides = array<i32>} : memref<2x6x6x32xf32, #tpu.memory_space<vmem>>, vector<2x6x6x32xf32>,
    %c0_81 = arith.constant 0 : index
    %c1_82 = arith.constant 1 : index
    %c1_83 = arith.constant 1 : index
    %c0_84 = arith.constant 0 : index
    %132 = vector.load %arg22[%c0_81, %c1_82, %c1_83, %c0_84] : memref<2x6x6x32xf32, #tpu.memory_space<vmem>>, vector<2x4x4x32xf32>
    tpu.vector_store %arg22[%c0_81, %c1_82, %c1_83, %c0_84], %129 {strides = array<i32>} : memref<2x6x6x32xf32, #tpu.memory_space<vmem>>, vector<2x4x4x32xf32>,
    %c0_85 = arith.constant 0 : index
    %c0_86 = arith.constant 0 : index
    %c0_87 = arith.constant 0 : index
    %c0_88 = arith.constant 0 : index
    %133 = vector.load %arg22[%c0_85, %c0_86, %c0_87, %c0_88] : memref<2x6x6x32xf32, #tpu.memory_space<vmem>>, vector<2x6x6x32xf32>
    %134 = vector.extract_strided_slice %133 {offsets = [0, 0, 0, 0], sizes = [2, 4, 4, 32], strides = [1, 1, 1, 1]} : vector<2x6x6x32xf32> to vector<2x4x4x32xf32>
    %135 = vector.shape_cast %134 : vector<2x4x4x32xf32> to vector<32x32xf32>
    %c0_89 = arith.constant 0 : index
    %c0_90 = arith.constant 0 : index
    %136 = vector.load %arg24[%c0_89, %c0_90] : memref<128x288xf32, #tpu.memory_space<vmem>>, vector<32x32xf32>
    tpu.vector_store %arg24[%c0_89, %c0_90], %135 {strides = array<i32>} : memref<128x288xf32, #tpu.memory_space<vmem>>, vector<32x32xf32>,
    %137 = vector.extract_strided_slice %133 {offsets = [0, 0, 1, 0], sizes = [2, 4, 4, 32], strides = [1, 1, 1, 1]} : vector<2x6x6x32xf32> to vector<2x4x4x32xf32>
    %138 = vector.shape_cast %137 : vector<2x4x4x32xf32> to vector<32x32xf32>
    %c0_91 = arith.constant 0 : index
    %c32_92 = arith.constant 32 : index
    %139 = vector.load %arg24[%c0_91, %c32_92] : memref<128x288xf32, #tpu.memory_space<vmem>>, vector<32x32xf32>
    tpu.vector_store %arg24[%c0_91, %c32_92], %138 {strides = array<i32>} : memref<128x288xf32, #tpu.memory_space<vmem>>, vector<32x32xf32>,
    %140 = vector.extract_strided_slice %133 {offsets = [0, 0, 2, 0], sizes = [2, 4, 4, 32], strides = [1, 1, 1, 1]} : vector<2x6x6x32xf32> to vector<2x4x4x32xf32>
    %141 = vector.shape_cast %140 : vector<2x4x4x32xf32> to vector<32x32xf32>
    %c0_93 = arith.constant 0 : index
    %c64_94 = arith.constant 64 : index
    %142 = vector.load %arg24[%c0_93, %c64_94] : memref<128x288xf32, #tpu.memory_space<vmem>>, vector<32x32xf32>
    tpu.vector_store %arg24[%c0_93, %c64_94], %141 {strides = array<i32>} : memref<128x288xf32, #tpu.memory_space<vmem>>, vector<32x32xf32>,
    %143 = vector.extract_strided_slice %133 {offsets = [0, 1, 0, 0], sizes = [2, 4, 4, 32], strides = [1, 1, 1, 1]} : vector<2x6x6x32xf32> to vector<2x4x4x32xf32>
    %144 = vector.shape_cast %143 : vector<2x4x4x32xf32> to vector<32x32xf32>
    %c0_95 = arith.constant 0 : index
    %c96_96 = arith.constant 96 : index
    %145 = vector.load %arg24[%c0_95, %c96_96] : memref<128x288xf32, #tpu.memory_space<vmem>>, vector<32x32xf32>
    tpu.vector_store %arg24[%c0_95, %c96_96], %144 {strides = array<i32>} : memref<128x288xf32, #tpu.memory_space<vmem>>, vector<32x32xf32>,
    %146 = vector.extract_strided_slice %133 {offsets = [0, 1, 1, 0], sizes = [2, 4, 4, 32], strides = [1, 1, 1, 1]} : vector<2x6x6x32xf32> to vector<2x4x4x32xf32>
    %147 = vector.shape_cast %146 : vector<2x4x4x32xf32> to vector<32x32xf32>
    %c0_97 = arith.constant 0 : index
    %c128_98 = arith.constant 128 : index
    %148 = vector.load %arg24[%c0_97, %c128_98] : memref<128x288xf32, #tpu.memory_space<vmem>>, vector<32x32xf32>
    tpu.vector_store %arg24[%c0_97, %c128_98], %147 {strides = array<i32>} : memref<128x288xf32, #tpu.memory_space<vmem>>, vector<32x32xf32>,
    %149 = vector.extract_strided_slice %133 {offsets = [0, 1, 2, 0], sizes = [2, 4, 4, 32], strides = [1, 1, 1, 1]} : vector<2x6x6x32xf32> to vector<2x4x4x32xf32>
    %150 = vector.shape_cast %149 : vector<2x4x4x32xf32> to vector<32x32xf32>
    %c0_99 = arith.constant 0 : index
    %c160_100 = arith.constant 160 : index
    %151 = vector.load %arg24[%c0_99, %c160_100] : memref<128x288xf32, #tpu.memory_space<vmem>>, vector<32x32xf32>
    tpu.vector_store %arg24[%c0_99, %c160_100], %150 {strides = array<i32>} : memref<128x288xf32, #tpu.memory_space<vmem>>, vector<32x32xf32>,
    %152 = vector.extract_strided_slice %133 {offsets = [0, 2, 0, 0], sizes = [2, 4, 4, 32], strides = [1, 1, 1, 1]} : vector<2x6x6x32xf32> to vector<2x4x4x32xf32>
    %153 = vector.shape_cast %152 : vector<2x4x4x32xf32> to vector<32x32xf32>
    %c0_101 = arith.constant 0 : index
    %c192_102 = arith.constant 192 : index
    %154 = vector.load %arg24[%c0_101, %c192_102] : memref<128x288xf32, #tpu.memory_space<vmem>>, vector<32x32xf32>
    tpu.vector_store %arg24[%c0_101, %c192_102], %153 {strides = array<i32>} : memref<128x288xf32, #tpu.memory_space<vmem>>, vector<32x32xf32>,
    %155 = vector.extract_strided_slice %133 {offsets = [0, 2, 1, 0], sizes = [2, 4, 4, 32], strides = [1, 1, 1, 1]} : vector<2x6x6x32xf32> to vector<2x4x4x32xf32>
    %156 = vector.shape_cast %155 : vector<2x4x4x32xf32> to vector<32x32xf32>
    %c0_103 = arith.constant 0 : index
    %c224_104 = arith.constant 224 : index
    %157 = vector.load %arg24[%c0_103, %c224_104] : memref<128x288xf32, #tpu.memory_space<vmem>>, vector<32x32xf32>
    tpu.vector_store %arg24[%c0_103, %c224_104], %156 {strides = array<i32>} : memref<128x288xf32, #tpu.memory_space<vmem>>, vector<32x32xf32>,
    %158 = vector.extract_strided_slice %133 {offsets = [0, 2, 2, 0], sizes = [2, 4, 4, 32], strides = [1, 1, 1, 1]} : vector<2x6x6x32xf32> to vector<2x4x4x32xf32>
    %159 = vector.shape_cast %158 : vector<2x4x4x32xf32> to vector<32x32xf32>
    %c0_105 = arith.constant 0 : index
    %c256_106 = arith.constant 256 : index
    %160 = vector.load %arg24[%c0_105, %c256_106] : memref<128x288xf32, #tpu.memory_space<vmem>>, vector<32x32xf32>
    tpu.vector_store %arg24[%c0_105, %c256_106], %159 {strides = array<i32>} : memref<128x288xf32, #tpu.memory_space<vmem>>, vector<32x32xf32>,
    %c0_107 = arith.constant 0 : index
    %c0_108 = arith.constant 0 : index
    %161 = vector.load %arg24[%c0_107, %c0_108] : memref<128x288xf32, #tpu.memory_space<vmem>>, vector<32x288xf32>
    %c0_109 = arith.constant 0 : index
    %c0_110 = arith.constant 0 : index
    %162 = vector.load %arg9[%c0_109, %c0_110] : memref<288x32xf32, #tpu.memory_space<vmem>>, vector<288x32xf32>
    %cst_111 = arith.constant dense<0.000000e+00> : vector<32x32xf32>
    %163 = tpu.matmul %161, %162, %cst_111 {dimension_numbers = #tpu.dot_dimension_numbers<[1], [0], [0], [1], [0, 0, 1, 1], [], []>} : vector<32x288xf32>, vector<288x32xf32>, vector<32x32xf32> -> vector<32x32xf32>
    %c0_112 = arith.constant 0 : index
    %c0_113 = arith.constant 0 : index
    %164 = vector.load %arg10[%c0_112, %c0_113] : memref<1x32xf32, #tpu.memory_space<vmem>>, vector<1x32xf32>
    %165 = vector.broadcast %164 : vector<1x32xf32> to vector<32x32xf32>
    %166 = arith.mulf %163, %165 : vector<32x32xf32>
    %c0_114 = arith.constant 0 : index
    %c0_115 = arith.constant 0 : index
    %167 = vector.load %arg11[%c0_114, %c0_115] : memref<1x32xf32, #tpu.memory_space<vmem>>, vector<1x32xf32>
    %168 = vector.broadcast %167 : vector<1x32xf32> to vector<32x32xf32>
    %169 = arith.addf %166, %168 : vector<32x32xf32>
    %cst_116 = arith.constant 0.000000e+00 : f32
    %170 = vector.broadcast %cst_116 : f32 to vector<32x32xf32>
    %171 = arith.maximumf %169, %170 : vector<32x32xf32>
    %172 = vector.shape_cast %171 : vector<32x32xf32> to vector<4x2x2x2x32xf32>
    %cst_117 = arith.constant dense<0xFF800000> : vector<4x2x2x32xf32>
    %173 = vector.multi_reduction <maximumf>, %172, %cst_117 [3] : vector<4x2x2x2x32xf32> to vector<4x2x2x32xf32>
    %cst_118 = arith.constant dense<0xFF800000> : vector<4x2x32xf32>
    %174 = vector.multi_reduction <maximumf>, %173, %cst_118 [1] : vector<4x2x2x32xf32> to vector<4x2x32xf32>
    %175 = vector.shape_cast %174 : vector<4x2x32xf32> to vector<2x2x2x32xf32>
    %cst_119 = arith.constant 0.000000e+00 : f32
    %176 = vector.broadcast %cst_119 : f32 to vector<2x4x4x32xf32>
    %c0_120 = arith.constant 0 : index
    %c0_121 = arith.constant 0 : index
    %c0_122 = arith.constant 0 : index
    %c0_123 = arith.constant 0 : index
    %177 = vector.load %arg23[%c0_120, %c0_121, %c0_122, %c0_123] : memref<2x4x4x32xf32, #tpu.memory_space<vmem>>, vector<2x4x4x32xf32>
    tpu.vector_store %arg23[%c0_120, %c0_121, %c0_122, %c0_123], %176 {strides = array<i32>} : memref<2x4x4x32xf32, #tpu.memory_space<vmem>>, vector<2x4x4x32xf32>,
    %c0_124 = arith.constant 0 : index
    %c1_125 = arith.constant 1 : index
    %c1_126 = arith.constant 1 : index
    %c0_127 = arith.constant 0 : index
    %178 = vector.load %arg23[%c0_124, %c1_125, %c1_126, %c0_127] : memref<2x4x4x32xf32, #tpu.memory_space<vmem>>, vector<2x2x2x32xf32>
    tpu.vector_store %arg23[%c0_124, %c1_125, %c1_126, %c0_127], %175 {strides = array<i32>} : memref<2x4x4x32xf32, #tpu.memory_space<vmem>>, vector<2x2x2x32xf32>,
    %c0_128 = arith.constant 0 : index
    %c0_129 = arith.constant 0 : index
    %c0_130 = arith.constant 0 : index
    %c0_131 = arith.constant 0 : index
    %179 = vector.load %arg23[%c0_128, %c0_129, %c0_130, %c0_131] : memref<2x4x4x32xf32, #tpu.memory_space<vmem>>, vector<2x4x4x32xf32>
    %180 = vector.extract_strided_slice %179 {offsets = [0, 0, 0, 0], sizes = [2, 2, 2, 32], strides = [1, 1, 1, 1]} : vector<2x4x4x32xf32> to vector<2x2x2x32xf32>
    %181 = vector.shape_cast %180 : vector<2x2x2x32xf32> to vector<8x32xf32>
    %c0_132 = arith.constant 0 : index
    %c0_133 = arith.constant 0 : index
    %182 = vector.load %arg24[%c0_132, %c0_133] : memref<128x288xf32, #tpu.memory_space<vmem>>, vector<8x32xf32>
    tpu.vector_store %arg24[%c0_132, %c0_133], %181 {strides = array<i32>} : memref<128x288xf32, #tpu.memory_space<vmem>>, vector<8x32xf32>,
    %183 = vector.extract_strided_slice %179 {offsets = [0, 0, 1, 0], sizes = [2, 2, 2, 32], strides = [1, 1, 1, 1]} : vector<2x4x4x32xf32> to vector<2x2x2x32xf32>
    %184 = vector.shape_cast %183 : vector<2x2x2x32xf32> to vector<8x32xf32>
    %c0_134 = arith.constant 0 : index
    %c32_135 = arith.constant 32 : index
    %185 = vector.load %arg24[%c0_134, %c32_135] : memref<128x288xf32, #tpu.memory_space<vmem>>, vector<8x32xf32>
    tpu.vector_store %arg24[%c0_134, %c32_135], %184 {strides = array<i32>} : memref<128x288xf32, #tpu.memory_space<vmem>>, vector<8x32xf32>,
    %186 = vector.extract_strided_slice %179 {offsets = [0, 0, 2, 0], sizes = [2, 2, 2, 32], strides = [1, 1, 1, 1]} : vector<2x4x4x32xf32> to vector<2x2x2x32xf32>
    %187 = vector.shape_cast %186 : vector<2x2x2x32xf32> to vector<8x32xf32>
    %c0_136 = arith.constant 0 : index
    %c64_137 = arith.constant 64 : index
    %188 = vector.load %arg24[%c0_136, %c64_137] : memref<128x288xf32, #tpu.memory_space<vmem>>, vector<8x32xf32>
    tpu.vector_store %arg24[%c0_136, %c64_137], %187 {strides = array<i32>} : memref<128x288xf32, #tpu.memory_space<vmem>>, vector<8x32xf32>,
    %189 = vector.extract_strided_slice %179 {offsets = [0, 1, 0, 0], sizes = [2, 2, 2, 32], strides = [1, 1, 1, 1]} : vector<2x4x4x32xf32> to vector<2x2x2x32xf32>
    %190 = vector.shape_cast %189 : vector<2x2x2x32xf32> to vector<8x32xf32>
    %c0_138 = arith.constant 0 : index
    %c96_139 = arith.constant 96 : index
    %191 = vector.load %arg24[%c0_138, %c96_139] : memref<128x288xf32, #tpu.memory_space<vmem>>, vector<8x32xf32>
    tpu.vector_store %arg24[%c0_138, %c96_139], %190 {strides = array<i32>} : memref<128x288xf32, #tpu.memory_space<vmem>>, vector<8x32xf32>,
    %192 = vector.extract_strided_slice %179 {offsets = [0, 1, 1, 0], sizes = [2, 2, 2, 32], strides = [1, 1, 1, 1]} : vector<2x4x4x32xf32> to vector<2x2x2x32xf32>
    %193 = vector.shape_cast %192 : vector<2x2x2x32xf32> to vector<8x32xf32>
    %c0_140 = arith.constant 0 : index
    %c128_141 = arith.constant 128 : index
    %194 = vector.load %arg24[%c0_140, %c128_141] : memref<128x288xf32, #tpu.memory_space<vmem>>, vector<8x32xf32>
    tpu.vector_store %arg24[%c0_140, %c128_141], %193 {strides = array<i32>} : memref<128x288xf32, #tpu.memory_space<vmem>>, vector<8x32xf32>,
    %195 = vector.extract_strided_slice %179 {offsets = [0, 1, 2, 0], sizes = [2, 2, 2, 32], strides = [1, 1, 1, 1]} : vector<2x4x4x32xf32> to vector<2x2x2x32xf32>
    %196 = vector.shape_cast %195 : vector<2x2x2x32xf32> to vector<8x32xf32>
    %c0_142 = arith.constant 0 : index
    %c160_143 = arith.constant 160 : index
    %197 = vector.load %arg24[%c0_142, %c160_143] : memref<128x288xf32, #tpu.memory_space<vmem>>, vector<8x32xf32>
    tpu.vector_store %arg24[%c0_142, %c160_143], %196 {strides = array<i32>} : memref<128x288xf32, #tpu.memory_space<vmem>>, vector<8x32xf32>,
    %198 = vector.extract_strided_slice %179 {offsets = [0, 2, 0, 0], sizes = [2, 2, 2, 32], strides = [1, 1, 1, 1]} : vector<2x4x4x32xf32> to vector<2x2x2x32xf32>
    %199 = vector.shape_cast %198 : vector<2x2x2x32xf32> to vector<8x32xf32>
    %c0_144 = arith.constant 0 : index
    %c192_145 = arith.constant 192 : index
    %200 = vector.load %arg24[%c0_144, %c192_145] : memref<128x288xf32, #tpu.memory_space<vmem>>, vector<8x32xf32>
    tpu.vector_store %arg24[%c0_144, %c192_145], %199 {strides = array<i32>} : memref<128x288xf32, #tpu.memory_space<vmem>>, vector<8x32xf32>,
    %201 = vector.extract_strided_slice %179 {offsets = [0, 2, 1, 0], sizes = [2, 2, 2, 32], strides = [1, 1, 1, 1]} : vector<2x4x4x32xf32> to vector<2x2x2x32xf32>
    %202 = vector.shape_cast %201 : vector<2x2x2x32xf32> to vector<8x32xf32>
    %c0_146 = arith.constant 0 : index
    %c224_147 = arith.constant 224 : index
    %203 = vector.load %arg24[%c0_146, %c224_147] : memref<128x288xf32, #tpu.memory_space<vmem>>, vector<8x32xf32>
    tpu.vector_store %arg24[%c0_146, %c224_147], %202 {strides = array<i32>} : memref<128x288xf32, #tpu.memory_space<vmem>>, vector<8x32xf32>,
    %204 = vector.extract_strided_slice %179 {offsets = [0, 2, 2, 0], sizes = [2, 2, 2, 32], strides = [1, 1, 1, 1]} : vector<2x4x4x32xf32> to vector<2x2x2x32xf32>
    %205 = vector.shape_cast %204 : vector<2x2x2x32xf32> to vector<8x32xf32>
    %c0_148 = arith.constant 0 : index
    %c256_149 = arith.constant 256 : index
    %206 = vector.load %arg24[%c0_148, %c256_149] : memref<128x288xf32, #tpu.memory_space<vmem>>, vector<8x32xf32>
    tpu.vector_store %arg24[%c0_148, %c256_149], %205 {strides = array<i32>} : memref<128x288xf32, #tpu.memory_space<vmem>>, vector<8x32xf32>,
    %c0_150 = arith.constant 0 : index
    %c0_151 = arith.constant 0 : index
    %207 = vector.load %arg24[%c0_150, %c0_151] : memref<128x288xf32, #tpu.memory_space<vmem>>, vector<8x288xf32>
    %c0_152 = arith.constant 0 : index
    %c0_153 = arith.constant 0 : index
    %208 = vector.load %arg12[%c0_152, %c0_153] : memref<288x32xf32, #tpu.memory_space<vmem>>, vector<288x32xf32>
    %cst_154 = arith.constant dense<0.000000e+00> : vector<8x32xf32>
    %209 = tpu.matmul %207, %208, %cst_154 {dimension_numbers = #tpu.dot_dimension_numbers<[1], [0], [0], [1], [0, 0, 1, 1], [], []>} : vector<8x288xf32>, vector<288x32xf32>, vector<8x32xf32> -> vector<8x32xf32>
    %c0_155 = arith.constant 0 : index
    %c0_156 = arith.constant 0 : index
    %210 = vector.load %arg13[%c0_155, %c0_156] : memref<1x32xf32, #tpu.memory_space<vmem>>, vector<1x32xf32>
    %211 = vector.broadcast %210 : vector<1x32xf32> to vector<8x32xf32>
    %212 = arith.mulf %209, %211 : vector<8x32xf32>
    %c0_157 = arith.constant 0 : index
    %c0_158 = arith.constant 0 : index
    %213 = vector.load %arg14[%c0_157, %c0_158] : memref<1x32xf32, #tpu.memory_space<vmem>>, vector<1x32xf32>
    %214 = vector.broadcast %213 : vector<1x32xf32> to vector<8x32xf32>
    %215 = arith.addf %212, %214 : vector<8x32xf32>
    %cst_159 = arith.constant 0.000000e+00 : f32
    %216 = vector.broadcast %cst_159 : f32 to vector<8x32xf32>
    %217 = arith.maximumf %215, %216 : vector<8x32xf32>
    %218 = vector.shape_cast %217 : vector<8x32xf32> to vector<2x2x1x2x32xf32>
    %cst_160 = arith.constant dense<0xFF800000> : vector<2x2x1x32xf32>
    %219 = vector.multi_reduction <maximumf>, %218, %cst_160 [3] : vector<2x2x1x2x32xf32> to vector<2x2x1x32xf32>
    %cst_161 = arith.constant dense<0xFF800000> : vector<2x1x32xf32>
    %220 = vector.multi_reduction <maximumf>, %219, %cst_161 [1] : vector<2x2x1x32xf32> to vector<2x1x32xf32>
    %221 = vector.shape_cast %220 : vector<2x1x32xf32> to vector<2x1x1x32xf32>
    %222 = vector.shape_cast %221 : vector<2x1x1x32xf32> to vector<2x32xf32>
    %c0_162 = arith.constant 0 : index
    %c0_163 = arith.constant 0 : index
    %223 = vector.load %arg15[%c0_162, %c0_163] : memref<32x8xf32, #tpu.memory_space<vmem>>, vector<32x8xf32>
    %cst_164 = arith.constant dense<0.000000e+00> : vector<2x8xf32>
    %224 = tpu.matmul %222, %223, %cst_164 {dimension_numbers = #tpu.dot_dimension_numbers<[1], [0], [0], [1], [0, 0, 1, 1], [], []>} : vector<2x32xf32>, vector<32x8xf32>, vector<2x8xf32> -> vector<2x8xf32>
    %c0_165 = arith.constant 0 : index
    %c0_166 = arith.constant 0 : index
    %225 = vector.load %arg16[%c0_165, %c0_166] : memref<1x8xf32, #tpu.memory_space<vmem>>, vector<1x8xf32>
    %226 = vector.broadcast %225 : vector<1x8xf32> to vector<2x8xf32>
    %227 = arith.addf %224, %226 : vector<2x8xf32>
    %228 = vector.extract_strided_slice %227 {offsets = [0, 0], sizes = [1, 8], strides = [1, 1]} : vector<2x8xf32> to vector<1x8xf32>
    %229 = vector.extract_strided_slice %227 {offsets = [1, 0], sizes = [1, 8], strides = [1, 1]} : vector<2x8xf32> to vector<1x8xf32>
    %230 = arith.subf %228, %229 : vector<1x8xf32>
    %231 = arith.mulf %230, %230 : vector<1x8xf32>
    %c0_167 = arith.constant 0 : index
    %c0_168 = arith.constant 0 : index
    %232 = vector.load %arg17[%c0_167, %c0_168] : memref<1x8xf32, #tpu.memory_space<vmem>>, vector<1x8xf32>
    %233 = arith.mulf %231, %232 : vector<1x8xf32>
    %cst_169 = arith.constant dense<0.000000e+00> : vector<1xf32>
    %234 = vector.multi_reduction <add>, %233, %cst_169 [1] : vector<1x8xf32> to vector<1xf32>
    %235 = vector.shape_cast %234 : vector<1xf32> to vector<1x1xf32>
    %c0_170 = arith.constant 0 : index
    %c0_171 = arith.constant 0 : index
    %236 = vector.load %arg18[%c0_170, %c0_171] : memref<1x1xf32, #tpu.memory_space<vmem>>, vector<1x1xf32>
    %237 = arith.addf %235, %236 : vector<1x1xf32>
    %238 = vector.shape_cast %237 : vector<1x1xf32> to vector<1x1x1xf32>
    %c0_172 = arith.constant 0 : index
    %c0_173 = arith.constant 0 : index
    %c0_174 = arith.constant 0 : index
    %239 = vector.load %arg19[%c0_172, %c0_173, %c0_174] : memref<1x1x1xf32, #tpu.memory_space<vmem>>, vector<1x1x1xf32>
    tpu.vector_store %arg19[%c0_172, %c0_173, %c0_174], %238 {strides = array<i32>} : memref<1x1x1xf32, #tpu.memory_space<vmem>>, vector<1x1x1xf32>,
    return
  }
  func.func @transform_0(%arg0: i32) -> (i32, i32, i32, i32) {
    %c0_i32 = arith.constant 0 : i32
    %c0_i32_0 = arith.constant 0 : i32
    %c0_i32_1 = arith.constant 0 : i32
    %c0_i32_2 = arith.constant 0 : i32
    return %arg0, %c0_i32, %c0_i32_0, %c0_i32_1 : i32, i32, i32, i32
  }
  func.func @transform_1(%arg0: i32) -> (i32, i32, i32, i32) {
    %c0_i32 = arith.constant 0 : i32
    %c0_i32_0 = arith.constant 0 : i32
    %c0_i32_1 = arith.constant 0 : i32
    %c0_i32_2 = arith.constant 0 : i32
    return %arg0, %c0_i32, %c0_i32_0, %c0_i32_1 : i32, i32, i32, i32
  }
  func.func @transform_2(%arg0: i32) -> (i32, i32) {
    %c0_i32 = arith.constant 0 : i32
    %c0_i32_0 = arith.constant 0 : i32
    %c0_i32_1 = arith.constant 0 : i32
    return %c0_i32, %c0_i32_0 : i32, i32
  }
  func.func @transform_3(%arg0: i32) -> (i32, i32) {
    %c0_i32 = arith.constant 0 : i32
    %c0_i32_0 = arith.constant 0 : i32
    %c0_i32_1 = arith.constant 0 : i32
    return %c0_i32, %c0_i32_0 : i32, i32
  }
  func.func @transform_4(%arg0: i32) -> (i32, i32) {
    %c0_i32 = arith.constant 0 : i32
    %c0_i32_0 = arith.constant 0 : i32
    %c0_i32_1 = arith.constant 0 : i32
    return %c0_i32, %c0_i32_0 : i32, i32
  }
  func.func @transform_5(%arg0: i32) -> (i32, i32) {
    %c0_i32 = arith.constant 0 : i32
    %c0_i32_0 = arith.constant 0 : i32
    %c0_i32_1 = arith.constant 0 : i32
    return %c0_i32, %c0_i32_0 : i32, i32
  }
  func.func @transform_6(%arg0: i32) -> (i32, i32) {
    %c0_i32 = arith.constant 0 : i32
    %c0_i32_0 = arith.constant 0 : i32
    %c0_i32_1 = arith.constant 0 : i32
    return %c0_i32, %c0_i32_0 : i32, i32
  }
  func.func @transform_7(%arg0: i32) -> (i32, i32) {
    %c0_i32 = arith.constant 0 : i32
    %c0_i32_0 = arith.constant 0 : i32
    %c0_i32_1 = arith.constant 0 : i32
    return %c0_i32, %c0_i32_0 : i32, i32
  }
  func.func @transform_8(%arg0: i32) -> (i32, i32) {
    %c0_i32 = arith.constant 0 : i32
    %c0_i32_0 = arith.constant 0 : i32
    %c0_i32_1 = arith.constant 0 : i32
    return %c0_i32, %c0_i32_0 : i32, i32
  }
  func.func @transform_9(%arg0: i32) -> (i32, i32) {
    %c0_i32 = arith.constant 0 : i32
    %c0_i32_0 = arith.constant 0 : i32
    %c0_i32_1 = arith.constant 0 : i32
    return %c0_i32, %c0_i32_0 : i32, i32
  }
  func.func @transform_10(%arg0: i32) -> (i32, i32) {
    %c0_i32 = arith.constant 0 : i32
    %c0_i32_0 = arith.constant 0 : i32
    %c0_i32_1 = arith.constant 0 : i32
    return %c0_i32, %c0_i32_0 : i32, i32
  }
  func.func @transform_11(%arg0: i32) -> (i32, i32) {
    %c0_i32 = arith.constant 0 : i32
    %c0_i32_0 = arith.constant 0 : i32
    %c0_i32_1 = arith.constant 0 : i32
    return %c0_i32, %c0_i32_0 : i32, i32
  }
  func.func @transform_12(%arg0: i32) -> (i32, i32) {
    %c0_i32 = arith.constant 0 : i32
    %c0_i32_0 = arith.constant 0 : i32
    %c0_i32_1 = arith.constant 0 : i32
    return %c0_i32, %c0_i32_0 : i32, i32
  }
  func.func @transform_13(%arg0: i32) -> (i32, i32) {
    %c0_i32 = arith.constant 0 : i32
    %c0_i32_0 = arith.constant 0 : i32
    %c0_i32_1 = arith.constant 0 : i32
    return %c0_i32, %c0_i32_0 : i32, i32
  }
  func.func @transform_14(%arg0: i32) -> (i32, i32) {
    %c0_i32 = arith.constant 0 : i32
    %c0_i32_0 = arith.constant 0 : i32
    %c0_i32_1 = arith.constant 0 : i32
    return %c0_i32, %c0_i32_0 : i32, i32
  }
  func.func @transform_15(%arg0: i32) -> (i32, i32) {
    %c0_i32 = arith.constant 0 : i32
    %c0_i32_0 = arith.constant 0 : i32
    %c0_i32_1 = arith.constant 0 : i32
    return %c0_i32, %c0_i32_0 : i32, i32
  }
  func.func @transform_16(%arg0: i32) -> (i32, i32) {
    %c0_i32 = arith.constant 0 : i32
    %c0_i32_0 = arith.constant 0 : i32
    %c0_i32_1 = arith.constant 0 : i32
    return %c0_i32, %c0_i32_0 : i32, i32
  }
  func.func @transform_17(%arg0: i32) -> (i32, i32) {
    %c0_i32 = arith.constant 0 : i32
    %c0_i32_0 = arith.constant 0 : i32
    %c0_i32_1 = arith.constant 0 : i32
    return %c0_i32, %c0_i32_0 : i32, i32
  }
  func.func @transform_18(%arg0: i32) -> (i32, i32, i32) {
    %c0_i32 = arith.constant 0 : i32
    %c0_i32_0 = arith.constant 0 : i32
    %c0_i32_1 = arith.constant 0 : i32
    return %arg0, %c0_i32, %c0_i32_0 : i32, i32, i32
  }
}

</mosaic_0001>

<llo_original>
// kernel: _forward.1
$region0: #{_forward.1}
  #allocation0 [shape = 'u32[]', space=smem, size = 0x4, offset = 0x4, fixed_abs, tag = 'smem constant byte address 0x4 - core index']
  #allocation1 [shape = 'u32[72,128]{1,0:T(1,128)}', space=vmem, size = 0x9000, scoped, tag = 'internal scratch']
  #allocation2 [shape = 'f32[2,18,18,1]{3,2,1,0:T(8,128)}', space=vmem, size = 0x6c000, scoped, tag = 'scratch operand']
  #allocation3 [shape = 'f32[2,10,10,32]{3,2,1,0:T(8,128)}', space=vmem, size = 0x28000, scoped, tag = 'scratch operand']
  #allocation4 [shape = 'f32[2,6,6,32]{3,2,1,0:T(8,128)}', space=vmem, size = 0xc000, scoped, tag = 'scratch operand']
  #allocation5 [shape = 'f32[2,4,4,32]{3,2,1,0:T(4,128)}', space=vmem, size = 0x4000, scoped, tag = 'scratch operand']
  #allocation6 [shape = 'f32[128,288]{1,0:T(8,128)}', space=vmem, size = 0x30000, scoped, tag = 'scratch operand']
  #allocation7 [shape = 'f32[1,1]{1,0:T(1,128)S(1)}', space=vmem, size = 0x200, scoped, tag = 'scoped memory for _forward.1']
  %s0 = inlined_call_operand.vmem [shape: f32[2,16,16,1], index: 0, kind: input, shape index: {}]
  %s1 = inlined_call_operand.vmem [shape: f32[2,16,16,1], index: 1, kind: input, shape index: {}]
  %s2 = inlined_call_operand.vmem [shape: f32[9,32], index: 2, kind: input, shape index: {}]
  %s3 = inlined_call_operand.vmem [shape: f32[1,32], index: 3, kind: input, shape index: {}, may-alias: {3,6,9,12}]
  %s4 = inlined_call_operand.vmem [shape: f32[1,32], index: 4, kind: input, shape index: {}]
  %s5 = inlined_call_operand.vmem [shape: f32[288,32], index: 5, kind: input, shape index: {}]
  %s6 = inlined_call_operand.vmem [shape: f32[1,32], index: 6, kind: input, shape index: {}, may-alias: {3,6,9,12}]
  %s7 = inlined_call_operand.vmem [shape: f32[1,32], index: 7, kind: input, shape index: {}]
  %s8 = inlined_call_operand.vmem [shape: f32[288,32], index: 8, kind: input, shape index: {}]
  %s9 = inlined_call_operand.vmem [shape: f32[1,32], index: 9, kind: input, shape index: {}, may-alias: {3,6,9,12}]
  %s10 = inlined_call_operand.vmem [shape: f32[1,32], index: 10, kind: input, shape index: {}]
  %s11 = inlined_call_operand.vmem [shape: f32[288,32], index: 11, kind: input, shape index: {}]
  %s12 = inlined_call_operand.vmem [shape: f32[1,32], index: 12, kind: input, shape index: {}, may-alias: {3,6,9,12}]
  %s13 = inlined_call_operand.vmem [shape: f32[1,32], index: 13, kind: input, shape index: {}]
  %s14 = inlined_call_operand.vmem [shape: f32[32,8], index: 14, kind: input, shape index: {}]
  %s15 = inlined_call_operand.vmem [shape: f32[1,8], index: 15, kind: input, shape index: {}]
  %s16 = inlined_call_operand.vmem [shape: f32[1,8], index: 16, kind: input, shape index: {}]
  %s17 = inlined_call_operand.<no memory space> [shape: f32[1,1], index: 17, kind: input, shape index: {}]
  %s18 = inlined_call_operand.vmem [shape: f32[2,1,1], index: 18, kind: output, shape index: {}]
  %s19 = sld [smem:[#allocation0]]
  $region105: #{_forward.1} parent=0
    _
  %s21 = ssub.s32 1, %s19
  %s22 = scalar_select 0, %s21, %s19
  %v23 = vstv %s17
  %24 = vst [vmem:[#allocation7] sm:$0x1] %v23
  loop: start=0, step=1, limit=4
  $region2: #{_forward.1} parent=0 // loop_pre_header
    _
  $region3: #{_forward.1} parent=0 // loop_header
    %s26 = sphi 0, %s30
    %p27 = scmp.ge.s32.totalorder %s26, 4
    %s36 = sphi 0, %s38
    %s39 = sphi 0, %s36
    %s40 = sphi 0, %s39
    %s56 = sphi 0, %s40
    %s62 = sphi 0, %s64
    %s65 = sphi 0, %s62
    %s66 = sphi 0, %s65
    %s82 = sphi 0, %s66
    %s86 = sphi 0, %s86
    %s88 = sphi 0, %s86
    %s89 = sphi 0, %s88
    %s103 = sphi 0, %s89
    %s107 = sphi 0, %s107
    %s109 = sphi 0, %s107
    %s110 = sphi 0, %s109
    %s124 = sphi 0, %s110
    %s128 = sphi 0, %s128
    %s130 = sphi 0, %s128
    %s131 = sphi 0, %s130
    %s145 = sphi 0, %s131
    %s149 = sphi 0, %s149
    %s151 = sphi 0, %s149
    %s152 = sphi 0, %s151
    %s166 = sphi 0, %s152
    %s170 = sphi 0, %s170
    %s172 = sphi 0, %s170
    %s173 = sphi 0, %s172
    %s187 = sphi 0, %s173
    %s191 = sphi 0, %s191
    %s193 = sphi 0, %s191
    %s194 = sphi 0, %s193
    %s208 = sphi 0, %s194
    %s212 = sphi 0, %s212
    %s214 = sphi 0, %s212
    %s215 = sphi 0, %s214
    %s229 = sphi 0, %s215
    %s233 = sphi 0, %s233
    %s235 = sphi 0, %s233
    %s236 = sphi 0, %s235
    %s250 = sphi 0, %s236
    %s254 = sphi 0, %s254
    %s256 = sphi 0, %s254
    %s257 = sphi 0, %s256
    %s271 = sphi 0, %s257
    %s275 = sphi 0, %s275
    %s277 = sphi 0, %s275
    %s278 = sphi 0, %s277
    %s292 = sphi 0, %s278
    %s296 = sphi 0, %s296
    %s298 = sphi 0, %s296
    %s299 = sphi 0, %s298
    %s313 = sphi 0, %s299
    %s317 = sphi 0, %s317
    %s319 = sphi 0, %s317
    %s320 = sphi 0, %s319
    %s334 = sphi 0, %s320
    %s338 = sphi 0, %s338
    %s340 = sphi 0, %s338
    %s341 = sphi 0, %s340
    %s355 = sphi 0, %s341
    %s359 = sphi 0, %s359
    %s361 = sphi 0, %s359
    %s362 = sphi 0, %s361
    %s376 = sphi 0, %s362
    %s380 = sphi 0, %s380
    %s382 = sphi 0, %s380
    %s383 = sphi 0, %s382
    %s397 = sphi 0, %s383
    %s401 = sphi 0, %s401
    %s403 = sphi 0, %s401
    %s404 = sphi 0, %s403
    %s418 = sphi 0, %s404
    %s424 = sphi 0, %s426
    %s427 = sphi 0, %s424
    %s428 = sphi 0, %s427
    %s444 = sphi 0, %s428
  $region4: #{_forward.1} parent=0 // loop_header_branch
    %29 = sbr.rel (%p27) target = $region8
  $region5: #{_forward.1} parent=0 // loop_body
    %s31 = ssub.s32 %s26, 1
    %s32 = ssub.s32 %s26, 2
    %s33 = sadd.s32 %s26, 1
    %s34 = ssub.s32 %s26, %s33
    %p35 = scmp.eq.s32.totalorder %s34, 0
    %s37 = sadd.s32 %s36, 1
    %s38 = scalar_select %p35, %s36, %s37
    %p41 = pneg %p35
    %p42 = scmp.eq.s32.totalorder %s26, 1
    %p43 = por %p41, %p42
    %p44 = scmp.ne.s32.totalorder %s36, %s39
    %p45 = scmp.eq.s32.totalorder %s26, 0
    %p46 = por %p44, %p45
    %p47 = scmp.ne.s32.totalorder %s36, %s39
    %p48 = scmp.eq.s32.totalorder %s31, 1
    %p49 = por %p47, %p48
    %p50 = scmp.ne.s32.totalorder %s39, %s40
    %p51 = scmp.eq.s32.totalorder %s31, 0
    %p52 = por %p50, %p51
    %p53 = scmp.ne.s32.totalorder %s39, %s40
    %p54 = scmp.eq.s32.totalorder %s32, 1
    %p55 = por %p53, %p54
    %p57 = scmp.ne.s32.totalorder %s40, %s56
    %p58 = scmp.eq.s32.totalorder %s32, 0
    %p59 = por %p57, %p58
    %s60 = ssub.s32 %s26, %s33
    %p61 = scmp.eq.s32.totalorder %s60, 0
    %s63 = sadd.s32 %s62, 1
    %s64 = scalar_select %p61, %s62, %s63
    %p67 = pneg %p61
    %p68 = scmp.eq.s32.totalorder %s26, 1
    %p69 = por %p67, %p68
    %p70 = scmp.ne.s32.totalorder %s62, %s65
    %p71 = scmp.eq.s32.totalorder %s26, 0
    %p72 = por %p70, %p71
    %p73 = scmp.ne.s32.totalorder %s62, %s65
    %p74 = scmp.eq.s32.totalorder %s31, 1
    %p75 = por %p73, %p74
    %p76 = scmp.ne.s32.totalorder %s65, %s66
    %p77 = scmp.eq.s32.totalorder %s31, 0
    %p78 = por %p76, %p77
    %p79 = scmp.ne.s32.totalorder %s65, %s66
    %p80 = scmp.eq.s32.totalorder %s32, 1
    %p81 = por %p79, %p80
    %p83 = scmp.ne.s32.totalorder %s66, %s82
    %p84 = scmp.eq.s32.totalorder %s32, 0
    %p85 = por %p83, %p84
    %s87 = sadd.s32 %s86, 1
    %p90 = scmp.eq.s32.totalorder %s26, 1
    %p91 = scmp.ne.s32.totalorder %s86, %s88
    %p92 = scmp.eq.s32.totalorder %s26, 0
    %p93 = por %p91, %p92
    %p94 = scmp.ne.s32.totalorder %s86, %s88
    %p95 = scmp.eq.s32.totalorder %s31, 1
    %p96 = por %p94, %p95
    %p97 = scmp.ne.s32.totalorder %s88, %s89
    %p98 = scmp.eq.s32.totalorder %s31, 0
    %p99 = por %p97, %p98
    %p100 = scmp.ne.s32.totalorder %s88, %s89
    %p101 = scmp.eq.s32.totalorder %s32, 1
    %p102 = por %p100, %p101
    %p104 = scmp.ne.s32.totalorder %s89, %s103
    %p105 = scmp.eq.s32.totalorder %s32, 0
    %p106 = por %p104, %p105
    %s108 = sadd.s32 %s107, 1
    %p111 = scmp.eq.s32.totalorder %s26, 1
    %p112 = scmp.ne.s32.totalorder %s107, %s109
    %p113 = scmp.eq.s32.totalorder %s26, 0
    %p114 = por %p112, %p113
    %p115 = scmp.ne.s32.totalorder %s107, %s109
    %p116 = scmp.eq.s32.totalorder %s31, 1
    %p117 = por %p115, %p116
    %p118 = scmp.ne.s32.totalorder %s109, %s110
    %p119 = scmp.eq.s32.totalorder %s31, 0
    %p120 = por %p118, %p119
    %p121 = scmp.ne.s32.totalorder %s109, %s110
    %p122 = scmp.eq.s32.totalorder %s32, 1
    %p123 = por %p121, %p122
    %p125 = scmp.ne.s32.totalorder %s110, %s124
    %p126 = scmp.eq.s32.totalorder %s32, 0
    %p127 = por %p125, %p126
    %s129 = sadd.s32 %s128, 1
    %p132 = scmp.eq.s32.totalorder %s26, 1
    %p133 = scmp.ne.s32.totalorder %s128, %s130
    %p134 = scmp.eq.s32.totalorder %s26, 0
    %p135 = por %p133, %p134
    %p136 = scmp.ne.s32.totalorder %s128, %s130
    %p137 = scmp.eq.s32.totalorder %s31, 1
    %p138 = por %p136, %p137
    %p139 = scmp.ne.s32.totalorder %s130, %s131
    %p140 = scmp.eq.s32.totalorder %s31, 0
    %p141 = por %p139, %p140
    %p142 = scmp.ne.s32.totalorder %s130, %s131
    %p143 = scmp.eq.s32.totalorder %s32, 1
    %p144 = por %p142, %p143
    %p146 = scmp.ne.s32.totalorder %s131, %s145
    %p147 = scmp.eq.s32.totalorder %s32, 0
    %p148 = por %p146, %p147
    %s150 = sadd.s32 %s149, 1
    %p153 = scmp.eq.s32.totalorder %s26, 1
    %p154 = scmp.ne.s32.totalorder %s149, %s151
    %p155 = scmp.eq.s32.totalorder %s26, 0
    %p156 = por %p154, %p155
    %p157 = scmp.ne.s32.totalorder %s149, %s151
    %p158 = scmp.eq.s32.totalorder %s31, 1
    %p159 = por %p157, %p158
    %p160 = scmp.ne.s32.totalorder %s151, %s152
    %p161 = scmp.eq.s32.totalorder %s31, 0
    %p162 = por %p160, %p161
    %p163 = scmp.ne.s32.totalorder %s151, %s152
    %p164 = scmp.eq.s32.totalorder %s32, 1
    %p165 = por %p163, %p164
    %p167 = scmp.ne.s32.totalorder %s152, %s166
    %p168 = scmp.eq.s32.totalorder %s32, 0
    %p169 = por %p167, %p168
    %s171 = sadd.s32 %s170, 1
    %p174 = scmp.eq.s32.totalorder %s26, 1
    %p175 = scmp.ne.s32.totalorder %s170, %s172
    %p176 = scmp.eq.s32.totalorder %s26, 0
    %p177 = por %p175, %p176
    %p178 = scmp.ne.s32.totalorder %s170, %s172
    %p179 = scmp.eq.s32.totalorder %s31, 1
    %p180 = por %p178, %p179
    %p181 = scmp.ne.s32.totalorder %s172, %s173
    %p182 = scmp.eq.s32.totalorder %s31, 0
    %p183 = por %p181, %p182
    %p184 = scmp.ne.s32.totalorder %s172, %s173
    %p185 = scmp.eq.s32.totalorder %s32, 1
    %p186 = por %p184, %p185
    %p188 = scmp.ne.s32.totalorder %s173, %s187
    %p189 = scmp.eq.s32.totalorder %s32, 0
    %p190 = por %p188, %p189
    %s192 = sadd.s32 %s191, 1
    %p195 = scmp.eq.s32.totalorder %s26, 1
    %p196 = scmp.ne.s32.totalorder %s191, %s193
    %p197 = scmp.eq.s32.totalorder %s26, 0
    %p198 = por %p196, %p197
    %p199 = scmp.ne.s32.totalorder %s191, %s193
    %p200 = scmp.eq.s32.totalorder %s31, 1
    %p201 = por %p199, %p200
    %p202 = scmp.ne.s32.totalorder %s193, %s194
    %p203 = scmp.eq.s32.totalorder %s31, 0
    %p204 = por %p202, %p203
    %p205 = scmp.ne.s32.totalorder %s193, %s194
    %p206 = scmp.eq.s32.totalorder %s32, 1
    %p207 = por %p205, %p206
    %p209 = scmp.ne.s32.totalorder %s194, %s208
    %p210 = scmp.eq.s32.totalorder %s32, 0
    %p211 = por %p209, %p210
    %s213 = sadd.s32 %s212, 1
    %p216 = scmp.eq.s32.totalorder %s26, 1
    %p217 = scmp.ne.s32.totalorder %s212, %s214
    %p218 = scmp.eq.s32.totalorder %s26, 0
    %p219 = por %p217, %p218
    %p220 = scmp.ne.s32.totalorder %s212, %s214
    %p221 = scmp.eq.s32.totalorder %s31, 1
    %p222 = por %p220, %p221
    %p223 = scmp.ne.s32.totalorder %s214, %s215
    %p224 = scmp.eq.s32.totalorder %s31, 0
    %p225 = por %p223, %p224
    %p226 = scmp.ne.s32.totalorder %s214, %s215
    %p227 = scmp.eq.s32.totalorder %s32, 1
    %p228 = por %p226, %p227
    %p230 = scmp.ne.s32.totalorder %s215, %s229
    %p231 = scmp.eq.s32.totalorder %s32, 0
    %p232 = por %p230, %p231
    %s234 = sadd.s32 %s233, 1
    %p237 = scmp.eq.s32.totalorder %s26, 1
    %p238 = scmp.ne.s32.totalorder %s233, %s235
    %p239 = scmp.eq.s32.totalorder %s26, 0
    %p240 = por %p238, %p239
    %p241 = scmp.ne.s32.totalorder %s233, %s235
    %p242 = scmp.eq.s32.totalorder %s31, 1
    %p243 = por %p241, %p242
    %p244 = scmp.ne.s32.totalorder %s235, %s236
    %p245 = scmp.eq.s32.totalorder %s31, 0
    %p246 = por %p244, %p245
    %p247 = scmp.ne.s32.totalorder %s235, %s236
    %p248 = scmp.eq.s32.totalorder %s32, 1
    %p249 = por %p247, %p248
    %p251 = scmp.ne.s32.totalorder %s236, %s250
    %p252 = scmp.eq.s32.totalorder %s32, 0
    %p253 = por %p251, %p252
    %s255 = sadd.s32 %s254, 1
    %p258 = scmp.eq.s32.totalorder %s26, 1
    %p259 = scmp.ne.s32.totalorder %s254, %s256
    %p260 = scmp.eq.s32.totalorder %s26, 0
    %p261 = por %p259, %p260
    %p262 = scmp.ne.s32.totalorder %s254, %s256
    %p263 = scmp.eq.s32.totalorder %s31, 1
    %p264 = por %p262, %p263
    %p265 = scmp.ne.s32.totalorder %s256, %s257
    %p266 = scmp.eq.s32.totalorder %s31, 0
    %p267 = por %p265, %p266
    %p268 = scmp.ne.s32.totalorder %s256, %s257
    %p269 = scmp.eq.s32.totalorder %s32, 1
    %p270 = por %p268, %p269
    %p272 = scmp.ne.s32.totalorder %s257, %s271
    %p273 = scmp.eq.s32.totalorder %s32, 0
    %p274 = por %p272, %p273
    %s276 = sadd.s32 %s275, 1
    %p279 = scmp.eq.s32.totalorder %s26, 1
    %p280 = scmp.ne.s32.totalorder %s275, %s277
    %p281 = scmp.eq.s32.totalorder %s26, 0
    %p282 = por %p280, %p281
    %p283 = scmp.ne.s32.totalorder %s275, %s277
    %p284 = scmp.eq.s32.totalorder %s31, 1
    %p285 = por %p283, %p284
    %p286 = scmp.ne.s32.totalorder %s277, %s278
    %p287 = scmp.eq.s32.totalorder %s31, 0
    %p288 = por %p286, %p287
    %p289 = scmp.ne.s32.totalorder %s277, %s278
    %p290 = scmp.eq.s32.totalorder %s32, 1
    %p291 = por %p289, %p290
    %p293 = scmp.ne.s32.totalorder %s278, %s292
    %p294 = scmp.eq.s32.totalorder %s32, 0
    %p295 = por %p293, %p294
    %s297 = sadd.s32 %s296, 1
    %p300 = scmp.eq.s32.totalorder %s26, 1
    %p301 = scmp.ne.s32.totalorder %s296, %s298
    %p302 = scmp.eq.s32.totalorder %s26, 0
    %p303 = por %p301, %p302
    %p304 = scmp.ne.s32.totalorder %s296, %s298
    %p305 = scmp.eq.s32.totalorder %s31, 1
    %p306 = por %p304, %p305
    %p307 = scmp.ne.s32.totalorder %s298, %s299
    %p308 = scmp.eq.s32.totalorder %s31, 0
    %p309 = por %p307, %p308
    %p310 = scmp.ne.s32.totalorder %s298, %s299
    %p311 = scmp.eq.s32.totalorder %s32, 1
    %p312 = por %p310, %p311
    %p314 = scmp.ne.s32.totalorder %s299, %s313
    %p315 = scmp.eq.s32.totalorder %s32, 0
    %p316 = por %p314, %p315
    %s318 = sadd.s32 %s317, 1
    %p321 = scmp.eq.s32.totalorder %s26, 1
    %p322 = scmp.ne.s32.totalorder %s317, %s319
    %p323 = scmp.eq.s32.totalorder %s26, 0
    %p324 = por %p322, %p323
    %p325 = scmp.ne.s32.totalorder %s317, %s319
    %p326 = scmp.eq.s32.totalorder %s31, 1
    %p327 = por %p325, %p326
    %p328 = scmp.ne.s32.totalorder %s319, %s320
    %p329 = scmp.eq.s32.totalorder %s31, 0
    %p330 = por %p328, %p329
    %p331 = scmp.ne.s32.totalorder %s319, %s320
    %p332 = scmp.eq.s32.totalorder %s32, 1
    %p333 = por %p331, %p332
    %p335 = scmp.ne.s32.totalorder %s320, %s334
    %p336 = scmp.eq.s32.totalorder %s32, 0
    %p337 = por %p335, %p336
    %s339 = sadd.s32 %s338, 1
    %p342 = scmp.eq.s32.totalorder %s26, 1
    %p343 = scmp.ne.s32.totalorder %s338, %s340
    %p344 = scmp.eq.s32.totalorder %s26, 0
    %p345 = por %p343, %p344
    %p346 = scmp.ne.s32.totalorder %s338, %s340
    %p347 = scmp.eq.s32.totalorder %s31, 1
    %p348 = por %p346, %p347
    %p349 = scmp.ne.s32.totalorder %s340, %s341
    %p350 = scmp.eq.s32.totalorder %s31, 0
    %p351 = por %p349, %p350
    %p352 = scmp.ne.s32.totalorder %s340, %s341
    %p353 = scmp.eq.s32.totalorder %s32, 1
    %p354 = por %p352, %p353
    %p356 = scmp.ne.s32.totalorder %s341, %s355
    %p357 = scmp.eq.s32.totalorder %s32, 0
    %p358 = por %p356, %p357
    %s360 = sadd.s32 %s359, 1
    %p363 = scmp.eq.s32.totalorder %s26, 1
    %p364 = scmp.ne.s32.totalorder %s359, %s361
    %p365 = scmp.eq.s32.totalorder %s26, 0
    %p366 = por %p364, %p365
    %p367 = scmp.ne.s32.totalorder %s359, %s361
    %p368 = scmp.eq.s32.totalorder %s31, 1
    %p369 = por %p367, %p368
    %p370 = scmp.ne.s32.totalorder %s361, %s362
    %p371 = scmp.eq.s32.totalorder %s31, 0
    %p372 = por %p370, %p371
    %p373 = scmp.ne.s32.totalorder %s361, %s362
    %p374 = scmp.eq.s32.totalorder %s32, 1
    %p375 = por %p373, %p374
    %p377 = scmp.ne.s32.totalorder %s362, %s376
    %p378 = scmp.eq.s32.totalorder %s32, 0
    %p379 = por %p377, %p378
    %s381 = sadd.s32 %s380, 1
    %p384 = scmp.eq.s32.totalorder %s26, 1
    %p385 = scmp.ne.s32.totalorder %s380, %s382
    %p386 = scmp.eq.s32.totalorder %s26, 0
    %p387 = por %p385, %p386
    %p388 = scmp.ne.s32.totalorder %s380, %s382
    %p389 = scmp.eq.s32.totalorder %s31, 1
    %p390 = por %p388, %p389
    %p391 = scmp.ne.s32.totalorder %s382, %s383
    %p392 = scmp.eq.s32.totalorder %s31, 0
    %p393 = por %p391, %p392
    %p394 = scmp.ne.s32.totalorder %s382, %s383
    %p395 = scmp.eq.s32.totalorder %s32, 1
    %p396 = por %p394, %p395
    %p398 = scmp.ne.s32.totalorder %s383, %s397
    %p399 = scmp.eq.s32.totalorder %s32, 0
    %p400 = por %p398, %p399
    %s402 = sadd.s32 %s401, 1
    %p405 = scmp.eq.s32.totalorder %s26, 1
    %p406 = scmp.ne.s32.totalorder %s401, %s403
    %p407 = scmp.eq.s32.totalorder %s26, 0
    %p408 = por %p406, %p407
    %p409 = scmp.ne.s32.totalorder %s401, %s403
    %p410 = scmp.eq.s32.totalorder %s31, 1
    %p411 = por %p409, %p410
    %p412 = scmp.ne.s32.totalorder %s403, %s404
    %p413 = scmp.eq.s32.totalorder %s31, 0
    %p414 = por %p412, %p413
    %p415 = scmp.ne.s32.totalorder %s403, %s404
    %p416 = scmp.eq.s32.totalorder %s32, 1
    %p417 = por %p415, %p416
    %p419 = scmp.ne.s32.totalorder %s404, %s418
    %p420 = scmp.eq.s32.totalorder %s32, 0
    %p421 = por %p419, %p420
    %s422 = ssub.s32 %s26, %s33
    %p423 = scmp.eq.s32.totalorder %s422, 0
    %s425 = sadd.s32 %s424, 1
    %s426 = scalar_select %p423, %s424, %s425
    %p429 = pneg %p423
    %p430 = scmp.eq.s32.totalorder %s26, 1
    %p431 = por %p429, %p430
    %p432 = scmp.ne.s32.totalorder %s424, %s427
    %p433 = scmp.eq.s32.totalorder %s26, 0
    %p434 = por %p432, %p433
    %p435 = scmp.ne.s32.totalorder %s424, %s427
    %p436 = scmp.eq.s32.totalorder %s31, 1
    %p437 = por %p435, %p436
    %p438 = scmp.ne.s32.totalorder %s427, %s428
    %p439 = scmp.eq.s32.totalorder %s31, 0
    %p440 = por %p438, %p439
    %p441 = scmp.ne.s32.totalorder %s427, %s428
    %p442 = scmp.eq.s32.totalorder %s32, 1
    %p443 = por %p441, %p442
    %p445 = scmp.ne.s32.totalorder %s428, %s444
    %p446 = scmp.eq.s32.totalorder %s32, 0
    %p447 = por %p445, %p446
    %p448 = scmp.le.s32.totalorder 1, %s26
    %p449 = scmp.lt.s32.totalorder %s26, 3
    %p450 = pnand %p448, %p449
    %p451 = pneg %p450
    // Predicated region
    $region9: #{_forward.1} parent=5 // pred_check
      _
    $region10: #{_forward.1} parent=5 // pred_check_branch
      %453 = sbr.rel (%p450) target = $region12
    $region11: #{_forward.1} parent=5 // pred_region
      %s454 = ssub.s32 %s26, 1
      // Predicated region
      $region13: #{_forward.1} parent=11 // pred_check
        %p455 = pneg %p99
      $region14: #{_forward.1} parent=11 // pred_check_branch
        %457 = sbr.rel (%p455) target = $region16
      $region15: #{_forward.1} parent=11 // pred_region
        _
      $region16: #{_forward.1} parent=11 // pred_fallthru
        _
      // Predicated region
      $region17: #{_forward.1} parent=11 // pred_check
        %p458 = pneg %p120
      $region18: #{_forward.1} parent=11 // pred_check_branch
        %460 = sbr.rel (%p458) target = $region20
      $region19: #{_forward.1} parent=11 // pred_region
        _
      $region20: #{_forward.1} parent=11 // pred_fallthru
        _
      // Predicated region
      $region21: #{_forward.1} parent=11 // pred_check
        %p461 = pneg %p141
      $region22: #{_forward.1} parent=11 // pred_check_branch
        %463 = sbr.rel (%p461) target = $region24
      $region23: #{_forward.1} parent=11 // pred_region
        _
      $region24: #{_forward.1} parent=11 // pred_fallthru
        _
      // Predicated region
      $region25: #{_forward.1} parent=11 // pred_check
        %p464 = pneg %p162
      $region26: #{_forward.1} parent=11 // pred_check_branch
        %466 = sbr.rel (%p464) target = $region28
      $region27: #{_forward.1} parent=11 // pred_region
        _
      $region28: #{_forward.1} parent=11 // pred_fallthru
        _
      // Predicated region
      $region29: #{_forward.1} parent=11 // pred_check
        %p467 = pneg %p183
      $region30: #{_forward.1} parent=11 // pred_check_branch
        %469 = sbr.rel (%p467) target = $region32
      $region31: #{_forward.1} parent=11 // pred_region
        _
      $region32: #{_forward.1} parent=11 // pred_fallthru
        _
      // Predicated region
      $region33: #{_forward.1} parent=11 // pred_check
        %p470 = pneg %p204
      $region34: #{_forward.1} parent=11 // pred_check_branch
        %472 = sbr.rel (%p470) target = $region36
      $region35: #{_forward.1} parent=11 // pred_region
        _
      $region36: #{_forward.1} parent=11 // pred_fallthru
        _
      // Predicated region
      $region37: #{_forward.1} parent=11 // pred_check
        %p473 = pneg %p225
      $region38: #{_forward.1} parent=11 // pred_check_branch
        %475 = sbr.rel (%p473) target = $region40
      $region39: #{_forward.1} parent=11 // pred_region
        _
      $region40: #{_forward.1} parent=11 // pred_fallthru
        _
      // Predicated region
      $region41: #{_forward.1} parent=11 // pred_check
        %p476 = pneg %p246
      $region42: #{_forward.1} parent=11 // pred_check_branch
        %478 = sbr.rel (%p476) target = $region44
      $region43: #{_forward.1} parent=11 // pred_region
        _
      $region44: #{_forward.1} parent=11 // pred_fallthru
        _
      // Predicated region
      $region45: #{_forward.1} parent=11 // pred_check
        %p479 = pneg %p267
      $region46: #{_forward.1} parent=11 // pred_check_branch
        %481 = sbr.rel (%p479) target = $region48
      $region47: #{_forward.1} parent=11 // pred_region
        _
      $region48: #{_forward.1} parent=11 // pred_fallthru
        _
      // Predicated region
      $region49: #{_forward.1} parent=11 // pred_check
        %p482 = pneg %p288
      $region50: #{_forward.1} parent=11 // pred_check_branch
        %484 = sbr.rel (%p482) target = $region52
      $region51: #{_forward.1} parent=11 // pred_region
        _
      $region52: #{_forward.1} parent=11 // pred_fallthru
        _
      // Predicated region
      $region53: #{_forward.1} parent=11 // pred_check
        %p485 = pneg %p309
      $region54: #{_forward.1} parent=11 // pred_check_branch
        %487 = sbr.rel (%p485) target = $region56
      $region55: #{_forward.1} parent=11 // pred_region
        _
      $region56: #{_forward.1} parent=11 // pred_fallthru
        _
      // Predicated region
      $region57: #{_forward.1} parent=11 // pred_check
        %p488 = pneg %p330
      $region58: #{_forward.1} parent=11 // pred_check_branch
        %490 = sbr.rel (%p488) target = $region60
      $region59: #{_forward.1} parent=11 // pred_region
        _
      $region60: #{_forward.1} parent=11 // pred_fallthru
        _
      // Predicated region
      $region61: #{_forward.1} parent=11 // pred_check
        %p491 = pneg %p351
      $region62: #{_forward.1} parent=11 // pred_check_branch
        %493 = sbr.rel (%p491) target = $region64
      $region63: #{_forward.1} parent=11 // pred_region
        _
      $region64: #{_forward.1} parent=11 // pred_fallthru
        _
      // Predicated region
      $region65: #{_forward.1} parent=11 // pred_check
        %p494 = pneg %p372
      $region66: #{_forward.1} parent=11 // pred_check_branch
        %496 = sbr.rel (%p494) target = $region68
      $region67: #{_forward.1} parent=11 // pred_region
        _
      $region68: #{_forward.1} parent=11 // pred_fallthru
        _
      // Predicated region
      $region69: #{_forward.1} parent=11 // pred_check
        %p497 = pneg %p393
      $region70: #{_forward.1} parent=11 // pred_check_branch
        %499 = sbr.rel (%p497) target = $region72
      $region71: #{_forward.1} parent=11 // pred_region
        _
      $region72: #{_forward.1} parent=11 // pred_fallthru
        _
      // Predicated region
      $region73: #{_forward.1} parent=11 // pred_check
        %p500 = pneg %p414
      $region74: #{_forward.1} parent=11 // pred_check_branch
        %502 = sbr.rel (%p500) target = $region76
      $region75: #{_forward.1} parent=11 // pred_region
        _
      $region76: #{_forward.1} parent=11 // pred_fallthru
        _
    $region12: #{_forward.1} parent=5 // pred_fallthru
      _
    %p503 = scmp.lt.s32.totalorder %s26, 2
    // Predicated region
    $region77: #{_forward.1} parent=5 // pred_check
      %p504 = pneg %p503
    $region78: #{_forward.1} parent=5 // pred_check_branch
      %506 = sbr.rel (%p504) target = $region80
    $region79: #{_forward.1} parent=5 // pred_region
      // Predicated region
      $region81: #{_forward.1} parent=79 // pred_check
        %p507 = pneg %p46
      $region82: #{_forward.1} parent=79 // pred_check_branch
        %509 = sbr.rel (%p507) target = $region84
      $region83: #{_forward.1} parent=79 // pred_region
        %p510 = scmp.lt.s32.totalorder %s26, 1
        %s511 = scalar_select %p510, %s26, 1
        %s512 = smul.addr %s511, 32
        %s513 = smul.addr %s512, 8
        %s514 = scalar_lea.vmem %s0, %s513
      $region84: #{_forward.1} parent=79 // pred_fallthru
        _
      // Predicated region
      $region85: #{_forward.1} parent=79 // pred_check
        %p515 = pneg %p72
      $region86: #{_forward.1} parent=79 // pred_check_branch
        %517 = sbr.rel (%p515) target = $region88
      $region87: #{_forward.1} parent=79 // pred_region
        %p518 = scmp.lt.s32.totalorder %s26, 1
        %s519 = scalar_select %p518, %s26, 1
        %s520 = smul.addr %s519, 32
        %s521 = smul.addr %s520, 8
        %s522 = scalar_lea.vmem %s1, %s521
      $region88: #{_forward.1} parent=79 // pred_fallthru
        _
    $region80: #{_forward.1} parent=5 // pred_fallthru
      _
    %p523 = scmp.le.s32.totalorder 1, %s26
    %p524 = scmp.lt.s32.totalorder %s26, 3
    %p525 = pnand %p523, %p524
    %p526 = pneg %p525
    // Predicated region
    $region89: #{_forward.1} parent=5 // pred_check
      _
    $region90: #{_forward.1} parent=5 // pred_check_branch
      %528 = sbr.rel (%p525) target = $region92
    $region91: #{_forward.1} parent=5 // pred_region
      %s529 = ssub.s32 %s26, 1
      %p530 = scmp.lt.s32.totalorder %s31, 1
      %s531 = scalar_select %p530, %s31, 1
      %s532 = smul.addr %s531, 32
      %s533 = smul.addr %s532, 8
      %s534 = scalar_lea.vmem %s0, %s533
      %p535 = pneg %p52
      %p536 = pneg %p49
      %p537 = scmp.lt.s32.totalorder %s31, 1
      %s538 = scalar_select %p537, %s31, 1
      %s539 = smul.addr %s538, 32
      %s540 = smul.addr %s539, 8
      %s541 = scalar_lea.vmem %s1, %s540
      %p542 = pneg %p78
      %p543 = pneg %p75
      %p544 = pneg %p99
      %p545 = pneg %p96
      %p546 = pneg %p120
      %p547 = pneg %p117
      %p548 = pneg %p141
      %p549 = pneg %p138
      %p550 = pneg %p162
      %p551 = pneg %p159
      %p552 = pneg %p183
      %p553 = pneg %p180
      %p554 = pneg %p204
      %p555 = pneg %p201
      %p556 = pneg %p225
      %p557 = pneg %p222
      %p558 = pneg %p246
      %p559 = pneg %p243
      %p560 = pneg %p267
      %p561 = pneg %p264
      %p562 = pneg %p288
      %p563 = pneg %p285
      %p564 = pneg %p309
      %p565 = pneg %p306
      %p566 = pneg %p330
      %p567 = pneg %p327
      %p568 = pneg %p351
      %p569 = pneg %p348
      %p570 = pneg %p372
      %p571 = pneg %p369
      %p572 = pneg %p393
      %p573 = pneg %p390
      %p574 = pneg %p414
      %p575 = pneg %p411
      %p576 = pneg %p440
      %p577 = pneg %p437
      %p578 = scmp.lt.s32.totalorder %s31, 1
      %s579 = scalar_select %p578, %s31, 1
      %s580 = scalar_lea.vmem %s18, %s579
      %p581 = scmp.lt.s32.totalorder %s31, 1
      %s582 = scalar_select %p581, %s31, 1
      %s583 = smul.addr %s582, 32
      %s584 = smul.addr %s583, 8
      %s585 = scalar_lea.vmem %s0, %s584
      %p586 = scmp.lt.s32.totalorder %s31, 1
      %s587 = scalar_select %p586, %s31, 1
      %s588 = smul.addr %s587, 32
      %s589 = smul.addr %s588, 8
      %s590 = scalar_lea.vmem %s1, %s589
      %p591 = scmp.lt.s32.totalorder %s31, 1
      %s592 = scalar_select %p591, %s31, 1
      %s593 = scalar_lea.vmem %s18, %s592
      %vm594 = vcmask 7168
      %595 = vst.msk [vmem:[#allocation2] sm:$0xff] %vm594, 0.0
      %596 = vst.msk [vmem:[#allocation2 + $0x8] sm:$0xff] %vm594, 0.0
      %vm597 = vcmask 1024
      %598 = vst.msk [vmem:[#allocation2 + $0x10] sm:$0x3] %vm597, 0.0
      %599 = vst.msk [vmem:[#allocation2 + $0x18] sm:$0xff] %vm594, 0.0
      %600 = vst.msk [vmem:[#allocation2 + $0x20] sm:$0xff] %vm594, 0.0
      %601 = vst.msk [vmem:[#allocation2 + $0x28] sm:$0x3] %vm597, 0.0
      %602 = vst.msk [vmem:[#allocation2 + $0x30] sm:$0xff] %vm594, 0.0
      %603 = vst.msk [vmem:[#allocation2 + $0x38] sm:$0xff] %vm594, 0.0
      %604 = vst.msk [vmem:[#allocation2 + $0x40] sm:$0x3] %vm597, 0.0
      %605 = vst.msk [vmem:[#allocation2 + $0x48] sm:$0xff] %vm594, 0.0
      %606 = vst.msk [vmem:[#allocation2 + $0x50] sm:$0xff] %vm594, 0.0
      %607 = vst.msk [vmem:[#allocation2 + $0x58] sm:$0x3] %vm597, 0.0
      %608 = vst.msk [vmem:[#allocation2 + $0x60] sm:$0xff] %vm594, 0.0
      %609 = vst.msk [vmem:[#allocation2 + $0x68] sm:$0xff] %vm594, 0.0
      %610 = vst.msk [vmem:[#allocation2 + $0x70] sm:$0x3] %vm597, 0.0
      %611 = vst.msk [vmem:[#allocation2 + $0x78] sm:$0xff] %vm594, 0.0
      %612 = vst.msk [vmem:[#allocation2 + $0x80] sm:$0xff] %vm594, 0.0
      %613 = vst.msk [vmem:[#allocation2 + $0x88] sm:$0x3] %vm597, 0.0
      %614 = vst.msk [vmem:[#allocation2 + $0x90] sm:$0xff] %vm594, 0.0
      %615 = vst.msk [vmem:[#allocation2 + $0x98] sm:$0xff] %vm594, 0.0
      %616 = vst.msk [vmem:[#allocation2 + $0xa0] sm:$0x3] %vm597, 0.0
      %617 = vst.msk [vmem:[#allocation2 + $0xa8] sm:$0xff] %vm594, 0.0
      %618 = vst.msk [vmem:[#allocation2 + $0xb0] sm:$0xff] %vm594, 0.0
      %619 = vst.msk [vmem:[#allocation2 + $0xb8] sm:$0x3] %vm597, 0.0
      %620 = vst.msk [vmem:[#allocation2 + $0xc0] sm:$0xff] %vm594, 0.0
      %621 = vst.msk [vmem:[#allocation2 + $0xc8] sm:$0xff] %vm594, 0.0
      %622 = vst.msk [vmem:[#allocation2 + $0xd0] sm:$0x3] %vm597, 0.0
      %623 = vst.msk [vmem:[#allocation2 + $0xd8] sm:$0xff] %vm594, 0.0
      %624 = vst.msk [vmem:[#allocation2 + $0xe0] sm:$0xff] %vm594, 0.0
      %625 = vst.msk [vmem:[#allocation2 + $0xe8] sm:$0x3] %vm597, 0.0
      %626 = vst.msk [vmem:[#allocation2 + $0xf0] sm:$0xff] %vm594, 0.0
      %627 = vst.msk [vmem:[#allocation2 + $0xf8] sm:$0xff] %vm594, 0.0
      %628 = vst.msk [vmem:[#allocation2 + $0x100] sm:$0x3] %vm597, 0.0
      %629 = vst.msk [vmem:[#allocation2 + $0x108] sm:$0xff] %vm594, 0.0
      %630 = vst.msk [vmem:[#allocation2 + $0x110] sm:$0xff] %vm594, 0.0
      %631 = vst.msk [vmem:[#allocation2 + $0x118] sm:$0x3] %vm597, 0.0
      %632 = vst.msk [vmem:[#allocation2 + $0x120] sm:$0xff] %vm594, 0.0
      %633 = vst.msk [vmem:[#allocation2 + $0x128] sm:$0xff] %vm594, 0.0
      %634 = vst.msk [vmem:[#allocation2 + $0x130] sm:$0x3] %vm597, 0.0
      %635 = vst.msk [vmem:[#allocation2 + $0x138] sm:$0xff] %vm594, 0.0
      %636 = vst.msk [vmem:[#allocation2 + $0x140] sm:$0xff] %vm594, 0.0
      %637 = vst.msk [vmem:[#allocation2 + $0x148] sm:$0x3] %vm597, 0.0
      %638 = vst.msk [vmem:[#allocation2 + $0x150] sm:$0xff] %vm594, 0.0
      %639 = vst.msk [vmem:[#allocation2 + $0x158] sm:$0xff] %vm594, 0.0
      %640 = vst.msk [vmem:[#allocation2 + $0x160] sm:$0x3] %vm597, 0.0
      %641 = vst.msk [vmem:[#allocation2 + $0x168] sm:$0xff] %vm594, 0.0
      %642 = vst.msk [vmem:[#allocation2 + $0x170] sm:$0xff] %vm594, 0.0
      %643 = vst.msk [vmem:[#allocation2 + $0x178] sm:$0x3] %vm597, 0.0
      %644 = vst.msk [vmem:[#allocation2 + $0x180] sm:$0xff] %vm594, 0.0
      %645 = vst.msk [vmem:[#allocation2 + $0x188] sm:$0xff] %vm594, 0.0
      %646 = vst.msk [vmem:[#allocation2 + $0x190] sm:$0x3] %vm597, 0.0
      %647 = vst.msk [vmem:[#allocation2 + $0x198] sm:$0xff] %vm594, 0.0
      %648 = vst.msk [vmem:[#allocation2 + $0x1a0] sm:$0xff] %vm594, 0.0
      %649 = vst.msk [vmem:[#allocation2 + $0x1a8] sm:$0x3] %vm597, 0.0
      %650 = vst.msk [vmem:[#allocation2 + $0x1b0] sm:$0xff] %vm594, 0.0
      %651 = vst.msk [vmem:[#allocation2 + $0x1b8] sm:$0xff] %vm594, 0.0
      %652 = vst.msk [vmem:[#allocation2 + $0x1c0] sm:$0x3] %vm597, 0.0
      %653 = vst.msk [vmem:[#allocation2 + $0x1c8] sm:$0xff] %vm594, 0.0
      %654 = vst.msk [vmem:[#allocation2 + $0x1d0] sm:$0xff] %vm594, 0.0
      %655 = vst.msk [vmem:[#allocation2 + $0x1d8] sm:$0x3] %vm597, 0.0
      %656 = vst.msk [vmem:[#allocation2 + $0x1e0] sm:$0xff] %vm594, 0.0
      %657 = vst.msk [vmem:[#allocation2 + $0x1e8] sm:$0xff] %vm594, 0.0
      %658 = vst.msk [vmem:[#allocation2 + $0x1f0] sm:$0x3] %vm597, 0.0
      %659 = vst.msk [vmem:[#allocation2 + $0x1f8] sm:$0xff] %vm594, 0.0
      %660 = vst.msk [vmem:[#allocation2 + $0x200] sm:$0xff] %vm594, 0.0
      %661 = vst.msk [vmem:[#allocation2 + $0x208] sm:$0x3] %vm597, 0.0
      %662 = vst.msk [vmem:[#allocation2 + $0x210] sm:$0xff] %vm594, 0.0
      %663 = vst.msk [vmem:[#allocation2 + $0x218] sm:$0xff] %vm594, 0.0
      %664 = vst.msk [vmem:[#allocation2 + $0x220] sm:$0x3] %vm597, 0.0
      %665 = vst.msk [vmem:[#allocation2 + $0x228] sm:$0xff] %vm594, 0.0
      %666 = vst.msk [vmem:[#allocation2 + $0x230] sm:$0xff] %vm594, 0.0
      %667 = vst.msk [vmem:[#allocation2 + $0x238] sm:$0x3] %vm597, 0.0
      %668 = vst.msk [vmem:[#allocation2 + $0x240] sm:$0xff] %vm594, 0.0
      %669 = vst.msk [vmem:[#allocation2 + $0x248] sm:$0xff] %vm594, 0.0
      %670 = vst.msk [vmem:[#allocation2 + $0x250] sm:$0x3] %vm597, 0.0
      %671 = vst.msk [vmem:[#allocation2 + $0x258] sm:$0xff] %vm594, 0.0
      %672 = vst.msk [vmem:[#allocation2 + $0x260] sm:$0xff] %vm594, 0.0
      %673 = vst.msk [vmem:[#allocation2 + $0x268] sm:$0x3] %vm597, 0.0
      %674 = vst.msk [vmem:[#allocation2 + $0x270] sm:$0xff] %vm594, 0.0
      %675 = vst.msk [vmem:[#allocation2 + $0x278] sm:$0xff] %vm594, 0.0
      %676 = vst.msk [vmem:[#allocation2 + $0x280] sm:$0x3] %vm597, 0.0
      %677 = vst.msk [vmem:[#allocation2 + $0x288] sm:$0xff] %vm594, 0.0
      %678 = vst.msk [vmem:[#allocation2 + $0x290] sm:$0xff] %vm594, 0.0
      %679 = vst.msk [vmem:[#allocation2 + $0x298] sm:$0x3] %vm597, 0.0
      %680 = vst.msk [vmem:[#allocation2 + $0x2a0] sm:$0xff] %vm594, 0.0
      %681 = vst.msk [vmem:[#allocation2 + $0x2a8] sm:$0xff] %vm594, 0.0
      %682 = vst.msk [vmem:[#allocation2 + $0x2b0] sm:$0x3] %vm597, 0.0
      %683 = vst.msk [vmem:[#allocation2 + $0x2b8] sm:$0xff] %vm594, 0.0
      %684 = vst.msk [vmem:[#allocation2 + $0x2c0] sm:$0xff] %vm594, 0.0
      %685 = vst.msk [vmem:[#allocation2 + $0x2c8] sm:$0x3] %vm597, 0.0
      %686 = vst.msk [vmem:[#allocation2 + $0x2d0] sm:$0xff] %vm594, 0.0
      %687 = vst.msk [vmem:[#allocation2 + $0x2d8] sm:$0xff] %vm594, 0.0
      %688 = vst.msk [vmem:[#allocation2 + $0x2e0] sm:$0x3] %vm597, 0.0
      %689 = vst.msk [vmem:[#allocation2 + $0x2e8] sm:$0xff] %vm594, 0.0
      %690 = vst.msk [vmem:[#allocation2 + $0x2f0] sm:$0xff] %vm594, 0.0
      %691 = vst.msk [vmem:[#allocation2 + $0x2f8] sm:$0x3] %vm597, 0.0
      %692 = vst.msk [vmem:[#allocation2 + $0x300] sm:$0xff] %vm594, 0.0
      %693 = vst.msk [vmem:[#allocation2 + $0x308] sm:$0xff] %vm594, 0.0
      %694 = vst.msk [vmem:[#allocation2 + $0x310] sm:$0x3] %vm597, 0.0
      %695 = vst.msk [vmem:[#allocation2 + $0x318] sm:$0xff] %vm594, 0.0
      %696 = vst.msk [vmem:[#allocation2 + $0x320] sm:$0xff] %vm594, 0.0
      %697 = vst.msk [vmem:[#allocation2 + $0x328] sm:$0x3] %vm597, 0.0
      %698 = vst.msk [vmem:[#allocation2 + $0x330] sm:$0xff] %vm594, 0.0
      %699 = vst.msk [vmem:[#allocation2 + $0x338] sm:$0xff] %vm594, 0.0
      %700 = vst.msk [vmem:[#allocation2 + $0x340] sm:$0x3] %vm597, 0.0
      %701 = vst.msk [vmem:[#allocation2 + $0x348] sm:$0xff] %vm594, 0.0
      %702 = vst.msk [vmem:[#allocation2 + $0x350] sm:$0xff] %vm594, 0.0
      %703 = vst.msk [vmem:[#allocation2 + $0x358] sm:$0x3] %vm597, 0.0
      %v704 = vld [vmem:[%s585] sm:$0xff]
      %v705 = vld [vmem:[%s585 + $0x8] sm:$0xff]
      %v706 = vld [vmem:[%s585 + $0x10] sm:$0xff]
      %v707 = vld [vmem:[%s585 + $0x18] sm:$0xff]
      %v708 = vld [vmem:[%s585 + $0x20] sm:$0xff]
      %v709 = vld [vmem:[%s585 + $0x28] sm:$0xff]
      %v710 = vld [vmem:[%s585 + $0x30] sm:$0xff]
      %v711 = vld [vmem:[%s585 + $0x38] sm:$0xff]
      %v712 = vld [vmem:[%s585 + $0x40] sm:$0xff]
      %v713 = vld [vmem:[%s585 + $0x48] sm:$0xff]
      %v714 = vld [vmem:[%s585 + $0x50] sm:$0xff]
      %v715 = vld [vmem:[%s585 + $0x58] sm:$0xff]
      %v716 = vld [vmem:[%s585 + $0x60] sm:$0xff]
      %v717 = vld [vmem:[%s585 + $0x68] sm:$0xff]
      %v718 = vld [vmem:[%s585 + $0x70] sm:$0xff]
      %v719 = vld [vmem:[%s585 + $0x78] sm:$0xff]
      %v720 = vld [vmem:[%s585 + $0x80] sm:$0xff]
      %v721 = vld [vmem:[%s585 + $0x88] sm:$0xff]
      %v722 = vld [vmem:[%s585 + $0x90] sm:$0xff]
      %v723 = vld [vmem:[%s585 + $0x98] sm:$0xff]
      %v724 = vld [vmem:[%s585 + $0xa0] sm:$0xff]
      %v725 = vld [vmem:[%s585 + $0xa8] sm:$0xff]
      %v726 = vld [vmem:[%s585 + $0xb0] sm:$0xff]
      %v727 = vld [vmem:[%s585 + $0xb8] sm:$0xff]
      %v728 = vld [vmem:[%s585 + $0xc0] sm:$0xff]
      %v729 = vld [vmem:[%s585 + $0xc8] sm:$0xff]
      %v730 = vld [vmem:[%s585 + $0xd0] sm:$0xff]
      %v731 = vld [vmem:[%s585 + $0xd8] sm:$0xff]
      %v732 = vld [vmem:[%s585 + $0xe0] sm:$0xff]
      %v733 = vld [vmem:[%s585 + $0xe8] sm:$0xff]
      %v734 = vld [vmem:[%s585 + $0xf0] sm:$0xff]
      %v735 = vld [vmem:[%s585 + $0xf8] sm:$0xff]
      %s736 = scalar_lea.vmem [#allocation2], 24
      %737 = vst.msk [vmem:[%s736 + $0x1] sm:$0xff] %vm594, %v704
      %738 = vst.msk [vmem:[%s736 + $0x9] sm:$0xff] %vm594, %v705
      %739 = vst.msk [vmem:[%s736 + $0x19] sm:$0xff] %vm594, %v706
      %740 = vst.msk [vmem:[%s736 + $0x21] sm:$0xff] %vm594, %v707
      %741 = vst.msk [vmem:[%s736 + $0x31] sm:$0xff] %vm594, %v708
      %742 = vst.msk [vmem:[%s736 + $0x39] sm:$0xff] %vm594, %v709
      %743 = vst.msk [vmem:[%s736 + $0x49] sm:$0xff] %vm594, %v710
      %744 = vst.msk [vmem:[%s736 + $0x51] sm:$0xff] %vm594, %v711
      %745 = vst.msk [vmem:[%s736 + $0x61] sm:$0xff] %vm594, %v712
      %746 = vst.msk [vmem:[%s736 + $0x69] sm:$0xff] %vm594, %v713
      %747 = vst.msk [vmem:[%s736 + $0x79] sm:$0xff] %vm594, %v714
      %748 = vst.msk [vmem:[%s736 + $0x81] sm:$0xff] %vm594, %v715
      %749 = vst.msk [vmem:[%s736 + $0x91] sm:$0xff] %vm594, %v716
      %750 = vst.msk [vmem:[%s736 + $0x99] sm:$0xff] %vm594, %v717
      %751 = vst.msk [vmem:[%s736 + $0xa9] sm:$0xff] %vm594, %v718
      %752 = vst.msk [vmem:[%s736 + $0xb1] sm:$0xff] %vm594, %v719
      %753 = vst.msk [vmem:[%s736 + $0xc1] sm:$0xff] %vm594, %v720
      %754 = vst.msk [vmem:[%s736 + $0xc9] sm:$0xff] %vm594, %v721
      %755 = vst.msk [vmem:[%s736 + $0xd9] sm:$0xff] %vm594, %v722
      %756 = vst.msk [vmem:[%s736 + $0xe1] sm:$0xff] %vm594, %v723
      %757 = vst.msk [vmem:[%s736 + $0xf1] sm:$0xff] %vm594, %v724
      %758 = vst.msk [vmem:[%s736 + $0xf9] sm:$0xff] %vm594, %v725
      %759 = vst.msk [vmem:[%s736 + $0x109] sm:$0xff] %vm594, %v726
      %760 = vst.msk [vmem:[%s736 + $0x111] sm:$0xff] %vm594, %v727
      %761 = vst.msk [vmem:[%s736 + $0x121] sm:$0xff] %vm594, %v728
      %762 = vst.msk [vmem:[%s736 + $0x129] sm:$0xff] %vm594, %v729
      %763 = vst.msk [vmem:[%s736 + $0x139] sm:$0xff] %vm594, %v730
      %764 = vst.msk [vmem:[%s736 + $0x141] sm:$0xff] %vm594, %v731
      %765 = vst.msk [vmem:[%s736 + $0x151] sm:$0xff] %vm594, %v732
      %766 = vst.msk [vmem:[%s736 + $0x159] sm:$0xff] %vm594, %v733
      %767 = vst.msk [vmem:[%s736 + $0x169] sm:$0xff] %vm594, %v734
      %768 = vst.msk [vmem:[%s736 + $0x171] sm:$0xff] %vm594, %v735
      %v769 = vld [vmem:[%s590] sm:$0xff]
      %v770 = vld [vmem:[%s590 + $0x8] sm:$0xff]
      %v771 = vld [vmem:[%s590 + $0x10] sm:$0xff]
      %v772 = vld [vmem:[%s590 + $0x18] sm:$0xff]
      %v773 = vld [vmem:[%s590 + $0x20] sm:$0xff]
      %v774 = vld [vmem:[%s590 + $0x28] sm:$0xff]
      %v775 = vld [vmem:[%s590 + $0x30] sm:$0xff]
      %v776 = vld [vmem:[%s590 + $0x38] sm:$0xff]
      %v777 = vld [vmem:[%s590 + $0x40] sm:$0xff]
      %v778 = vld [vmem:[%s590 + $0x48] sm:$0xff]
      %v779 = vld [vmem:[%s590 + $0x50] sm:$0xff]
      %v780 = vld [vmem:[%s590 + $0x58] sm:$0xff]
      %v781 = vld [vmem:[%s590 + $0x60] sm:$0xff]
      %v782 = vld [vmem:[%s590 + $0x68] sm:$0xff]
      %v783 = vld [vmem:[%s590 + $0x70] sm:$0xff]
      %v784 = vld [vmem:[%s590 + $0x78] sm:$0xff]
      %v785 = vld [vmem:[%s590 + $0x80] sm:$0xff]
      %v786 = vld [vmem:[%s590 + $0x88] sm:$0xff]
      %v787 = vld [vmem:[%s590 + $0x90] sm:$0xff]
      %v788 = vld [vmem:[%s590 + $0x98] sm:$0xff]
      %v789 = vld [vmem:[%s590 + $0xa0] sm:$0xff]
      %v790 = vld [vmem:[%s590 + $0xa8] sm:$0xff]
      %v791 = vld [vmem:[%s590 + $0xb0] sm:$0xff]
      %v792 = vld [vmem:[%s590 + $0xb8] sm:$0xff]
      %v793 = vld [vmem:[%s590 + $0xc0] sm:$0xff]
      %v794 = vld [vmem:[%s590 + $0xc8] sm:$0xff]
      %v795 = vld [vmem:[%s590 + $0xd0] sm:$0xff]
      %v796 = vld [vmem:[%s590 + $0xd8] sm:$0xff]
      %v797 = vld [vmem:[%s590 + $0xe0] sm:$0xff]
      %v798 = vld [vmem:[%s590 + $0xe8] sm:$0xff]
      %v799 = vld [vmem:[%s590 + $0xf0] sm:$0xff]
      %v800 = vld [vmem:[%s590 + $0xf8] sm:$0xff]
      %s801 = scalar_lea.vmem [#allocation2], 456
      %802 = vst.msk [vmem:[%s801 + $0x1] sm:$0xff] %vm594, %v769
      %803 = vst.msk [vmem:[%s801 + $0x9] sm:$0xff] %vm594, %v770
      %804 = vst.msk [vmem:[%s801 + $0x19] sm:$0xff] %vm594, %v771
      %805 = vst.msk [vmem:[%s801 + $0x21] sm:$0xff] %vm594, %v772
      %806 = vst.msk [vmem:[%s801 + $0x31] sm:$0xff] %vm594, %v773
      %807 = vst.msk [vmem:[%s801 + $0x39] sm:$0xff] %vm594, %v774
      %808 = vst.msk [vmem:[%s801 + $0x49] sm:$0xff] %vm594, %v775
      %809 = vst.msk [vmem:[%s801 + $0x51] sm:$0xff] %vm594, %v776
      %810 = vst.msk [vmem:[%s801 + $0x61] sm:$0xff] %vm594, %v777
      %811 = vst.msk [vmem:[%s801 + $0x69] sm:$0xff] %vm594, %v778
      %812 = vst.msk [vmem:[%s801 + $0x79] sm:$0xff] %vm594, %v779
      %813 = vst.msk [vmem:[%s801 + $0x81] sm:$0xff] %vm594, %v780
      %814 = vst.msk [vmem:[%s801 + $0x91] sm:$0xff] %vm594, %v781
      %815 = vst.msk [vmem:[%s801 + $0x99] sm:$0xff] %vm594, %v782
      %816 = vst.msk [vmem:[%s801 + $0xa9] sm:$0xff] %vm594, %v783
      %817 = vst.msk [vmem:[%s801 + $0xb1] sm:$0xff] %vm594, %v784
      %818 = vst.msk [vmem:[%s801 + $0xc1] sm:$0xff] %vm594, %v785
      %819 = vst.msk [vmem:[%s801 + $0xc9] sm:$0xff] %vm594, %v786
      %820 = vst.msk [vmem:[%s801 + $0xd9] sm:$0xff] %vm594, %v787
      %821 = vst.msk [vmem:[%s801 + $0xe1] sm:$0xff] %vm594, %v788
      %822 = vst.msk [vmem:[%s801 + $0xf1] sm:$0xff] %vm594, %v789
      %823 = vst.msk [vmem:[%s801 + $0xf9] sm:$0xff] %vm594, %v790
      %824 = vst.msk [vmem:[%s801 + $0x109] sm:$0xff] %vm594, %v791
      %825 = vst.msk [vmem:[%s801 + $0x111] sm:$0xff] %vm594, %v792
      %826 = vst.msk [vmem:[%s801 + $0x121] sm:$0xff] %vm594, %v793
      %827 = vst.msk [vmem:[%s801 + $0x129] sm:$0xff] %vm594, %v794
      %828 = vst.msk [vmem:[%s801 + $0x139] sm:$0xff] %vm594, %v795
      %829 = vst.msk [vmem:[%s801 + $0x141] sm:$0xff] %vm594, %v796
      %830 = vst.msk [vmem:[%s801 + $0x151] sm:$0xff] %vm594, %v797
      %831 = vst.msk [vmem:[%s801 + $0x159] sm:$0xff] %vm594, %v798
      %832 = vst.msk [vmem:[%s801 + $0x169] sm:$0xff] %vm594, %v799
      %833 = vst.msk [vmem:[%s801 + $0x171] sm:$0xff] %vm594, %v800
      %v834 = vld [vmem:[#allocation2] sm:$0xff]
      %v835 = vld [vmem:[#allocation2 + $0x8] sm:$0xff]
      %v836 = vld [vmem:[#allocation2 + $0x10] sm:$0x3]
      %v837 = vld [vmem:[#allocation2 + $0x18] sm:$0xff]
      %v838 = vld [vmem:[#allocation2 + $0x20] sm:$0xff]
      %v839 = vld [vmem:[#allocation2 + $0x28] sm:$0x3]
      %v840 = vld [vmem:[#allocation2 + $0x30] sm:$0xff]
      %v841 = vld [vmem:[#allocation2 + $0x38] sm:$0xff]
      %v842 = vld [vmem:[#allocation2 + $0x40] sm:$0x3]
      %v843 = vld [vmem:[#allocation2 + $0x48] sm:$0xff]
      %v844 = vld [vmem:[#allocation2 + $0x50] sm:$0xff]
      %v845 = vld [vmem:[#allocation2 + $0x58] sm:$0x3]
      %v846 = vld [vmem:[#allocation2 + $0x60] sm:$0xff]
      %v847 = vld [vmem:[#allocation2 + $0x68] sm:$0xff]
      %v848 = vld [vmem:[#allocation2 + $0x70] sm:$0x3]
      %v849 = vld [vmem:[#allocation2 + $0x78] sm:$0xff]
      %v850 = vld [vmem:[#allocation2 + $0x80] sm:$0xff]
      %v851 = vld [vmem:[#allocation2 + $0x88] sm:$0x3]
      %v852 = vld [vmem:[#allocation2 + $0x90] sm:$0xff]
      %v853 = vld [vmem:[#allocation2 + $0x98] sm:$0xff]
      %v854 = vld [vmem:[#allocation2 + $0xa0] sm:$0x3]
      %v855 = vld [vmem:[#allocation2 + $0xa8] sm:$0xff]
      %v856 = vld [vmem:[#allocation2 + $0xb0] sm:$0xff]
      %v857 = vld [vmem:[#allocation2 + $0xb8] sm:$0x3]
      %v858 = vld [vmem:[#allocation2 + $0xc0] sm:$0xff]
      %v859 = vld [vmem:[#allocation2 + $0xc8] sm:$0xff]
      %v860 = vld [vmem:[#allocation2 + $0xd0] sm:$0x3]
      %v861 = vld [vmem:[#allocation2 + $0xd8] sm:$0xff]
      %v862 = vld [vmem:[#allocation2 + $0xe0] sm:$0xff]
      %v863 = vld [vmem:[#allocation2 + $0xe8] sm:$0x3]
      %v864 = vld [vmem:[#allocation2 + $0xf0] sm:$0xff]
      %v865 = vld [vmem:[#allocation2 + $0xf8] sm:$0xff]
      %v866 = vld [vmem:[#allocation2 + $0x100] sm:$0x3]
      %v867 = vld [vmem:[#allocation2 + $0x108] sm:$0xff]
      %v868 = vld [vmem:[#allocation2 + $0x110] sm:$0xff]
      %v869 = vld [vmem:[#allocation2 + $0x118] sm:$0x3]
      %v870 = vld [vmem:[#allocation2 + $0x120] sm:$0xff]
      %v871 = vld [vmem:[#allocation2 + $0x128] sm:$0xff]
      %v872 = vld [vmem:[#allocation2 + $0x130] sm:$0x3]
      %v873 = vld [vmem:[#allocation2 + $0x138] sm:$0xff]
      %v874 = vld [vmem:[#allocation2 + $0x140] sm:$0xff]
      %v875 = vld [vmem:[#allocation2 + $0x148] sm:$0x3]
      %v876 = vld [vmem:[#allocation2 + $0x150] sm:$0xff]
      %v877 = vld [vmem:[#allocation2 + $0x158] sm:$0xff]
      %v878 = vld [vmem:[#allocation2 + $0x160] sm:$0x3]
      %v879 = vld [vmem:[#allocation2 + $0x168] sm:$0xff]
      %v880 = vld [vmem:[#allocation2 + $0x170] sm:$0xff]
      %v881 = vld [vmem:[#allocation2 + $0x178] sm:$0x3]
      %v882 = vld [vmem:[#allocation2 + $0x180] sm:$0xff]
      %v883 = vld [vmem:[#allocation2 + $0x188] sm:$0xff]
      %v884 = vld [vmem:[#allocation2 + $0x190] sm:$0x3]
      %v885 = vld [vmem:[#allocation2 + $0x198] sm:$0xff]
      %v886 = vld [vmem:[#allocation2 + $0x1a0] sm:$0xff]
      %v887 = vld [vmem:[#allocation2 + $0x1a8] sm:$0x3]
      %v888 = vld [vmem:[#allocation2 + $0x1b0] sm:$0xff]
      %v889 = vld [vmem:[#allocation2 + $0x1b8] sm:$0xff]
      %v890 = vld [vmem:[#allocation2 + $0x1c0] sm:$0x3]
      %v891 = vld [vmem:[#allocation2 + $0x1c8] sm:$0xff]
      %v892 = vld [vmem:[#allocation2 + $0x1d0] sm:$0xff]
      %v893 = vld [vmem:[#allocation2 + $0x1d8] sm:$0x3]
      %v894 = vld [vmem:[#allocation2 + $0x1e0] sm:$0xff]
      %v895 = vld [vmem:[#allocation2 + $0x1e8] sm:$0xff]
      %v896 = vld [vmem:[#allocation2 + $0x1f0] sm:$0x3]
      %v897 = vld [vmem:[#allocation2 + $0x1f8] sm:$0xff]
      %v898 = vld [vmem:[#allocation2 + $0x200] sm:$0xff]
      %v899 = vld [vmem:[#allocation2 + $0x208] sm:$0x3]
      %v900 = vld [vmem:[#allocation2 + $0x210] sm:$0xff]
      %v901 = vld [vmem:[#allocation2 + $0x218] sm:$0xff]
      %v902 = vld [vmem:[#allocation2 + $0x220] sm:$0x3]
      %v903 = vld [vmem:[#allocation2 + $0x228] sm:$0xff]
      %v904 = vld [vmem:[#allocation2 + $0x230] sm:$0xff]
      %v905 = vld [vmem:[#allocation2 + $0x238] sm:$0x3]
      %v906 = vld [vmem:[#allocation2 + $0x240] sm:$0xff]
      %v907 = vld [vmem:[#allocation2 + $0x248] sm:$0xff]
      %v908 = vld [vmem:[#allocation2 + $0x250] sm:$0x3]
      %v909 = vld [vmem:[#allocation2 + $0x258] sm:$0xff]
      %v910 = vld [vmem:[#allocation2 + $0x260] sm:$0xff]
      %v911 = vld [vmem:[#allocation2 + $0x268] sm:$0x3]
      %v912 = vld [vmem:[#allocation2 + $0x270] sm:$0xff]
      %v913 = vld [vmem:[#allocation2 + $0x278] sm:$0xff]
      %v914 = vld [vmem:[#allocation2 + $0x280] sm:$0x3]
      %v915 = vld [vmem:[#allocation2 + $0x288] sm:$0xff]
      %v916 = vld [vmem:[#allocation2 + $0x290] sm:$0xff]
      %v917 = vld [vmem:[#allocation2 + $0x298] sm:$0x3]
      %v918 = vld [vmem:[#allocation2 + $0x2a0] sm:$0xff]
      %v919 = vld [vmem:[#allocation2 + $0x2a8] sm:$0xff]
      %v920 = vld [vmem:[#allocation2 + $0x2b0] sm:$0x3]
      %v921 = vld [vmem:[#allocation2 + $0x2b8] sm:$0xff]
      %v922 = vld [vmem:[#allocation2 + $0x2c0] sm:$0xff]
      %v923 = vld [vmem:[#allocation2 + $0x2c8] sm:$0x3]
      %v924 = vld [vmem:[#allocation2 + $0x2d0] sm:$0xff]
      %v925 = vld [vmem:[#allocation2 + $0x2d8] sm:$0xff]
      %v926 = vld [vmem:[#allocation2 + $0x2e0] sm:$0x3]
      %v927 = vld [vmem:[#allocation2 + $0x2e8] sm:$0xff]
      %v928 = vld [vmem:[#allocation2 + $0x2f0] sm:$0xff]
      %v929 = vld [vmem:[#allocation2 + $0x2f8] sm:$0x3]
      %v930 = vld [vmem:[#allocation2 + $0x300] sm:$0xff]
      %v931 = vld [vmem:[#allocation2 + $0x308] sm:$0xff]
      %v932 = vld [vmem:[#allocation2 + $0x310] sm:$0x3]
      %v933 = vld [vmem:[#allocation2 + $0x318] sm:$0xff]
      %v934 = vld [vmem:[#allocation2 + $0x320] sm:$0xff]
      %v935 = vld [vmem:[#allocation2 + $0x328] sm:$0x3]
      %v936 = vld [vmem:[#allocation2 + $0x330] sm:$0xff]
      %v937 = vld [vmem:[#allocation2 + $0x338] sm:$0xff]
      %v938 = vld [vmem:[#allocation2 + $0x340] sm:$0x3]
      %v939 = vld [vmem:[#allocation2 + $0x348] sm:$0xff]
      %v940 = vld [vmem:[#allocation2 + $0x350] sm:$0xff]
      %v941 = vld [vmem:[#allocation2 + $0x358] sm:$0x3]
      %v942 = vld [vmem:[%s2] sm:$0x1]
      %944 = vset.pattern.permute.xlu0 0
      %945 = vperm.xlu0 %944, %v834
      %v946 = vpop.permute.xlu0 %945
      %949 = vset.pattern.permute.xlu0 0
      %950 = vperm.xlu0 %949, %v835
      %v951 = vpop.permute.xlu0 %950
      %954 = vset.pattern.permute.xlu0 0
      %955 = vperm.xlu0 %954, %v837
      %v956 = vpop.permute.xlu0 %955
      %959 = vset.pattern.permute.xlu0 0
      %960 = vperm.xlu0 %959, %v838
      %v961 = vpop.permute.xlu0 %960
      %964 = vset.pattern.permute.xlu0 0
      %965 = vperm.xlu0 %964, %v840
      %v966 = vpop.permute.xlu0 %965
      %969 = vset.pattern.permute.xlu0 0
      %970 = vperm.xlu0 %969, %v841
      %v971 = vpop.permute.xlu0 %970
      %974 = vset.pattern.permute.xlu0 0
      %975 = vperm.xlu0 %974, %v843
      %v976 = vpop.permute.xlu0 %975
      %979 = vset.pattern.permute.xlu0 0
      %980 = vperm.xlu0 %979, %v844
      %v981 = vpop.permute.xlu0 %980
      %984 = vset.pattern.permute.xlu0 0
      %985 = vperm.xlu0 %984, %v846
      %v986 = vpop.permute.xlu0 %985
      %989 = vset.pattern.permute.xlu0 0
      %990 = vperm.xlu0 %989, %v847
      %v991 = vpop.permute.xlu0 %990
      %994 = vset.pattern.permute.xlu0 0
      %995 = vperm.xlu0 %994, %v849
      %v996 = vpop.permute.xlu0 %995
      %999 = vset.pattern.permute.xlu0 0
      %1000 = vperm.xlu0 %999, %v850
      %v1001 = vpop.permute.xlu0 %1000
      %1004 = vset.pattern.permute.xlu0 0
      %1005 = vperm.xlu0 %1004, %v852
      %v1006 = vpop.permute.xlu0 %1005
      %1009 = vset.pattern.permute.xlu0 0
      %1010 = vperm.xlu0 %1009, %v853
      %v1011 = vpop.permute.xlu0 %1010
      %1014 = vset.pattern.permute.xlu0 0
      %1015 = vperm.xlu0 %1014, %v855
      %v1016 = vpop.permute.xlu0 %1015
      %1019 = vset.pattern.permute.xlu0 0
      %1020 = vperm.xlu0 %1019, %v856
      %v1021 = vpop.permute.xlu0 %1020
      %1024 = vset.pattern.permute.xlu0 0
      %1025 = vperm.xlu0 %1024, %v858
      %v1026 = vpop.permute.xlu0 %1025
      %1029 = vset.pattern.permute.xlu0 0
      %1030 = vperm.xlu0 %1029, %v859
      %v1031 = vpop.permute.xlu0 %1030
      %1034 = vset.pattern.permute.xlu0 0
      %1035 = vperm.xlu0 %1034, %v861
      %v1036 = vpop.permute.xlu0 %1035
      %1039 = vset.pattern.permute.xlu0 0
      %1040 = vperm.xlu0 %1039, %v862
      %v1041 = vpop.permute.xlu0 %1040
      %1044 = vset.pattern.permute.xlu0 0
      %1045 = vperm.xlu0 %1044, %v864
      %v1046 = vpop.permute.xlu0 %1045
      %1049 = vset.pattern.permute.xlu0 0
      %1050 = vperm.xlu0 %1049, %v865
      %v1051 = vpop.permute.xlu0 %1050
      %1054 = vset.pattern.permute.xlu0 0
      %1055 = vperm.xlu0 %1054, %v867
      %v1056 = vpop.permute.xlu0 %1055
      %1059 = vset.pattern.permute.xlu0 0
      %1060 = vperm.xlu0 %1059, %v868
      %v1061 = vpop.permute.xlu0 %1060
      %1064 = vset.pattern.permute.xlu0 0
      %1065 = vperm.xlu0 %1064, %v870
      %v1066 = vpop.permute.xlu0 %1065
      %1069 = vset.pattern.permute.xlu0 0
      %1070 = vperm.xlu0 %1069, %v871
      %v1071 = vpop.permute.xlu0 %1070
      %1074 = vset.pattern.permute.xlu0 0
      %1075 = vperm.xlu0 %1074, %v873
      %v1076 = vpop.permute.xlu0 %1075
      %1079 = vset.pattern.permute.xlu0 0
      %1080 = vperm.xlu0 %1079, %v874
      %v1081 = vpop.permute.xlu0 %1080
      %1084 = vset.pattern.permute.xlu0 0
      %1085 = vperm.xlu0 %1084, %v876
      %v1086 = vpop.permute.xlu0 %1085
      %1089 = vset.pattern.permute.xlu0 0
      %1090 = vperm.xlu0 %1089, %v877
      %v1091 = vpop.permute.xlu0 %1090
      %1094 = vset.pattern.permute.xlu0 0
      %1095 = vperm.xlu0 %1094, %v879
      %v1096 = vpop.permute.xlu0 %1095
      %1099 = vset.pattern.permute.xlu0 0
      %1100 = vperm.xlu0 %1099, %v880
      %v1101 = vpop.permute.xlu0 %1100
      %1104 = vset.pattern.permute.xlu0 0
      %1105 = vperm.xlu0 %1104, %v888
      %v1106 = vpop.permute.xlu0 %1105
      %1109 = vset.pattern.permute.xlu0 0
      %1110 = vperm.xlu0 %1109, %v889
      %v1111 = vpop.permute.xlu0 %1110
      %1114 = vset.pattern.permute.xlu0 0
      %1115 = vperm.xlu0 %1114, %v891
      %v1116 = vpop.permute.xlu0 %1115
      %1119 = vset.pattern.permute.xlu0 0
      %1120 = vperm.xlu0 %1119, %v892
      %v1121 = vpop.permute.xlu0 %1120
      %1124 = vset.pattern.permute.xlu0 0
      %1125 = vperm.xlu0 %1124, %v894
      %v1126 = vpop.permute.xlu0 %1125
      %1129 = vset.pattern.permute.xlu0 0
      %1130 = vperm.xlu0 %1129, %v895
      %v1131 = vpop.permute.xlu0 %1130
      %1134 = vset.pattern.permute.xlu0 0
      %1135 = vperm.xlu0 %1134, %v897
      %v1136 = vpop.permute.xlu0 %1135
      %1139 = vset.pattern.permute.xlu0 0
      %1140 = vperm.xlu0 %1139, %v898
      %v1141 = vpop.permute.xlu0 %1140
      %1144 = vset.pattern.permute.xlu0 0
      %1145 = vperm.xlu0 %1144, %v900
      %v1146 = vpop.permute.xlu0 %1145
      %1149 = vset.pattern.permute.xlu0 0
      %1150 = vperm.xlu0 %1149, %v901
      %v1151 = vpop.permute.xlu0 %1150
      %1154 = vset.pattern.permute.xlu0 0
      %1155 = vperm.xlu0 %1154, %v903
      %v1156 = vpop.permute.xlu0 %1155
      %1159 = vset.pattern.permute.xlu0 0
      %1160 = vperm.xlu0 %1159, %v904
      %v1161 = vpop.permute.xlu0 %1160
      %1164 = vset.pattern.permute.xlu0 0
      %1165 = vperm.xlu0 %1164, %v906
      %v1166 = vpop.permute.xlu0 %1165
      %1169 = vset.pattern.permute.xlu0 0
      %1170 = vperm.xlu0 %1169, %v907
      %v1171 = vpop.permute.xlu0 %1170
      %1174 = vset.pattern.permute.xlu0 0
      %1175 = vperm.xlu0 %1174, %v909
      %v1176 = vpop.permute.xlu0 %1175
      %1179 = vset.pattern.permute.xlu0 0
      %1180 = vperm.xlu0 %1179, %v910
      %v1181 = vpop.permute.xlu0 %1180
      %1184 = vset.pattern.permute.xlu0 0
      %1185 = vperm.xlu0 %1184, %v912
      %v1186 = vpop.permute.xlu0 %1185
      %1189 = vset.pattern.permute.xlu0 0
      %1190 = vperm.xlu0 %1189, %v913
      %v1191 = vpop.permute.xlu0 %1190
      %1194 = vset.pattern.permute.xlu0 0
      %1195 = vperm.xlu0 %1194, %v915
      %v1196 = vpop.permute.xlu0 %1195
      %1199 = vset.pattern.permute.xlu0 0
      %1200 = vperm.xlu0 %1199, %v916
      %v1201 = vpop.permute.xlu0 %1200
      %1204 = vset.pattern.permute.xlu0 0
      %1205 = vperm.xlu0 %1204, %v918
      %v1206 = vpop.permute.xlu0 %1205
      %1209 = vset.pattern.permute.xlu0 0
      %1210 = vperm.xlu0 %1209, %v919
      %v1211 = vpop.permute.xlu0 %1210
      %1214 = vset.pattern.permute.xlu0 0
      %1215 = vperm.xlu0 %1214, %v921
      %v1216 = vpop.permute.xlu0 %1215
      %1219 = vset.pattern.permute.xlu0 0
      %1220 = vperm.xlu0 %1219, %v922
      %v1221 = vpop.permute.xlu0 %1220
      %1224 = vset.pattern.permute.xlu0 0
      %1225 = vperm.xlu0 %1224, %v924
      %v1226 = vpop.permute.xlu0 %1225
      %1229 = vset.pattern.permute.xlu0 0
      %1230 = vperm.xlu0 %1229, %v925
      %v1231 = vpop.permute.xlu0 %1230
      %1234 = vset.pattern.permute.xlu0 0
      %1235 = vperm.xlu0 %1234, %v927
      %v1236 = vpop.permute.xlu0 %1235
      %1239 = vset.pattern.permute.xlu0 0
      %1240 = vperm.xlu0 %1239, %v928
      %v1241 = vpop.permute.xlu0 %1240
      %1244 = vset.pattern.permute.xlu0 0
      %1245 = vperm.xlu0 %1244, %v930
      %v1246 = vpop.permute.xlu0 %1245
      %1249 = vset.pattern.permute.xlu0 0
      %1250 = vperm.xlu0 %1249, %v931
      %v1251 = vpop.permute.xlu0 %1250
      %1254 = vset.pattern.permute.xlu0 0
      %1255 = vperm.xlu0 %1254, %v933
      %v1256 = vpop.permute.xlu0 %1255
      %1259 = vset.pattern.permute.xlu0 0
      %1260 = vperm.xlu0 %1259, %v934
      %v1261 = vpop.permute.xlu0 %1260
      %v1263 = vperm.slane %v942, 0
      %v1264 = vmul.f32 %v946, %v1263
      %v1265 = vmul.f32 %v951, %v1263
      %v1266 = vmul.f32 %v956, %v1263
      %v1267 = vmul.f32 %v961, %v1263
      %v1268 = vmul.f32 %v966, %v1263
      %v1269 = vmul.f32 %v971, %v1263
      %v1270 = vmul.f32 %v976, %v1263
      %v1271 = vmul.f32 %v981, %v1263
      %v1272 = vmul.f32 %v986, %v1263
      %v1273 = vmul.f32 %v991, %v1263
      %v1274 = vmul.f32 %v996, %v1263
      %v1275 = vmul.f32 %v1001, %v1263
      %v1276 = vmul.f32 %v1006, %v1263
      %v1277 = vmul.f32 %v1011, %v1263
      %v1278 = vmul.f32 %v1016, %v1263
      %v1279 = vmul.f32 %v1021, %v1263
      %v1280 = vmul.f32 %v1026, %v1263
      %v1281 = vmul.f32 %v1031, %v1263
      %v1282 = vmul.f32 %v1036, %v1263
      %v1283 = vmul.f32 %v1041, %v1263
      %v1284 = vmul.f32 %v1046, %v1263
      %v1285 = vmul.f32 %v1051, %v1263
      %v1286 = vmul.f32 %v1056, %v1263
      %v1287 = vmul.f32 %v1061, %v1263
      %v1288 = vmul.f32 %v1066, %v1263
      %v1289 = vmul.f32 %v1071, %v1263
      %v1290 = vmul.f32 %v1076, %v1263
      %v1291 = vmul.f32 %v1081, %v1263
      %v1292 = vmul.f32 %v1086, %v1263
      %v1293 = vmul.f32 %v1091, %v1263
      %v1294 = vmul.f32 %v1096, %v1263
      %v1295 = vmul.f32 %v1101, %v1263
      %v1296 = vmul.f32 %v1106, %v1263
      %v1297 = vmul.f32 %v1111, %v1263
      %v1298 = vmul.f32 %v1116, %v1263
      %v1299 = vmul.f32 %v1121, %v1263
      %v1300 = vmul.f32 %v1126, %v1263
      %v1301 = vmul.f32 %v1131, %v1263
      %v1302 = vmul.f32 %v1136, %v1263
      %v1303 = vmul.f32 %v1141, %v1263
      %v1304 = vmul.f32 %v1146, %v1263
      %v1305 = vmul.f32 %v1151, %v1263
      %v1306 = vmul.f32 %v1156, %v1263
      %v1307 = vmul.f32 %v1161, %v1263
      %v1308 = vmul.f32 %v1166, %v1263
      %v1309 = vmul.f32 %v1171, %v1263
      %v1310 = vmul.f32 %v1176, %v1263
      %v1311 = vmul.f32 %v1181, %v1263
      %v1312 = vmul.f32 %v1186, %v1263
      %v1313 = vmul.f32 %v1191, %v1263
      %v1314 = vmul.f32 %v1196, %v1263
      %v1315 = vmul.f32 %v1201, %v1263
      %v1316 = vmul.f32 %v1206, %v1263
      %v1317 = vmul.f32 %v1211, %v1263
      %v1318 = vmul.f32 %v1216, %v1263
      %v1319 = vmul.f32 %v1221, %v1263
      %v1320 = vmul.f32 %v1226, %v1263
      %v1321 = vmul.f32 %v1231, %v1263
      %v1322 = vmul.f32 %v1236, %v1263
      %v1323 = vmul.f32 %v1241, %v1263
      %v1324 = vmul.f32 %v1246, %v1263
      %v1325 = vmul.f32 %v1251, %v1263
      %v1326 = vmul.f32 %v1256, %v1263
      %v1327 = vmul.f32 %v1261, %v1263
      %v1328 = vadd.f32 %v1264, 0.0
      %v1329 = vadd.f32 %v1265, 0.0
      %v1330 = vadd.f32 %v1266, 0.0
      %v1331 = vadd.f32 %v1267, 0.0
      %v1332 = vadd.f32 %v1268, 0.0
      %v1333 = vadd.f32 %v1269, 0.0
      %v1334 = vadd.f32 %v1270, 0.0
      %v1335 = vadd.f32 %v1271, 0.0
      %v1336 = vadd.f32 %v1272, 0.0
      %v1337 = vadd.f32 %v1273, 0.0
      %v1338 = vadd.f32 %v1274, 0.0
      %v1339 = vadd.f32 %v1275, 0.0
      %v1340 = vadd.f32 %v1276, 0.0
      %v1341 = vadd.f32 %v1277, 0.0
      %v1342 = vadd.f32 %v1278, 0.0
      %v1343 = vadd.f32 %v1279, 0.0
      %v1344 = vadd.f32 %v1280, 0.0
      %v1345 = vadd.f32 %v1281, 0.0
      %v1346 = vadd.f32 %v1282, 0.0
      %v1347 = vadd.f32 %v1283, 0.0
      %v1348 = vadd.f32 %v1284, 0.0
      %v1349 = vadd.f32 %v1285, 0.0
      %v1350 = vadd.f32 %v1286, 0.0
      %v1351 = vadd.f32 %v1287, 0.0
      %v1352 = vadd.f32 %v1288, 0.0
      %v1353 = vadd.f32 %v1289, 0.0
      %v1354 = vadd.f32 %v1290, 0.0
      %v1355 = vadd.f32 %v1291, 0.0
      %v1356 = vadd.f32 %v1292, 0.0
      %v1357 = vadd.f32 %v1293, 0.0
      %v1358 = vadd.f32 %v1294, 0.0
      %v1359 = vadd.f32 %v1295, 0.0
      %v1360 = vadd.f32 %v1296, 0.0
      %v1361 = vadd.f32 %v1297, 0.0
      %v1362 = vadd.f32 %v1298, 0.0
      %v1363 = vadd.f32 %v1299, 0.0
      %v1364 = vadd.f32 %v1300, 0.0
      %v1365 = vadd.f32 %v1301, 0.0
      %v1366 = vadd.f32 %v1302, 0.0
      %v1367 = vadd.f32 %v1303, 0.0
      %v1368 = vadd.f32 %v1304, 0.0
      %v1369 = vadd.f32 %v1305, 0.0
      %v1370 = vadd.f32 %v1306, 0.0
      %v1371 = vadd.f32 %v1307, 0.0
      %v1372 = vadd.f32 %v1308, 0.0
      %v1373 = vadd.f32 %v1309, 0.0
      %v1374 = vadd.f32 %v1310, 0.0
      %v1375 = vadd.f32 %v1311, 0.0
      %v1376 = vadd.f32 %v1312, 0.0
      %v1377 = vadd.f32 %v1313, 0.0
      %v1378 = vadd.f32 %v1314, 0.0
      %v1379 = vadd.f32 %v1315, 0.0
      %v1380 = vadd.f32 %v1316, 0.0
      %v1381 = vadd.f32 %v1317, 0.0
      %v1382 = vadd.f32 %v1318, 0.0
      %v1383 = vadd.f32 %v1319, 0.0
      %v1384 = vadd.f32 %v1320, 0.0
      %v1385 = vadd.f32 %v1321, 0.0
      %v1386 = vadd.f32 %v1322, 0.0
      %v1387 = vadd.f32 %v1323, 0.0
      %v1388 = vadd.f32 %v1324, 0.0
      %v1389 = vadd.f32 %v1325, 0.0
      %v1390 = vadd.f32 %v1326, 0.0
      %v1391 = vadd.f32 %v1327, 0.0
      %v1392 = vld [vmem:[%s2 + $0x1] sm:$0x1]
      %1394 = vset.pattern.permute.xlu0 0
      %1395 = vperm.xlu0 %1394, %v836
      %v1396 = vpop.permute.xlu0 %1395
      %1399 = vset.pattern.permute.xlu0 0
      %1400 = vperm.xlu0 %1399, %v839
      %v1401 = vpop.permute.xlu0 %1400
      %1404 = vset.pattern.permute.xlu0 0
      %1405 = vperm.xlu0 %1404, %v842
      %v1406 = vpop.permute.xlu0 %1405
      %1409 = vset.pattern.permute.xlu0 0
      %1410 = vperm.xlu0 %1409, %v845
      %v1411 = vpop.permute.xlu0 %1410
      %1414 = vset.pattern.permute.xlu0 0
      %1415 = vperm.xlu0 %1414, %v848
      %v1416 = vpop.permute.xlu0 %1415
      %1419 = vset.pattern.permute.xlu0 0
      %1420 = vperm.xlu0 %1419, %v851
      %v1421 = vpop.permute.xlu0 %1420
      %1424 = vset.pattern.permute.xlu0 0
      %1425 = vperm.xlu0 %1424, %v854
      %v1426 = vpop.permute.xlu0 %1425
      %1429 = vset.pattern.permute.xlu0 0
      %1430 = vperm.xlu0 %1429, %v857
      %v1431 = vpop.permute.xlu0 %1430
      %1434 = vset.pattern.permute.xlu0 0
      %1435 = vperm.xlu0 %1434, %v860
      %v1436 = vpop.permute.xlu0 %1435
      %1439 = vset.pattern.permute.xlu0 0
      %1440 = vperm.xlu0 %1439, %v863
      %v1441 = vpop.permute.xlu0 %1440
      %1444 = vset.pattern.permute.xlu0 0
      %1445 = vperm.xlu0 %1444, %v866
      %v1446 = vpop.permute.xlu0 %1445
      %1449 = vset.pattern.permute.xlu0 0
      %1450 = vperm.xlu0 %1449, %v869
      %v1451 = vpop.permute.xlu0 %1450
      %1454 = vset.pattern.permute.xlu0 0
      %1455 = vperm.xlu0 %1454, %v872
      %v1456 = vpop.permute.xlu0 %1455
      %1459 = vset.pattern.permute.xlu0 0
      %1460 = vperm.xlu0 %1459, %v875
      %v1461 = vpop.permute.xlu0 %1460
      %1464 = vset.pattern.permute.xlu0 0
      %1465 = vperm.xlu0 %1464, %v878
      %v1466 = vpop.permute.xlu0 %1465
      %1469 = vset.pattern.permute.xlu0 0
      %1470 = vperm.xlu0 %1469, %v881
      %v1471 = vpop.permute.xlu0 %1470
      %1474 = vset.pattern.permute.xlu0 0
      %1475 = vperm.xlu0 %1474, %v890
      %v1476 = vpop.permute.xlu0 %1475
      %1479 = vset.pattern.permute.xlu0 0
      %1480 = vperm.xlu0 %1479, %v893
      %v1481 = vpop.permute.xlu0 %1480
      %1484 = vset.pattern.permute.xlu0 0
      %1485 = vperm.xlu0 %1484, %v896
      %v1486 = vpop.permute.xlu0 %1485
      %1489 = vset.pattern.permute.xlu0 0
      %1490 = vperm.xlu0 %1489, %v899
      %v1491 = vpop.permute.xlu0 %1490
      %1494 = vset.pattern.permute.xlu0 0
      %1495 = vperm.xlu0 %1494, %v902
      %v1496 = vpop.permute.xlu0 %1495
      %1499 = vset.pattern.permute.xlu0 0
      %1500 = vperm.xlu0 %1499, %v905
      %v1501 = vpop.permute.xlu0 %1500
      %1504 = vset.pattern.permute.xlu0 0
      %1505 = vperm.xlu0 %1504, %v908
      %v1506 = vpop.permute.xlu0 %1505
      %1509 = vset.pattern.permute.xlu0 0
      %1510 = vperm.xlu0 %1509, %v911
      %v1511 = vpop.permute.xlu0 %1510
      %1514 = vset.pattern.permute.xlu0 0
      %1515 = vperm.xlu0 %1514, %v914
      %v1516 = vpop.permute.xlu0 %1515
      %1519 = vset.pattern.permute.xlu0 0
      %1520 = vperm.xlu0 %1519, %v917
      %v1521 = vpop.permute.xlu0 %1520
      %1524 = vset.pattern.permute.xlu0 0
      %1525 = vperm.xlu0 %1524, %v920
      %v1526 = vpop.permute.xlu0 %1525
      %1529 = vset.pattern.permute.xlu0 0
      %1530 = vperm.xlu0 %1529, %v923
      %v1531 = vpop.permute.xlu0 %1530
      %1534 = vset.pattern.permute.xlu0 0
      %1535 = vperm.xlu0 %1534, %v926
      %v1536 = vpop.permute.xlu0 %1535
      %1539 = vset.pattern.permute.xlu0 0
      %1540 = vperm.xlu0 %1539, %v929
      %v1541 = vpop.permute.xlu0 %1540
      %1544 = vset.pattern.permute.xlu0 0
      %1545 = vperm.xlu0 %1544, %v932
      %v1546 = vpop.permute.xlu0 %1545
      %1549 = vset.pattern.permute.xlu0 0
      %1550 = vperm.xlu0 %1549, %v935
      %v1551 = vpop.permute.xlu0 %1550
      %v1553 = vperm.slane %v1392, 0
      %v1554 = vmul.f32 %v946, %v1553
      %v1555 = vmul.f32 %v951, %v1553
      %v1556 = vmul.f32 %v1396, %v1553
      %v1557 = vmul.f32 %v956, %v1553
      %v1558 = vmul.f32 %v961, %v1553
      %v1559 = vmul.f32 %v1401, %v1553
      %v1560 = vmul.f32 %v966, %v1553
      %v1561 = vmul.f32 %v971, %v1553
      %v1562 = vmul.f32 %v1406, %v1553
      %v1563 = vmul.f32 %v976, %v1553
      %v1564 = vmul.f32 %v981, %v1553
      %v1565 = vmul.f32 %v1411, %v1553
      %v1566 = vmul.f32 %v986, %v1553
      %v1567 = vmul.f32 %v991, %v1553
      %v1568 = vmul.f32 %v1416, %v1553
      %v1569 = vmul.f32 %v996, %v1553
      %v1570 = vmul.f32 %v1001, %v1553
      %v1571 = vmul.f32 %v1421, %v1553
      %v1572 = vmul.f32 %v1006, %v1553
      %v1573 = vmul.f32 %v1011, %v1553
      %v1574 = vmul.f32 %v1426, %v1553
      %v1575 = vmul.f32 %v1016, %v1553
      %v1576 = vmul.f32 %v1021, %v1553
      %v1577 = vmul.f32 %v1431, %v1553
      %v1578 = vmul.f32 %v1026, %v1553
      %v1579 = vmul.f32 %v1031, %v1553
      %v1580 = vmul.f32 %v1436, %v1553
      %v1581 = vmul.f32 %v1036, %v1553
      %v1582 = vmul.f32 %v1041, %v1553
      %v1583 = vmul.f32 %v1441, %v1553
      %v1584 = vmul.f32 %v1046, %v1553
      %v1585 = vmul.f32 %v1051, %v1553
      %v1586 = vmul.f32 %v1446, %v1553
      %v1587 = vmul.f32 %v1056, %v1553
      %v1588 = vmul.f32 %v1061, %v1553
      %v1589 = vmul.f32 %v1451, %v1553
      %v1590 = vmul.f32 %v1066, %v1553
      %v1591 = vmul.f32 %v1071, %v1553
      %v1592 = vmul.f32 %v1456, %v1553
      %v1593 = vmul.f32 %v1076, %v1553
      %v1594 = vmul.f32 %v1081, %v1553
      %v1595 = vmul.f32 %v1461, %v1553
      %v1596 = vmul.f32 %v1086, %v1553
      %v1597 = vmul.f32 %v1091, %v1553
      %v1598 = vmul.f32 %v1466, %v1553
      %v1599 = vmul.f32 %v1096, %v1553
      %v1600 = vmul.f32 %v1101, %v1553
      %v1601 = vmul.f32 %v1471, %v1553
      %v1602 = vmul.f32 %v1106, %v1553
      %v1603 = vmul.f32 %v1111, %v1553
      %v1604 = vmul.f32 %v1476, %v1553
      %v1605 = vmul.f32 %v1116, %v1553
      %v1606 = vmul.f32 %v1121, %v1553
      %v1607 = vmul.f32 %v1481, %v1553
      %v1608 = vmul.f32 %v1126, %v1553
      %v1609 = vmul.f32 %v1131, %v1553
      %v1610 = vmul.f32 %v1486, %v1553
      %v1611 = vmul.f32 %v1136, %v1553
      %v1612 = vmul.f32 %v1141, %v1553
      %v1613 = vmul.f32 %v1491, %v1553
      %v1614 = vmul.f32 %v1146, %v1553
      %v1615 = vmul.f32 %v1151, %v1553
      %v1616 = vmul.f32 %v1496, %v1553
      %v1617 = vmul.f32 %v1156, %v1553
      %v1618 = vmul.f32 %v1161, %v1553
      %v1619 = vmul.f32 %v1501, %v1553
      %v1620 = vmul.f32 %v1166, %v1553
      %v1621 = vmul.f32 %v1171, %v1553
      %v1622 = vmul.f32 %v1506, %v1553
      %v1623 = vmul.f32 %v1176, %v1553
      %v1624 = vmul.f32 %v1181, %v1553
      %v1625 = vmul.f32 %v1511, %v1553
      %v1626 = vmul.f32 %v1186, %v1553
      %v1627 = vmul.f32 %v1191, %v1553
      %v1628 = vmul.f32 %v1516, %v1553
      %v1629 = vmul.f32 %v1196, %v1553
      %v1630 = vmul.f32 %v1201, %v1553
      %v1631 = vmul.f32 %v1521, %v1553
      %v1632 = vmul.f32 %v1206, %v1553
      %v1633 = vmul.f32 %v1211, %v1553
      %v1634 = vmul.f32 %v1526, %v1553
      %v1635 = vmul.f32 %v1216, %v1553
      %v1636 = vmul.f32 %v1221, %v1553
      %v1637 = vmul.f32 %v1531, %v1553
      %v1638 = vmul.f32 %v1226, %v1553
      %v1639 = vmul.f32 %v1231, %v1553
      %v1640 = vmul.f32 %v1536, %v1553
      %v1641 = vmul.f32 %v1236, %v1553
      %v1642 = vmul.f32 %v1241, %v1553
      %v1643 = vmul.f32 %v1541, %v1553
      %v1644 = vmul.f32 %v1246, %v1553
      %v1645 = vmul.f32 %v1251, %v1553
      %v1646 = vmul.f32 %v1546, %v1553
      %v1647 = vmul.f32 %v1256, %v1553
      %v1648 = vmul.f32 %v1261, %v1553
      %v1649 = vmul.f32 %v1551, %v1553
      %vm1746 = vcmask 1046528
      %v1747 = vrot.slane %v1554, 1
      %v1748 = vrot.slane %v1555, 1
      %v1749 = vsel %vm1746, %v1747, %v1748
      %v1750 = vrot.slane %v1556, 1
      %v1751 = vsel %vm1746, %v1748, %v1750
      %v1752 = vrot.slane %v1557, 1
      %v1753 = vrot.slane %v1558, 1
      %v1754 = vsel %vm1746, %v1752, %v1753
      %v1755 = vrot.slane %v1559, 1
      %v1756 = vsel %vm1746, %v1753, %v1755
      %v1757 = vrot.slane %v1560, 1
      %v1758 = vrot.slane %v1561, 1
      %v1759 = vsel %vm1746, %v1757, %v1758
      %v1760 = vrot.slane %v1562, 1
      %v1761 = vsel %vm1746, %v1758, %v1760
      %v1762 = vrot.slane %v1563, 1
      %v1763 = vrot.slane %v1564, 1
      %v1764 = vsel %vm1746, %v1762, %v1763
      %v1765 = vrot.slane %v1565, 1
      %v1766 = vsel %vm1746, %v1763, %v1765
      %v1767 = vrot.slane %v1566, 1
      %v1768 = vrot.slane %v1567, 1
      %v1769 = vsel %vm1746, %v1767, %v1768
      %v1770 = vrot.slane %v1568, 1
      %v1771 = vsel %vm1746, %v1768, %v1770
      %v1772 = vrot.slane %v1569, 1
      %v1773 = vrot.slane %v1570, 1
      %v1774 = vsel %vm1746, %v1772, %v1773
      %v1775 = vrot.slane %v1571, 1
      %v1776 = vsel %vm1746, %v1773, %v1775
      %v1777 = vrot.slane %v1572, 1
      %v1778 = vrot.slane %v1573, 1
      %v1779 = vsel %vm1746, %v1777, %v1778
      %v1780 = vrot.slane %v1574, 1
      %v1781 = vsel %vm1746, %v1778, %v1780
      %v1782 = vrot.slane %v1575, 1
      %v1783 = vrot.slane %v1576, 1
      %v1784 = vsel %vm1746, %v1782, %v1783
      %v1785 = vrot.slane %v1577, 1
      %v1786 = vsel %vm1746, %v1783, %v1785
      %v1787 = vrot.slane %v1578, 1
      %v1788 = vrot.slane %v1579, 1
      %v1789 = vsel %vm1746, %v1787, %v1788
      %v1790 = vrot.slane %v1580, 1
      %v1791 = vsel %vm1746, %v1788, %v1790
      %v1792 = vrot.slane %v1581, 1
      %v1793 = vrot.slane %v1582, 1
      %v1794 = vsel %vm1746, %v1792, %v1793
      %v1795 = vrot.slane %v1583, 1
      %v1796 = vsel %vm1746, %v1793, %v1795
      %v1797 = vrot.slane %v1584, 1
      %v1798 = vrot.slane %v1585, 1
      %v1799 = vsel %vm1746, %v1797, %v1798
      %v1800 = vrot.slane %v1586, 1
      %v1801 = vsel %vm1746, %v1798, %v1800
      %v1802 = vrot.slane %v1587, 1
      %v1803 = vrot.slane %v1588, 1
      %v1804 = vsel %vm1746, %v1802, %v1803
      %v1805 = vrot.slane %v1589, 1
      %v1806 = vsel %vm1746, %v1803, %v1805
      %v1807 = vrot.slane %v1590, 1
      %v1808 = vrot.slane %v1591, 1
      %v1809 = vsel %vm1746, %v1807, %v1808
      %v1810 = vrot.slane %v1592, 1
      %v1811 = vsel %vm1746, %v1808, %v1810
      %v1812 = vrot.slane %v1593, 1
      %v1813 = vrot.slane %v1594, 1
      %v1814 = vsel %vm1746, %v1812, %v1813
      %v1815 = vrot.slane %v1595, 1
      %v1816 = vsel %vm1746, %v1813, %v1815
      %v1817 = vrot.slane %v1596, 1
      %v1818 = vrot.slane %v1597, 1
      %v1819 = vsel %vm1746, %v1817, %v1818
      %v1820 = vrot.slane %v1598, 1
      %v1821 = vsel %vm1746, %v1818, %v1820
      %v1822 = vrot.slane %v1599, 1
      %v1823 = vrot.slane %v1600, 1
      %v1824 = vsel %vm1746, %v1822, %v1823
      %v1825 = vrot.slane %v1601, 1
      %v1826 = vsel %vm1746, %v1823, %v1825
      %v1827 = vrot.slane %v1602, 1
      %v1828 = vrot.slane %v1603, 1
      %v1829 = vsel %vm1746, %v1827, %v1828
      %v1830 = vrot.slane %v1604, 1
      %v1831 = vsel %vm1746, %v1828, %v1830
      %v1832 = vrot.slane %v1605, 1
      %v1833 = vrot.slane %v1606, 1
      %v1834 = vsel %vm1746, %v1832, %v1833
      %v1835 = vrot.slane %v1607, 1
      %v1836 = vsel %vm1746, %v1833, %v1835
      %v1837 = vrot.slane %v1608, 1
      %v1838 = vrot.slane %v1609, 1
      %v1839 = vsel %vm1746, %v1837, %v1838
      %v1840 = vrot.slane %v1610, 1
      %v1841 = vsel %vm1746, %v1838, %v1840
      %v1842 = vrot.slane %v1611, 1
      %v1843 = vrot.slane %v1612, 1
      %v1844 = vsel %vm1746, %v1842, %v1843
      %v1845 = vrot.slane %v1613, 1
      %v1846 = vsel %vm1746, %v1843, %v1845
      %v1847 = vrot.slane %v1614, 1
      %v1848 = vrot.slane %v1615, 1
      %v1849 = vsel %vm1746, %v1847, %v1848
      %v1850 = vrot.slane %v1616, 1
      %v1851 = vsel %vm1746, %v1848, %v1850
      %v1852 = vrot.slane %v1617, 1
      %v1853 = vrot.slane %v1618, 1
      %v1854 = vsel %vm1746, %v1852, %v1853
      %v1855 = vrot.slane %v1619, 1
      %v1856 = vsel %vm1746, %v1853, %v1855
      %v1857 = vrot.slane %v1620, 1
      %v1858 = vrot.slane %v1621, 1
      %v1859 = vsel %vm1746, %v1857, %v1858
      %v1860 = vrot.slane %v1622, 1
      %v1861 = vsel %vm1746, %v1858, %v1860
      %v1862 = vrot.slane %v1623, 1
      %v1863 = vrot.slane %v1624, 1
      %v1864 = vsel %vm1746, %v1862, %v1863
      %v1865 = vrot.slane %v1625, 1
      %v1866 = vsel %vm1746, %v1863, %v1865
      %v1867 = vrot.slane %v1626, 1
      %v1868 = vrot.slane %v1627, 1
      %v1869 = vsel %vm1746, %v1867, %v1868
      %v1870 = vrot.slane %v1628, 1
      %v1871 = vsel %vm1746, %v1868, %v1870
      %v1872 = vrot.slane %v1629, 1
      %v1873 = vrot.slane %v1630, 1
      %v1874 = vsel %vm1746, %v1872, %v1873
      %v1875 = vrot.slane %v1631, 1
      %v1876 = vsel %vm1746, %v1873, %v1875
      %v1877 = vrot.slane %v1632, 1
      %v1878 = vrot.slane %v1633, 1
      %v1879 = vsel %vm1746, %v1877, %v1878
      %v1880 = vrot.slane %v1634, 1
      %v1881 = vsel %vm1746, %v1878, %v1880
      %v1882 = vrot.slane %v1635, 1
      %v1883 = vrot.slane %v1636, 1
      %v1884 = vsel %vm1746, %v1882, %v1883
      %v1885 = vrot.slane %v1637, 1
      %v1886 = vsel %vm1746, %v1883, %v1885
      %v1887 = vrot.slane %v1638, 1
      %v1888 = vrot.slane %v1639, 1
      %v1889 = vsel %vm1746, %v1887, %v1888
      %v1890 = vrot.slane %v1640, 1
      %v1891 = vsel %vm1746, %v1888, %v1890
      %v1892 = vrot.slane %v1641, 1
      %v1893 = vrot.slane %v1642, 1
      %v1894 = vsel %vm1746, %v1892, %v1893
      %v1895 = vrot.slane %v1643, 1
      %v1896 = vsel %vm1746, %v1893, %v1895
      %v1897 = vrot.slane %v1644, 1
      %v1898 = vrot.slane %v1645, 1
      %v1899 = vsel %vm1746, %v1897, %v1898
      %v1900 = vrot.slane %v1646, 1
      %v1901 = vsel %vm1746, %v1898, %v1900
      %v1902 = vrot.slane %v1647, 1
      %v1903 = vrot.slane %v1648, 1
      %v1904 = vsel %vm1746, %v1902, %v1903
      %v1905 = vrot.slane %v1649, 1
      %v1906 = vsel %vm1746, %v1903, %v1905
      %v1971 = vadd.f32 %v1328, %v1749
      %v1972 = vadd.f32 %v1329, %v1751
      %v1973 = vadd.f32 %v1330, %v1754
      %v1974 = vadd.f32 %v1331, %v1756
      %v1975 = vadd.f32 %v1332, %v1759
      %v1976 = vadd.f32 %v1333, %v1761
      %v1977 = vadd.f32 %v1334, %v1764
      %v1978 = vadd.f32 %v1335, %v1766
      %v1979 = vadd.f32 %v1336, %v1769
      %v1980 = vadd.f32 %v1337, %v1771
      %v1981 = vadd.f32 %v1338, %v1774
      %v1982 = vadd.f32 %v1339, %v1776
      %v1983 = vadd.f32 %v1340, %v1779
      %v1984 = vadd.f32 %v1341, %v1781
      %v1985 = vadd.f32 %v1342, %v1784
      %v1986 = vadd.f32 %v1343, %v1786
      %v1987 = vadd.f32 %v1344, %v1789
      %v1988 = vadd.f32 %v1345, %v1791
      %v1989 = vadd.f32 %v1346, %v1794
      %v1990 = vadd.f32 %v1347, %v1796
      %v1991 = vadd.f32 %v1348, %v1799
      %v1992 = vadd.f32 %v1349, %v1801
      %v1993 = vadd.f32 %v1350, %v1804
      %v1994 = vadd.f32 %v1351, %v1806
      %v1995 = vadd.f32 %v1352, %v1809
      %v1996 = vadd.f32 %v1353, %v1811
      %v1997 = vadd.f32 %v1354, %v1814
      %v1998 = vadd.f32 %v1355, %v1816
      %v1999 = vadd.f32 %v1356, %v1819
      %v2000 = vadd.f32 %v1357, %v1821
      %v2001 = vadd.f32 %v1358, %v1824
      %v2002 = vadd.f32 %v1359, %v1826
      %v2003 = vadd.f32 %v1360, %v1829
      %v2004 = vadd.f32 %v1361, %v1831
      %v2005 = vadd.f32 %v1362, %v1834
      %v2006 = vadd.f32 %v1363, %v1836
      %v2007 = vadd.f32 %v1364, %v1839
      %v2008 = vadd.f32 %v1365, %v1841
      %v2009 = vadd.f32 %v1366, %v1844
      %v2010 = vadd.f32 %v1367, %v1846
      %v2011 = vadd.f32 %v1368, %v1849
      %v2012 = vadd.f32 %v1369, %v1851
      %v2013 = vadd.f32 %v1370, %v1854
      %v2014 = vadd.f32 %v1371, %v1856
      %v2015 = vadd.f32 %v1372, %v1859
      %v2016 = vadd.f32 %v1373, %v1861
      %v2017 = vadd.f32 %v1374, %v1864
      %v2018 = vadd.f32 %v1375, %v1866
      %v2019 = vadd.f32 %v1376, %v1869
      %v2020 = vadd.f32 %v1377, %v1871
      %v2021 = vadd.f32 %v1378, %v1874
      %v2022 = vadd.f32 %v1379, %v1876
      %v2023 = vadd.f32 %v1380, %v1879
      %v2024 = vadd.f32 %v1381, %v1881
      %v2025 = vadd.f32 %v1382, %v1884
      %v2026 = vadd.f32 %v1383, %v1886
      %v2027 = vadd.f32 %v1384, %v1889
      %v2028 = vadd.f32 %v1385, %v1891
      %v2029 = vadd.f32 %v1386, %v1894
      %v2030 = vadd.f32 %v1387, %v1896
      %v2031 = vadd.f32 %v1388, %v1899
      %v2032 = vadd.f32 %v1389, %v1901
      %v2033 = vadd.f32 %v1390, %v1904
      %v2034 = vadd.f32 %v1391, %v1906
      %v2035 = vld [vmem:[%s2 + $0x2] sm:$0x1]
      %v2036 = vperm.slane %v2035, 0
      %v2037 = vmul.f32 %v946, %v2036
      %v2038 = vmul.f32 %v951, %v2036
      %v2039 = vmul.f32 %v1396, %v2036
      %v2040 = vmul.f32 %v956, %v2036
      %v2041 = vmul.f32 %v961, %v2036
      %v2042 = vmul.f32 %v1401, %v2036
      %v2043 = vmul.f32 %v966, %v2036
      %v2044 = vmul.f32 %v971, %v2036
      %v2045 = vmul.f32 %v1406, %v2036
      %v2046 = vmul.f32 %v976, %v2036
      %v2047 = vmul.f32 %v981, %v2036
      %v2048 = vmul.f32 %v1411, %v2036
      %v2049 = vmul.f32 %v986, %v2036
      %v2050 = vmul.f32 %v991, %v2036
      %v2051 = vmul.f32 %v1416, %v2036
      %v2052 = vmul.f32 %v996, %v2036
      %v2053 = vmul.f32 %v1001, %v2036
      %v2054 = vmul.f32 %v1421, %v2036
      %v2055 = vmul.f32 %v1006, %v2036
      %v2056 = vmul.f32 %v1011, %v2036
      %v2057 = vmul.f32 %v1426, %v2036
      %v2058 = vmul.f32 %v1016, %v2036
      %v2059 = vmul.f32 %v1021, %v2036
      %v2060 = vmul.f32 %v1431, %v2036
      %v2061 = vmul.f32 %v1026, %v2036
      %v2062 = vmul.f32 %v1031, %v2036
      %v2063 = vmul.f32 %v1436, %v2036
      %v2064 = vmul.f32 %v1036, %v2036
      %v2065 = vmul.f32 %v1041, %v2036
      %v2066 = vmul.f32 %v1441, %v2036
      %v2067 = vmul.f32 %v1046, %v2036
      %v2068 = vmul.f32 %v1051, %v2036
      %v2069 = vmul.f32 %v1446, %v2036
      %v2070 = vmul.f32 %v1056, %v2036
      %v2071 = vmul.f32 %v1061, %v2036
      %v2072 = vmul.f32 %v1451, %v2036
      %v2073 = vmul.f32 %v1066, %v2036
      %v2074 = vmul.f32 %v1071, %v2036
      %v2075 = vmul.f32 %v1456, %v2036
      %v2076 = vmul.f32 %v1076, %v2036
      %v2077 = vmul.f32 %v1081, %v2036
      %v2078 = vmul.f32 %v1461, %v2036
      %v2079 = vmul.f32 %v1086, %v2036
      %v2080 = vmul.f32 %v1091, %v2036
      %v2081 = vmul.f32 %v1466, %v2036
      %v2082 = vmul.f32 %v1096, %v2036
      %v2083 = vmul.f32 %v1101, %v2036
      %v2084 = vmul.f32 %v1471, %v2036
      %v2085 = vmul.f32 %v1106, %v2036
      %v2086 = vmul.f32 %v1111, %v2036
      %v2087 = vmul.f32 %v1476, %v2036
      %v2088 = vmul.f32 %v1116, %v2036
      %v2089 = vmul.f32 %v1121, %v2036
      %v2090 = vmul.f32 %v1481, %v2036
      %v2091 = vmul.f32 %v1126, %v2036
      %v2092 = vmul.f32 %v1131, %v2036
      %v2093 = vmul.f32 %v1486, %v2036
      %v2094 = vmul.f32 %v1136, %v2036
      %v2095 = vmul.f32 %v1141, %v2036
      %v2096 = vmul.f32 %v1491, %v2036
      %v2097 = vmul.f32 %v1146, %v2036
      %v2098 = vmul.f32 %v1151, %v2036
      %v2099 = vmul.f32 %v1496, %v2036
      %v2100 = vmul.f32 %v1156, %v2036
      %v2101 = vmul.f32 %v1161, %v2036
      %v2102 = vmul.f32 %v1501, %v2036
      %v2103 = vmul.f32 %v1166, %v2036
      %v2104 = vmul.f32 %v1171, %v2036
      %v2105 = vmul.f32 %v1506, %v2036
      %v2106 = vmul.f32 %v1176, %v2036
      %v2107 = vmul.f32 %v1181, %v2036
      %v2108 = vmul.f32 %v1511, %v2036
      %v2109 = vmul.f32 %v1186, %v2036
      %v2110 = vmul.f32 %v1191, %v2036
      %v2111 = vmul.f32 %v1516, %v2036
      %v2112 = vmul.f32 %v1196, %v2036
      %v2113 = vmul.f32 %v1201, %v2036
      %v2114 = vmul.f32 %v1521, %v2036
      %v2115 = vmul.f32 %v1206, %v2036
      %v2116 = vmul.f32 %v1211, %v2036
      %v2117 = vmul.f32 %v1526, %v2036
      %v2118 = vmul.f32 %v1216, %v2036
      %v2119 = vmul.f32 %v1221, %v2036
      %v2120 = vmul.f32 %v1531, %v2036
      %v2121 = vmul.f32 %v1226, %v2036
      %v2122 = vmul.f32 %v1231, %v2036
      %v2123 = vmul.f32 %v1536, %v2036
      %v2124 = vmul.f32 %v1236, %v2036
      %v2125 = vmul.f32 %v1241, %v2036
      %v2126 = vmul.f32 %v1541, %v2036
      %v2127 = vmul.f32 %v1246, %v2036
      %v2128 = vmul.f32 %v1251, %v2036
      %v2129 = vmul.f32 %v1546, %v2036
      %v2130 = vmul.f32 %v1256, %v2036
      %v2131 = vmul.f32 %v1261, %v2036
      %v2132 = vmul.f32 %v1551, %v2036
      %vm2229 = vcmask 1045504
      %v2230 = vrot.slane %v2037, 2
      %v2231 = vrot.slane %v2038, 2
      %v2232 = vsel %vm2229, %v2230, %v2231
      %v2233 = vrot.slane %v2039, 2
      %v2234 = vsel %vm2229, %v2231, %v2233
      %v2235 = vrot.slane %v2040, 2
      %v2236 = vrot.slane %v2041, 2
      %v2237 = vsel %vm2229, %v2235, %v2236
      %v2238 = vrot.slane %v2042, 2
      %v2239 = vsel %vm2229, %v2236, %v2238
      %v2240 = vrot.slane %v2043, 2
      %v2241 = vrot.slane %v2044, 2
      %v2242 = vsel %vm2229, %v2240, %v2241
      %v2243 = vrot.slane %v2045, 2
      %v2244 = vsel %vm2229, %v2241, %v2243
      %v2245 = vrot.slane %v2046, 2
      %v2246 = vrot.slane %v2047, 2
      %v2247 = vsel %vm2229, %v2245, %v2246
      %v2248 = vrot.slane %v2048, 2
      %v2249 = vsel %vm2229, %v2246, %v2248
      %v2250 = vrot.slane %v2049, 2
      %v2251 = vrot.slane %v2050, 2
      %v2252 = vsel %vm2229, %v2250, %v2251
      %v2253 = vrot.slane %v2051, 2
      %v2254 = vsel %vm2229, %v2251, %v2253
      %v2255 = vrot.slane %v2052, 2
      %v2256 = vrot.slane %v2053, 2
      %v2257 = vsel %vm2229, %v2255, %v2256
      %v2258 = vrot.slane %v2054, 2
      %v2259 = vsel %vm2229, %v2256, %v2258
      %v2260 = vrot.slane %v2055, 2
      %v2261 = vrot.slane %v2056, 2
      %v2262 = vsel %vm2229, %v2260, %v2261
      %v2263 = vrot.slane %v2057, 2
      %v2264 = vsel %vm2229, %v2261, %v2263
      %v2265 = vrot.slane %v2058, 2
      %v2266 = vrot.slane %v2059, 2
      %v2267 = vsel %vm2229, %v2265, %v2266
      %v2268 = vrot.slane %v2060, 2
      %v2269 = vsel %vm2229, %v2266, %v2268
      %v2270 = vrot.slane %v2061, 2
      %v2271 = vrot.slane %v2062, 2
      %v2272 = vsel %vm2229, %v2270, %v2271
      %v2273 = vrot.slane %v2063, 2
      %v2274 = vsel %vm2229, %v2271, %v2273
      %v2275 = vrot.slane %v2064, 2
      %v2276 = vrot.slane %v2065, 2
      %v2277 = vsel %vm2229, %v2275, %v2276
      %v2278 = vrot.slane %v2066, 2
      %v2279 = vsel %vm2229, %v2276, %v2278
      %v2280 = vrot.slane %v2067, 2
      %v2281 = vrot.slane %v2068, 2
      %v2282 = vsel %vm2229, %v2280, %v2281
      %v2283 = vrot.slane %v2069, 2
      %v2284 = vsel %vm2229, %v2281, %v2283
      %v2285 = vrot.slane %v2070, 2
      %v2286 = vrot.slane %v2071, 2
      %v2287 = vsel %vm2229, %v2285, %v2286
      %v2288 = vrot.slane %v2072, 2
      %v2289 = vsel %vm2229, %v2286, %v2288
      %v2290 = vrot.slane %v2073, 2
      %v2291 = vrot.slane %v2074, 2
      %v2292 = vsel %vm2229, %v2290, %v2291
      %v2293 = vrot.slane %v2075, 2
      %v2294 = vsel %vm2229, %v2291, %v2293
      %v2295 = vrot.slane %v2076, 2
      %v2296 = vrot.slane %v2077, 2
      %v2297 = vsel %vm2229, %v2295, %v2296
      %v2298 = vrot.slane %v2078, 2
      %v2299 = vsel %vm2229, %v2296, %v2298
      %v2300 = vrot.slane %v2079, 2
      %v2301 = vrot.slane %v2080, 2
      %v2302 = vsel %vm2229, %v2300, %v2301
      %v2303 = vrot.slane %v2081, 2
      %v2304 = vsel %vm2229, %v2301, %v2303
      %v2305 = vrot.slane %v2082, 2
      %v2306 = vrot.slane %v2083, 2
      %v2307 = vsel %vm2229, %v2305, %v2306
      %v2308 = vrot.slane %v2084, 2
      %v2309 = vsel %vm2229, %v2306, %v2308
      %v2310 = vrot.slane %v2085, 2
      %v2311 = vrot.slane %v2086, 2
      %v2312 = vsel %vm2229, %v2310, %v2311
      %v2313 = vrot.slane %v2087, 2
      %v2314 = vsel %vm2229, %v2311, %v2313
      %v2315 = vrot.slane %v2088, 2
      %v2316 = vrot.slane %v2089, 2
      %v2317 = vsel %vm2229, %v2315, %v2316
      %v2318 = vrot.slane %v2090, 2
      %v2319 = vsel %vm2229, %v2316, %v2318
      %v2320 = vrot.slane %v2091, 2
      %v2321 = vrot.slane %v2092, 2
      %v2322 = vsel %vm2229, %v2320, %v2321
      %v2323 = vrot.slane %v2093, 2
      %v2324 = vsel %vm2229, %v2321, %v2323
      %v2325 = vrot.slane %v2094, 2
      %v2326 = vrot.slane %v2095, 2
      %v2327 = vsel %vm2229, %v2325, %v2326
      %v2328 = vrot.slane %v2096, 2
      %v2329 = vsel %vm2229, %v2326, %v2328
      %v2330 = vrot.slane %v2097, 2
      %v2331 = vrot.slane %v2098, 2
      %v2332 = vsel %vm2229, %v2330, %v2331
      %v2333 = vrot.slane %v2099, 2
      %v2334 = vsel %vm2229, %v2331, %v2333
      %v2335 = vrot.slane %v2100, 2
      %v2336 = vrot.slane %v2101, 2
      %v2337 = vsel %vm2229, %v2335, %v2336
      %v2338 = vrot.slane %v2102, 2
      %v2339 = vsel %vm2229, %v2336, %v2338
      %v2340 = vrot.slane %v2103, 2
      %v2341 = vrot.slane %v2104, 2
      %v2342 = vsel %vm2229, %v2340, %v2341
      %v2343 = vrot.slane %v2105, 2
      %v2344 = vsel %vm2229, %v2341, %v2343
      %v2345 = vrot.slane %v2106, 2
      %v2346 = vrot.slane %v2107, 2
      %v2347 = vsel %vm2229, %v2345, %v2346
      %v2348 = vrot.slane %v2108, 2
      %v2349 = vsel %vm2229, %v2346, %v2348
      %v2350 = vrot.slane %v2109, 2
      %v2351 = vrot.slane %v2110, 2
      %v2352 = vsel %vm2229, %v2350, %v2351
      %v2353 = vrot.slane %v2111, 2
      %v2354 = vsel %vm2229, %v2351, %v2353
      %v2355 = vrot.slane %v2112, 2
      %v2356 = vrot.slane %v2113, 2
      %v2357 = vsel %vm2229, %v2355, %v2356
      %v2358 = vrot.slane %v2114, 2
      %v2359 = vsel %vm2229, %v2356, %v2358
      %v2360 = vrot.slane %v2115, 2
      %v2361 = vrot.slane %v2116, 2
      %v2362 = vsel %vm2229, %v2360, %v2361
      %v2363 = vrot.slane %v2117, 2
      %v2364 = vsel %vm2229, %v2361, %v2363
      %v2365 = vrot.slane %v2118, 2
      %v2366 = vrot.slane %v2119, 2
      %v2367 = vsel %vm2229, %v2365, %v2366
      %v2368 = vrot.slane %v2120, 2
      %v2369 = vsel %vm2229, %v2366, %v2368
      %v2370 = vrot.slane %v2121, 2
      %v2371 = vrot.slane %v2122, 2
      %v2372 = vsel %vm2229, %v2370, %v2371
      %v2373 = vrot.slane %v2123, 2
      %v2374 = vsel %vm2229, %v2371, %v2373
      %v2375 = vrot.slane %v2124, 2
      %v2376 = vrot.slane %v2125, 2
      %v2377 = vsel %vm2229, %v2375, %v2376
      %v2378 = vrot.slane %v2126, 2
      %v2379 = vsel %vm2229, %v2376, %v2378
      %v2380 = vrot.slane %v2127, 2
      %v2381 = vrot.slane %v2128, 2
      %v2382 = vsel %vm2229, %v2380, %v2381
      %v2383 = vrot.slane %v2129, 2
      %v2384 = vsel %vm2229, %v2381, %v2383
      %v2385 = vrot.slane %v2130, 2
      %v2386 = vrot.slane %v2131, 2
      %v2387 = vsel %vm2229, %v2385, %v2386
      %v2388 = vrot.slane %v2132, 2
      %v2389 = vsel %vm2229, %v2386, %v2388
      %v2454 = vadd.f32 %v1971, %v2232
      %v2455 = vadd.f32 %v1972, %v2234
      %v2456 = vadd.f32 %v1973, %v2237
      %v2457 = vadd.f32 %v1974, %v2239
      %v2458 = vadd.f32 %v1975, %v2242
      %v2459 = vadd.f32 %v1976, %v2244
      %v2460 = vadd.f32 %v1977, %v2247
      %v2461 = vadd.f32 %v1978, %v2249
      %v2462 = vadd.f32 %v1979, %v2252
      %v2463 = vadd.f32 %v1980, %v2254
      %v2464 = vadd.f32 %v1981, %v2257
      %v2465 = vadd.f32 %v1982, %v2259
      %v2466 = vadd.f32 %v1983, %v2262
      %v2467 = vadd.f32 %v1984, %v2264
      %v2468 = vadd.f32 %v1985, %v2267
      %v2469 = vadd.f32 %v1986, %v2269
      %v2470 = vadd.f32 %v1987, %v2272
      %v2471 = vadd.f32 %v1988, %v2274
      %v2472 = vadd.f32 %v1989, %v2277
      %v2473 = vadd.f32 %v1990, %v2279
      %v2474 = vadd.f32 %v1991, %v2282
      %v2475 = vadd.f32 %v1992, %v2284
      %v2476 = vadd.f32 %v1993, %v2287
      %v2477 = vadd.f32 %v1994, %v2289
      %v2478 = vadd.f32 %v1995, %v2292
      %v2479 = vadd.f32 %v1996, %v2294
      %v2480 = vadd.f32 %v1997, %v2297
      %v2481 = vadd.f32 %v1998, %v2299
      %v2482 = vadd.f32 %v1999, %v2302
      %v2483 = vadd.f32 %v2000, %v2304
      %v2484 = vadd.f32 %v2001, %v2307
      %v2485 = vadd.f32 %v2002, %v2309
      %v2486 = vadd.f32 %v2003, %v2312
      %v2487 = vadd.f32 %v2004, %v2314
      %v2488 = vadd.f32 %v2005, %v2317
      %v2489 = vadd.f32 %v2006, %v2319
      %v2490 = vadd.f32 %v2007, %v2322
      %v2491 = vadd.f32 %v2008, %v2324
      %v2492 = vadd.f32 %v2009, %v2327
      %v2493 = vadd.f32 %v2010, %v2329
      %v2494 = vadd.f32 %v2011, %v2332
      %v2495 = vadd.f32 %v2012, %v2334
      %v2496 = vadd.f32 %v2013, %v2337
      %v2497 = vadd.f32 %v2014, %v2339
      %v2498 = vadd.f32 %v2015, %v2342
      %v2499 = vadd.f32 %v2016, %v2344
      %v2500 = vadd.f32 %v2017, %v2347
      %v2501 = vadd.f32 %v2018, %v2349
      %v2502 = vadd.f32 %v2019, %v2352
      %v2503 = vadd.f32 %v2020, %v2354
      %v2504 = vadd.f32 %v2021, %v2357
      %v2505 = vadd.f32 %v2022, %v2359
      %v2506 = vadd.f32 %v2023, %v2362
      %v2507 = vadd.f32 %v2024, %v2364
      %v2508 = vadd.f32 %v2025, %v2367
      %v2509 = vadd.f32 %v2026, %v2369
      %v2510 = vadd.f32 %v2027, %v2372
      %v2511 = vadd.f32 %v2028, %v2374
      %v2512 = vadd.f32 %v2029, %v2377
      %v2513 = vadd.f32 %v2030, %v2379
      %v2514 = vadd.f32 %v2031, %v2382
      %v2515 = vadd.f32 %v2032, %v2384
      %v2516 = vadd.f32 %v2033, %v2387
      %v2517 = vadd.f32 %v2034, %v2389
      %v2518 = vld [vmem:[%s2 + $0x3] sm:$0x1]
      %2520 = vset.pattern.permute.xlu0 0
      %2521 = vperm.xlu0 %2520, %v882
      %v2522 = vpop.permute.xlu0 %2521
      %2525 = vset.pattern.permute.xlu0 0
      %2526 = vperm.xlu0 %2525, %v883
      %v2527 = vpop.permute.xlu0 %2526
      %2530 = vset.pattern.permute.xlu0 0
      %2531 = vperm.xlu0 %2530, %v936
      %v2532 = vpop.permute.xlu0 %2531
      %2535 = vset.pattern.permute.xlu0 0
      %2536 = vperm.xlu0 %2535, %v937
      %v2537 = vpop.permute.xlu0 %2536
      %v2539 = vperm.slane %v2518, 0
      %v2540 = vmul.f32 %v956, %v2539
      %v2541 = vmul.f32 %v961, %v2539
      %v2542 = vmul.f32 %v966, %v2539
      %v2543 = vmul.f32 %v971, %v2539
      %v2544 = vmul.f32 %v976, %v2539
      %v2545 = vmul.f32 %v981, %v2539
      %v2546 = vmul.f32 %v986, %v2539
      %v2547 = vmul.f32 %v991, %v2539
      %v2548 = vmul.f32 %v996, %v2539
      %v2549 = vmul.f32 %v1001, %v2539
      %v2550 = vmul.f32 %v1006, %v2539
      %v2551 = vmul.f32 %v1011, %v2539
      %v2552 = vmul.f32 %v1016, %v2539
      %v2553 = vmul.f32 %v1021, %v2539
      %v2554 = vmul.f32 %v1026, %v2539
      %v2555 = vmul.f32 %v1031, %v2539
      %v2556 = vmul.f32 %v1036, %v2539
      %v2557 = vmul.f32 %v1041, %v2539
      %v2558 = vmul.f32 %v1046, %v2539
      %v2559 = vmul.f32 %v1051, %v2539
      %v2560 = vmul.f32 %v1056, %v2539
      %v2561 = vmul.f32 %v1061, %v2539
      %v2562 = vmul.f32 %v1066, %v2539
      %v2563 = vmul.f32 %v1071, %v2539
      %v2564 = vmul.f32 %v1076, %v2539
      %v2565 = vmul.f32 %v1081, %v2539
      %v2566 = vmul.f32 %v1086, %v2539
      %v2567 = vmul.f32 %v1091, %v2539
      %v2568 = vmul.f32 %v1096, %v2539
      %v2569 = vmul.f32 %v1101, %v2539
      %v2570 = vmul.f32 %v2522, %v2539
      %v2571 = vmul.f32 %v2527, %v2539
      %v2572 = vmul.f32 %v1116, %v2539
      %v2573 = vmul.f32 %v1121, %v2539
      %v2574 = vmul.f32 %v1126, %v2539
      %v2575 = vmul.f32 %v1131, %v2539
      %v2576 = vmul.f32 %v1136, %v2539
      %v2577 = vmul.f32 %v1141, %v2539
      %v2578 = vmul.f32 %v1146, %v2539
      %v2579 = vmul.f32 %v1151, %v2539
      %v2580 = vmul.f32 %v1156, %v2539
      %v2581 = vmul.f32 %v1161, %v2539
      %v2582 = vmul.f32 %v1166, %v2539
      %v2583 = vmul.f32 %v1171, %v2539
      %v2584 = vmul.f32 %v1176, %v2539
      %v2585 = vmul.f32 %v1181, %v2539
      %v2586 = vmul.f32 %v1186, %v2539
      %v2587 = vmul.f32 %v1191, %v2539
      %v2588 = vmul.f32 %v1196, %v2539
      %v2589 = vmul.f32 %v1201, %v2539
      %v2590 = vmul.f32 %v1206, %v2539
      %v2591 = vmul.f32 %v1211, %v2539
      %v2592 = vmul.f32 %v1216, %v2539
      %v2593 = vmul.f32 %v1221, %v2539
      %v2594 = vmul.f32 %v1226, %v2539
      %v2595 = vmul.f32 %v1231, %v2539
      %v2596 = vmul.f32 %v1236, %v2539
      %v2597 = vmul.f32 %v1241, %v2539
      %v2598 = vmul.f32 %v1246, %v2539
      %v2599 = vmul.f32 %v1251, %v2539
      %v2600 = vmul.f32 %v1256, %v2539
      %v2601 = vmul.f32 %v1261, %v2539
      %v2602 = vmul.f32 %v2532, %v2539
      %v2603 = vmul.f32 %v2537, %v2539
      %v2604 = vadd.f32 %v2454, %v2540
      %v2605 = vadd.f32 %v2455, %v2541
      %v2606 = vadd.f32 %v2456, %v2542
      %v2607 = vadd.f32 %v2457, %v2543
      %v2608 = vadd.f32 %v2458, %v2544
      %v2609 = vadd.f32 %v2459, %v2545
      %v2610 = vadd.f32 %v2460, %v2546
      %v2611 = vadd.f32 %v2461, %v2547
      %v2612 = vadd.f32 %v2462, %v2548
      %v2613 = vadd.f32 %v2463, %v2549
      %v2614 = vadd.f32 %v2464, %v2550
      %v2615 = vadd.f32 %v2465, %v2551
      %v2616 = vadd.f32 %v2466, %v2552
      %v2617 = vadd.f32 %v2467, %v2553
      %v2618 = vadd.f32 %v2468, %v2554
      %v2619 = vadd.f32 %v2469, %v2555
      %v2620 = vadd.f32 %v2470, %v2556
      %v2621 = vadd.f32 %v2471, %v2557
      %v2622 = vadd.f32 %v2472, %v2558
      %v2623 = vadd.f32 %v2473, %v2559
      %v2624 = vadd.f32 %v2474, %v2560
      %v2625 = vadd.f32 %v2475, %v2561
      %v2626 = vadd.f32 %v2476, %v2562
      %v2627 = vadd.f32 %v2477, %v2563
      %v2628 = vadd.f32 %v2478, %v2564
      %v2629 = vadd.f32 %v2479, %v2565
      %v2630 = vadd.f32 %v2480, %v2566
      %v2631 = vadd.f32 %v2481, %v2567
      %v2632 = vadd.f32 %v2482, %v2568
      %v2633 = vadd.f32 %v2483, %v2569
      %v2634 = vadd.f32 %v2484, %v2570
      %v2635 = vadd.f32 %v2485, %v2571
      %v2636 = vadd.f32 %v2486, %v2572
      %v2637 = vadd.f32 %v2487, %v2573
      %v2638 = vadd.f32 %v2488, %v2574
      %v2639 = vadd.f32 %v2489, %v2575
      %v2640 = vadd.f32 %v2490, %v2576
      %v2641 = vadd.f32 %v2491, %v2577
      %v2642 = vadd.f32 %v2492, %v2578
      %v2643 = vadd.f32 %v2493, %v2579
      %v2644 = vadd.f32 %v2494, %v2580
      %v2645 = vadd.f32 %v2495, %v2581
      %v2646 = vadd.f32 %v2496, %v2582
      %v2647 = vadd.f32 %v2497, %v2583
      %v2648 = vadd.f32 %v2498, %v2584
      %v2649 = vadd.f32 %v2499, %v2585
      %v2650 = vadd.f32 %v2500, %v2586
      %v2651 = vadd.f32 %v2501, %v2587
      %v2652 = vadd.f32 %v2502, %v2588
      %v2653 = vadd.f32 %v2503, %v2589
      %v2654 = vadd.f32 %v2504, %v2590
      %v2655 = vadd.f32 %v2505, %v2591
      %v2656 = vadd.f32 %v2506, %v2592
      %v2657 = vadd.f32 %v2507, %v2593
      %v2658 = vadd.f32 %v2508, %v2594
      %v2659 = vadd.f32 %v2509, %v2595
      %v2660 = vadd.f32 %v2510, %v2596
      %v2661 = vadd.f32 %v2511, %v2597
      %v2662 = vadd.f32 %v2512, %v2598
      %v2663 = vadd.f32 %v2513, %v2599
      %v2664 = vadd.f32 %v2514, %v2600
      %v2665 = vadd.f32 %v2515, %v2601
      %v2666 = vadd.f32 %v2516, %v2602
      %v2667 = vadd.f32 %v2517, %v2603
      %v2668 = vld [vmem:[%s2 + $0x4] sm:$0x1]
      %2670 = vset.pattern.permute.xlu0 0
      %2671 = vperm.xlu0 %2670, %v884
      %v2672 = vpop.permute.xlu0 %2671
      %2675 = vset.pattern.permute.xlu0 0
      %2676 = vperm.xlu0 %2675, %v938
      %v2677 = vpop.permute.xlu0 %2676
      %v2679 = vperm.slane %v2668, 0
      %v2680 = vmul.f32 %v956, %v2679
      %v2681 = vmul.f32 %v961, %v2679
      %v2682 = vmul.f32 %v1401, %v2679
      %v2683 = vmul.f32 %v966, %v2679
      %v2684 = vmul.f32 %v971, %v2679
      %v2685 = vmul.f32 %v1406, %v2679
      %v2686 = vmul.f32 %v976, %v2679
      %v2687 = vmul.f32 %v981, %v2679
      %v2688 = vmul.f32 %v1411, %v2679
      %v2689 = vmul.f32 %v986, %v2679
      %v2690 = vmul.f32 %v991, %v2679
      %v2691 = vmul.f32 %v1416, %v2679
      %v2692 = vmul.f32 %v996, %v2679
      %v2693 = vmul.f32 %v1001, %v2679
      %v2694 = vmul.f32 %v1421, %v2679
      %v2695 = vmul.f32 %v1006, %v2679
      %v2696 = vmul.f32 %v1011, %v2679
      %v2697 = vmul.f32 %v1426, %v2679
      %v2698 = vmul.f32 %v1016, %v2679
      %v2699 = vmul.f32 %v1021, %v2679
      %v2700 = vmul.f32 %v1431, %v2679
      %v2701 = vmul.f32 %v1026, %v2679
      %v2702 = vmul.f32 %v1031, %v2679
      %v2703 = vmul.f32 %v1436, %v2679
      %v2704 = vmul.f32 %v1036, %v2679
      %v2705 = vmul.f32 %v1041, %v2679
      %v2706 = vmul.f32 %v1441, %v2679
      %v2707 = vmul.f32 %v1046, %v2679
      %v2708 = vmul.f32 %v1051, %v2679
      %v2709 = vmul.f32 %v1446, %v2679
      %v2710 = vmul.f32 %v1056, %v2679
      %v2711 = vmul.f32 %v1061, %v2679
      %v2712 = vmul.f32 %v1451, %v2679
      %v2713 = vmul.f32 %v1066, %v2679
      %v2714 = vmul.f32 %v1071, %v2679
      %v2715 = vmul.f32 %v1456, %v2679
      %v2716 = vmul.f32 %v1076, %v2679
      %v2717 = vmul.f32 %v1081, %v2679
      %v2718 = vmul.f32 %v1461, %v2679
      %v2719 = vmul.f32 %v1086, %v2679
      %v2720 = vmul.f32 %v1091, %v2679
      %v2721 = vmul.f32 %v1466, %v2679
      %v2722 = vmul.f32 %v1096, %v2679
      %v2723 = vmul.f32 %v1101, %v2679
      %v2724 = vmul.f32 %v1471, %v2679
      %v2725 = vmul.f32 %v2522, %v2679
      %v2726 = vmul.f32 %v2527, %v2679
      %v2727 = vmul.f32 %v2672, %v2679
      %v2728 = vmul.f32 %v1116, %v2679
      %v2729 = vmul.f32 %v1121, %v2679
      %v2730 = vmul.f32 %v1481, %v2679
      %v2731 = vmul.f32 %v1126, %v2679
      %v2732 = vmul.f32 %v1131, %v2679
      %v2733 = vmul.f32 %v1486, %v2679
      %v2734 = vmul.f32 %v1136, %v2679
      %v2735 = vmul.f32 %v1141, %v2679
      %v2736 = vmul.f32 %v1491, %v2679
      %v2737 = vmul.f32 %v1146, %v2679
      %v2738 = vmul.f32 %v1151, %v2679
      %v2739 = vmul.f32 %v1496, %v2679
      %v2740 = vmul.f32 %v1156, %v2679
      %v2741 = vmul.f32 %v1161, %v2679
      %v2742 = vmul.f32 %v1501, %v2679
      %v2743 = vmul.f32 %v1166, %v2679
      %v2744 = vmul.f32 %v1171, %v2679
      %v2745 = vmul.f32 %v1506, %v2679
      %v2746 = vmul.f32 %v1176, %v2679
      %v2747 = vmul.f32 %v1181, %v2679
      %v2748 = vmul.f32 %v1511, %v2679
      %v2749 = vmul.f32 %v1186, %v2679
      %v2750 = vmul.f32 %v1191, %v2679
      %v2751 = vmul.f32 %v1516, %v2679
      %v2752 = vmul.f32 %v1196, %v2679
      %v2753 = vmul.f32 %v1201, %v2679
      %v2754 = vmul.f32 %v1521, %v2679
      %v2755 = vmul.f32 %v1206, %v2679
      %v2756 = vmul.f32 %v1211, %v2679
      %v2757 = vmul.f32 %v1526, %v2679
      %v2758 = vmul.f32 %v1216, %v2679
      %v2759 = vmul.f32 %v1221, %v2679
      %v2760 = vmul.f32 %v1531, %v2679
      %v2761 = vmul.f32 %v1226, %v2679
      %v2762 = vmul.f32 %v1231, %v2679
      %v2763 = vmul.f32 %v1536, %v2679
      %v2764 = vmul.f32 %v1236, %v2679
      %v2765 = vmul.f32 %v1241, %v2679
      %v2766 = vmul.f32 %v1541, %v2679
      %v2767 = vmul.f32 %v1246, %v2679
      %v2768 = vmul.f32 %v1251, %v2679
      %v2769 = vmul.f32 %v1546, %v2679
      %v2770 = vmul.f32 %v1256, %v2679
      %v2771 = vmul.f32 %v1261, %v2679
      %v2772 = vmul.f32 %v1551, %v2679
      %v2773 = vmul.f32 %v2532, %v2679
      %v2774 = vmul.f32 %v2537, %v2679
      %v2775 = vmul.f32 %v2677, %v2679
      %v2872 = vrot.slane %v2680, 1
      %v2873 = vrot.slane %v2681, 1
      %v2874 = vsel %vm1746, %v2872, %v2873
      %v2875 = vrot.slane %v2682, 1
      %v2876 = vsel %vm1746, %v2873, %v2875
      %v2877 = vrot.slane %v2683, 1
      %v2878 = vrot.slane %v2684, 1
      %v2879 = vsel %vm1746, %v2877, %v2878
      %v2880 = vrot.slane %v2685, 1
      %v2881 = vsel %vm1746, %v2878, %v2880
      %v2882 = vrot.slane %v2686, 1
      %v2883 = vrot.slane %v2687, 1
      %v2884 = vsel %vm1746, %v2882, %v2883
      %v2885 = vrot.slane %v2688, 1
      %v2886 = vsel %vm1746, %v2883, %v2885
      %v2887 = vrot.slane %v2689, 1
      %v2888 = vrot.slane %v2690, 1
      %v2889 = vsel %vm1746, %v2887, %v2888
      %v2890 = vrot.slane %v2691, 1
      %v2891 = vsel %vm1746, %v2888, %v2890
      %v2892 = vrot.slane %v2692, 1
      %v2893 = vrot.slane %v2693, 1
      %v2894 = vsel %vm1746, %v2892, %v2893
      %v2895 = vrot.slane %v2694, 1
      %v2896 = vsel %vm1746, %v2893, %v2895
      %v2897 = vrot.slane %v2695, 1
      %v2898 = vrot.slane %v2696, 1
      %v2899 = vsel %vm1746, %v2897, %v2898
      %v2900 = vrot.slane %v2697, 1
      %v2901 = vsel %vm1746, %v2898, %v2900
      %v2902 = vrot.slane %v2698, 1
      %v2903 = vrot.slane %v2699, 1
      %v2904 = vsel %vm1746, %v2902, %v2903
      %v2905 = vrot.slane %v2700, 1
      %v2906 = vsel %vm1746, %v2903, %v2905
      %v2907 = vrot.slane %v2701, 1
      %v2908 = vrot.slane %v2702, 1
      %v2909 = vsel %vm1746, %v2907, %v2908
      %v2910 = vrot.slane %v2703, 1
      %v2911 = vsel %vm1746, %v2908, %v2910
      %v2912 = vrot.slane %v2704, 1
      %v2913 = vrot.slane %v2705, 1
      %v2914 = vsel %vm1746, %v2912, %v2913
      %v2915 = vrot.slane %v2706, 1
      %v2916 = vsel %vm1746, %v2913, %v2915
      %v2917 = vrot.slane %v2707, 1
      %v2918 = vrot.slane %v2708, 1
      %v2919 = vsel %vm1746, %v2917, %v2918
      %v2920 = vrot.slane %v2709, 1
      %v2921 = vsel %vm1746, %v2918, %v2920
      %v2922 = vrot.slane %v2710, 1
      %v2923 = vrot.slane %v2711, 1
      %v2924 = vsel %vm1746, %v2922, %v2923
      %v2925 = vrot.slane %v2712, 1
      %v2926 = vsel %vm1746, %v2923, %v2925
      %v2927 = vrot.slane %v2713, 1
      %v2928 = vrot.slane %v2714, 1
      %v2929 = vsel %vm1746, %v2927, %v2928
      %v2930 = vrot.slane %v2715, 1
      %v2931 = vsel %vm1746, %v2928, %v2930
      %v2932 = vrot.slane %v2716, 1
      %v2933 = vrot.slane %v2717, 1
      %v2934 = vsel %vm1746, %v2932, %v2933
      %v2935 = vrot.slane %v2718, 1
      %v2936 = vsel %vm1746, %v2933, %v2935
      %v2937 = vrot.slane %v2719, 1
      %v2938 = vrot.slane %v2720, 1
      %v2939 = vsel %vm1746, %v2937, %v2938
      %v2940 = vrot.slane %v2721, 1
      %v2941 = vsel %vm1746, %v2938, %v2940
      %v2942 = vrot.slane %v2722, 1
      %v2943 = vrot.slane %v2723, 1
      %v2944 = vsel %vm1746, %v2942, %v2943
      %v2945 = vrot.slane %v2724, 1
      %v2946 = vsel %vm1746, %v2943, %v2945
      %v2947 = vrot.slane %v2725, 1
      %v2948 = vrot.slane %v2726, 1
      %v2949 = vsel %vm1746, %v2947, %v2948
      %v2950 = vrot.slane %v2727, 1
      %v2951 = vsel %vm1746, %v2948, %v2950
      %v2952 = vrot.slane %v2728, 1
      %v2953 = vrot.slane %v2729, 1
      %v2954 = vsel %vm1746, %v2952, %v2953
      %v2955 = vrot.slane %v2730, 1
      %v2956 = vsel %vm1746, %v2953, %v2955
      %v2957 = vrot.slane %v2731, 1
      %v2958 = vrot.slane %v2732, 1
      %v2959 = vsel %vm1746, %v2957, %v2958
      %v2960 = vrot.slane %v2733, 1
      %v2961 = vsel %vm1746, %v2958, %v2960
      %v2962 = vrot.slane %v2734, 1
      %v2963 = vrot.slane %v2735, 1
      %v2964 = vsel %vm1746, %v2962, %v2963
      %v2965 = vrot.slane %v2736, 1
      %v2966 = vsel %vm1746, %v2963, %v2965
      %v2967 = vrot.slane %v2737, 1
      %v2968 = vrot.slane %v2738, 1
      %v2969 = vsel %vm1746, %v2967, %v2968
      %v2970 = vrot.slane %v2739, 1
      %v2971 = vsel %vm1746, %v2968, %v2970
      %v2972 = vrot.slane %v2740, 1
      %v2973 = vrot.slane %v2741, 1
      %v2974 = vsel %vm1746, %v2972, %v2973
      %v2975 = vrot.slane %v2742, 1
      %v2976 = vsel %vm1746, %v2973, %v2975
      %v2977 = vrot.slane %v2743, 1
      %v2978 = vrot.slane %v2744, 1
      %v2979 = vsel %vm1746, %v2977, %v2978
      %v2980 = vrot.slane %v2745, 1
      %v2981 = vsel %vm1746, %v2978, %v2980
      %v2982 = vrot.slane %v2746, 1
      %v2983 = vrot.slane %v2747, 1
      %v2984 = vsel %vm1746, %v2982, %v2983
      %v2985 = vrot.slane %v2748, 1
      %v2986 = vsel %vm1746, %v2983, %v2985
      %v2987 = vrot.slane %v2749, 1
      %v2988 = vrot.slane %v2750, 1
      %v2989 = vsel %vm1746, %v2987, %v2988
      %v2990 = vrot.slane %v2751, 1
      %v2991 = vsel %vm1746, %v2988, %v2990
      %v2992 = vrot.slane %v2752, 1
      %v2993 = vrot.slane %v2753, 1
      %v2994 = vsel %vm1746, %v2992, %v2993
      %v2995 = vrot.slane %v2754, 1
      %v2996 = vsel %vm1746, %v2993, %v2995
      %v2997 = vrot.slane %v2755, 1
      %v2998 = vrot.slane %v2756, 1
      %v2999 = vsel %vm1746, %v2997, %v2998
      %v3000 = vrot.slane %v2757, 1
      %v3001 = vsel %vm1746, %v2998, %v3000
      %v3002 = vrot.slane %v2758, 1
      %v3003 = vrot.slane %v2759, 1
      %v3004 = vsel %vm1746, %v3002, %v3003
      %v3005 = vrot.slane %v2760, 1
      %v3006 = vsel %vm1746, %v3003, %v3005
      %v3007 = vrot.slane %v2761, 1
      %v3008 = vrot.slane %v2762, 1
      %v3009 = vsel %vm1746, %v3007, %v3008
      %v3010 = vrot.slane %v2763, 1
      %v3011 = vsel %vm1746, %v3008, %v3010
      %v3012 = vrot.slane %v2764, 1
      %v3013 = vrot.slane %v2765, 1
      %v3014 = vsel %vm1746, %v3012, %v3013
      %v3015 = vrot.slane %v2766, 1
      %v3016 = vsel %vm1746, %v3013, %v3015
      %v3017 = vrot.slane %v2767, 1
      %v3018 = vrot.slane %v2768, 1
      %v3019 = vsel %vm1746, %v3017, %v3018
      %v3020 = vrot.slane %v2769, 1
      %v3021 = vsel %vm1746, %v3018, %v3020
      %v3022 = vrot.slane %v2770, 1
      %v3023 = vrot.slane %v2771, 1
      %v3024 = vsel %vm1746, %v3022, %v3023
      %v3025 = vrot.slane %v2772, 1
      %v3026 = vsel %vm1746, %v3023, %v3025
      %v3027 = vrot.slane %v2773, 1
      %v3028 = vrot.slane %v2774, 1
      %v3029 = vsel %vm1746, %v3027, %v3028
      %v3030 = vrot.slane %v2775, 1
      %v3031 = vsel %vm1746, %v3028, %v3030
      %v3096 = vadd.f32 %v2604, %v2874
      %v3097 = vadd.f32 %v2605, %v2876
      %v3098 = vadd.f32 %v2606, %v2879
      %v3099 = vadd.f32 %v2607, %v2881
      %v3100 = vadd.f32 %v2608, %v2884
      %v3101 = vadd.f32 %v2609, %v2886
      %v3102 = vadd.f32 %v2610, %v2889
      %v3103 = vadd.f32 %v2611, %v2891
      %v3104 = vadd.f32 %v2612, %v2894
      %v3105 = vadd.f32 %v2613, %v2896
      %v3106 = vadd.f32 %v2614, %v2899
      %v3107 = vadd.f32 %v2615, %v2901
      %v3108 = vadd.f32 %v2616, %v2904
      %v3109 = vadd.f32 %v2617, %v2906
      %v3110 = vadd.f32 %v2618, %v2909
      %v3111 = vadd.f32 %v2619, %v2911
      %v3112 = vadd.f32 %v2620, %v2914
      %v3113 = vadd.f32 %v2621, %v2916
      %v3114 = vadd.f32 %v2622, %v2919
      %v3115 = vadd.f32 %v2623, %v2921
      %v3116 = vadd.f32 %v2624, %v2924
      %v3117 = vadd.f32 %v2625, %v2926
      %v3118 = vadd.f32 %v2626, %v2929
      %v3119 = vadd.f32 %v2627, %v2931
      %v3120 = vadd.f32 %v2628, %v2934
      %v3121 = vadd.f32 %v2629, %v2936
      %v3122 = vadd.f32 %v2630, %v2939
      %v3123 = vadd.f32 %v2631, %v2941
      %v3124 = vadd.f32 %v2632, %v2944
      %v3125 = vadd.f32 %v2633, %v2946
      %v3126 = vadd.f32 %v2634, %v2949
      %v3127 = vadd.f32 %v2635, %v2951
      %v3128 = vadd.f32 %v2636, %v2954
      %v3129 = vadd.f32 %v2637, %v2956
      %v3130 = vadd.f32 %v2638, %v2959
      %v3131 = vadd.f32 %v2639, %v2961
      %v3132 = vadd.f32 %v2640, %v2964
      %v3133 = vadd.f32 %v2641, %v2966
      %v3134 = vadd.f32 %v2642, %v2969
      %v3135 = vadd.f32 %v2643, %v2971
      %v3136 = vadd.f32 %v2644, %v2974
      %v3137 = vadd.f32 %v2645, %v2976
      %v3138 = vadd.f32 %v2646, %v2979
      %v3139 = vadd.f32 %v2647, %v2981
      %v3140 = vadd.f32 %v2648, %v2984
      %v3141 = vadd.f32 %v2649, %v2986
      %v3142 = vadd.f32 %v2650, %v2989
      %v3143 = vadd.f32 %v2651, %v2991
      %v3144 = vadd.f32 %v2652, %v2994
      %v3145 = vadd.f32 %v2653, %v2996
      %v3146 = vadd.f32 %v2654, %v2999
      %v3147 = vadd.f32 %v2655, %v3001
      %v3148 = vadd.f32 %v2656, %v3004
      %v3149 = vadd.f32 %v2657, %v3006
      %v3150 = vadd.f32 %v2658, %v3009
      %v3151 = vadd.f32 %v2659, %v3011
      %v3152 = vadd.f32 %v2660, %v3014
      %v3153 = vadd.f32 %v2661, %v3016
      %v3154 = vadd.f32 %v2662, %v3019
      %v3155 = vadd.f32 %v2663, %v3021
      %v3156 = vadd.f32 %v2664, %v3024
      %v3157 = vadd.f32 %v2665, %v3026
      %v3158 = vadd.f32 %v2666, %v3029
      %v3159 = vadd.f32 %v2667, %v3031
      %v3160 = vld [vmem:[%s2 + $0x5] sm:$0x1]
      %v3161 = vperm.slane %v3160, 0
      %v3162 = vmul.f32 %v956, %v3161
      %v3163 = vmul.f32 %v961, %v3161
      %v3164 = vmul.f32 %v1401, %v3161
      %v3165 = vmul.f32 %v966, %v3161
      %v3166 = vmul.f32 %v971, %v3161
      %v3167 = vmul.f32 %v1406, %v3161
      %v3168 = vmul.f32 %v976, %v3161
      %v3169 = vmul.f32 %v981, %v3161
      %v3170 = vmul.f32 %v1411, %v3161
      %v3171 = vmul.f32 %v986, %v3161
      %v3172 = vmul.f32 %v991, %v3161
      %v3173 = vmul.f32 %v1416, %v3161
      %v3174 = vmul.f32 %v996, %v3161
      %v3175 = vmul.f32 %v1001, %v3161
      %v3176 = vmul.f32 %v1421, %v3161
      %v3177 = vmul.f32 %v1006, %v3161
      %v3178 = vmul.f32 %v1011, %v3161
      %v3179 = vmul.f32 %v1426, %v3161
      %v3180 = vmul.f32 %v1016, %v3161
      %v3181 = vmul.f32 %v1021, %v3161
      %v3182 = vmul.f32 %v1431, %v3161
      %v3183 = vmul.f32 %v1026, %v3161
      %v3184 = vmul.f32 %v1031, %v3161
      %v3185 = vmul.f32 %v1436, %v3161
      %v3186 = vmul.f32 %v1036, %v3161
      %v3187 = vmul.f32 %v1041, %v3161
      %v3188 = vmul.f32 %v1441, %v3161
      %v3189 = vmul.f32 %v1046, %v3161
      %v3190 = vmul.f32 %v1051, %v3161
      %v3191 = vmul.f32 %v1446, %v3161
      %v3192 = vmul.f32 %v1056, %v3161
      %v3193 = vmul.f32 %v1061, %v3161
      %v3194 = vmul.f32 %v1451, %v3161
      %v3195 = vmul.f32 %v1066, %v3161
      %v3196 = vmul.f32 %v1071, %v3161
      %v3197 = vmul.f32 %v1456, %v3161
      %v3198 = vmul.f32 %v1076, %v3161
      %v3199 = vmul.f32 %v1081, %v3161
      %v3200 = vmul.f32 %v1461, %v3161
      %v3201 = vmul.f32 %v1086, %v3161
      %v3202 = vmul.f32 %v1091, %v3161
      %v3203 = vmul.f32 %v1466, %v3161
      %v3204 = vmul.f32 %v1096, %v3161
      %v3205 = vmul.f32 %v1101, %v3161
      %v3206 = vmul.f32 %v1471, %v3161
      %v3207 = vmul.f32 %v2522, %v3161
      %v3208 = vmul.f32 %v2527, %v3161
      %v3209 = vmul.f32 %v2672, %v3161
      %v3210 = vmul.f32 %v1116, %v3161
      %v3211 = vmul.f32 %v1121, %v3161
      %v3212 = vmul.f32 %v1481, %v3161
      %v3213 = vmul.f32 %v1126, %v3161
      %v3214 = vmul.f32 %v1131, %v3161
      %v3215 = vmul.f32 %v1486, %v3161
      %v3216 = vmul.f32 %v1136, %v3161
      %v3217 = vmul.f32 %v1141, %v3161
      %v3218 = vmul.f32 %v1491, %v3161
      %v3219 = vmul.f32 %v1146, %v3161
      %v3220 = vmul.f32 %v1151, %v3161
      %v3221 = vmul.f32 %v1496, %v3161
      %v3222 = vmul.f32 %v1156, %v3161
      %v3223 = vmul.f32 %v1161, %v3161
      %v3224 = vmul.f32 %v1501, %v3161
      %v3225 = vmul.f32 %v1166, %v3161
      %v3226 = vmul.f32 %v1171, %v3161
      %v3227 = vmul.f32 %v1506, %v3161
      %v3228 = vmul.f32 %v1176, %v3161
      %v3229 = vmul.f32 %v1181, %v3161
      %v3230 = vmul.f32 %v1511, %v3161
      %v3231 = vmul.f32 %v1186, %v3161
      %v3232 = vmul.f32 %v1191, %v3161
      %v3233 = vmul.f32 %v1516, %v3161
      %v3234 = vmul.f32 %v1196, %v3161
      %v3235 = vmul.f32 %v1201, %v3161
      %v3236 = vmul.f32 %v1521, %v3161
      %v3237 = vmul.f32 %v1206, %v3161
      %v3238 = vmul.f32 %v1211, %v3161
      %v3239 = vmul.f32 %v1526, %v3161
      %v3240 = vmul.f32 %v1216, %v3161
      %v3241 = vmul.f32 %v1221, %v3161
      %v3242 = vmul.f32 %v1531, %v3161
      %v3243 = vmul.f32 %v1226, %v3161
      %v3244 = vmul.f32 %v1231, %v3161
      %v3245 = vmul.f32 %v1536, %v3161
      %v3246 = vmul.f32 %v1236, %v3161
      %v3247 = vmul.f32 %v1241, %v3161
      %v3248 = vmul.f32 %v1541, %v3161
      %v3249 = vmul.f32 %v1246, %v3161
      %v3250 = vmul.f32 %v1251, %v3161
      %v3251 = vmul.f32 %v1546, %v3161
      %v3252 = vmul.f32 %v1256, %v3161
      %v3253 = vmul.f32 %v1261, %v3161
      %v3254 = vmul.f32 %v1551, %v3161
      %v3255 = vmul.f32 %v2532, %v3161
      %v3256 = vmul.f32 %v2537, %v3161
      %v3257 = vmul.f32 %v2677, %v3161
      %v3354 = vrot.slane %v3162, 2
      %v3355 = vrot.slane %v3163, 2
      %v3356 = vsel %vm2229, %v3354, %v3355
      %v3357 = vrot.slane %v3164, 2
      %v3358 = vsel %vm2229, %v3355, %v3357
      %v3359 = vrot.slane %v3165, 2
      %v3360 = vrot.slane %v3166, 2
      %v3361 = vsel %vm2229, %v3359, %v3360
      %v3362 = vrot.slane %v3167, 2
      %v3363 = vsel %vm2229, %v3360, %v3362
      %v3364 = vrot.slane %v3168, 2
      %v3365 = vrot.slane %v3169, 2
      %v3366 = vsel %vm2229, %v3364, %v3365
      %v3367 = vrot.slane %v3170, 2
      %v3368 = vsel %vm2229, %v3365, %v3367
      %v3369 = vrot.slane %v3171, 2
      %v3370 = vrot.slane %v3172, 2
      %v3371 = vsel %vm2229, %v3369, %v3370
      %v3372 = vrot.slane %v3173, 2
      %v3373 = vsel %vm2229, %v3370, %v3372
      %v3374 = vrot.slane %v3174, 2
      %v3375 = vrot.slane %v3175, 2
      %v3376 = vsel %vm2229, %v3374, %v3375
      %v3377 = vrot.slane %v3176, 2
      %v3378 = vsel %vm2229, %v3375, %v3377
      %v3379 = vrot.slane %v3177, 2
      %v3380 = vrot.slane %v3178, 2
      %v3381 = vsel %vm2229, %v3379, %v3380
      %v3382 = vrot.slane %v3179, 2
      %v3383 = vsel %vm2229, %v3380, %v3382
      %v3384 = vrot.slane %v3180, 2
      %v3385 = vrot.slane %v3181, 2
      %v3386 = vsel %vm2229, %v3384, %v3385
      %v3387 = vrot.slane %v3182, 2
      %v3388 = vsel %vm2229, %v3385, %v3387
      %v3389 = vrot.slane %v3183, 2
      %v3390 = vrot.slane %v3184, 2
      %v3391 = vsel %vm2229, %v3389, %v3390
      %v3392 = vrot.slane %v3185, 2
      %v3393 = vsel %vm2229, %v3390, %v3392
      %v3394 = vrot.slane %v3186, 2
      %v3395 = vrot.slane %v3187, 2
      %v3396 = vsel %vm2229, %v3394, %v3395
      %v3397 = vrot.slane %v3188, 2
      %v3398 = vsel %vm2229, %v3395, %v3397
      %v3399 = vrot.slane %v3189, 2
      %v3400 = vrot.slane %v3190, 2
      %v3401 = vsel %vm2229, %v3399, %v3400
      %v3402 = vrot.slane %v3191, 2
      %v3403 = vsel %vm2229, %v3400, %v3402
      %v3404 = vrot.slane %v3192, 2
      %v3405 = vrot.slane %v3193, 2
      %v3406 = vsel %vm2229, %v3404, %v3405
      %v3407 = vrot.slane %v3194, 2
      %v3408 = vsel %vm2229, %v3405, %v3407
      %v3409 = vrot.slane %v3195, 2
      %v3410 = vrot.slane %v3196, 2
      %v3411 = vsel %vm2229, %v3409, %v3410
      %v3412 = vrot.slane %v3197, 2
      %v3413 = vsel %vm2229, %v3410, %v3412
      %v3414 = vrot.slane %v3198, 2
      %v3415 = vrot.slane %v3199, 2
      %v3416 = vsel %vm2229, %v3414, %v3415
      %v3417 = vrot.slane %v3200, 2
      %v3418 = vsel %vm2229, %v3415, %v3417
      %v3419 = vrot.slane %v3201, 2
      %v3420 = vrot.slane %v3202, 2
      %v3421 = vsel %vm2229, %v3419, %v3420
      %v3422 = vrot.slane %v3203, 2
      %v3423 = vsel %vm2229, %v3420, %v3422
      %v3424 = vrot.slane %v3204, 2
      %v3425 = vrot.slane %v3205, 2
      %v3426 = vsel %vm2229, %v3424, %v3425
      %v3427 = vrot.slane %v3206, 2
      %v3428 = vsel %vm2229, %v3425, %v3427
      %v3429 = vrot.slane %v3207, 2
      %v3430 = vrot.slane %v3208, 2
      %v3431 = vsel %vm2229, %v3429, %v3430
      %v3432 = vrot.slane %v3209, 2
      %v3433 = vsel %vm2229, %v3430, %v3432
      %v3434 = vrot.slane %v3210, 2
      %v3435 = vrot.slane %v3211, 2
      %v3436 = vsel %vm2229, %v3434, %v3435
      %v3437 = vrot.slane %v3212, 2
      %v3438 = vsel %vm2229, %v3435, %v3437
      %v3439 = vrot.slane %v3213, 2
      %v3440 = vrot.slane %v3214, 2
      %v3441 = vsel %vm2229, %v3439, %v3440
      %v3442 = vrot.slane %v3215, 2
      %v3443 = vsel %vm2229, %v3440, %v3442
      %v3444 = vrot.slane %v3216, 2
      %v3445 = vrot.slane %v3217, 2
      %v3446 = vsel %vm2229, %v3444, %v3445
      %v3447 = vrot.slane %v3218, 2
      %v3448 = vsel %vm2229, %v3445, %v3447
      %v3449 = vrot.slane %v3219, 2
      %v3450 = vrot.slane %v3220, 2
      %v3451 = vsel %vm2229, %v3449, %v3450
      %v3452 = vrot.slane %v3221, 2
      %v3453 = vsel %vm2229, %v3450, %v3452
      %v3454 = vrot.slane %v3222, 2
      %v3455 = vrot.slane %v3223, 2
      %v3456 = vsel %vm2229, %v3454, %v3455
      %v3457 = vrot.slane %v3224, 2
      %v3458 = vsel %vm2229, %v3455, %v3457
      %v3459 = vrot.slane %v3225, 2
      %v3460 = vrot.slane %v3226, 2
      %v3461 = vsel %vm2229, %v3459, %v3460
      %v3462 = vrot.slane %v3227, 2
      %v3463 = vsel %vm2229, %v3460, %v3462
      %v3464 = vrot.slane %v3228, 2
      %v3465 = vrot.slane %v3229, 2
      %v3466 = vsel %vm2229, %v3464, %v3465
      %v3467 = vrot.slane %v3230, 2
      %v3468 = vsel %vm2229, %v3465, %v3467
      %v3469 = vrot.slane %v3231, 2
      %v3470 = vrot.slane %v3232, 2
      %v3471 = vsel %vm2229, %v3469, %v3470
      %v3472 = vrot.slane %v3233, 2
      %v3473 = vsel %vm2229, %v3470, %v3472
      %v3474 = vrot.slane %v3234, 2
      %v3475 = vrot.slane %v3235, 2
      %v3476 = vsel %vm2229, %v3474, %v3475
      %v3477 = vrot.slane %v3236, 2
      %v3478 = vsel %vm2229, %v3475, %v3477
      %v3479 = vrot.slane %v3237, 2
      %v3480 = vrot.slane %v3238, 2
      %v3481 = vsel %vm2229, %v3479, %v3480
      %v3482 = vrot.slane %v3239, 2
      %v3483 = vsel %vm2229, %v3480, %v3482
      %v3484 = vrot.slane %v3240, 2
      %v3485 = vrot.slane %v3241, 2
      %v3486 = vsel %vm2229, %v3484, %v3485
      %v3487 = vrot.slane %v3242, 2
      %v3488 = vsel %vm2229, %v3485, %v3487
      %v3489 = vrot.slane %v3243, 2
      %v3490 = vrot.slane %v3244, 2
      %v3491 = vsel %vm2229, %v3489, %v3490
      %v3492 = vrot.slane %v3245, 2
      %v3493 = vsel %vm2229, %v3490, %v3492
      %v3494 = vrot.slane %v3246, 2
      %v3495 = vrot.slane %v3247, 2
      %v3496 = vsel %vm2229, %v3494, %v3495
      %v3497 = vrot.slane %v3248, 2
      %v3498 = vsel %vm2229, %v3495, %v3497
      %v3499 = vrot.slane %v3249, 2
      %v3500 = vrot.slane %v3250, 2
      %v3501 = vsel %vm2229, %v3499, %v3500
      %v3502 = vrot.slane %v3251, 2
      %v3503 = vsel %vm2229, %v3500, %v3502
      %v3504 = vrot.slane %v3252, 2
      %v3505 = vrot.slane %v3253, 2
      %v3506 = vsel %vm2229, %v3504, %v3505
      %v3507 = vrot.slane %v3254, 2
      %v3508 = vsel %vm2229, %v3505, %v3507
      %v3509 = vrot.slane %v3255, 2
      %v3510 = vrot.slane %v3256, 2
      %v3511 = vsel %vm2229, %v3509, %v3510
      %v3512 = vrot.slane %v3257, 2
      %v3513 = vsel %vm2229, %v3510, %v3512
      %v3578 = vadd.f32 %v3096, %v3356
      %v3579 = vadd.f32 %v3097, %v3358
      %v3580 = vadd.f32 %v3098, %v3361
      %v3581 = vadd.f32 %v3099, %v3363
      %v3582 = vadd.f32 %v3100, %v3366
      %v3583 = vadd.f32 %v3101, %v3368
      %v3584 = vadd.f32 %v3102, %v3371
      %v3585 = vadd.f32 %v3103, %v3373
      %v3586 = vadd.f32 %v3104, %v3376
      %v3587 = vadd.f32 %v3105, %v3378
      %v3588 = vadd.f32 %v3106, %v3381
      %v3589 = vadd.f32 %v3107, %v3383
      %v3590 = vadd.f32 %v3108, %v3386
      %v3591 = vadd.f32 %v3109, %v3388
      %v3592 = vadd.f32 %v3110, %v3391
      %v3593 = vadd.f32 %v3111, %v3393
      %v3594 = vadd.f32 %v3112, %v3396
      %v3595 = vadd.f32 %v3113, %v3398
      %v3596 = vadd.f32 %v3114, %v3401
      %v3597 = vadd.f32 %v3115, %v3403
      %v3598 = vadd.f32 %v3116, %v3406
      %v3599 = vadd.f32 %v3117, %v3408
      %v3600 = vadd.f32 %v3118, %v3411
      %v3601 = vadd.f32 %v3119, %v3413
      %v3602 = vadd.f32 %v3120, %v3416
      %v3603 = vadd.f32 %v3121, %v3418
      %v3604 = vadd.f32 %v3122, %v3421
      %v3605 = vadd.f32 %v3123, %v3423
      %v3606 = vadd.f32 %v3124, %v3426
      %v3607 = vadd.f32 %v3125, %v3428
      %v3608 = vadd.f32 %v3126, %v3431
      %v3609 = vadd.f32 %v3127, %v3433
      %v3610 = vadd.f32 %v3128, %v3436
      %v3611 = vadd.f32 %v3129, %v3438
      %v3612 = vadd.f32 %v3130, %v3441
      %v3613 = vadd.f32 %v3131, %v3443
      %v3614 = vadd.f32 %v3132, %v3446
      %v3615 = vadd.f32 %v3133, %v3448
      %v3616 = vadd.f32 %v3134, %v3451
      %v3617 = vadd.f32 %v3135, %v3453
      %v3618 = vadd.f32 %v3136, %v3456
      %v3619 = vadd.f32 %v3137, %v3458
      %v3620 = vadd.f32 %v3138, %v3461
      %v3621 = vadd.f32 %v3139, %v3463
      %v3622 = vadd.f32 %v3140, %v3466
      %v3623 = vadd.f32 %v3141, %v3468
      %v3624 = vadd.f32 %v3142, %v3471
      %v3625 = vadd.f32 %v3143, %v3473
      %v3626 = vadd.f32 %v3144, %v3476
      %v3627 = vadd.f32 %v3145, %v3478
      %v3628 = vadd.f32 %v3146, %v3481
      %v3629 = vadd.f32 %v3147, %v3483
      %v3630 = vadd.f32 %v3148, %v3486
      %v3631 = vadd.f32 %v3149, %v3488
      %v3632 = vadd.f32 %v3150, %v3491
      %v3633 = vadd.f32 %v3151, %v3493
      %v3634 = vadd.f32 %v3152, %v3496
      %v3635 = vadd.f32 %v3153, %v3498
      %v3636 = vadd.f32 %v3154, %v3501
      %v3637 = vadd.f32 %v3155, %v3503
      %v3638 = vadd.f32 %v3156, %v3506
      %v3639 = vadd.f32 %v3157, %v3508
      %v3640 = vadd.f32 %v3158, %v3511
      %v3641 = vadd.f32 %v3159, %v3513
      %v3642 = vld [vmem:[%s2 + $0x6] sm:$0x1]
      %3644 = vset.pattern.permute.xlu0 0
      %3645 = vperm.xlu0 %3644, %v885
      %v3646 = vpop.permute.xlu0 %3645
      %3649 = vset.pattern.permute.xlu0 0
      %3650 = vperm.xlu0 %3649, %v886
      %v3651 = vpop.permute.xlu0 %3650
      %3654 = vset.pattern.permute.xlu0 0
      %3655 = vperm.xlu0 %3654, %v939
      %v3656 = vpop.permute.xlu0 %3655
      %3659 = vset.pattern.permute.xlu0 0
      %3660 = vperm.xlu0 %3659, %v940
      %v3661 = vpop.permute.xlu0 %3660
      %v3663 = vperm.slane %v3642, 0
      %v3664 = vmul.f32 %v966, %v3663
      %v3665 = vmul.f32 %v971, %v3663
      %v3666 = vmul.f32 %v976, %v3663
      %v3667 = vmul.f32 %v981, %v3663
      %v3668 = vmul.f32 %v986, %v3663
      %v3669 = vmul.f32 %v991, %v3663
      %v3670 = vmul.f32 %v996, %v3663
      %v3671 = vmul.f32 %v1001, %v3663
      %v3672 = vmul.f32 %v1006, %v3663
      %v3673 = vmul.f32 %v1011, %v3663
      %v3674 = vmul.f32 %v1016, %v3663
      %v3675 = vmul.f32 %v1021, %v3663
      %v3676 = vmul.f32 %v1026, %v3663
      %v3677 = vmul.f32 %v1031, %v3663
      %v3678 = vmul.f32 %v1036, %v3663
      %v3679 = vmul.f32 %v1041, %v3663
      %v3680 = vmul.f32 %v1046, %v3663
      %v3681 = vmul.f32 %v1051, %v3663
      %v3682 = vmul.f32 %v1056, %v3663
      %v3683 = vmul.f32 %v1061, %v3663
      %v3684 = vmul.f32 %v1066, %v3663
      %v3685 = vmul.f32 %v1071, %v3663
      %v3686 = vmul.f32 %v1076, %v3663
      %v3687 = vmul.f32 %v1081, %v3663
      %v3688 = vmul.f32 %v1086, %v3663
      %v3689 = vmul.f32 %v1091, %v3663
      %v3690 = vmul.f32 %v1096, %v3663
      %v3691 = vmul.f32 %v1101, %v3663
      %v3692 = vmul.f32 %v2522, %v3663
      %v3693 = vmul.f32 %v2527, %v3663
      %v3694 = vmul.f32 %v3646, %v3663
      %v3695 = vmul.f32 %v3651, %v3663
      %v3696 = vmul.f32 %v1126, %v3663
      %v3697 = vmul.f32 %v1131, %v3663
      %v3698 = vmul.f32 %v1136, %v3663
      %v3699 = vmul.f32 %v1141, %v3663
      %v3700 = vmul.f32 %v1146, %v3663
      %v3701 = vmul.f32 %v1151, %v3663
      %v3702 = vmul.f32 %v1156, %v3663
      %v3703 = vmul.f32 %v1161, %v3663
      %v3704 = vmul.f32 %v1166, %v3663
      %v3705 = vmul.f32 %v1171, %v3663
      %v3706 = vmul.f32 %v1176, %v3663
      %v3707 = vmul.f32 %v1181, %v3663
      %v3708 = vmul.f32 %v1186, %v3663
      %v3709 = vmul.f32 %v1191, %v3663
      %v3710 = vmul.f32 %v1196, %v3663
      %v3711 = vmul.f32 %v1201, %v3663
      %v3712 = vmul.f32 %v1206, %v3663
      %v3713 = vmul.f32 %v1211, %v3663
      %v3714 = vmul.f32 %v1216, %v3663
      %v3715 = vmul.f32 %v1221, %v3663
      %v3716 = vmul.f32 %v1226, %v3663
      %v3717 = vmul.f32 %v1231, %v3663
      %v3718 = vmul.f32 %v1236, %v3663
      %v3719 = vmul.f32 %v1241, %v3663
      %v3720 = vmul.f32 %v1246, %v3663
      %v3721 = vmul.f32 %v1251, %v3663
      %v3722 = vmul.f32 %v1256, %v3663
      %v3723 = vmul.f32 %v1261, %v3663
      %v3724 = vmul.f32 %v2532, %v3663
      %v3725 = vmul.f32 %v2537, %v3663
      %v3726 = vmul.f32 %v3656, %v3663
      %v3727 = vmul.f32 %v3661, %v3663
      %v3728 = vadd.f32 %v3578, %v3664
      %v3729 = vadd.f32 %v3579, %v3665
      %v3730 = vadd.f32 %v3580, %v3666
      %v3731 = vadd.f32 %v3581, %v3667
      %v3732 = vadd.f32 %v3582, %v3668
      %v3733 = vadd.f32 %v3583, %v3669
      %v3734 = vadd.f32 %v3584, %v3670
      %v3735 = vadd.f32 %v3585, %v3671
      %v3736 = vadd.f32 %v3586, %v3672
      %v3737 = vadd.f32 %v3587, %v3673
      %v3738 = vadd.f32 %v3588, %v3674
      %v3739 = vadd.f32 %v3589, %v3675
      %v3740 = vadd.f32 %v3590, %v3676
      %v3741 = vadd.f32 %v3591, %v3677
      %v3742 = vadd.f32 %v3592, %v3678
      %v3743 = vadd.f32 %v3593, %v3679
      %v3744 = vadd.f32 %v3594, %v3680
      %v3745 = vadd.f32 %v3595, %v3681
      %v3746 = vadd.f32 %v3596, %v3682
      %v3747 = vadd.f32 %v3597, %v3683
      %v3748 = vadd.f32 %v3598, %v3684
      %v3749 = vadd.f32 %v3599, %v3685
      %v3750 = vadd.f32 %v3600, %v3686
      %v3751 = vadd.f32 %v3601, %v3687
      %v3752 = vadd.f32 %v3602, %v3688
      %v3753 = vadd.f32 %v3603, %v3689
      %v3754 = vadd.f32 %v3604, %v3690
      %v3755 = vadd.f32 %v3605, %v3691
      %v3756 = vadd.f32 %v3606, %v3692
      %v3757 = vadd.f32 %v3607, %v3693
      %v3758 = vadd.f32 %v3608, %v3694
      %v3759 = vadd.f32 %v3609, %v3695
      %v3760 = vadd.f32 %v3610, %v3696
      %v3761 = vadd.f32 %v3611, %v3697
      %v3762 = vadd.f32 %v3612, %v3698
      %v3763 = vadd.f32 %v3613, %v3699
      %v3764 = vadd.f32 %v3614, %v3700
      %v3765 = vadd.f32 %v3615, %v3701
      %v3766 = vadd.f32 %v3616, %v3702
      %v3767 = vadd.f32 %v3617, %v3703
      %v3768 = vadd.f32 %v3618, %v3704
      %v3769 = vadd.f32 %v3619, %v3705
      %v3770 = vadd.f32 %v3620, %v3706
      %v3771 = vadd.f32 %v3621, %v3707
      %v3772 = vadd.f32 %v3622, %v3708
      %v3773 = vadd.f32 %v3623, %v3709
      %v3774 = vadd.f32 %v3624, %v3710
      %v3775 = vadd.f32 %v3625, %v3711
      %v3776 = vadd.f32 %v3626, %v3712
      %v3777 = vadd.f32 %v3627, %v3713
      %v3778 = vadd.f32 %v3628, %v3714
      %v3779 = vadd.f32 %v3629, %v3715
      %v3780 = vadd.f32 %v3630, %v3716
      %v3781 = vadd.f32 %v3631, %v3717
      %v3782 = vadd.f32 %v3632, %v3718
      %v3783 = vadd.f32 %v3633, %v3719
      %v3784 = vadd.f32 %v3634, %v3720
      %v3785 = vadd.f32 %v3635, %v3721
      %v3786 = vadd.f32 %v3636, %v3722
      %v3787 = vadd.f32 %v3637, %v3723
      %v3788 = vadd.f32 %v3638, %v3724
      %v3789 = vadd.f32 %v3639, %v3725
      %v3790 = vadd.f32 %v3640, %v3726
      %v3791 = vadd.f32 %v3641, %v3727
      %v3792 = vld [vmem:[%s2 + $0x7] sm:$0x1]
      %3794 = vset.pattern.permute.xlu0 0
      %3795 = vperm.xlu0 %3794, %v887
      %v3796 = vpop.permute.xlu0 %3795
      %3799 = vset.pattern.permute.xlu0 0
      %3800 = vperm.xlu0 %3799, %v941
      %v3801 = vpop.permute.xlu0 %3800
      %v3803 = vperm.slane %v3792, 0
      %v3804 = vmul.f32 %v966, %v3803
      %v3805 = vmul.f32 %v971, %v3803
      %v3806 = vmul.f32 %v1406, %v3803
      %v3807 = vmul.f32 %v976, %v3803
      %v3808 = vmul.f32 %v981, %v3803
      %v3809 = vmul.f32 %v1411, %v3803
      %v3810 = vmul.f32 %v986, %v3803
      %v3811 = vmul.f32 %v991, %v3803
      %v3812 = vmul.f32 %v1416, %v3803
      %v3813 = vmul.f32 %v996, %v3803
      %v3814 = vmul.f32 %v1001, %v3803
      %v3815 = vmul.f32 %v1421, %v3803
      %v3816 = vmul.f32 %v1006, %v3803
      %v3817 = vmul.f32 %v1011, %v3803
      %v3818 = vmul.f32 %v1426, %v3803
      %v3819 = vmul.f32 %v1016, %v3803
      %v3820 = vmul.f32 %v1021, %v3803
      %v3821 = vmul.f32 %v1431, %v3803
      %v3822 = vmul.f32 %v1026, %v3803
      %v3823 = vmul.f32 %v1031, %v3803
      %v3824 = vmul.f32 %v1436, %v3803
      %v3825 = vmul.f32 %v1036, %v3803
      %v3826 = vmul.f32 %v1041, %v3803
      %v3827 = vmul.f32 %v1441, %v3803
      %v3828 = vmul.f32 %v1046, %v3803
      %v3829 = vmul.f32 %v1051, %v3803
      %v3830 = vmul.f32 %v1446, %v3803
      %v3831 = vmul.f32 %v1056, %v3803
      %v3832 = vmul.f32 %v1061, %v3803
      %v3833 = vmul.f32 %v1451, %v3803
      %v3834 = vmul.f32 %v1066, %v3803
      %v3835 = vmul.f32 %v1071, %v3803
      %v3836 = vmul.f32 %v1456, %v3803
      %v3837 = vmul.f32 %v1076, %v3803
      %v3838 = vmul.f32 %v1081, %v3803
      %v3839 = vmul.f32 %v1461, %v3803
      %v3840 = vmul.f32 %v1086, %v3803
      %v3841 = vmul.f32 %v1091, %v3803
      %v3842 = vmul.f32 %v1466, %v3803
      %v3843 = vmul.f32 %v1096, %v3803
      %v3844 = vmul.f32 %v1101, %v3803
      %v3845 = vmul.f32 %v1471, %v3803
      %v3846 = vmul.f32 %v2522, %v3803
      %v3847 = vmul.f32 %v2527, %v3803
      %v3848 = vmul.f32 %v2672, %v3803
      %v3849 = vmul.f32 %v3646, %v3803
      %v3850 = vmul.f32 %v3651, %v3803
      %v3851 = vmul.f32 %v3796, %v3803
      %v3852 = vmul.f32 %v1126, %v3803
      %v3853 = vmul.f32 %v1131, %v3803
      %v3854 = vmul.f32 %v1486, %v3803
      %v3855 = vmul.f32 %v1136, %v3803
      %v3856 = vmul.f32 %v1141, %v3803
      %v3857 = vmul.f32 %v1491, %v3803
      %v3858 = vmul.f32 %v1146, %v3803
      %v3859 = vmul.f32 %v1151, %v3803
      %v3860 = vmul.f32 %v1496, %v3803
      %v3861 = vmul.f32 %v1156, %v3803
      %v3862 = vmul.f32 %v1161, %v3803
      %v3863 = vmul.f32 %v1501, %v3803
      %v3864 = vmul.f32 %v1166, %v3803
      %v3865 = vmul.f32 %v1171, %v3803
      %v3866 = vmul.f32 %v1506, %v3803
      %v3867 = vmul.f32 %v1176, %v3803
      %v3868 = vmul.f32 %v1181, %v3803
      %v3869 = vmul.f32 %v1511, %v3803
      %v3870 = vmul.f32 %v1186, %v3803
      %v3871 = vmul.f32 %v1191, %v3803
      %v3872 = vmul.f32 %v1516, %v3803
      %v3873 = vmul.f32 %v1196, %v3803
      %v3874 = vmul.f32 %v1201, %v3803
      %v3875 = vmul.f32 %v1521, %v3803
      %v3876 = vmul.f32 %v1206, %v3803
      %v3877 = vmul.f32 %v1211, %v3803
      %v3878 = vmul.f32 %v1526, %v3803
      %v3879 = vmul.f32 %v1216, %v3803
      %v3880 = vmul.f32 %v1221, %v3803
      %v3881 = vmul.f32 %v1531, %v3803
      %v3882 = vmul.f32 %v1226, %v3803
      %v3883 = vmul.f32 %v1231, %v3803
      %v3884 = vmul.f32 %v1536, %v3803
      %v3885 = vmul.f32 %v1236, %v3803
      %v3886 = vmul.f32 %v1241, %v3803
      %v3887 = vmul.f32 %v1541, %v3803
      %v3888 = vmul.f32 %v1246, %v3803
      %v3889 = vmul.f32 %v1251, %v3803
      %v3890 = vmul.f32 %v1546, %v3803
      %v3891 = vmul.f32 %v1256, %v3803
      %v3892 = vmul.f32 %v1261, %v3803
      %v3893 = vmul.f32 %v1551, %v3803
      %v3894 = vmul.f32 %v2532, %v3803
      %v3895 = vmul.f32 %v2537, %v3803
      %v3896 = vmul.f32 %v2677, %v3803
      %v3897 = vmul.f32 %v3656, %v3803
      %v3898 = vmul.f32 %v3661, %v3803
      %v3899 = vmul.f32 %v3801, %v3803
      %v3996 = vrot.slane %v3804, 1
      %v3997 = vrot.slane %v3805, 1
      %v3998 = vsel %vm1746, %v3996, %v3997
      %v3999 = vrot.slane %v3806, 1
      %v4000 = vsel %vm1746, %v3997, %v3999
      %v4001 = vrot.slane %v3807, 1
      %v4002 = vrot.slane %v3808, 1
      %v4003 = vsel %vm1746, %v4001, %v4002
      %v4004 = vrot.slane %v3809, 1
      %v4005 = vsel %vm1746, %v4002, %v4004
      %v4006 = vrot.slane %v3810, 1
      %v4007 = vrot.slane %v3811, 1
      %v4008 = vsel %vm1746, %v4006, %v4007
      %v4009 = vrot.slane %v3812, 1
      %v4010 = vsel %vm1746, %v4007, %v4009
      %v4011 = vrot.slane %v3813, 1
      %v4012 = vrot.slane %v3814, 1
      %v4013 = vsel %vm1746, %v4011, %v4012
      %v4014 = vrot.slane %v3815, 1
      %v4015 = vsel %vm1746, %v4012, %v4014
      %v4016 = vrot.slane %v3816, 1
      %v4017 = vrot.slane %v3817, 1
      %v4018 = vsel %vm1746, %v4016, %v4017
      %v4019 = vrot.slane %v3818, 1
      %v4020 = vsel %vm1746, %v4017, %v4019
      %v4021 = vrot.slane %v3819, 1
      %v4022 = vrot.slane %v3820, 1
      %v4023 = vsel %vm1746, %v4021, %v4022
      %v4024 = vrot.slane %v3821, 1
      %v4025 = vsel %vm1746, %v4022, %v4024
      %v4026 = vrot.slane %v3822, 1
      %v4027 = vrot.slane %v3823, 1
      %v4028 = vsel %vm1746, %v4026, %v4027
      %v4029 = vrot.slane %v3824, 1
      %v4030 = vsel %vm1746, %v4027, %v4029
      %v4031 = vrot.slane %v3825, 1
      %v4032 = vrot.slane %v3826, 1
      %v4033 = vsel %vm1746, %v4031, %v4032
      %v4034 = vrot.slane %v3827, 1
      %v4035 = vsel %vm1746, %v4032, %v4034
      %v4036 = vrot.slane %v3828, 1
      %v4037 = vrot.slane %v3829, 1
      %v4038 = vsel %vm1746, %v4036, %v4037
      %v4039 = vrot.slane %v3830, 1
      %v4040 = vsel %vm1746, %v4037, %v4039
      %v4041 = vrot.slane %v3831, 1
      %v4042 = vrot.slane %v3832, 1
      %v4043 = vsel %vm1746, %v4041, %v4042
      %v4044 = vrot.slane %v3833, 1
      %v4045 = vsel %vm1746, %v4042, %v4044
      %v4046 = vrot.slane %v3834, 1
      %v4047 = vrot.slane %v3835, 1
      %v4048 = vsel %vm1746, %v4046, %v4047
      %v4049 = vrot.slane %v3836, 1
      %v4050 = vsel %vm1746, %v4047, %v4049
      %v4051 = vrot.slane %v3837, 1
      %v4052 = vrot.slane %v3838, 1
      %v4053 = vsel %vm1746, %v4051, %v4052
      %v4054 = vrot.slane %v3839, 1
      %v4055 = vsel %vm1746, %v4052, %v4054
      %v4056 = vrot.slane %v3840, 1
      %v4057 = vrot.slane %v3841, 1
      %v4058 = vsel %vm1746, %v4056, %v4057
      %v4059 = vrot.slane %v3842, 1
      %v4060 = vsel %vm1746, %v4057, %v4059
      %v4061 = vrot.slane %v3843, 1
      %v4062 = vrot.slane %v3844, 1
      %v4063 = vsel %vm1746, %v4061, %v4062
      %v4064 = vrot.slane %v3845, 1
      %v4065 = vsel %vm1746, %v4062, %v4064
      %v4066 = vrot.slane %v3846, 1
      %v4067 = vrot.slane %v3847, 1
      %v4068 = vsel %vm1746, %v4066, %v4067
      %v4069 = vrot.slane %v3848, 1
      %v4070 = vsel %vm1746, %v4067, %v4069
      %v4071 = vrot.slane %v3849, 1
      %v4072 = vrot.slane %v3850, 1
      %v4073 = vsel %vm1746, %v4071, %v4072
      %v4074 = vrot.slane %v3851, 1
      %v4075 = vsel %vm1746, %v4072, %v4074
      %v4076 = vrot.slane %v3852, 1
      %v4077 = vrot.slane %v3853, 1
      %v4078 = vsel %vm1746, %v4076, %v4077
      %v4079 = vrot.slane %v3854, 1
      %v4080 = vsel %vm1746, %v4077, %v4079
      %v4081 = vrot.slane %v3855, 1
      %v4082 = vrot.slane %v3856, 1
      %v4083 = vsel %vm1746, %v4081, %v4082
      %v4084 = vrot.slane %v3857, 1
      %v4085 = vsel %vm1746, %v4082, %v4084
      %v4086 = vrot.slane %v3858, 1
      %v4087 = vrot.slane %v3859, 1
      %v4088 = vsel %vm1746, %v4086, %v4087
      %v4089 = vrot.slane %v3860, 1
      %v4090 = vsel %vm1746, %v4087, %v4089
      %v4091 = vrot.slane %v3861, 1
      %v4092 = vrot.slane %v3862, 1
      %v4093 = vsel %vm1746, %v4091, %v4092
      %v4094 = vrot.slane %v3863, 1
      %v4095 = vsel %vm1746, %v4092, %v4094
      %v4096 = vrot.slane %v3864, 1
      %v4097 = vrot.slane %v3865, 1
      %v4098 = vsel %vm1746, %v4096, %v4097
      %v4099 = vrot.slane %v3866, 1
      %v4100 = vsel %vm1746, %v4097, %v4099
      %v4101 = vrot.slane %v3867, 1
      %v4102 = vrot.slane %v3868, 1
      %v4103 = vsel %vm1746, %v4101, %v4102
      %v4104 = vrot.slane %v3869, 1
      %v4105 = vsel %vm1746, %v4102, %v4104
      %v4106 = vrot.slane %v3870, 1
      %v4107 = vrot.slane %v3871, 1
      %v4108 = vsel %vm1746, %v4106, %v4107
      %v4109 = vrot.slane %v3872, 1
      %v4110 = vsel %vm1746, %v4107, %v4109
      %v4111 = vrot.slane %v3873, 1
      %v4112 = vrot.slane %v3874, 1
      %v4113 = vsel %vm1746, %v4111, %v4112
      %v4114 = vrot.slane %v3875, 1
      %v4115 = vsel %vm1746, %v4112, %v4114
      %v4116 = vrot.slane %v3876, 1
      %v4117 = vrot.slane %v3877, 1
      %v4118 = vsel %vm1746, %v4116, %v4117
      %v4119 = vrot.slane %v3878, 1
      %v4120 = vsel %vm1746, %v4117, %v4119
      %v4121 = vrot.slane %v3879, 1
      %v4122 = vrot.slane %v3880, 1
      %v4123 = vsel %vm1746, %v4121, %v4122
      %v4124 = vrot.slane %v3881, 1
      %v4125 = vsel %vm1746, %v4122, %v4124
      %v4126 = vrot.slane %v3882, 1
      %v4127 = vrot.slane %v3883, 1
      %v4128 = vsel %vm1746, %v4126, %v4127
      %v4129 = vrot.slane %v3884, 1
      %v4130 = vsel %vm1746, %v4127, %v4129
      %v4131 = vrot.slane %v3885, 1
      %v4132 = vrot.slane %v3886, 1
      %v4133 = vsel %vm1746, %v4131, %v4132
      %v4134 = vrot.slane %v3887, 1
      %v4135 = vsel %vm1746, %v4132, %v4134
      %v4136 = vrot.slane %v3888, 1
      %v4137 = vrot.slane %v3889, 1
      %v4138 = vsel %vm1746, %v4136, %v4137
      %v4139 = vrot.slane %v3890, 1
      %v4140 = vsel %vm1746, %v4137, %v4139
      %v4141 = vrot.slane %v3891, 1
      %v4142 = vrot.slane %v3892, 1
      %v4143 = vsel %vm1746, %v4141, %v4142
      %v4144 = vrot.slane %v3893, 1
      %v4145 = vsel %vm1746, %v4142, %v4144
      %v4146 = vrot.slane %v3894, 1
      %v4147 = vrot.slane %v3895, 1
      %v4148 = vsel %vm1746, %v4146, %v4147
      %v4149 = vrot.slane %v3896, 1
      %v4150 = vsel %vm1746, %v4147, %v4149
      %v4151 = vrot.slane %v3897, 1
      %v4152 = vrot.slane %v3898, 1
      %v4153 = vsel %vm1746, %v4151, %v4152
      %v4154 = vrot.slane %v3899, 1
      %v4155 = vsel %vm1746, %v4152, %v4154
      %v4220 = vadd.f32 %v3728, %v3998
      %v4221 = vadd.f32 %v3729, %v4000
      %v4222 = vadd.f32 %v3730, %v4003
      %v4223 = vadd.f32 %v3731, %v4005
      %v4224 = vadd.f32 %v3732, %v4008
      %v4225 = vadd.f32 %v3733, %v4010
      %v4226 = vadd.f32 %v3734, %v4013
      %v4227 = vadd.f32 %v3735, %v4015
      %v4228 = vadd.f32 %v3736, %v4018
      %v4229 = vadd.f32 %v3737, %v4020
      %v4230 = vadd.f32 %v3738, %v4023
      %v4231 = vadd.f32 %v3739, %v4025
      %v4232 = vadd.f32 %v3740, %v4028
      %v4233 = vadd.f32 %v3741, %v4030
      %v4234 = vadd.f32 %v3742, %v4033
      %v4235 = vadd.f32 %v3743, %v4035
      %v4236 = vadd.f32 %v3744, %v4038
      %v4237 = vadd.f32 %v3745, %v4040
      %v4238 = vadd.f32 %v3746, %v4043
      %v4239 = vadd.f32 %v3747, %v4045
      %v4240 = vadd.f32 %v3748, %v4048
      %v4241 = vadd.f32 %v3749, %v4050
      %v4242 = vadd.f32 %v3750, %v4053
      %v4243 = vadd.f32 %v3751, %v4055
      %v4244 = vadd.f32 %v3752, %v4058
      %v4245 = vadd.f32 %v3753, %v4060
      %v4246 = vadd.f32 %v3754, %v4063
      %v4247 = vadd.f32 %v3755, %v4065
      %v4248 = vadd.f32 %v3756, %v4068
      %v4249 = vadd.f32 %v3757, %v4070
      %v4250 = vadd.f32 %v3758, %v4073
      %v4251 = vadd.f32 %v3759, %v4075
      %v4252 = vadd.f32 %v3760, %v4078
      %v4253 = vadd.f32 %v3761, %v4080
      %v4254 = vadd.f32 %v3762, %v4083
      %v4255 = vadd.f32 %v3763, %v4085
      %v4256 = vadd.f32 %v3764, %v4088
      %v4257 = vadd.f32 %v3765, %v4090
      %v4258 = vadd.f32 %v3766, %v4093
      %v4259 = vadd.f32 %v3767, %v4095
      %v4260 = vadd.f32 %v3768, %v4098
      %v4261 = vadd.f32 %v3769, %v4100
      %v4262 = vadd.f32 %v3770, %v4103
      %v4263 = vadd.f32 %v3771, %v4105
      %v4264 = vadd.f32 %v3772, %v4108
      %v4265 = vadd.f32 %v3773, %v4110
      %v4266 = vadd.f32 %v3774, %v4113
      %v4267 = vadd.f32 %v3775, %v4115
      %v4268 = vadd.f32 %v3776, %v4118
      %v4269 = vadd.f32 %v3777, %v4120
      %v4270 = vadd.f32 %v3778, %v4123
      %v4271 = vadd.f32 %v3779, %v4125
      %v4272 = vadd.f32 %v3780, %v4128
      %v4273 = vadd.f32 %v3781, %v4130
      %v4274 = vadd.f32 %v3782, %v4133
      %v4275 = vadd.f32 %v3783, %v4135
      %v4276 = vadd.f32 %v3784, %v4138
      %v4277 = vadd.f32 %v3785, %v4140
      %v4278 = vadd.f32 %v3786, %v4143
      %v4279 = vadd.f32 %v3787, %v4145
      %v4280 = vadd.f32 %v3788, %v4148
      %v4281 = vadd.f32 %v3789, %v4150
      %v4282 = vadd.f32 %v3790, %v4153
      %v4283 = vadd.f32 %v3791, %v4155
      %v4284 = vld [vmem:[%s2 + $0x8] sm:$0x1]
      %v4285 = vperm.slane %v4284, 0
      %v4286 = vmul.f32 %v966, %v4285
      %v4287 = vmul.f32 %v971, %v4285
      %v4288 = vmul.f32 %v1406, %v4285
      %v4289 = vmul.f32 %v976, %v4285
      %v4290 = vmul.f32 %v981, %v4285
      %v4291 = vmul.f32 %v1411, %v4285
      %v4292 = vmul.f32 %v986, %v4285
      %v4293 = vmul.f32 %v991, %v4285
      %v4294 = vmul.f32 %v1416, %v4285
      %v4295 = vmul.f32 %v996, %v4285
      %v4296 = vmul.f32 %v1001, %v4285
      %v4297 = vmul.f32 %v1421, %v4285
      %v4298 = vmul.f32 %v1006, %v4285
      %v4299 = vmul.f32 %v1011, %v4285
      %v4300 = vmul.f32 %v1426, %v4285
      %v4301 = vmul.f32 %v1016, %v4285
      %v4302 = vmul.f32 %v1021, %v4285
      %v4303 = vmul.f32 %v1431, %v4285
      %v4304 = vmul.f32 %v1026, %v4285
      %v4305 = vmul.f32 %v1031, %v4285
      %v4306 = vmul.f32 %v1436, %v4285
      %v4307 = vmul.f32 %v1036, %v4285
      %v4308 = vmul.f32 %v1041, %v4285
      %v4309 = vmul.f32 %v1441, %v4285
      %v4310 = vmul.f32 %v1046, %v4285
      %v4311 = vmul.f32 %v1051, %v4285
      %v4312 = vmul.f32 %v1446, %v4285
      %v4313 = vmul.f32 %v1056, %v4285
      %v4314 = vmul.f32 %v1061, %v4285
      %v4315 = vmul.f32 %v1451, %v4285
      %v4316 = vmul.f32 %v1066, %v4285
      %v4317 = vmul.f32 %v1071, %v4285
      %v4318 = vmul.f32 %v1456, %v4285
      %v4319 = vmul.f32 %v1076, %v4285
      %v4320 = vmul.f32 %v1081, %v4285
      %v4321 = vmul.f32 %v1461, %v4285
      %v4322 = vmul.f32 %v1086, %v4285
      %v4323 = vmul.f32 %v1091, %v4285
      %v4324 = vmul.f32 %v1466, %v4285
      %v4325 = vmul.f32 %v1096, %v4285
      %v4326 = vmul.f32 %v1101, %v4285
      %v4327 = vmul.f32 %v1471, %v4285
      %v4328 = vmul.f32 %v2522, %v4285
      %v4329 = vmul.f32 %v2527, %v4285
      %v4330 = vmul.f32 %v2672, %v4285
      %v4331 = vmul.f32 %v3646, %v4285
      %v4332 = vmul.f32 %v3651, %v4285
      %v4333 = vmul.f32 %v3796, %v4285
      %v4334 = vmul.f32 %v1126, %v4285
      %v4335 = vmul.f32 %v1131, %v4285
      %v4336 = vmul.f32 %v1486, %v4285
      %v4337 = vmul.f32 %v1136, %v4285
      %v4338 = vmul.f32 %v1141, %v4285
      %v4339 = vmul.f32 %v1491, %v4285
      %v4340 = vmul.f32 %v1146, %v4285
      %v4341 = vmul.f32 %v1151, %v4285
      %v4342 = vmul.f32 %v1496, %v4285
      %v4343 = vmul.f32 %v1156, %v4285
      %v4344 = vmul.f32 %v1161, %v4285
      %v4345 = vmul.f32 %v1501, %v4285
      %v4346 = vmul.f32 %v1166, %v4285
      %v4347 = vmul.f32 %v1171, %v4285
      %v4348 = vmul.f32 %v1506, %v4285
      %v4349 = vmul.f32 %v1176, %v4285
      %v4350 = vmul.f32 %v1181, %v4285
      %v4351 = vmul.f32 %v1511, %v4285
      %v4352 = vmul.f32 %v1186, %v4285
      %v4353 = vmul.f32 %v1191, %v4285
      %v4354 = vmul.f32 %v1516, %v4285
      %v4355 = vmul.f32 %v1196, %v4285
      %v4356 = vmul.f32 %v1201, %v4285
      %v4357 = vmul.f32 %v1521, %v4285
      %v4358 = vmul.f32 %v1206, %v4285
      %v4359 = vmul.f32 %v1211, %v4285
      %v4360 = vmul.f32 %v1526, %v4285
      %v4361 = vmul.f32 %v1216, %v4285
      %v4362 = vmul.f32 %v1221, %v4285
      %v4363 = vmul.f32 %v1531, %v4285
      %v4364 = vmul.f32 %v1226, %v4285
      %v4365 = vmul.f32 %v1231, %v4285
      %v4366 = vmul.f32 %v1536, %v4285
      %v4367 = vmul.f32 %v1236, %v4285
      %v4368 = vmul.f32 %v1241, %v4285
      %v4369 = vmul.f32 %v1541, %v4285
      %v4370 = vmul.f32 %v1246, %v4285
      %v4371 = vmul.f32 %v1251, %v4285
      %v4372 = vmul.f32 %v1546, %v4285
      %v4373 = vmul.f32 %v1256, %v4285
      %v4374 = vmul.f32 %v1261, %v4285
      %v4375 = vmul.f32 %v1551, %v4285
      %v4376 = vmul.f32 %v2532, %v4285
      %v4377 = vmul.f32 %v2537, %v4285
      %v4378 = vmul.f32 %v2677, %v4285
      %v4379 = vmul.f32 %v3656, %v4285
      %v4380 = vmul.f32 %v3661, %v4285
      %v4381 = vmul.f32 %v3801, %v4285
      %v4478 = vrot.slane %v4286, 2
      %v4479 = vrot.slane %v4287, 2
      %v4480 = vsel %vm2229, %v4478, %v4479
      %v4481 = vrot.slane %v4288, 2
      %v4482 = vsel %vm2229, %v4479, %v4481
      %v4483 = vrot.slane %v4289, 2
      %v4484 = vrot.slane %v4290, 2
      %v4485 = vsel %vm2229, %v4483, %v4484
      %v4486 = vrot.slane %v4291, 2
      %v4487 = vsel %vm2229, %v4484, %v4486
      %v4488 = vrot.slane %v4292, 2
      %v4489 = vrot.slane %v4293, 2
      %v4490 = vsel %vm2229, %v4488, %v4489
      %v4491 = vrot.slane %v4294, 2
      %v4492 = vsel %vm2229, %v4489, %v4491
      %v4493 = vrot.slane %v4295, 2
      %v4494 = vrot.slane %v4296, 2
      %v4495 = vsel %vm2229, %v4493, %v4494
      %v4496 = vrot.slane %v4297, 2
      %v4497 = vsel %vm2229, %v4494, %v4496
      %v4498 = vrot.slane %v4298, 2
      %v4499 = vrot.slane %v4299, 2
      %v4500 = vsel %vm2229, %v4498, %v4499
      %v4501 = vrot.slane %v4300, 2
      %v4502 = vsel %vm2229, %v4499, %v4501
      %v4503 = vrot.slane %v4301, 2
      %v4504 = vrot.slane %v4302, 2
      %v4505 = vsel %vm2229, %v4503, %v4504
      %v4506 = vrot.slane %v4303, 2
      %v4507 = vsel %vm2229, %v4504, %v4506
      %v4508 = vrot.slane %v4304, 2
      %v4509 = vrot.slane %v4305, 2
      %v4510 = vsel %vm2229, %v4508, %v4509
      %v4511 = vrot.slane %v4306, 2
      %v4512 = vsel %vm2229, %v4509, %v4511
      %v4513 = vrot.slane %v4307, 2
      %v4514 = vrot.slane %v4308, 2
      %v4515 = vsel %vm2229, %v4513, %v4514
      %v4516 = vrot.slane %v4309, 2
      %v4517 = vsel %vm2229, %v4514, %v4516
      %v4518 = vrot.slane %v4310, 2
      %v4519 = vrot.slane %v4311, 2
      %v4520 = vsel %vm2229, %v4518, %v4519
      %v4521 = vrot.slane %v4312, 2
      %v4522 = vsel %vm2229, %v4519, %v4521
      %v4523 = vrot.slane %v4313, 2
      %v4524 = vrot.slane %v4314, 2
      %v4525 = vsel %vm2229, %v4523, %v4524
      %v4526 = vrot.slane %v4315, 2
      %v4527 = vsel %vm2229, %v4524, %v4526
      %v4528 = vrot.slane %v4316, 2
      %v4529 = vrot.slane %v4317, 2
      %v4530 = vsel %vm2229, %v4528, %v4529
      %v4531 = vrot.slane %v4318, 2
      %v4532 = vsel %vm2229, %v4529, %v4531
      %v4533 = vrot.slane %v4319, 2
      %v4534 = vrot.slane %v4320, 2
      %v4535 = vsel %vm2229, %v4533, %v4534
      %v4536 = vrot.slane %v4321, 2
      %v4537 = vsel %vm2229, %v4534, %v4536
      %v4538 = vrot.slane %v4322, 2
      %v4539 = vrot.slane %v4323, 2
      %v4540 = vsel %vm2229, %v4538, %v4539
      %v4541 = vrot.slane %v4324, 2
      %v4542 = vsel %vm2229, %v4539, %v4541
      %v4543 = vrot.slane %v4325, 2
      %v4544 = vrot.slane %v4326, 2
      %v4545 = vsel %vm2229, %v4543, %v4544
      %v4546 = vrot.slane %v4327, 2
      %v4547 = vsel %vm2229, %v4544, %v4546
      %v4548 = vrot.slane %v4328, 2
      %v4549 = vrot.slane %v4329, 2
      %v4550 = vsel %vm2229, %v4548, %v4549
      %v4551 = vrot.slane %v4330, 2
      %v4552 = vsel %vm2229, %v4549, %v4551
      %v4553 = vrot.slane %v4331, 2
      %v4554 = vrot.slane %v4332, 2
      %v4555 = vsel %vm2229, %v4553, %v4554
      %v4556 = vrot.slane %v4333, 2
      %v4557 = vsel %vm2229, %v4554, %v4556
      %v4558 = vrot.slane %v4334, 2
      %v4559 = vrot.slane %v4335, 2
      %v4560 = vsel %vm2229, %v4558, %v4559
      %v4561 = vrot.slane %v4336, 2
      %v4562 = vsel %vm2229, %v4559, %v4561
      %v4563 = vrot.slane %v4337, 2
      %v4564 = vrot.slane %v4338, 2
      %v4565 = vsel %vm2229, %v4563, %v4564
      %v4566 = vrot.slane %v4339, 2
      %v4567 = vsel %vm2229, %v4564, %v4566
      %v4568 = vrot.slane %v4340, 2
      %v4569 = vrot.slane %v4341, 2
      %v4570 = vsel %vm2229, %v4568, %v4569
      %v4571 = vrot.slane %v4342, 2
      %v4572 = vsel %vm2229, %v4569, %v4571
      %v4573 = vrot.slane %v4343, 2
      %v4574 = vrot.slane %v4344, 2
      %v4575 = vsel %vm2229, %v4573, %v4574
      %v4576 = vrot.slane %v4345, 2
      %v4577 = vsel %vm2229, %v4574, %v4576
      %v4578 = vrot.slane %v4346, 2
      %v4579 = vrot.slane %v4347, 2
      %v4580 = vsel %vm2229, %v4578, %v4579
      %v4581 = vrot.slane %v4348, 2
      %v4582 = vsel %vm2229, %v4579, %v4581
      %v4583 = vrot.slane %v4349, 2
      %v4584 = vrot.slane %v4350, 2
      %v4585 = vsel %vm2229, %v4583, %v4584
      %v4586 = vrot.slane %v4351, 2
      %v4587 = vsel %vm2229, %v4584, %v4586
      %v4588 = vrot.slane %v4352, 2
      %v4589 = vrot.slane %v4353, 2
      %v4590 = vsel %vm2229, %v4588, %v4589
      %v4591 = vrot.slane %v4354, 2
      %v4592 = vsel %vm2229, %v4589, %v4591
      %v4593 = vrot.slane %v4355, 2
      %v4594 = vrot.slane %v4356, 2
      %v4595 = vsel %vm2229, %v4593, %v4594
      %v4596 = vrot.slane %v4357, 2
      %v4597 = vsel %vm2229, %v4594, %v4596
      %v4598 = vrot.slane %v4358, 2
      %v4599 = vrot.slane %v4359, 2
      %v4600 = vsel %vm2229, %v4598, %v4599
      %v4601 = vrot.slane %v4360, 2
      %v4602 = vsel %vm2229, %v4599, %v4601
      %v4603 = vrot.slane %v4361, 2
      %v4604 = vrot.slane %v4362, 2
      %v4605 = vsel %vm2229, %v4603, %v4604
      %v4606 = vrot.slane %v4363, 2
      %v4607 = vsel %vm2229, %v4604, %v4606
      %v4608 = vrot.slane %v4364, 2
      %v4609 = vrot.slane %v4365, 2
      %v4610 = vsel %vm2229, %v4608, %v4609
      %v4611 = vrot.slane %v4366, 2
      %v4612 = vsel %vm2229, %v4609, %v4611
      %v4613 = vrot.slane %v4367, 2
      %v4614 = vrot.slane %v4368, 2
      %v4615 = vsel %vm2229, %v4613, %v4614
      %v4616 = vrot.slane %v4369, 2
      %v4617 = vsel %vm2229, %v4614, %v4616
      %v4618 = vrot.slane %v4370, 2
      %v4619 = vrot.slane %v4371, 2
      %v4620 = vsel %vm2229, %v4618, %v4619
      %v4621 = vrot.slane %v4372, 2
      %v4622 = vsel %vm2229, %v4619, %v4621
      %v4623 = vrot.slane %v4373, 2
      %v4624 = vrot.slane %v4374, 2
      %v4625 = vsel %vm2229, %v4623, %v4624
      %v4626 = vrot.slane %v4375, 2
      %v4627 = vsel %vm2229, %v4624, %v4626
      %v4628 = vrot.slane %v4376, 2
      %v4629 = vrot.slane %v4377, 2
      %v4630 = vsel %vm2229, %v4628, %v4629
      %v4631 = vrot.slane %v4378, 2
      %v4632 = vsel %vm2229, %v4629, %v4631
      %v4633 = vrot.slane %v4379, 2
      %v4634 = vrot.slane %v4380, 2
      %v4635 = vsel %vm2229, %v4633, %v4634
      %v4636 = vrot.slane %v4381, 2
      %v4637 = vsel %vm2229, %v4634, %v4636
      %v4702 = vadd.f32 %v4220, %v4480
      %v4703 = vadd.f32 %v4221, %v4482
      %v4704 = vadd.f32 %v4222, %v4485
      %v4705 = vadd.f32 %v4223, %v4487
      %v4706 = vadd.f32 %v4224, %v4490
      %v4707 = vadd.f32 %v4225, %v4492
      %v4708 = vadd.f32 %v4226, %v4495
      %v4709 = vadd.f32 %v4227, %v4497
      %v4710 = vadd.f32 %v4228, %v4500
      %v4711 = vadd.f32 %v4229, %v4502
      %v4712 = vadd.f32 %v4230, %v4505
      %v4713 = vadd.f32 %v4231, %v4507
      %v4714 = vadd.f32 %v4232, %v4510
      %v4715 = vadd.f32 %v4233, %v4512
      %v4716 = vadd.f32 %v4234, %v4515
      %v4717 = vadd.f32 %v4235, %v4517
      %v4718 = vadd.f32 %v4236, %v4520
      %v4719 = vadd.f32 %v4237, %v4522
      %v4720 = vadd.f32 %v4238, %v4525
      %v4721 = vadd.f32 %v4239, %v4527
      %v4722 = vadd.f32 %v4240, %v4530
      %v4723 = vadd.f32 %v4241, %v4532
      %v4724 = vadd.f32 %v4242, %v4535
      %v4725 = vadd.f32 %v4243, %v4537
      %v4726 = vadd.f32 %v4244, %v4540
      %v4727 = vadd.f32 %v4245, %v4542
      %v4728 = vadd.f32 %v4246, %v4545
      %v4729 = vadd.f32 %v4247, %v4547
      %v4730 = vadd.f32 %v4248, %v4550
      %v4731 = vadd.f32 %v4249, %v4552
      %v4732 = vadd.f32 %v4250, %v4555
      %v4733 = vadd.f32 %v4251, %v4557
      %v4734 = vadd.f32 %v4252, %v4560
      %v4735 = vadd.f32 %v4253, %v4562
      %v4736 = vadd.f32 %v4254, %v4565
      %v4737 = vadd.f32 %v4255, %v4567
      %v4738 = vadd.f32 %v4256, %v4570
      %v4739 = vadd.f32 %v4257, %v4572
      %v4740 = vadd.f32 %v4258, %v4575
      %v4741 = vadd.f32 %v4259, %v4577
      %v4742 = vadd.f32 %v4260, %v4580
      %v4743 = vadd.f32 %v4261, %v4582
      %v4744 = vadd.f32 %v4262, %v4585
      %v4745 = vadd.f32 %v4263, %v4587
      %v4746 = vadd.f32 %v4264, %v4590
      %v4747 = vadd.f32 %v4265, %v4592
      %v4748 = vadd.f32 %v4266, %v4595
      %v4749 = vadd.f32 %v4267, %v4597
      %v4750 = vadd.f32 %v4268, %v4600
      %v4751 = vadd.f32 %v4269, %v4602
      %v4752 = vadd.f32 %v4270, %v4605
      %v4753 = vadd.f32 %v4271, %v4607
      %v4754 = vadd.f32 %v4272, %v4610
      %v4755 = vadd.f32 %v4273, %v4612
      %v4756 = vadd.f32 %v4274, %v4615
      %v4757 = vadd.f32 %v4275, %v4617
      %v4758 = vadd.f32 %v4276, %v4620
      %v4759 = vadd.f32 %v4277, %v4622
      %v4760 = vadd.f32 %v4278, %v4625
      %v4761 = vadd.f32 %v4279, %v4627
      %v4762 = vadd.f32 %v4280, %v4630
      %v4763 = vadd.f32 %v4281, %v4632
      %v4764 = vadd.f32 %v4282, %v4635
      %v4765 = vadd.f32 %v4283, %v4637
      %v4766 = vld [vmem:[%s3] sm:$0x1]
      %v4768 = vperm.slane %v4766, 0
      %v4770 = vmul.f32 %v4702, %v4768
      %v4771 = vmul.f32 %v4703, %v4768
      %v4772 = vmul.f32 %v4704, %v4768
      %v4773 = vmul.f32 %v4705, %v4768
      %v4774 = vmul.f32 %v4706, %v4768
      %v4775 = vmul.f32 %v4707, %v4768
      %v4776 = vmul.f32 %v4708, %v4768
      %v4777 = vmul.f32 %v4709, %v4768
      %v4778 = vmul.f32 %v4710, %v4768
      %v4779 = vmul.f32 %v4711, %v4768
      %v4780 = vmul.f32 %v4712, %v4768
      %v4781 = vmul.f32 %v4713, %v4768
      %v4782 = vmul.f32 %v4714, %v4768
      %v4783 = vmul.f32 %v4715, %v4768
      %v4784 = vmul.f32 %v4716, %v4768
      %v4785 = vmul.f32 %v4717, %v4768
      %v4786 = vmul.f32 %v4718, %v4768
      %v4787 = vmul.f32 %v4719, %v4768
      %v4788 = vmul.f32 %v4720, %v4768
      %v4789 = vmul.f32 %v4721, %v4768
      %v4790 = vmul.f32 %v4722, %v4768
      %v4791 = vmul.f32 %v4723, %v4768
      %v4792 = vmul.f32 %v4724, %v4768
      %v4793 = vmul.f32 %v4725, %v4768
      %v4794 = vmul.f32 %v4726, %v4768
      %v4795 = vmul.f32 %v4727, %v4768
      %v4796 = vmul.f32 %v4728, %v4768
      %v4797 = vmul.f32 %v4729, %v4768
      %v4798 = vmul.f32 %v4730, %v4768
      %v4799 = vmul.f32 %v4731, %v4768
      %v4800 = vmul.f32 %v4732, %v4768
      %v4801 = vmul.f32 %v4733, %v4768
      %v4802 = vmul.f32 %v4734, %v4768
      %v4803 = vmul.f32 %v4735, %v4768
      %v4804 = vmul.f32 %v4736, %v4768
      %v4805 = vmul.f32 %v4737, %v4768
      %v4806 = vmul.f32 %v4738, %v4768
      %v4807 = vmul.f32 %v4739, %v4768
      %v4808 = vmul.f32 %v4740, %v4768
      %v4809 = vmul.f32 %v4741, %v4768
      %v4810 = vmul.f32 %v4742, %v4768
      %v4811 = vmul.f32 %v4743, %v4768
      %v4812 = vmul.f32 %v4744, %v4768
      %v4813 = vmul.f32 %v4745, %v4768
      %v4814 = vmul.f32 %v4746, %v4768
      %v4815 = vmul.f32 %v4747, %v4768
      %v4816 = vmul.f32 %v4748, %v4768
      %v4817 = vmul.f32 %v4749, %v4768
      %v4818 = vmul.f32 %v4750, %v4768
      %v4819 = vmul.f32 %v4751, %v4768
      %v4820 = vmul.f32 %v4752, %v4768
      %v4821 = vmul.f32 %v4753, %v4768
      %v4822 = vmul.f32 %v4754, %v4768
      %v4823 = vmul.f32 %v4755, %v4768
      %v4824 = vmul.f32 %v4756, %v4768
      %v4825 = vmul.f32 %v4757, %v4768
      %v4826 = vmul.f32 %v4758, %v4768
      %v4827 = vmul.f32 %v4759, %v4768
      %v4828 = vmul.f32 %v4760, %v4768
      %v4829 = vmul.f32 %v4761, %v4768
      %v4830 = vmul.f32 %v4762, %v4768
      %v4831 = vmul.f32 %v4763, %v4768
      %v4832 = vmul.f32 %v4764, %v4768
      %v4833 = vmul.f32 %v4765, %v4768
      %v4834 = vld [vmem:[%s4] sm:$0x1]
      %v4836 = vperm.slane %v4834, 0
      %v4838 = vadd.f32 %v4770, %v4836
      %v4839 = vadd.f32 %v4771, %v4836
      %v4840 = vadd.f32 %v4772, %v4836
      %v4841 = vadd.f32 %v4773, %v4836
      %v4842 = vadd.f32 %v4774, %v4836
      %v4843 = vadd.f32 %v4775, %v4836
      %v4844 = vadd.f32 %v4776, %v4836
      %v4845 = vadd.f32 %v4777, %v4836
      %v4846 = vadd.f32 %v4778, %v4836
      %v4847 = vadd.f32 %v4779, %v4836
      %v4848 = vadd.f32 %v4780, %v4836
      %v4849 = vadd.f32 %v4781, %v4836
      %v4850 = vadd.f32 %v4782, %v4836
      %v4851 = vadd.f32 %v4783, %v4836
      %v4852 = vadd.f32 %v4784, %v4836
      %v4853 = vadd.f32 %v4785, %v4836
      %v4854 = vadd.f32 %v4786, %v4836
      %v4855 = vadd.f32 %v4787, %v4836
      %v4856 = vadd.f32 %v4788, %v4836
      %v4857 = vadd.f32 %v4789, %v4836
      %v4858 = vadd.f32 %v4790, %v4836
      %v4859 = vadd.f32 %v4791, %v4836
      %v4860 = vadd.f32 %v4792, %v4836
      %v4861 = vadd.f32 %v4793, %v4836
      %v4862 = vadd.f32 %v4794, %v4836
      %v4863 = vadd.f32 %v4795, %v4836
      %v4864 = vadd.f32 %v4796, %v4836
      %v4865 = vadd.f32 %v4797, %v4836
      %v4866 = vadd.f32 %v4798, %v4836
      %v4867 = vadd.f32 %v4799, %v4836
      %v4868 = vadd.f32 %v4800, %v4836
      %v4869 = vadd.f32 %v4801, %v4836
      %v4870 = vadd.f32 %v4802, %v4836
      %v4871 = vadd.f32 %v4803, %v4836
      %v4872 = vadd.f32 %v4804, %v4836
      %v4873 = vadd.f32 %v4805, %v4836
      %v4874 = vadd.f32 %v4806, %v4836
      %v4875 = vadd.f32 %v4807, %v4836
      %v4876 = vadd.f32 %v4808, %v4836
      %v4877 = vadd.f32 %v4809, %v4836
      %v4878 = vadd.f32 %v4810, %v4836
      %v4879 = vadd.f32 %v4811, %v4836
      %v4880 = vadd.f32 %v4812, %v4836
      %v4881 = vadd.f32 %v4813, %v4836
      %v4882 = vadd.f32 %v4814, %v4836
      %v4883 = vadd.f32 %v4815, %v4836
      %v4884 = vadd.f32 %v4816, %v4836
      %v4885 = vadd.f32 %v4817, %v4836
      %v4886 = vadd.f32 %v4818, %v4836
      %v4887 = vadd.f32 %v4819, %v4836
      %v4888 = vadd.f32 %v4820, %v4836
      %v4889 = vadd.f32 %v4821, %v4836
      %v4890 = vadd.f32 %v4822, %v4836
      %v4891 = vadd.f32 %v4823, %v4836
      %v4892 = vadd.f32 %v4824, %v4836
      %v4893 = vadd.f32 %v4825, %v4836
      %v4894 = vadd.f32 %v4826, %v4836
      %v4895 = vadd.f32 %v4827, %v4836
      %v4896 = vadd.f32 %v4828, %v4836
      %v4897 = vadd.f32 %v4829, %v4836
      %v4898 = vadd.f32 %v4830, %v4836
      %v4899 = vadd.f32 %v4831, %v4836
      %v4900 = vadd.f32 %v4832, %v4836
      %v4901 = vadd.f32 %v4833, %v4836
      %v4902 = vmax.f32 %v4838, 0.0
      %v4903 = vmax.f32 %v4839, 0.0
      %v4904 = vmax.f32 %v4840, 0.0
      %v4905 = vmax.f32 %v4841, 0.0
      %v4906 = vmax.f32 %v4842, 0.0
      %v4907 = vmax.f32 %v4843, 0.0
      %v4908 = vmax.f32 %v4844, 0.0
      %v4909 = vmax.f32 %v4845, 0.0
      %v4910 = vmax.f32 %v4846, 0.0
      %v4911 = vmax.f32 %v4847, 0.0
      %v4912 = vmax.f32 %v4848, 0.0
      %v4913 = vmax.f32 %v4849, 0.0
      %v4914 = vmax.f32 %v4850, 0.0
      %v4915 = vmax.f32 %v4851, 0.0
      %v4916 = vmax.f32 %v4852, 0.0
      %v4917 = vmax.f32 %v4853, 0.0
      %v4918 = vmax.f32 %v4854, 0.0
      %v4919 = vmax.f32 %v4855, 0.0
      %v4920 = vmax.f32 %v4856, 0.0
      %v4921 = vmax.f32 %v4857, 0.0
      %v4922 = vmax.f32 %v4858, 0.0
      %v4923 = vmax.f32 %v4859, 0.0
      %v4924 = vmax.f32 %v4860, 0.0
      %v4925 = vmax.f32 %v4861, 0.0
      %v4926 = vmax.f32 %v4862, 0.0
      %v4927 = vmax.f32 %v4863, 0.0
      %v4928 = vmax.f32 %v4864, 0.0
      %v4929 = vmax.f32 %v4865, 0.0
      %v4930 = vmax.f32 %v4866, 0.0
      %v4931 = vmax.f32 %v4867, 0.0
      %v4932 = vmax.f32 %v4868, 0.0
      %v4933 = vmax.f32 %v4869, 0.0
      %v4934 = vmax.f32 %v4870, 0.0
      %v4935 = vmax.f32 %v4871, 0.0
      %v4936 = vmax.f32 %v4872, 0.0
      %v4937 = vmax.f32 %v4873, 0.0
      %v4938 = vmax.f32 %v4874, 0.0
      %v4939 = vmax.f32 %v4875, 0.0
      %v4940 = vmax.f32 %v4876, 0.0
      %v4941 = vmax.f32 %v4877, 0.0
      %v4942 = vmax.f32 %v4878, 0.0
      %v4943 = vmax.f32 %v4879, 0.0
      %v4944 = vmax.f32 %v4880, 0.0
      %v4945 = vmax.f32 %v4881, 0.0
      %v4946 = vmax.f32 %v4882, 0.0
      %v4947 = vmax.f32 %v4883, 0.0
      %v4948 = vmax.f32 %v4884, 0.0
      %v4949 = vmax.f32 %v4885, 0.0
      %v4950 = vmax.f32 %v4886, 0.0
      %v4951 = vmax.f32 %v4887, 0.0
      %v4952 = vmax.f32 %v4888, 0.0
      %v4953 = vmax.f32 %v4889, 0.0
      %v4954 = vmax.f32 %v4890, 0.0
      %v4955 = vmax.f32 %v4891, 0.0
      %v4956 = vmax.f32 %v4892, 0.0
      %v4957 = vmax.f32 %v4893, 0.0
      %v4958 = vmax.f32 %v4894, 0.0
      %v4959 = vmax.f32 %v4895, 0.0
      %v4960 = vmax.f32 %v4896, 0.0
      %v4961 = vmax.f32 %v4897, 0.0
      %v4962 = vmax.f32 %v4898, 0.0
      %v4963 = vmax.f32 %v4899, 0.0
      %v4964 = vmax.f32 %v4900, 0.0
      %v4965 = vmax.f32 %v4901, 0.0
      %v5030 = vrot.slane %v4902, 2
      %v5031 = vrot.slane %v4902, 4
      %v5032 = vrot.slane %v4902, 6
      %v5033 = vrot.slane %v4903, 2
      %v5034 = vrot.slane %v4903, 4
      %v5035 = vrot.slane %v4903, 6
      %v5036 = vrot.slane %v4904, 2
      %v5037 = vrot.slane %v4904, 4
      %v5038 = vrot.slane %v4904, 6
      %v5039 = vrot.slane %v4905, 2
      %v5040 = vrot.slane %v4905, 4
      %v5041 = vrot.slane %v4905, 6
      %v5042 = vrot.slane %v4906, 2
      %v5043 = vrot.slane %v4906, 4
      %v5044 = vrot.slane %v4906, 6
      %v5045 = vrot.slane %v4907, 2
      %v5046 = vrot.slane %v4907, 4
      %v5047 = vrot.slane %v4907, 6
      %v5048 = vrot.slane %v4908, 2
      %v5049 = vrot.slane %v4908, 4
      %v5050 = vrot.slane %v4908, 6
      %v5051 = vrot.slane %v4909, 2
      %v5052 = vrot.slane %v4909, 4
      %v5053 = vrot.slane %v4909, 6
      %v5054 = vrot.slane %v4910, 2
      %v5055 = vrot.slane %v4910, 4
      %v5056 = vrot.slane %v4910, 6
      %v5057 = vrot.slane %v4911, 2
      %v5058 = vrot.slane %v4911, 4
      %v5059 = vrot.slane %v4911, 6
      %v5060 = vrot.slane %v4912, 2
      %v5061 = vrot.slane %v4912, 4
      %v5062 = vrot.slane %v4912, 6
      %v5063 = vrot.slane %v4913, 2
      %v5064 = vrot.slane %v4913, 4
      %v5065 = vrot.slane %v4913, 6
      %v5066 = vrot.slane %v4914, 2
      %v5067 = vrot.slane %v4914, 4
      %v5068 = vrot.slane %v4914, 6
      %v5069 = vrot.slane %v4915, 2
      %v5070 = vrot.slane %v4915, 4
      %v5071 = vrot.slane %v4915, 6
      %v5072 = vrot.slane %v4916, 2
      %v5073 = vrot.slane %v4916, 4
      %v5074 = vrot.slane %v4916, 6
      %v5075 = vrot.slane %v4917, 2
      %v5076 = vrot.slane %v4917, 4
      %v5077 = vrot.slane %v4917, 6
      %v5078 = vrot.slane %v4918, 2
      %v5079 = vrot.slane %v4918, 4
      %v5080 = vrot.slane %v4918, 6
      %v5081 = vrot.slane %v4919, 2
      %v5082 = vrot.slane %v4919, 4
      %v5083 = vrot.slane %v4919, 6
      %v5084 = vrot.slane %v4920, 2
      %v5085 = vrot.slane %v4920, 4
      %v5086 = vrot.slane %v4920, 6
      %v5087 = vrot.slane %v4921, 2
      %v5088 = vrot.slane %v4921, 4
      %v5089 = vrot.slane %v4921, 6
      %v5090 = vrot.slane %v4922, 2
      %v5091 = vrot.slane %v4922, 4
      %v5092 = vrot.slane %v4922, 6
      %v5093 = vrot.slane %v4923, 2
      %v5094 = vrot.slane %v4923, 4
      %v5095 = vrot.slane %v4923, 6
      %v5096 = vrot.slane %v4924, 2
      %v5097 = vrot.slane %v4924, 4
      %v5098 = vrot.slane %v4924, 6
      %v5099 = vrot.slane %v4925, 2
      %v5100 = vrot.slane %v4925, 4
      %v5101 = vrot.slane %v4925, 6
      %v5102 = vrot.slane %v4926, 2
      %v5103 = vrot.slane %v4926, 4
      %v5104 = vrot.slane %v4926, 6
      %v5105 = vrot.slane %v4927, 2
      %v5106 = vrot.slane %v4927, 4
      %v5107 = vrot.slane %v4927, 6
      %v5108 = vrot.slane %v4928, 2
      %v5109 = vrot.slane %v4928, 4
      %v5110 = vrot.slane %v4928, 6
      %v5111 = vrot.slane %v4929, 2
      %v5112 = vrot.slane %v4929, 4
      %v5113 = vrot.slane %v4929, 6
      %v5114 = vrot.slane %v4930, 2
      %v5115 = vrot.slane %v4930, 4
      %v5116 = vrot.slane %v4930, 6
      %v5117 = vrot.slane %v4931, 2
      %v5118 = vrot.slane %v4931, 4
      %v5119 = vrot.slane %v4931, 6
      %v5120 = vrot.slane %v4932, 2
      %v5121 = vrot.slane %v4932, 4
      %v5122 = vrot.slane %v4932, 6
      %v5123 = vrot.slane %v4933, 2
      %v5124 = vrot.slane %v4933, 4
      %v5125 = vrot.slane %v4933, 6
      %v5126 = vrot.slane %v4934, 2
      %v5127 = vrot.slane %v4934, 4
      %v5128 = vrot.slane %v4934, 6
      %v5129 = vrot.slane %v4935, 2
      %v5130 = vrot.slane %v4935, 4
      %v5131 = vrot.slane %v4935, 6
      %v5132 = vrot.slane %v4936, 2
      %v5133 = vrot.slane %v4936, 4
      %v5134 = vrot.slane %v4936, 6
      %v5135 = vrot.slane %v4937, 2
      %v5136 = vrot.slane %v4937, 4
      %v5137 = vrot.slane %v4937, 6
      %v5138 = vrot.slane %v4938, 2
      %v5139 = vrot.slane %v4938, 4
      %v5140 = vrot.slane %v4938, 6
      %v5141 = vrot.slane %v4939, 2
      %v5142 = vrot.slane %v4939, 4
      %v5143 = vrot.slane %v4939, 6
      %v5144 = vrot.slane %v4940, 2
      %v5145 = vrot.slane %v4940, 4
      %v5146 = vrot.slane %v4940, 6
      %v5147 = vrot.slane %v4941, 2
      %v5148 = vrot.slane %v4941, 4
      %v5149 = vrot.slane %v4941, 6
      %v5150 = vrot.slane %v4942, 2
      %v5151 = vrot.slane %v4942, 4
      %v5152 = vrot.slane %v4942, 6
      %v5153 = vrot.slane %v4943, 2
      %v5154 = vrot.slane %v4943, 4
      %v5155 = vrot.slane %v4943, 6
      %v5156 = vrot.slane %v4944, 2
      %v5157 = vrot.slane %v4944, 4
      %v5158 = vrot.slane %v4944, 6
      %v5159 = vrot.slane %v4945, 2
      %v5160 = vrot.slane %v4945, 4
      %v5161 = vrot.slane %v4945, 6
      %v5162 = vrot.slane %v4946, 2
      %v5163 = vrot.slane %v4946, 4
      %v5164 = vrot.slane %v4946, 6
      %v5165 = vrot.slane %v4947, 2
      %v5166 = vrot.slane %v4947, 4
      %v5167 = vrot.slane %v4947, 6
      %v5168 = vrot.slane %v4948, 2
      %v5169 = vrot.slane %v4948, 4
      %v5170 = vrot.slane %v4948, 6
      %v5171 = vrot.slane %v4949, 2
      %v5172 = vrot.slane %v4949, 4
      %v5173 = vrot.slane %v4949, 6
      %v5174 = vrot.slane %v4950, 2
      %v5175 = vrot.slane %v4950, 4
      %v5176 = vrot.slane %v4950, 6
      %v5177 = vrot.slane %v4951, 2
      %v5178 = vrot.slane %v4951, 4
      %v5179 = vrot.slane %v4951, 6
      %v5180 = vrot.slane %v4952, 2
      %v5181 = vrot.slane %v4952, 4
      %v5182 = vrot.slane %v4952, 6
      %v5183 = vrot.slane %v4953, 2
      %v5184 = vrot.slane %v4953, 4
      %v5185 = vrot.slane %v4953, 6
      %v5186 = vrot.slane %v4954, 2
      %v5187 = vrot.slane %v4954, 4
      %v5188 = vrot.slane %v4954, 6
      %v5189 = vrot.slane %v4955, 2
      %v5190 = vrot.slane %v4955, 4
      %v5191 = vrot.slane %v4955, 6
      %v5192 = vrot.slane %v4956, 2
      %v5193 = vrot.slane %v4956, 4
      %v5194 = vrot.slane %v4956, 6
      %v5195 = vrot.slane %v4957, 2
      %v5196 = vrot.slane %v4957, 4
      %v5197 = vrot.slane %v4957, 6
      %v5198 = vrot.slane %v4958, 2
      %v5199 = vrot.slane %v4958, 4
      %v5200 = vrot.slane %v4958, 6
      %v5201 = vrot.slane %v4959, 2
      %v5202 = vrot.slane %v4959, 4
      %v5203 = vrot.slane %v4959, 6
      %v5204 = vrot.slane %v4960, 2
      %v5205 = vrot.slane %v4960, 4
      %v5206 = vrot.slane %v4960, 6
      %v5207 = vrot.slane %v4961, 2
      %v5208 = vrot.slane %v4961, 4
      %v5209 = vrot.slane %v4961, 6
      %v5210 = vrot.slane %v4962, 2
      %v5211 = vrot.slane %v4962, 4
      %v5212 = vrot.slane %v4962, 6
      %v5213 = vrot.slane %v4963, 2
      %v5214 = vrot.slane %v4963, 4
      %v5215 = vrot.slane %v4963, 6
      %v5216 = vrot.slane %v4964, 2
      %v5217 = vrot.slane %v4964, 4
      %v5218 = vrot.slane %v4964, 6
      %v5219 = vrot.slane %v4965, 2
      %v5220 = vrot.slane %v4965, 4
      %v5221 = vrot.slane %v4965, 6
      %vm5414 = vcmask 254976
      %v5415 = vsel %vm5414, %v4902, -inf
      %v5416 = vrot.slane %v5415, 4
      %v5417 = vmax.f32 %v5415, %v5416
      %v5418 = vrot.slane %v5417, 2
      %v5419 = vmax.f32 %v5417, %v5418
      %v5420 = vrot.slane %v5419, 1
      %v5421 = vmax.f32 %v5419, %v5420
      %v5422 = vsel %vm5414, %v5030, -inf
      %v5423 = vrot.slane %v5422, 4
      %v5424 = vmax.f32 %v5422, %v5423
      %v5425 = vrot.slane %v5424, 2
      %v5426 = vmax.f32 %v5424, %v5425
      %v5427 = vrot.slane %v5426, 1
      %v5428 = vmax.f32 %v5426, %v5427
      %v5429 = vsel %vm5414, %v5031, -inf
      %v5430 = vrot.slane %v5429, 4
      %v5431 = vmax.f32 %v5429, %v5430
      %v5432 = vrot.slane %v5431, 2
      %v5433 = vmax.f32 %v5431, %v5432
      %v5434 = vrot.slane %v5433, 1
      %v5435 = vmax.f32 %v5433, %v5434
      %v5436 = vsel %vm5414, %v5032, -inf
      %v5437 = vrot.slane %v5436, 4
      %v5438 = vmax.f32 %v5436, %v5437
      %v5439 = vrot.slane %v5438, 2
      %v5440 = vmax.f32 %v5438, %v5439
      %v5441 = vrot.slane %v5440, 1
      %v5442 = vmax.f32 %v5440, %v5441
      %v5443 = vsel %vm5414, %v4903, -inf
      %v5444 = vrot.slane %v5443, 4
      %v5445 = vmax.f32 %v5443, %v5444
      %v5446 = vrot.slane %v5445, 2
      %v5447 = vmax.f32 %v5445, %v5446
      %v5448 = vrot.slane %v5447, 1
      %v5449 = vmax.f32 %v5447, %v5448
      %v5450 = vsel %vm5414, %v5033, -inf
      %v5451 = vrot.slane %v5450, 4
      %v5452 = vmax.f32 %v5450, %v5451
      %v5453 = vrot.slane %v5452, 2
      %v5454 = vmax.f32 %v5452, %v5453
      %v5455 = vrot.slane %v5454, 1
      %v5456 = vmax.f32 %v5454, %v5455
      %v5457 = vsel %vm5414, %v5034, -inf
      %v5458 = vrot.slane %v5457, 4
      %v5459 = vmax.f32 %v5457, %v5458
      %v5460 = vrot.slane %v5459, 2
      %v5461 = vmax.f32 %v5459, %v5460
      %v5462 = vrot.slane %v5461, 1
      %v5463 = vmax.f32 %v5461, %v5462
      %v5464 = vsel %vm5414, %v5035, -inf
      %v5465 = vrot.slane %v5464, 4
      %v5466 = vmax.f32 %v5464, %v5465
      %v5467 = vrot.slane %v5466, 2
      %v5468 = vmax.f32 %v5466, %v5467
      %v5469 = vrot.slane %v5468, 1
      %v5470 = vmax.f32 %v5468, %v5469
      %v5471 = vsel %vm5414, %v4904, -inf
      %v5472 = vrot.slane %v5471, 4
      %v5473 = vmax.f32 %v5471, %v5472
      %v5474 = vrot.slane %v5473, 2
      %v5475 = vmax.f32 %v5473, %v5474
      %v5476 = vrot.slane %v5475, 1
      %v5477 = vmax.f32 %v5475, %v5476
      %v5478 = vsel %vm5414, %v5036, -inf
      %v5479 = vrot.slane %v5478, 4
      %v5480 = vmax.f32 %v5478, %v5479
      %v5481 = vrot.slane %v5480, 2
      %v5482 = vmax.f32 %v5480, %v5481
      %v5483 = vrot.slane %v5482, 1
      %v5484 = vmax.f32 %v5482, %v5483
      %v5485 = vsel %vm5414, %v5037, -inf
      %v5486 = vrot.slane %v5485, 4
      %v5487 = vmax.f32 %v5485, %v5486
      %v5488 = vrot.slane %v5487, 2
      %v5489 = vmax.f32 %v5487, %v5488
      %v5490 = vrot.slane %v5489, 1
      %v5491 = vmax.f32 %v5489, %v5490
      %v5492 = vsel %vm5414, %v5038, -inf
      %v5493 = vrot.slane %v5492, 4
      %v5494 = vmax.f32 %v5492, %v5493
      %v5495 = vrot.slane %v5494, 2
      %v5496 = vmax.f32 %v5494, %v5495
      %v5497 = vrot.slane %v5496, 1
      %v5498 = vmax.f32 %v5496, %v5497
      %v5499 = vsel %vm5414, %v4905, -inf
      %v5500 = vrot.slane %v5499, 4
      %v5501 = vmax.f32 %v5499, %v5500
      %v5502 = vrot.slane %v5501, 2
      %v5503 = vmax.f32 %v5501, %v5502
      %v5504 = vrot.slane %v5503, 1
      %v5505 = vmax.f32 %v5503, %v5504
      %v5506 = vsel %vm5414, %v5039, -inf
      %v5507 = vrot.slane %v5506, 4
      %v5508 = vmax.f32 %v5506, %v5507
      %v5509 = vrot.slane %v5508, 2
      %v5510 = vmax.f32 %v5508, %v5509
      %v5511 = vrot.slane %v5510, 1
      %v5512 = vmax.f32 %v5510, %v5511
      %v5513 = vsel %vm5414, %v5040, -inf
      %v5514 = vrot.slane %v5513, 4
      %v5515 = vmax.f32 %v5513, %v5514
      %v5516 = vrot.slane %v5515, 2
      %v5517 = vmax.f32 %v5515, %v5516
      %v5518 = vrot.slane %v5517, 1
      %v5519 = vmax.f32 %v5517, %v5518
      %v5520 = vsel %vm5414, %v5041, -inf
      %v5521 = vrot.slane %v5520, 4
      %v5522 = vmax.f32 %v5520, %v5521
      %v5523 = vrot.slane %v5522, 2
      %v5524 = vmax.f32 %v5522, %v5523
      %v5525 = vrot.slane %v5524, 1
      %v5526 = vmax.f32 %v5524, %v5525
      %v5527 = vsel %vm5414, %v4906, -inf
      %v5528 = vrot.slane %v5527, 4
      %v5529 = vmax.f32 %v5527, %v5528
      %v5530 = vrot.slane %v5529, 2
      %v5531 = vmax.f32 %v5529, %v5530
      %v5532 = vrot.slane %v5531, 1
      %v5533 = vmax.f32 %v5531, %v5532
      %v5534 = vsel %vm5414, %v5042, -inf
      %v5535 = vrot.slane %v5534, 4
      %v5536 = vmax.f32 %v5534, %v5535
      %v5537 = vrot.slane %v5536, 2
      %v5538 = vmax.f32 %v5536, %v5537
      %v5539 = vrot.slane %v5538, 1
      %v5540 = vmax.f32 %v5538, %v5539
      %v5541 = vsel %vm5414, %v5043, -inf
      %v5542 = vrot.slane %v5541, 4
      %v5543 = vmax.f32 %v5541, %v5542
      %v5544 = vrot.slane %v5543, 2
      %v5545 = vmax.f32 %v5543, %v5544
      %v5546 = vrot.slane %v5545, 1
      %v5547 = vmax.f32 %v5545, %v5546
      %v5548 = vsel %vm5414, %v5044, -inf
      %v5549 = vrot.slane %v5548, 4
      %v5550 = vmax.f32 %v5548, %v5549
      %v5551 = vrot.slane %v5550, 2
      %v5552 = vmax.f32 %v5550, %v5551
      %v5553 = vrot.slane %v5552, 1
      %v5554 = vmax.f32 %v5552, %v5553
      %v5555 = vsel %vm5414, %v4907, -inf
      %v5556 = vrot.slane %v5555, 4
      %v5557 = vmax.f32 %v5555, %v5556
      %v5558 = vrot.slane %v5557, 2
      %v5559 = vmax.f32 %v5557, %v5558
      %v5560 = vrot.slane %v5559, 1
      %v5561 = vmax.f32 %v5559, %v5560
      %v5562 = vsel %vm5414, %v5045, -inf
      %v5563 = vrot.slane %v5562, 4
      %v5564 = vmax.f32 %v5562, %v5563
      %v5565 = vrot.slane %v5564, 2
      %v5566 = vmax.f32 %v5564, %v5565
      %v5567 = vrot.slane %v5566, 1
      %v5568 = vmax.f32 %v5566, %v5567
      %v5569 = vsel %vm5414, %v5046, -inf
      %v5570 = vrot.slane %v5569, 4
      %v5571 = vmax.f32 %v5569, %v5570
      %v5572 = vrot.slane %v5571, 2
      %v5573 = vmax.f32 %v5571, %v5572
      %v5574 = vrot.slane %v5573, 1
      %v5575 = vmax.f32 %v5573, %v5574
      %v5576 = vsel %vm5414, %v5047, -inf
      %v5577 = vrot.slane %v5576, 4
      %v5578 = vmax.f32 %v5576, %v5577
      %v5579 = vrot.slane %v5578, 2
      %v5580 = vmax.f32 %v5578, %v5579
      %v5581 = vrot.slane %v5580, 1
      %v5582 = vmax.f32 %v5580, %v5581
      %v5583 = vsel %vm5414, %v4908, -inf
      %v5584 = vrot.slane %v5583, 4
      %v5585 = vmax.f32 %v5583, %v5584
      %v5586 = vrot.slane %v5585, 2
      %v5587 = vmax.f32 %v5585, %v5586
      %v5588 = vrot.slane %v5587, 1
      %v5589 = vmax.f32 %v5587, %v5588
      %v5590 = vsel %vm5414, %v5048, -inf
      %v5591 = vrot.slane %v5590, 4
      %v5592 = vmax.f32 %v5590, %v5591
      %v5593 = vrot.slane %v5592, 2
      %v5594 = vmax.f32 %v5592, %v5593
      %v5595 = vrot.slane %v5594, 1
      %v5596 = vmax.f32 %v5594, %v5595
      %v5597 = vsel %vm5414, %v5049, -inf
      %v5598 = vrot.slane %v5597, 4
      %v5599 = vmax.f32 %v5597, %v5598
      %v5600 = vrot.slane %v5599, 2
      %v5601 = vmax.f32 %v5599, %v5600
      %v5602 = vrot.slane %v5601, 1
      %v5603 = vmax.f32 %v5601, %v5602
      %v5604 = vsel %vm5414, %v5050, -inf
      %v5605 = vrot.slane %v5604, 4
      %v5606 = vmax.f32 %v5604, %v5605
      %v5607 = vrot.slane %v5606, 2
      %v5608 = vmax.f32 %v5606, %v5607
      %v5609 = vrot.slane %v5608, 1
      %v5610 = vmax.f32 %v5608, %v5609
      %v5611 = vsel %vm5414, %v4909, -inf
      %v5612 = vrot.slane %v5611, 4
      %v5613 = vmax.f32 %v5611, %v5612
      %v5614 = vrot.slane %v5613, 2
      %v5615 = vmax.f32 %v5613, %v5614
      %v5616 = vrot.slane %v5615, 1
      %v5617 = vmax.f32 %v5615, %v5616
      %v5618 = vsel %vm5414, %v5051, -inf
      %v5619 = vrot.slane %v5618, 4
      %v5620 = vmax.f32 %v5618, %v5619
      %v5621 = vrot.slane %v5620, 2
      %v5622 = vmax.f32 %v5620, %v5621
      %v5623 = vrot.slane %v5622, 1
      %v5624 = vmax.f32 %v5622, %v5623
      %v5625 = vsel %vm5414, %v5052, -inf
      %v5626 = vrot.slane %v5625, 4
      %v5627 = vmax.f32 %v5625, %v5626
      %v5628 = vrot.slane %v5627, 2
      %v5629 = vmax.f32 %v5627, %v5628
      %v5630 = vrot.slane %v5629, 1
      %v5631 = vmax.f32 %v5629, %v5630
      %v5632 = vsel %vm5414, %v5053, -inf
      %v5633 = vrot.slane %v5632, 4
      %v5634 = vmax.f32 %v5632, %v5633
      %v5635 = vrot.slane %v5634, 2
      %v5636 = vmax.f32 %v5634, %v5635
      %v5637 = vrot.slane %v5636, 1
      %v5638 = vmax.f32 %v5636, %v5637
      %v5639 = vsel %vm5414, %v4910, -inf
      %v5640 = vrot.slane %v5639, 4
      %v5641 = vmax.f32 %v5639, %v5640
      %v5642 = vrot.slane %v5641, 2
      %v5643 = vmax.f32 %v5641, %v5642
      %v5644 = vrot.slane %v5643, 1
      %v5645 = vmax.f32 %v5643, %v5644
      %v5646 = vsel %vm5414, %v5054, -inf
      %v5647 = vrot.slane %v5646, 4
      %v5648 = vmax.f32 %v5646, %v5647
      %v5649 = vrot.slane %v5648, 2
      %v5650 = vmax.f32 %v5648, %v5649
      %v5651 = vrot.slane %v5650, 1
      %v5652 = vmax.f32 %v5650, %v5651
      %v5653 = vsel %vm5414, %v5055, -inf
      %v5654 = vrot.slane %v5653, 4
      %v5655 = vmax.f32 %v5653, %v5654
      %v5656 = vrot.slane %v5655, 2
      %v5657 = vmax.f32 %v5655, %v5656
      %v5658 = vrot.slane %v5657, 1
      %v5659 = vmax.f32 %v5657, %v5658
      %v5660 = vsel %vm5414, %v5056, -inf
      %v5661 = vrot.slane %v5660, 4
      %v5662 = vmax.f32 %v5660, %v5661
      %v5663 = vrot.slane %v5662, 2
      %v5664 = vmax.f32 %v5662, %v5663
      %v5665 = vrot.slane %v5664, 1
      %v5666 = vmax.f32 %v5664, %v5665
      %v5667 = vsel %vm5414, %v4911, -inf
      %v5668 = vrot.slane %v5667, 4
      %v5669 = vmax.f32 %v5667, %v5668
      %v5670 = vrot.slane %v5669, 2
      %v5671 = vmax.f32 %v5669, %v5670
      %v5672 = vrot.slane %v5671, 1
      %v5673 = vmax.f32 %v5671, %v5672
      %v5674 = vsel %vm5414, %v5057, -inf
      %v5675 = vrot.slane %v5674, 4
      %v5676 = vmax.f32 %v5674, %v5675
      %v5677 = vrot.slane %v5676, 2
      %v5678 = vmax.f32 %v5676, %v5677
      %v5679 = vrot.slane %v5678, 1
      %v5680 = vmax.f32 %v5678, %v5679
      %v5681 = vsel %vm5414, %v5058, -inf
      %v5682 = vrot.slane %v5681, 4
      %v5683 = vmax.f32 %v5681, %v5682
      %v5684 = vrot.slane %v5683, 2
      %v5685 = vmax.f32 %v5683, %v5684
      %v5686 = vrot.slane %v5685, 1
      %v5687 = vmax.f32 %v5685, %v5686
      %v5688 = vsel %vm5414, %v5059, -inf
      %v5689 = vrot.slane %v5688, 4
      %v5690 = vmax.f32 %v5688, %v5689
      %v5691 = vrot.slane %v5690, 2
      %v5692 = vmax.f32 %v5690, %v5691
      %v5693 = vrot.slane %v5692, 1
      %v5694 = vmax.f32 %v5692, %v5693
      %v5695 = vsel %vm5414, %v4912, -inf
      %v5696 = vrot.slane %v5695, 4
      %v5697 = vmax.f32 %v5695, %v5696
      %v5698 = vrot.slane %v5697, 2
      %v5699 = vmax.f32 %v5697, %v5698
      %v5700 = vrot.slane %v5699, 1
      %v5701 = vmax.f32 %v5699, %v5700
      %v5702 = vsel %vm5414, %v5060, -inf
      %v5703 = vrot.slane %v5702, 4
      %v5704 = vmax.f32 %v5702, %v5703
      %v5705 = vrot.slane %v5704, 2
      %v5706 = vmax.f32 %v5704, %v5705
      %v5707 = vrot.slane %v5706, 1
      %v5708 = vmax.f32 %v5706, %v5707
      %v5709 = vsel %vm5414, %v5061, -inf
      %v5710 = vrot.slane %v5709, 4
      %v5711 = vmax.f32 %v5709, %v5710
      %v5712 = vrot.slane %v5711, 2
      %v5713 = vmax.f32 %v5711, %v5712
      %v5714 = vrot.slane %v5713, 1
      %v5715 = vmax.f32 %v5713, %v5714
      %v5716 = vsel %vm5414, %v5062, -inf
      %v5717 = vrot.slane %v5716, 4
      %v5718 = vmax.f32 %v5716, %v5717
      %v5719 = vrot.slane %v5718, 2
      %v5720 = vmax.f32 %v5718, %v5719
      %v5721 = vrot.slane %v5720, 1
      %v5722 = vmax.f32 %v5720, %v5721
      %v5723 = vsel %vm5414, %v4913, -inf
      %v5724 = vrot.slane %v5723, 4
      %v5725 = vmax.f32 %v5723, %v5724
      %v5726 = vrot.slane %v5725, 2
      %v5727 = vmax.f32 %v5725, %v5726
      %v5728 = vrot.slane %v5727, 1
      %v5729 = vmax.f32 %v5727, %v5728
      %v5730 = vsel %vm5414, %v5063, -inf
      %v5731 = vrot.slane %v5730, 4
      %v5732 = vmax.f32 %v5730, %v5731
      %v5733 = vrot.slane %v5732, 2
      %v5734 = vmax.f32 %v5732, %v5733
      %v5735 = vrot.slane %v5734, 1
      %v5736 = vmax.f32 %v5734, %v5735
      %v5737 = vsel %vm5414, %v5064, -inf
      %v5738 = vrot.slane %v5737, 4
      %v5739 = vmax.f32 %v5737, %v5738
      %v5740 = vrot.slane %v5739, 2
      %v5741 = vmax.f32 %v5739, %v5740
      %v5742 = vrot.slane %v5741, 1
      %v5743 = vmax.f32 %v5741, %v5742
      %v5744 = vsel %vm5414, %v5065, -inf
      %v5745 = vrot.slane %v5744, 4
      %v5746 = vmax.f32 %v5744, %v5745
      %v5747 = vrot.slane %v5746, 2
      %v5748 = vmax.f32 %v5746, %v5747
      %v5749 = vrot.slane %v5748, 1
      %v5750 = vmax.f32 %v5748, %v5749
      %v5751 = vsel %vm5414, %v4914, -inf
      %v5752 = vrot.slane %v5751, 4
      %v5753 = vmax.f32 %v5751, %v5752
      %v5754 = vrot.slane %v5753, 2
      %v5755 = vmax.f32 %v5753, %v5754
      %v5756 = vrot.slane %v5755, 1
      %v5757 = vmax.f32 %v5755, %v5756
      %v5758 = vsel %vm5414, %v5066, -inf
      %v5759 = vrot.slane %v5758, 4
      %v5760 = vmax.f32 %v5758, %v5759
      %v5761 = vrot.slane %v5760, 2
      %v5762 = vmax.f32 %v5760, %v5761
      %v5763 = vrot.slane %v5762, 1
      %v5764 = vmax.f32 %v5762, %v5763
      %v5765 = vsel %vm5414, %v5067, -inf
      %v5766 = vrot.slane %v5765, 4
      %v5767 = vmax.f32 %v5765, %v5766
      %v5768 = vrot.slane %v5767, 2
      %v5769 = vmax.f32 %v5767, %v5768
      %v5770 = vrot.slane %v5769, 1
      %v5771 = vmax.f32 %v5769, %v5770
      %v5772 = vsel %vm5414, %v5068, -inf
      %v5773 = vrot.slane %v5772, 4
      %v5774 = vmax.f32 %v5772, %v5773
      %v5775 = vrot.slane %v5774, 2
      %v5776 = vmax.f32 %v5774, %v5775
      %v5777 = vrot.slane %v5776, 1
      %v5778 = vmax.f32 %v5776, %v5777
      %v5779 = vsel %vm5414, %v4915, -inf
      %v5780 = vrot.slane %v5779, 4
      %v5781 = vmax.f32 %v5779, %v5780
      %v5782 = vrot.slane %v5781, 2
      %v5783 = vmax.f32 %v5781, %v5782
      %v5784 = vrot.slane %v5783, 1
      %v5785 = vmax.f32 %v5783, %v5784
      %v5786 = vsel %vm5414, %v5069, -inf
      %v5787 = vrot.slane %v5786, 4
      %v5788 = vmax.f32 %v5786, %v5787
      %v5789 = vrot.slane %v5788, 2
      %v5790 = vmax.f32 %v5788, %v5789
      %v5791 = vrot.slane %v5790, 1
      %v5792 = vmax.f32 %v5790, %v5791
      %v5793 = vsel %vm5414, %v5070, -inf
      %v5794 = vrot.slane %v5793, 4
      %v5795 = vmax.f32 %v5793, %v5794
      %v5796 = vrot.slane %v5795, 2
      %v5797 = vmax.f32 %v5795, %v5796
      %v5798 = vrot.slane %v5797, 1
      %v5799 = vmax.f32 %v5797, %v5798
      %v5800 = vsel %vm5414, %v5071, -inf
      %v5801 = vrot.slane %v5800, 4
      %v5802 = vmax.f32 %v5800, %v5801
      %v5803 = vrot.slane %v5802, 2
      %v5804 = vmax.f32 %v5802, %v5803
      %v5805 = vrot.slane %v5804, 1
      %v5806 = vmax.f32 %v5804, %v5805
      %v5807 = vsel %vm5414, %v4916, -inf
      %v5808 = vrot.slane %v5807, 4
      %v5809 = vmax.f32 %v5807, %v5808
      %v5810 = vrot.slane %v5809, 2
      %v5811 = vmax.f32 %v5809, %v5810
      %v5812 = vrot.slane %v5811, 1
      %v5813 = vmax.f32 %v5811, %v5812
      %v5814 = vsel %vm5414, %v5072, -inf
      %v5815 = vrot.slane %v5814, 4
      %v5816 = vmax.f32 %v5814, %v5815
      %v5817 = vrot.slane %v5816, 2
      %v5818 = vmax.f32 %v5816, %v5817
      %v5819 = vrot.slane %v5818, 1
      %v5820 = vmax.f32 %v5818, %v5819
      %v5821 = vsel %vm5414, %v5073, -inf
      %v5822 = vrot.slane %v5821, 4
      %v5823 = vmax.f32 %v5821, %v5822
      %v5824 = vrot.slane %v5823, 2
      %v5825 = vmax.f32 %v5823, %v5824
      %v5826 = vrot.slane %v5825, 1
      %v5827 = vmax.f32 %v5825, %v5826
      %v5828 = vsel %vm5414, %v5074, -inf
      %v5829 = vrot.slane %v5828, 4
      %v5830 = vmax.f32 %v5828, %v5829
      %v5831 = vrot.slane %v5830, 2
      %v5832 = vmax.f32 %v5830, %v5831
      %v5833 = vrot.slane %v5832, 1
      %v5834 = vmax.f32 %v5832, %v5833
      %v5835 = vsel %vm5414, %v4917, -inf
      %v5836 = vrot.slane %v5835, 4
      %v5837 = vmax.f32 %v5835, %v5836
      %v5838 = vrot.slane %v5837, 2
      %v5839 = vmax.f32 %v5837, %v5838
      %v5840 = vrot.slane %v5839, 1
      %v5841 = vmax.f32 %v5839, %v5840
      %v5842 = vsel %vm5414, %v5075, -inf
      %v5843 = vrot.slane %v5842, 4
      %v5844 = vmax.f32 %v5842, %v5843
      %v5845 = vrot.slane %v5844, 2
      %v5846 = vmax.f32 %v5844, %v5845
      %v5847 = vrot.slane %v5846, 1
      %v5848 = vmax.f32 %v5846, %v5847
      %v5849 = vsel %vm5414, %v5076, -inf
      %v5850 = vrot.slane %v5849, 4
      %v5851 = vmax.f32 %v5849, %v5850
      %v5852 = vrot.slane %v5851, 2
      %v5853 = vmax.f32 %v5851, %v5852
      %v5854 = vrot.slane %v5853, 1
      %v5855 = vmax.f32 %v5853, %v5854
      %v5856 = vsel %vm5414, %v5077, -inf
      %v5857 = vrot.slane %v5856, 4
      %v5858 = vmax.f32 %v5856, %v5857
      %v5859 = vrot.slane %v5858, 2
      %v5860 = vmax.f32 %v5858, %v5859
      %v5861 = vrot.slane %v5860, 1
      %v5862 = vmax.f32 %v5860, %v5861
      %v5863 = vsel %vm5414, %v4918, -inf
      %v5864 = vrot.slane %v5863, 4
      %v5865 = vmax.f32 %v5863, %v5864
      %v5866 = vrot.slane %v5865, 2
      %v5867 = vmax.f32 %v5865, %v5866
      %v5868 = vrot.slane %v5867, 1
      %v5869 = vmax.f32 %v5867, %v5868
      %v5870 = vsel %vm5414, %v5078, -inf
      %v5871 = vrot.slane %v5870, 4
      %v5872 = vmax.f32 %v5870, %v5871
      %v5873 = vrot.slane %v5872, 2
      %v5874 = vmax.f32 %v5872, %v5873
      %v5875 = vrot.slane %v5874, 1
      %v5876 = vmax.f32 %v5874, %v5875
      %v5877 = vsel %vm5414, %v5079, -inf
      %v5878 = vrot.slane %v5877, 4
      %v5879 = vmax.f32 %v5877, %v5878
      %v5880 = vrot.slane %v5879, 2
      %v5881 = vmax.f32 %v5879, %v5880
      %v5882 = vrot.slane %v5881, 1
      %v5883 = vmax.f32 %v5881, %v5882
      %v5884 = vsel %vm5414, %v5080, -inf
      %v5885 = vrot.slane %v5884, 4
      %v5886 = vmax.f32 %v5884, %v5885
      %v5887 = vrot.slane %v5886, 2
      %v5888 = vmax.f32 %v5886, %v5887
      %v5889 = vrot.slane %v5888, 1
      %v5890 = vmax.f32 %v5888, %v5889
      %v5891 = vsel %vm5414, %v4919, -inf
      %v5892 = vrot.slane %v5891, 4
      %v5893 = vmax.f32 %v5891, %v5892
      %v5894 = vrot.slane %v5893, 2
      %v5895 = vmax.f32 %v5893, %v5894
      %v5896 = vrot.slane %v5895, 1
      %v5897 = vmax.f32 %v5895, %v5896
      %v5898 = vsel %vm5414, %v5081, -inf
      %v5899 = vrot.slane %v5898, 4
      %v5900 = vmax.f32 %v5898, %v5899
      %v5901 = vrot.slane %v5900, 2
      %v5902 = vmax.f32 %v5900, %v5901
      %v5903 = vrot.slane %v5902, 1
      %v5904 = vmax.f32 %v5902, %v5903
      %v5905 = vsel %vm5414, %v5082, -inf
      %v5906 = vrot.slane %v5905, 4
      %v5907 = vmax.f32 %v5905, %v5906
      %v5908 = vrot.slane %v5907, 2
      %v5909 = vmax.f32 %v5907, %v5908
      %v5910 = vrot.slane %v5909, 1
      %v5911 = vmax.f32 %v5909, %v5910
      %v5912 = vsel %vm5414, %v5083, -inf
      %v5913 = vrot.slane %v5912, 4
      %v5914 = vmax.f32 %v5912, %v5913
      %v5915 = vrot.slane %v5914, 2
      %v5916 = vmax.f32 %v5914, %v5915
      %v5917 = vrot.slane %v5916, 1
      %v5918 = vmax.f32 %v5916, %v5917
      %v5919 = vsel %vm5414, %v4920, -inf
      %v5920 = vrot.slane %v5919, 4
      %v5921 = vmax.f32 %v5919, %v5920
      %v5922 = vrot.slane %v5921, 2
      %v5923 = vmax.f32 %v5921, %v5922
      %v5924 = vrot.slane %v5923, 1
      %v5925 = vmax.f32 %v5923, %v5924
      %v5926 = vsel %vm5414, %v5084, -inf
      %v5927 = vrot.slane %v5926, 4
      %v5928 = vmax.f32 %v5926, %v5927
      %v5929 = vrot.slane %v5928, 2
      %v5930 = vmax.f32 %v5928, %v5929
      %v5931 = vrot.slane %v5930, 1
      %v5932 = vmax.f32 %v5930, %v5931
      %v5933 = vsel %vm5414, %v5085, -inf
      %v5934 = vrot.slane %v5933, 4
      %v5935 = vmax.f32 %v5933, %v5934
      %v5936 = vrot.slane %v5935, 2
      %v5937 = vmax.f32 %v5935, %v5936
      %v5938 = vrot.slane %v5937, 1
      %v5939 = vmax.f32 %v5937, %v5938
      %v5940 = vsel %vm5414, %v5086, -inf
      %v5941 = vrot.slane %v5940, 4
      %v5942 = vmax.f32 %v5940, %v5941
      %v5943 = vrot.slane %v5942, 2
      %v5944 = vmax.f32 %v5942, %v5943
      %v5945 = vrot.slane %v5944, 1
      %v5946 = vmax.f32 %v5944, %v5945
      %v5947 = vsel %vm5414, %v4921, -inf
      %v5948 = vrot.slane %v5947, 4
      %v5949 = vmax.f32 %v5947, %v5948
      %v5950 = vrot.slane %v5949, 2
      %v5951 = vmax.f32 %v5949, %v5950
      %v5952 = vrot.slane %v5951, 1
      %v5953 = vmax.f32 %v5951, %v5952
      %v5954 = vsel %vm5414, %v5087, -inf
      %v5955 = vrot.slane %v5954, 4
      %v5956 = vmax.f32 %v5954, %v5955
      %v5957 = vrot.slane %v5956, 2
      %v5958 = vmax.f32 %v5956, %v5957
      %v5959 = vrot.slane %v5958, 1
      %v5960 = vmax.f32 %v5958, %v5959
      %v5961 = vsel %vm5414, %v5088, -inf
      %v5962 = vrot.slane %v5961, 4
      %v5963 = vmax.f32 %v5961, %v5962
      %v5964 = vrot.slane %v5963, 2
      %v5965 = vmax.f32 %v5963, %v5964
      %v5966 = vrot.slane %v5965, 1
      %v5967 = vmax.f32 %v5965, %v5966
      %v5968 = vsel %vm5414, %v5089, -inf
      %v5969 = vrot.slane %v5968, 4
      %v5970 = vmax.f32 %v5968, %v5969
      %v5971 = vrot.slane %v5970, 2
      %v5972 = vmax.f32 %v5970, %v5971
      %v5973 = vrot.slane %v5972, 1
      %v5974 = vmax.f32 %v5972, %v5973
      %v5975 = vsel %vm5414, %v4922, -inf
      %v5976 = vrot.slane %v5975, 4
      %v5977 = vmax.f32 %v5975, %v5976
      %v5978 = vrot.slane %v5977, 2
      %v5979 = vmax.f32 %v5977, %v5978
      %v5980 = vrot.slane %v5979, 1
      %v5981 = vmax.f32 %v5979, %v5980
      %v5982 = vsel %vm5414, %v5090, -inf
      %v5983 = vrot.slane %v5982, 4
      %v5984 = vmax.f32 %v5982, %v5983
      %v5985 = vrot.slane %v5984, 2
      %v5986 = vmax.f32 %v5984, %v5985
      %v5987 = vrot.slane %v5986, 1
      %v5988 = vmax.f32 %v5986, %v5987
      %v5989 = vsel %vm5414, %v5091, -inf
      %v5990 = vrot.slane %v5989, 4
      %v5991 = vmax.f32 %v5989, %v5990
      %v5992 = vrot.slane %v5991, 2
      %v5993 = vmax.f32 %v5991, %v5992
      %v5994 = vrot.slane %v5993, 1
      %v5995 = vmax.f32 %v5993, %v5994
      %v5996 = vsel %vm5414, %v5092, -inf
      %v5997 = vrot.slane %v5996, 4
      %v5998 = vmax.f32 %v5996, %v5997
      %v5999 = vrot.slane %v5998, 2
      %v6000 = vmax.f32 %v5998, %v5999
      %v6001 = vrot.slane %v6000, 1
      %v6002 = vmax.f32 %v6000, %v6001
      %v6003 = vsel %vm5414, %v4923, -inf
      %v6004 = vrot.slane %v6003, 4
      %v6005 = vmax.f32 %v6003, %v6004
      %v6006 = vrot.slane %v6005, 2
      %v6007 = vmax.f32 %v6005, %v6006
      %v6008 = vrot.slane %v6007, 1
      %v6009 = vmax.f32 %v6007, %v6008
      %v6010 = vsel %vm5414, %v5093, -inf
      %v6011 = vrot.slane %v6010, 4
      %v6012 = vmax.f32 %v6010, %v6011
      %v6013 = vrot.slane %v6012, 2
      %v6014 = vmax.f32 %v6012, %v6013
      %v6015 = vrot.slane %v6014, 1
      %v6016 = vmax.f32 %v6014, %v6015
      %v6017 = vsel %vm5414, %v5094, -inf
      %v6018 = vrot.slane %v6017, 4
      %v6019 = vmax.f32 %v6017, %v6018
      %v6020 = vrot.slane %v6019, 2
      %v6021 = vmax.f32 %v6019, %v6020
      %v6022 = vrot.slane %v6021, 1
      %v6023 = vmax.f32 %v6021, %v6022
      %v6024 = vsel %vm5414, %v5095, -inf
      %v6025 = vrot.slane %v6024, 4
      %v6026 = vmax.f32 %v6024, %v6025
      %v6027 = vrot.slane %v6026, 2
      %v6028 = vmax.f32 %v6026, %v6027
      %v6029 = vrot.slane %v6028, 1
      %v6030 = vmax.f32 %v6028, %v6029
      %v6031 = vsel %vm5414, %v4924, -inf
      %v6032 = vrot.slane %v6031, 4
      %v6033 = vmax.f32 %v6031, %v6032
      %v6034 = vrot.slane %v6033, 2
      %v6035 = vmax.f32 %v6033, %v6034
      %v6036 = vrot.slane %v6035, 1
      %v6037 = vmax.f32 %v6035, %v6036
      %v6038 = vsel %vm5414, %v5096, -inf
      %v6039 = vrot.slane %v6038, 4
      %v6040 = vmax.f32 %v6038, %v6039
      %v6041 = vrot.slane %v6040, 2
      %v6042 = vmax.f32 %v6040, %v6041
      %v6043 = vrot.slane %v6042, 1
      %v6044 = vmax.f32 %v6042, %v6043
      %v6045 = vsel %vm5414, %v5097, -inf
      %v6046 = vrot.slane %v6045, 4
      %v6047 = vmax.f32 %v6045, %v6046
      %v6048 = vrot.slane %v6047, 2
      %v6049 = vmax.f32 %v6047, %v6048
      %v6050 = vrot.slane %v6049, 1
      %v6051 = vmax.f32 %v6049, %v6050
      %v6052 = vsel %vm5414, %v5098, -inf
      %v6053 = vrot.slane %v6052, 4
      %v6054 = vmax.f32 %v6052, %v6053
      %v6055 = vrot.slane %v6054, 2
      %v6056 = vmax.f32 %v6054, %v6055
      %v6057 = vrot.slane %v6056, 1
      %v6058 = vmax.f32 %v6056, %v6057
      %v6059 = vsel %vm5414, %v4925, -inf
      %v6060 = vrot.slane %v6059, 4
      %v6061 = vmax.f32 %v6059, %v6060
      %v6062 = vrot.slane %v6061, 2
      %v6063 = vmax.f32 %v6061, %v6062
      %v6064 = vrot.slane %v6063, 1
      %v6065 = vmax.f32 %v6063, %v6064
      %v6066 = vsel %vm5414, %v5099, -inf
      %v6067 = vrot.slane %v6066, 4
      %v6068 = vmax.f32 %v6066, %v6067
      %v6069 = vrot.slane %v6068, 2
      %v6070 = vmax.f32 %v6068, %v6069
      %v6071 = vrot.slane %v6070, 1
      %v6072 = vmax.f32 %v6070, %v6071
      %v6073 = vsel %vm5414, %v5100, -inf
      %v6074 = vrot.slane %v6073, 4
      %v6075 = vmax.f32 %v6073, %v6074
      %v6076 = vrot.slane %v6075, 2
      %v6077 = vmax.f32 %v6075, %v6076
      %v6078 = vrot.slane %v6077, 1
      %v6079 = vmax.f32 %v6077, %v6078
      %v6080 = vsel %vm5414, %v5101, -inf
      %v6081 = vrot.slane %v6080, 4
      %v6082 = vmax.f32 %v6080, %v6081
      %v6083 = vrot.slane %v6082, 2
      %v6084 = vmax.f32 %v6082, %v6083
      %v6085 = vrot.slane %v6084, 1
      %v6086 = vmax.f32 %v6084, %v6085
      %v6087 = vsel %vm5414, %v4926, -inf
      %v6088 = vrot.slane %v6087, 4
      %v6089 = vmax.f32 %v6087, %v6088
      %v6090 = vrot.slane %v6089, 2
      %v6091 = vmax.f32 %v6089, %v6090
      %v6092 = vrot.slane %v6091, 1
      %v6093 = vmax.f32 %v6091, %v6092
      %v6094 = vsel %vm5414, %v5102, -inf
      %v6095 = vrot.slane %v6094, 4
      %v6096 = vmax.f32 %v6094, %v6095
      %v6097 = vrot.slane %v6096, 2
      %v6098 = vmax.f32 %v6096, %v6097
      %v6099 = vrot.slane %v6098, 1
      %v6100 = vmax.f32 %v6098, %v6099
      %v6101 = vsel %vm5414, %v5103, -inf
      %v6102 = vrot.slane %v6101, 4
      %v6103 = vmax.f32 %v6101, %v6102
      %v6104 = vrot.slane %v6103, 2
      %v6105 = vmax.f32 %v6103, %v6104
      %v6106 = vrot.slane %v6105, 1
      %v6107 = vmax.f32 %v6105, %v6106
      %v6108 = vsel %vm5414, %v5104, -inf
      %v6109 = vrot.slane %v6108, 4
      %v6110 = vmax.f32 %v6108, %v6109
      %v6111 = vrot.slane %v6110, 2
      %v6112 = vmax.f32 %v6110, %v6111
      %v6113 = vrot.slane %v6112, 1
      %v6114 = vmax.f32 %v6112, %v6113
      %v6115 = vsel %vm5414, %v4927, -inf
      %v6116 = vrot.slane %v6115, 4
      %v6117 = vmax.f32 %v6115, %v6116
      %v6118 = vrot.slane %v6117, 2
      %v6119 = vmax.f32 %v6117, %v6118
      %v6120 = vrot.slane %v6119, 1
      %v6121 = vmax.f32 %v6119, %v6120
      %v6122 = vsel %vm5414, %v5105, -inf
      %v6123 = vrot.slane %v6122, 4
      %v6124 = vmax.f32 %v6122, %v6123
      %v6125 = vrot.slane %v6124, 2
      %v6126 = vmax.f32 %v6124, %v6125
      %v6127 = vrot.slane %v6126, 1
      %v6128 = vmax.f32 %v6126, %v6127
      %v6129 = vsel %vm5414, %v5106, -inf
      %v6130 = vrot.slane %v6129, 4
      %v6131 = vmax.f32 %v6129, %v6130
      %v6132 = vrot.slane %v6131, 2
      %v6133 = vmax.f32 %v6131, %v6132
      %v6134 = vrot.slane %v6133, 1
      %v6135 = vmax.f32 %v6133, %v6134
      %v6136 = vsel %vm5414, %v5107, -inf
      %v6137 = vrot.slane %v6136, 4
      %v6138 = vmax.f32 %v6136, %v6137
      %v6139 = vrot.slane %v6138, 2
      %v6140 = vmax.f32 %v6138, %v6139
      %v6141 = vrot.slane %v6140, 1
      %v6142 = vmax.f32 %v6140, %v6141
      %v6143 = vsel %vm5414, %v4928, -inf
      %v6144 = vrot.slane %v6143, 4
      %v6145 = vmax.f32 %v6143, %v6144
      %v6146 = vrot.slane %v6145, 2
      %v6147 = vmax.f32 %v6145, %v6146
      %v6148 = vrot.slane %v6147, 1
      %v6149 = vmax.f32 %v6147, %v6148
      %v6150 = vsel %vm5414, %v5108, -inf
      %v6151 = vrot.slane %v6150, 4
      %v6152 = vmax.f32 %v6150, %v6151
      %v6153 = vrot.slane %v6152, 2
      %v6154 = vmax.f32 %v6152, %v6153
      %v6155 = vrot.slane %v6154, 1
      %v6156 = vmax.f32 %v6154, %v6155
      %v6157 = vsel %vm5414, %v5109, -inf
      %v6158 = vrot.slane %v6157, 4
      %v6159 = vmax.f32 %v6157, %v6158
      %v6160 = vrot.slane %v6159, 2
      %v6161 = vmax.f32 %v6159, %v6160
      %v6162 = vrot.slane %v6161, 1
      %v6163 = vmax.f32 %v6161, %v6162
      %v6164 = vsel %vm5414, %v5110, -inf
      %v6165 = vrot.slane %v6164, 4
      %v6166 = vmax.f32 %v6164, %v6165
      %v6167 = vrot.slane %v6166, 2
      %v6168 = vmax.f32 %v6166, %v6167
      %v6169 = vrot.slane %v6168, 1
      %v6170 = vmax.f32 %v6168, %v6169
      %v6171 = vsel %vm5414, %v4929, -inf
      %v6172 = vrot.slane %v6171, 4
      %v6173 = vmax.f32 %v6171, %v6172
      %v6174 = vrot.slane %v6173, 2
      %v6175 = vmax.f32 %v6173, %v6174
      %v6176 = vrot.slane %v6175, 1
      %v6177 = vmax.f32 %v6175, %v6176
      %v6178 = vsel %vm5414, %v5111, -inf
      %v6179 = vrot.slane %v6178, 4
      %v6180 = vmax.f32 %v6178, %v6179
      %v6181 = vrot.slane %v6180, 2
      %v6182 = vmax.f32 %v6180, %v6181
      %v6183 = vrot.slane %v6182, 1
      %v6184 = vmax.f32 %v6182, %v6183
      %v6185 = vsel %vm5414, %v5112, -inf
      %v6186 = vrot.slane %v6185, 4
      %v6187 = vmax.f32 %v6185, %v6186
      %v6188 = vrot.slane %v6187, 2
      %v6189 = vmax.f32 %v6187, %v6188
      %v6190 = vrot.slane %v6189, 1
      %v6191 = vmax.f32 %v6189, %v6190
      %v6192 = vsel %vm5414, %v5113, -inf
      %v6193 = vrot.slane %v6192, 4
      %v6194 = vmax.f32 %v6192, %v6193
      %v6195 = vrot.slane %v6194, 2
      %v6196 = vmax.f32 %v6194, %v6195
      %v6197 = vrot.slane %v6196, 1
      %v6198 = vmax.f32 %v6196, %v6197
      %v6199 = vsel %vm5414, %v4930, -inf
      %v6200 = vrot.slane %v6199, 4
      %v6201 = vmax.f32 %v6199, %v6200
      %v6202 = vrot.slane %v6201, 2
      %v6203 = vmax.f32 %v6201, %v6202
      %v6204 = vrot.slane %v6203, 1
      %v6205 = vmax.f32 %v6203, %v6204
      %v6206 = vsel %vm5414, %v5114, -inf
      %v6207 = vrot.slane %v6206, 4
      %v6208 = vmax.f32 %v6206, %v6207
      %v6209 = vrot.slane %v6208, 2
      %v6210 = vmax.f32 %v6208, %v6209
      %v6211 = vrot.slane %v6210, 1
      %v6212 = vmax.f32 %v6210, %v6211
      %v6213 = vsel %vm5414, %v5115, -inf
      %v6214 = vrot.slane %v6213, 4
      %v6215 = vmax.f32 %v6213, %v6214
      %v6216 = vrot.slane %v6215, 2
      %v6217 = vmax.f32 %v6215, %v6216
      %v6218 = vrot.slane %v6217, 1
      %v6219 = vmax.f32 %v6217, %v6218
      %v6220 = vsel %vm5414, %v5116, -inf
      %v6221 = vrot.slane %v6220, 4
      %v6222 = vmax.f32 %v6220, %v6221
      %v6223 = vrot.slane %v6222, 2
      %v6224 = vmax.f32 %v6222, %v6223
      %v6225 = vrot.slane %v6224, 1
      %v6226 = vmax.f32 %v6224, %v6225
      %v6227 = vsel %vm5414, %v4931, -inf
      %v6228 = vrot.slane %v6227, 4
      %v6229 = vmax.f32 %v6227, %v6228
      %v6230 = vrot.slane %v6229, 2
      %v6231 = vmax.f32 %v6229, %v6230
      %v6232 = vrot.slane %v6231, 1
      %v6233 = vmax.f32 %v6231, %v6232
      %v6234 = vsel %vm5414, %v5117, -inf
      %v6235 = vrot.slane %v6234, 4
      %v6236 = vmax.f32 %v6234, %v6235
      %v6237 = vrot.slane %v6236, 2
      %v6238 = vmax.f32 %v6236, %v6237
      %v6239 = vrot.slane %v6238, 1
      %v6240 = vmax.f32 %v6238, %v6239
      %v6241 = vsel %vm5414, %v5118, -inf
      %v6242 = vrot.slane %v6241, 4
      %v6243 = vmax.f32 %v6241, %v6242
      %v6244 = vrot.slane %v6243, 2
      %v6245 = vmax.f32 %v6243, %v6244
      %v6246 = vrot.slane %v6245, 1
      %v6247 = vmax.f32 %v6245, %v6246
      %v6248 = vsel %vm5414, %v5119, -inf
      %v6249 = vrot.slane %v6248, 4
      %v6250 = vmax.f32 %v6248, %v6249
      %v6251 = vrot.slane %v6250, 2
      %v6252 = vmax.f32 %v6250, %v6251
      %v6253 = vrot.slane %v6252, 1
      %v6254 = vmax.f32 %v6252, %v6253
      %v6255 = vsel %vm5414, %v4932, -inf
      %v6256 = vrot.slane %v6255, 4
      %v6257 = vmax.f32 %v6255, %v6256
      %v6258 = vrot.slane %v6257, 2
      %v6259 = vmax.f32 %v6257, %v6258
      %v6260 = vrot.slane %v6259, 1
      %v6261 = vmax.f32 %v6259, %v6260
      %v6262 = vsel %vm5414, %v5120, -inf
      %v6263 = vrot.slane %v6262, 4
      %v6264 = vmax.f32 %v6262, %v6263
      %v6265 = vrot.slane %v6264, 2
      %v6266 = vmax.f32 %v6264, %v6265
      %v6267 = vrot.slane %v6266, 1
      %v6268 = vmax.f32 %v6266, %v6267
      %v6269 = vsel %vm5414, %v5121, -inf
      %v6270 = vrot.slane %v6269, 4
      %v6271 = vmax.f32 %v6269, %v6270
      %v6272 = vrot.slane %v6271, 2
      %v6273 = vmax.f32 %v6271, %v6272
      %v6274 = vrot.slane %v6273, 1
      %v6275 = vmax.f32 %v6273, %v6274
      %v6276 = vsel %vm5414, %v5122, -inf
      %v6277 = vrot.slane %v6276, 4
      %v6278 = vmax.f32 %v6276, %v6277
      %v6279 = vrot.slane %v6278, 2
      %v6280 = vmax.f32 %v6278, %v6279
      %v6281 = vrot.slane %v6280, 1
      %v6282 = vmax.f32 %v6280, %v6281
      %v6283 = vsel %vm5414, %v4933, -inf
      %v6284 = vrot.slane %v6283, 4
      %v6285 = vmax.f32 %v6283, %v6284
      %v6286 = vrot.slane %v6285, 2
      %v6287 = vmax.f32 %v6285, %v6286
      %v6288 = vrot.slane %v6287, 1
      %v6289 = vmax.f32 %v6287, %v6288
      %v6290 = vsel %vm5414, %v5123, -inf
      %v6291 = vrot.slane %v6290, 4
      %v6292 = vmax.f32 %v6290, %v6291
      %v6293 = vrot.slane %v6292, 2
      %v6294 = vmax.f32 %v6292, %v6293
      %v6295 = vrot.slane %v6294, 1
      %v6296 = vmax.f32 %v6294, %v6295
      %v6297 = vsel %vm5414, %v5124, -inf
      %v6298 = vrot.slane %v6297, 4
      %v6299 = vmax.f32 %v6297, %v6298
      %v6300 = vrot.slane %v6299, 2
      %v6301 = vmax.f32 %v6299, %v6300
      %v6302 = vrot.slane %v6301, 1
      %v6303 = vmax.f32 %v6301, %v6302
      %v6304 = vsel %vm5414, %v5125, -inf
      %v6305 = vrot.slane %v6304, 4
      %v6306 = vmax.f32 %v6304, %v6305
      %v6307 = vrot.slane %v6306, 2
      %v6308 = vmax.f32 %v6306, %v6307
      %v6309 = vrot.slane %v6308, 1
      %v6310 = vmax.f32 %v6308, %v6309
      %v6311 = vsel %vm5414, %v4934, -inf
      %v6312 = vrot.slane %v6311, 4
      %v6313 = vmax.f32 %v6311, %v6312
      %v6314 = vrot.slane %v6313, 2
      %v6315 = vmax.f32 %v6313, %v6314
      %v6316 = vrot.slane %v6315, 1
      %v6317 = vmax.f32 %v6315, %v6316
      %v6318 = vsel %vm5414, %v5126, -inf
      %v6319 = vrot.slane %v6318, 4
      %v6320 = vmax.f32 %v6318, %v6319
      %v6321 = vrot.slane %v6320, 2
      %v6322 = vmax.f32 %v6320, %v6321
      %v6323 = vrot.slane %v6322, 1
      %v6324 = vmax.f32 %v6322, %v6323
      %v6325 = vsel %vm5414, %v5127, -inf
      %v6326 = vrot.slane %v6325, 4
      %v6327 = vmax.f32 %v6325, %v6326
      %v6328 = vrot.slane %v6327, 2
      %v6329 = vmax.f32 %v6327, %v6328
      %v6330 = vrot.slane %v6329, 1
      %v6331 = vmax.f32 %v6329, %v6330
      %v6332 = vsel %vm5414, %v5128, -inf
      %v6333 = vrot.slane %v6332, 4
      %v6334 = vmax.f32 %v6332, %v6333
      %v6335 = vrot.slane %v6334, 2
      %v6336 = vmax.f32 %v6334, %v6335
      %v6337 = vrot.slane %v6336, 1
      %v6338 = vmax.f32 %v6336, %v6337
      %v6339 = vsel %vm5414, %v4935, -inf
      %v6340 = vrot.slane %v6339, 4
      %v6341 = vmax.f32 %v6339, %v6340
      %v6342 = vrot.slane %v6341, 2
      %v6343 = vmax.f32 %v6341, %v6342
      %v6344 = vrot.slane %v6343, 1
      %v6345 = vmax.f32 %v6343, %v6344
      %v6346 = vsel %vm5414, %v5129, -inf
      %v6347 = vrot.slane %v6346, 4
      %v6348 = vmax.f32 %v6346, %v6347
      %v6349 = vrot.slane %v6348, 2
      %v6350 = vmax.f32 %v6348, %v6349
      %v6351 = vrot.slane %v6350, 1
      %v6352 = vmax.f32 %v6350, %v6351
      %v6353 = vsel %vm5414, %v5130, -inf
      %v6354 = vrot.slane %v6353, 4
      %v6355 = vmax.f32 %v6353, %v6354
      %v6356 = vrot.slane %v6355, 2
      %v6357 = vmax.f32 %v6355, %v6356
      %v6358 = vrot.slane %v6357, 1
      %v6359 = vmax.f32 %v6357, %v6358
      %v6360 = vsel %vm5414, %v5131, -inf
      %v6361 = vrot.slane %v6360, 4
      %v6362 = vmax.f32 %v6360, %v6361
      %v6363 = vrot.slane %v6362, 2
      %v6364 = vmax.f32 %v6362, %v6363
      %v6365 = vrot.slane %v6364, 1
      %v6366 = vmax.f32 %v6364, %v6365
      %v6367 = vsel %vm5414, %v4936, -inf
      %v6368 = vrot.slane %v6367, 4
      %v6369 = vmax.f32 %v6367, %v6368
      %v6370 = vrot.slane %v6369, 2
      %v6371 = vmax.f32 %v6369, %v6370
      %v6372 = vrot.slane %v6371, 1
      %v6373 = vmax.f32 %v6371, %v6372
      %v6374 = vsel %vm5414, %v5132, -inf
      %v6375 = vrot.slane %v6374, 4
      %v6376 = vmax.f32 %v6374, %v6375
      %v6377 = vrot.slane %v6376, 2
      %v6378 = vmax.f32 %v6376, %v6377
      %v6379 = vrot.slane %v6378, 1
      %v6380 = vmax.f32 %v6378, %v6379
      %v6381 = vsel %vm5414, %v5133, -inf
      %v6382 = vrot.slane %v6381, 4
      %v6383 = vmax.f32 %v6381, %v6382
      %v6384 = vrot.slane %v6383, 2
      %v6385 = vmax.f32 %v6383, %v6384
      %v6386 = vrot.slane %v6385, 1
      %v6387 = vmax.f32 %v6385, %v6386
      %v6388 = vsel %vm5414, %v5134, -inf
      %v6389 = vrot.slane %v6388, 4
      %v6390 = vmax.f32 %v6388, %v6389
      %v6391 = vrot.slane %v6390, 2
      %v6392 = vmax.f32 %v6390, %v6391
      %v6393 = vrot.slane %v6392, 1
      %v6394 = vmax.f32 %v6392, %v6393
      %v6395 = vsel %vm5414, %v4937, -inf
      %v6396 = vrot.slane %v6395, 4
      %v6397 = vmax.f32 %v6395, %v6396
      %v6398 = vrot.slane %v6397, 2
      %v6399 = vmax.f32 %v6397, %v6398
      %v6400 = vrot.slane %v6399, 1
      %v6401 = vmax.f32 %v6399, %v6400
      %v6402 = vsel %vm5414, %v5135, -inf
      %v6403 = vrot.slane %v6402, 4
      %v6404 = vmax.f32 %v6402, %v6403
      %v6405 = vrot.slane %v6404, 2
      %v6406 = vmax.f32 %v6404, %v6405
      %v6407 = vrot.slane %v6406, 1
      %v6408 = vmax.f32 %v6406, %v6407
      %v6409 = vsel %vm5414, %v5136, -inf
      %v6410 = vrot.slane %v6409, 4
      %v6411 = vmax.f32 %v6409, %v6410
      %v6412 = vrot.slane %v6411, 2
      %v6413 = vmax.f32 %v6411, %v6412
      %v6414 = vrot.slane %v6413, 1
      %v6415 = vmax.f32 %v6413, %v6414
      %v6416 = vsel %vm5414, %v5137, -inf
      %v6417 = vrot.slane %v6416, 4
      %v6418 = vmax.f32 %v6416, %v6417
      %v6419 = vrot.slane %v6418, 2
      %v6420 = vmax.f32 %v6418, %v6419
      %v6421 = vrot.slane %v6420, 1
      %v6422 = vmax.f32 %v6420, %v6421
      %v6423 = vsel %vm5414, %v4938, -inf
      %v6424 = vrot.slane %v6423, 4
      %v6425 = vmax.f32 %v6423, %v6424
      %v6426 = vrot.slane %v6425, 2
      %v6427 = vmax.f32 %v6425, %v6426
      %v6428 = vrot.slane %v6427, 1
      %v6429 = vmax.f32 %v6427, %v6428
      %v6430 = vsel %vm5414, %v5138, -inf
      %v6431 = vrot.slane %v6430, 4
      %v6432 = vmax.f32 %v6430, %v6431
      %v6433 = vrot.slane %v6432, 2
      %v6434 = vmax.f32 %v6432, %v6433
      %v6435 = vrot.slane %v6434, 1
      %v6436 = vmax.f32 %v6434, %v6435
      %v6437 = vsel %vm5414, %v5139, -inf
      %v6438 = vrot.slane %v6437, 4
      %v6439 = vmax.f32 %v6437, %v6438
      %v6440 = vrot.slane %v6439, 2
      %v6441 = vmax.f32 %v6439, %v6440
      %v6442 = vrot.slane %v6441, 1
      %v6443 = vmax.f32 %v6441, %v6442
      %v6444 = vsel %vm5414, %v5140, -inf
      %v6445 = vrot.slane %v6444, 4
      %v6446 = vmax.f32 %v6444, %v6445
      %v6447 = vrot.slane %v6446, 2
      %v6448 = vmax.f32 %v6446, %v6447
      %v6449 = vrot.slane %v6448, 1
      %v6450 = vmax.f32 %v6448, %v6449
      %v6451 = vsel %vm5414, %v4939, -inf
      %v6452 = vrot.slane %v6451, 4
      %v6453 = vmax.f32 %v6451, %v6452
      %v6454 = vrot.slane %v6453, 2
      %v6455 = vmax.f32 %v6453, %v6454
      %v6456 = vrot.slane %v6455, 1
      %v6457 = vmax.f32 %v6455, %v6456
      %v6458 = vsel %vm5414, %v5141, -inf
      %v6459 = vrot.slane %v6458, 4
      %v6460 = vmax.f32 %v6458, %v6459
      %v6461 = vrot.slane %v6460, 2
      %v6462 = vmax.f32 %v6460, %v6461
      %v6463 = vrot.slane %v6462, 1
      %v6464 = vmax.f32 %v6462, %v6463
      %v6465 = vsel %vm5414, %v5142, -inf
      %v6466 = vrot.slane %v6465, 4
      %v6467 = vmax.f32 %v6465, %v6466
      %v6468 = vrot.slane %v6467, 2
      %v6469 = vmax.f32 %v6467, %v6468
      %v6470 = vrot.slane %v6469, 1
      %v6471 = vmax.f32 %v6469, %v6470
      %v6472 = vsel %vm5414, %v5143, -inf
      %v6473 = vrot.slane %v6472, 4
      %v6474 = vmax.f32 %v6472, %v6473
      %v6475 = vrot.slane %v6474, 2
      %v6476 = vmax.f32 %v6474, %v6475
      %v6477 = vrot.slane %v6476, 1
      %v6478 = vmax.f32 %v6476, %v6477
      %v6479 = vsel %vm5414, %v4940, -inf
      %v6480 = vrot.slane %v6479, 4
      %v6481 = vmax.f32 %v6479, %v6480
      %v6482 = vrot.slane %v6481, 2
      %v6483 = vmax.f32 %v6481, %v6482
      %v6484 = vrot.slane %v6483, 1
      %v6485 = vmax.f32 %v6483, %v6484
      %v6486 = vsel %vm5414, %v5144, -inf
      %v6487 = vrot.slane %v6486, 4
      %v6488 = vmax.f32 %v6486, %v6487
      %v6489 = vrot.slane %v6488, 2
      %v6490 = vmax.f32 %v6488, %v6489
      %v6491 = vrot.slane %v6490, 1
      %v6492 = vmax.f32 %v6490, %v6491
      %v6493 = vsel %vm5414, %v5145, -inf
      %v6494 = vrot.slane %v6493, 4
      %v6495 = vmax.f32 %v6493, %v6494
      %v6496 = vrot.slane %v6495, 2
      %v6497 = vmax.f32 %v6495, %v6496
      %v6498 = vrot.slane %v6497, 1
      %v6499 = vmax.f32 %v6497, %v6498
      %v6500 = vsel %vm5414, %v5146, -inf
      %v6501 = vrot.slane %v6500, 4
      %v6502 = vmax.f32 %v6500, %v6501
      %v6503 = vrot.slane %v6502, 2
      %v6504 = vmax.f32 %v6502, %v6503
      %v6505 = vrot.slane %v6504, 1
      %v6506 = vmax.f32 %v6504, %v6505
      %v6507 = vsel %vm5414, %v4941, -inf
      %v6508 = vrot.slane %v6507, 4
      %v6509 = vmax.f32 %v6507, %v6508
      %v6510 = vrot.slane %v6509, 2
      %v6511 = vmax.f32 %v6509, %v6510
      %v6512 = vrot.slane %v6511, 1
      %v6513 = vmax.f32 %v6511, %v6512
      %v6514 = vsel %vm5414, %v5147, -inf
      %v6515 = vrot.slane %v6514, 4
      %v6516 = vmax.f32 %v6514, %v6515
      %v6517 = vrot.slane %v6516, 2
      %v6518 = vmax.f32 %v6516, %v6517
      %v6519 = vrot.slane %v6518, 1
      %v6520 = vmax.f32 %v6518, %v6519
      %v6521 = vsel %vm5414, %v5148, -inf
      %v6522 = vrot.slane %v6521, 4
      %v6523 = vmax.f32 %v6521, %v6522
      %v6524 = vrot.slane %v6523, 2
      %v6525 = vmax.f32 %v6523, %v6524
      %v6526 = vrot.slane %v6525, 1
      %v6527 = vmax.f32 %v6525, %v6526
      %v6528 = vsel %vm5414, %v5149, -inf
      %v6529 = vrot.slane %v6528, 4
      %v6530 = vmax.f32 %v6528, %v6529
      %v6531 = vrot.slane %v6530, 2
      %v6532 = vmax.f32 %v6530, %v6531
      %v6533 = vrot.slane %v6532, 1
      %v6534 = vmax.f32 %v6532, %v6533
      %v6535 = vsel %vm5414, %v4942, -inf
      %v6536 = vrot.slane %v6535, 4
      %v6537 = vmax.f32 %v6535, %v6536
      %v6538 = vrot.slane %v6537, 2
      %v6539 = vmax.f32 %v6537, %v6538
      %v6540 = vrot.slane %v6539, 1
      %v6541 = vmax.f32 %v6539, %v6540
      %v6542 = vsel %vm5414, %v5150, -inf
      %v6543 = vrot.slane %v6542, 4
      %v6544 = vmax.f32 %v6542, %v6543
      %v6545 = vrot.slane %v6544, 2
      %v6546 = vmax.f32 %v6544, %v6545
      %v6547 = vrot.slane %v6546, 1
      %v6548 = vmax.f32 %v6546, %v6547
      %v6549 = vsel %vm5414, %v5151, -inf
      %v6550 = vrot.slane %v6549, 4
      %v6551 = vmax.f32 %v6549, %v6550
      %v6552 = vrot.slane %v6551, 2
      %v6553 = vmax.f32 %v6551, %v6552
      %v6554 = vrot.slane %v6553, 1
      %v6555 = vmax.f32 %v6553, %v6554
      %v6556 = vsel %vm5414, %v5152, -inf
      %v6557 = vrot.slane %v6556, 4
      %v6558 = vmax.f32 %v6556, %v6557
      %v6559 = vrot.slane %v6558, 2
      %v6560 = vmax.f32 %v6558, %v6559
      %v6561 = vrot.slane %v6560, 1
      %v6562 = vmax.f32 %v6560, %v6561
      %v6563 = vsel %vm5414, %v4943, -inf
      %v6564 = vrot.slane %v6563, 4
      %v6565 = vmax.f32 %v6563, %v6564
      %v6566 = vrot.slane %v6565, 2
      %v6567 = vmax.f32 %v6565, %v6566
      %v6568 = vrot.slane %v6567, 1
      %v6569 = vmax.f32 %v6567, %v6568
      %v6570 = vsel %vm5414, %v5153, -inf
      %v6571 = vrot.slane %v6570, 4
      %v6572 = vmax.f32 %v6570, %v6571
      %v6573 = vrot.slane %v6572, 2
      %v6574 = vmax.f32 %v6572, %v6573
      %v6575 = vrot.slane %v6574, 1
      %v6576 = vmax.f32 %v6574, %v6575
      %v6577 = vsel %vm5414, %v5154, -inf
      %v6578 = vrot.slane %v6577, 4
      %v6579 = vmax.f32 %v6577, %v6578
      %v6580 = vrot.slane %v6579, 2
      %v6581 = vmax.f32 %v6579, %v6580
      %v6582 = vrot.slane %v6581, 1
      %v6583 = vmax.f32 %v6581, %v6582
      %v6584 = vsel %vm5414, %v5155, -inf
      %v6585 = vrot.slane %v6584, 4
      %v6586 = vmax.f32 %v6584, %v6585
      %v6587 = vrot.slane %v6586, 2
      %v6588 = vmax.f32 %v6586, %v6587
      %v6589 = vrot.slane %v6588, 1
      %v6590 = vmax.f32 %v6588, %v6589
      %v6591 = vsel %vm5414, %v4944, -inf
      %v6592 = vrot.slane %v6591, 4
      %v6593 = vmax.f32 %v6591, %v6592
      %v6594 = vrot.slane %v6593, 2
      %v6595 = vmax.f32 %v6593, %v6594
      %v6596 = vrot.slane %v6595, 1
      %v6597 = vmax.f32 %v6595, %v6596
      %v6598 = vsel %vm5414, %v5156, -inf
      %v6599 = vrot.slane %v6598, 4
      %v6600 = vmax.f32 %v6598, %v6599
      %v6601 = vrot.slane %v6600, 2
      %v6602 = vmax.f32 %v6600, %v6601
      %v6603 = vrot.slane %v6602, 1
      %v6604 = vmax.f32 %v6602, %v6603
      %v6605 = vsel %vm5414, %v5157, -inf
      %v6606 = vrot.slane %v6605, 4
      %v6607 = vmax.f32 %v6605, %v6606
      %v6608 = vrot.slane %v6607, 2
      %v6609 = vmax.f32 %v6607, %v6608
      %v6610 = vrot.slane %v6609, 1
      %v6611 = vmax.f32 %v6609, %v6610
      %v6612 = vsel %vm5414, %v5158, -inf
      %v6613 = vrot.slane %v6612, 4
      %v6614 = vmax.f32 %v6612, %v6613
      %v6615 = vrot.slane %v6614, 2
      %v6616 = vmax.f32 %v6614, %v6615
      %v6617 = vrot.slane %v6616, 1
      %v6618 = vmax.f32 %v6616, %v6617
      %v6619 = vsel %vm5414, %v4945, -inf
      %v6620 = vrot.slane %v6619, 4
      %v6621 = vmax.f32 %v6619, %v6620
      %v6622 = vrot.slane %v6621, 2
      %v6623 = vmax.f32 %v6621, %v6622
      %v6624 = vrot.slane %v6623, 1
      %v6625 = vmax.f32 %v6623, %v6624
      %v6626 = vsel %vm5414, %v5159, -inf
      %v6627 = vrot.slane %v6626, 4
      %v6628 = vmax.f32 %v6626, %v6627
      %v6629 = vrot.slane %v6628, 2
      %v6630 = vmax.f32 %v6628, %v6629
      %v6631 = vrot.slane %v6630, 1
      %v6632 = vmax.f32 %v6630, %v6631
      %v6633 = vsel %vm5414, %v5160, -inf
      %v6634 = vrot.slane %v6633, 4
      %v6635 = vmax.f32 %v6633, %v6634
      %v6636 = vrot.slane %v6635, 2
      %v6637 = vmax.f32 %v6635, %v6636
      %v6638 = vrot.slane %v6637, 1
      %v6639 = vmax.f32 %v6637, %v6638
      %v6640 = vsel %vm5414, %v5161, -inf
      %v6641 = vrot.slane %v6640, 4
      %v6642 = vmax.f32 %v6640, %v6641
      %v6643 = vrot.slane %v6642, 2
      %v6644 = vmax.f32 %v6642, %v6643
      %v6645 = vrot.slane %v6644, 1
      %v6646 = vmax.f32 %v6644, %v6645
      %v6647 = vsel %vm5414, %v4946, -inf
      %v6648 = vrot.slane %v6647, 4
      %v6649 = vmax.f32 %v6647, %v6648
      %v6650 = vrot.slane %v6649, 2
      %v6651 = vmax.f32 %v6649, %v6650
      %v6652 = vrot.slane %v6651, 1
      %v6653 = vmax.f32 %v6651, %v6652
      %v6654 = vsel %vm5414, %v5162, -inf
      %v6655 = vrot.slane %v6654, 4
      %v6656 = vmax.f32 %v6654, %v6655
      %v6657 = vrot.slane %v6656, 2
      %v6658 = vmax.f32 %v6656, %v6657
      %v6659 = vrot.slane %v6658, 1
      %v6660 = vmax.f32 %v6658, %v6659
      %v6661 = vsel %vm5414, %v5163, -inf
      %v6662 = vrot.slane %v6661, 4
      %v6663 = vmax.f32 %v6661, %v6662
      %v6664 = vrot.slane %v6663, 2
      %v6665 = vmax.f32 %v6663, %v6664
      %v6666 = vrot.slane %v6665, 1
      %v6667 = vmax.f32 %v6665, %v6666
      %v6668 = vsel %vm5414, %v5164, -inf
      %v6669 = vrot.slane %v6668, 4
      %v6670 = vmax.f32 %v6668, %v6669
      %v6671 = vrot.slane %v6670, 2
      %v6672 = vmax.f32 %v6670, %v6671
      %v6673 = vrot.slane %v6672, 1
      %v6674 = vmax.f32 %v6672, %v6673
      %v6675 = vsel %vm5414, %v4947, -inf
      %v6676 = vrot.slane %v6675, 4
      %v6677 = vmax.f32 %v6675, %v6676
      %v6678 = vrot.slane %v6677, 2
      %v6679 = vmax.f32 %v6677, %v6678
      %v6680 = vrot.slane %v6679, 1
      %v6681 = vmax.f32 %v6679, %v6680
      %v6682 = vsel %vm5414, %v5165, -inf
      %v6683 = vrot.slane %v6682, 4
      %v6684 = vmax.f32 %v6682, %v6683
      %v6685 = vrot.slane %v6684, 2
      %v6686 = vmax.f32 %v6684, %v6685
      %v6687 = vrot.slane %v6686, 1
      %v6688 = vmax.f32 %v6686, %v6687
      %v6689 = vsel %vm5414, %v5166, -inf
      %v6690 = vrot.slane %v6689, 4
      %v6691 = vmax.f32 %v6689, %v6690
      %v6692 = vrot.slane %v6691, 2
      %v6693 = vmax.f32 %v6691, %v6692
      %v6694 = vrot.slane %v6693, 1
      %v6695 = vmax.f32 %v6693, %v6694
      %v6696 = vsel %vm5414, %v5167, -inf
      %v6697 = vrot.slane %v6696, 4
      %v6698 = vmax.f32 %v6696, %v6697
      %v6699 = vrot.slane %v6698, 2
      %v6700 = vmax.f32 %v6698, %v6699
      %v6701 = vrot.slane %v6700, 1
      %v6702 = vmax.f32 %v6700, %v6701
      %v6703 = vsel %vm5414, %v4948, -inf
      %v6704 = vrot.slane %v6703, 4
      %v6705 = vmax.f32 %v6703, %v6704
      %v6706 = vrot.slane %v6705, 2
      %v6707 = vmax.f32 %v6705, %v6706
      %v6708 = vrot.slane %v6707, 1
      %v6709 = vmax.f32 %v6707, %v6708
      %v6710 = vsel %vm5414, %v5168, -inf
      %v6711 = vrot.slane %v6710, 4
      %v6712 = vmax.f32 %v6710, %v6711
      %v6713 = vrot.slane %v6712, 2
      %v6714 = vmax.f32 %v6712, %v6713
      %v6715 = vrot.slane %v6714, 1
      %v6716 = vmax.f32 %v6714, %v6715
      %v6717 = vsel %vm5414, %v5169, -inf
      %v6718 = vrot.slane %v6717, 4
      %v6719 = vmax.f32 %v6717, %v6718
      %v6720 = vrot.slane %v6719, 2
      %v6721 = vmax.f32 %v6719, %v6720
      %v6722 = vrot.slane %v6721, 1
      %v6723 = vmax.f32 %v6721, %v6722
      %v6724 = vsel %vm5414, %v5170, -inf
      %v6725 = vrot.slane %v6724, 4
      %v6726 = vmax.f32 %v6724, %v6725
      %v6727 = vrot.slane %v6726, 2
      %v6728 = vmax.f32 %v6726, %v6727
      %v6729 = vrot.slane %v6728, 1
      %v6730 = vmax.f32 %v6728, %v6729
      %v6731 = vsel %vm5414, %v4949, -inf
      %v6732 = vrot.slane %v6731, 4
      %v6733 = vmax.f32 %v6731, %v6732
      %v6734 = vrot.slane %v6733, 2
      %v6735 = vmax.f32 %v6733, %v6734
      %v6736 = vrot.slane %v6735, 1
      %v6737 = vmax.f32 %v6735, %v6736
      %v6738 = vsel %vm5414, %v5171, -inf
      %v6739 = vrot.slane %v6738, 4
      %v6740 = vmax.f32 %v6738, %v6739
      %v6741 = vrot.slane %v6740, 2
      %v6742 = vmax.f32 %v6740, %v6741
      %v6743 = vrot.slane %v6742, 1
      %v6744 = vmax.f32 %v6742, %v6743
      %v6745 = vsel %vm5414, %v5172, -inf
      %v6746 = vrot.slane %v6745, 4
      %v6747 = vmax.f32 %v6745, %v6746
      %v6748 = vrot.slane %v6747, 2
      %v6749 = vmax.f32 %v6747, %v6748
      %v6750 = vrot.slane %v6749, 1
      %v6751 = vmax.f32 %v6749, %v6750
      %v6752 = vsel %vm5414, %v5173, -inf
      %v6753 = vrot.slane %v6752, 4
      %v6754 = vmax.f32 %v6752, %v6753
      %v6755 = vrot.slane %v6754, 2
      %v6756 = vmax.f32 %v6754, %v6755
      %v6757 = vrot.slane %v6756, 1
      %v6758 = vmax.f32 %v6756, %v6757
      %v6759 = vsel %vm5414, %v4950, -inf
      %v6760 = vrot.slane %v6759, 4
      %v6761 = vmax.f32 %v6759, %v6760
      %v6762 = vrot.slane %v6761, 2
      %v6763 = vmax.f32 %v6761, %v6762
      %v6764 = vrot.slane %v6763, 1
      %v6765 = vmax.f32 %v6763, %v6764
      %v6766 = vsel %vm5414, %v5174, -inf
      %v6767 = vrot.slane %v6766, 4
      %v6768 = vmax.f32 %v6766, %v6767
      %v6769 = vrot.slane %v6768, 2
      %v6770 = vmax.f32 %v6768, %v6769
      %v6771 = vrot.slane %v6770, 1
      %v6772 = vmax.f32 %v6770, %v6771
      %v6773 = vsel %vm5414, %v5175, -inf
      %v6774 = vrot.slane %v6773, 4
      %v6775 = vmax.f32 %v6773, %v6774
      %v6776 = vrot.slane %v6775, 2
      %v6777 = vmax.f32 %v6775, %v6776
      %v6778 = vrot.slane %v6777, 1
      %v6779 = vmax.f32 %v6777, %v6778
      %v6780 = vsel %vm5414, %v5176, -inf
      %v6781 = vrot.slane %v6780, 4
      %v6782 = vmax.f32 %v6780, %v6781
      %v6783 = vrot.slane %v6782, 2
      %v6784 = vmax.f32 %v6782, %v6783
      %v6785 = vrot.slane %v6784, 1
      %v6786 = vmax.f32 %v6784, %v6785
      %v6787 = vsel %vm5414, %v4951, -inf
      %v6788 = vrot.slane %v6787, 4
      %v6789 = vmax.f32 %v6787, %v6788
      %v6790 = vrot.slane %v6789, 2
      %v6791 = vmax.f32 %v6789, %v6790
      %v6792 = vrot.slane %v6791, 1
      %v6793 = vmax.f32 %v6791, %v6792
      %v6794 = vsel %vm5414, %v5177, -inf
      %v6795 = vrot.slane %v6794, 4
      %v6796 = vmax.f32 %v6794, %v6795
      %v6797 = vrot.slane %v6796, 2
      %v6798 = vmax.f32 %v6796, %v6797
      %v6799 = vrot.slane %v6798, 1
      %v6800 = vmax.f32 %v6798, %v6799
      %v6801 = vsel %vm5414, %v5178, -inf
      %v6802 = vrot.slane %v6801, 4
      %v6803 = vmax.f32 %v6801, %v6802
      %v6804 = vrot.slane %v6803, 2
      %v6805 = vmax.f32 %v6803, %v6804
      %v6806 = vrot.slane %v6805, 1
      %v6807 = vmax.f32 %v6805, %v6806
      %v6808 = vsel %vm5414, %v5179, -inf
      %v6809 = vrot.slane %v6808, 4
      %v6810 = vmax.f32 %v6808, %v6809
      %v6811 = vrot.slane %v6810, 2
      %v6812 = vmax.f32 %v6810, %v6811
      %v6813 = vrot.slane %v6812, 1
      %v6814 = vmax.f32 %v6812, %v6813
      %v6815 = vsel %vm5414, %v4952, -inf
      %v6816 = vrot.slane %v6815, 4
      %v6817 = vmax.f32 %v6815, %v6816
      %v6818 = vrot.slane %v6817, 2
      %v6819 = vmax.f32 %v6817, %v6818
      %v6820 = vrot.slane %v6819, 1
      %v6821 = vmax.f32 %v6819, %v6820
      %v6822 = vsel %vm5414, %v5180, -inf
      %v6823 = vrot.slane %v6822, 4
      %v6824 = vmax.f32 %v6822, %v6823
      %v6825 = vrot.slane %v6824, 2
      %v6826 = vmax.f32 %v6824, %v6825
      %v6827 = vrot.slane %v6826, 1
      %v6828 = vmax.f32 %v6826, %v6827
      %v6829 = vsel %vm5414, %v5181, -inf
      %v6830 = vrot.slane %v6829, 4
      %v6831 = vmax.f32 %v6829, %v6830
      %v6832 = vrot.slane %v6831, 2
      %v6833 = vmax.f32 %v6831, %v6832
      %v6834 = vrot.slane %v6833, 1
      %v6835 = vmax.f32 %v6833, %v6834
      %v6836 = vsel %vm5414, %v5182, -inf
      %v6837 = vrot.slane %v6836, 4
      %v6838 = vmax.f32 %v6836, %v6837
      %v6839 = vrot.slane %v6838, 2
      %v6840 = vmax.f32 %v6838, %v6839
      %v6841 = vrot.slane %v6840, 1
      %v6842 = vmax.f32 %v6840, %v6841
      %v6843 = vsel %vm5414, %v4953, -inf
      %v6844 = vrot.slane %v6843, 4
      %v6845 = vmax.f32 %v6843, %v6844
      %v6846 = vrot.slane %v6845, 2
      %v6847 = vmax.f32 %v6845, %v6846
      %v6848 = vrot.slane %v6847, 1
      %v6849 = vmax.f32 %v6847, %v6848
      %v6850 = vsel %vm5414, %v5183, -inf
      %v6851 = vrot.slane %v6850, 4
      %v6852 = vmax.f32 %v6850, %v6851
      %v6853 = vrot.slane %v6852, 2
      %v6854 = vmax.f32 %v6852, %v6853
      %v6855 = vrot.slane %v6854, 1
      %v6856 = vmax.f32 %v6854, %v6855
      %v6857 = vsel %vm5414, %v5184, -inf
      %v6858 = vrot.slane %v6857, 4
      %v6859 = vmax.f32 %v6857, %v6858
      %v6860 = vrot.slane %v6859, 2
      %v6861 = vmax.f32 %v6859, %v6860
      %v6862 = vrot.slane %v6861, 1
      %v6863 = vmax.f32 %v6861, %v6862
      %v6864 = vsel %vm5414, %v5185, -inf
      %v6865 = vrot.slane %v6864, 4
      %v6866 = vmax.f32 %v6864, %v6865
      %v6867 = vrot.slane %v6866, 2
      %v6868 = vmax.f32 %v6866, %v6867
      %v6869 = vrot.slane %v6868, 1
      %v6870 = vmax.f32 %v6868, %v6869
      %v6871 = vsel %vm5414, %v4954, -inf
      %v6872 = vrot.slane %v6871, 4
      %v6873 = vmax.f32 %v6871, %v6872
      %v6874 = vrot.slane %v6873, 2
      %v6875 = vmax.f32 %v6873, %v6874
      %v6876 = vrot.slane %v6875, 1
      %v6877 = vmax.f32 %v6875, %v6876
      %v6878 = vsel %vm5414, %v5186, -inf
      %v6879 = vrot.slane %v6878, 4
      %v6880 = vmax.f32 %v6878, %v6879
      %v6881 = vrot.slane %v6880, 2
      %v6882 = vmax.f32 %v6880, %v6881
      %v6883 = vrot.slane %v6882, 1
      %v6884 = vmax.f32 %v6882, %v6883
      %v6885 = vsel %vm5414, %v5187, -inf
      %v6886 = vrot.slane %v6885, 4
      %v6887 = vmax.f32 %v6885, %v6886
      %v6888 = vrot.slane %v6887, 2
      %v6889 = vmax.f32 %v6887, %v6888
      %v6890 = vrot.slane %v6889, 1
      %v6891 = vmax.f32 %v6889, %v6890
      %v6892 = vsel %vm5414, %v5188, -inf
      %v6893 = vrot.slane %v6892, 4
      %v6894 = vmax.f32 %v6892, %v6893
      %v6895 = vrot.slane %v6894, 2
      %v6896 = vmax.f32 %v6894, %v6895
      %v6897 = vrot.slane %v6896, 1
      %v6898 = vmax.f32 %v6896, %v6897
      %v6899 = vsel %vm5414, %v4955, -inf
      %v6900 = vrot.slane %v6899, 4
      %v6901 = vmax.f32 %v6899, %v6900
      %v6902 = vrot.slane %v6901, 2
      %v6903 = vmax.f32 %v6901, %v6902
      %v6904 = vrot.slane %v6903, 1
      %v6905 = vmax.f32 %v6903, %v6904
      %v6906 = vsel %vm5414, %v5189, -inf
      %v6907 = vrot.slane %v6906, 4
      %v6908 = vmax.f32 %v6906, %v6907
      %v6909 = vrot.slane %v6908, 2
      %v6910 = vmax.f32 %v6908, %v6909
      %v6911 = vrot.slane %v6910, 1
      %v6912 = vmax.f32 %v6910, %v6911
      %v6913 = vsel %vm5414, %v5190, -inf
      %v6914 = vrot.slane %v6913, 4
      %v6915 = vmax.f32 %v6913, %v6914
      %v6916 = vrot.slane %v6915, 2
      %v6917 = vmax.f32 %v6915, %v6916
      %v6918 = vrot.slane %v6917, 1
      %v6919 = vmax.f32 %v6917, %v6918
      %v6920 = vsel %vm5414, %v5191, -inf
      %v6921 = vrot.slane %v6920, 4
      %v6922 = vmax.f32 %v6920, %v6921
      %v6923 = vrot.slane %v6922, 2
      %v6924 = vmax.f32 %v6922, %v6923
      %v6925 = vrot.slane %v6924, 1
      %v6926 = vmax.f32 %v6924, %v6925
      %v6927 = vsel %vm5414, %v4956, -inf
      %v6928 = vrot.slane %v6927, 4
      %v6929 = vmax.f32 %v6927, %v6928
      %v6930 = vrot.slane %v6929, 2
      %v6931 = vmax.f32 %v6929, %v6930
      %v6932 = vrot.slane %v6931, 1
      %v6933 = vmax.f32 %v6931, %v6932
      %v6934 = vsel %vm5414, %v5192, -inf
      %v6935 = vrot.slane %v6934, 4
      %v6936 = vmax.f32 %v6934, %v6935
      %v6937 = vrot.slane %v6936, 2
      %v6938 = vmax.f32 %v6936, %v6937
      %v6939 = vrot.slane %v6938, 1
      %v6940 = vmax.f32 %v6938, %v6939
      %v6941 = vsel %vm5414, %v5193, -inf
      %v6942 = vrot.slane %v6941, 4
      %v6943 = vmax.f32 %v6941, %v6942
      %v6944 = vrot.slane %v6943, 2
      %v6945 = vmax.f32 %v6943, %v6944
      %v6946 = vrot.slane %v6945, 1
      %v6947 = vmax.f32 %v6945, %v6946
      %v6948 = vsel %vm5414, %v5194, -inf
      %v6949 = vrot.slane %v6948, 4
      %v6950 = vmax.f32 %v6948, %v6949
      %v6951 = vrot.slane %v6950, 2
      %v6952 = vmax.f32 %v6950, %v6951
      %v6953 = vrot.slane %v6952, 1
      %v6954 = vmax.f32 %v6952, %v6953
      %v6955 = vsel %vm5414, %v4957, -inf
      %v6956 = vrot.slane %v6955, 4
      %v6957 = vmax.f32 %v6955, %v6956
      %v6958 = vrot.slane %v6957, 2
      %v6959 = vmax.f32 %v6957, %v6958
      %v6960 = vrot.slane %v6959, 1
      %v6961 = vmax.f32 %v6959, %v6960
      %v6962 = vsel %vm5414, %v5195, -inf
      %v6963 = vrot.slane %v6962, 4
      %v6964 = vmax.f32 %v6962, %v6963
      %v6965 = vrot.slane %v6964, 2
      %v6966 = vmax.f32 %v6964, %v6965
      %v6967 = vrot.slane %v6966, 1
      %v6968 = vmax.f32 %v6966, %v6967
      %v6969 = vsel %vm5414, %v5196, -inf
      %v6970 = vrot.slane %v6969, 4
      %v6971 = vmax.f32 %v6969, %v6970
      %v6972 = vrot.slane %v6971, 2
      %v6973 = vmax.f32 %v6971, %v6972
      %v6974 = vrot.slane %v6973, 1
      %v6975 = vmax.f32 %v6973, %v6974
      %v6976 = vsel %vm5414, %v5197, -inf
      %v6977 = vrot.slane %v6976, 4
      %v6978 = vmax.f32 %v6976, %v6977
      %v6979 = vrot.slane %v6978, 2
      %v6980 = vmax.f32 %v6978, %v6979
      %v6981 = vrot.slane %v6980, 1
      %v6982 = vmax.f32 %v6980, %v6981
      %v6983 = vsel %vm5414, %v4958, -inf
      %v6984 = vrot.slane %v6983, 4
      %v6985 = vmax.f32 %v6983, %v6984
      %v6986 = vrot.slane %v6985, 2
      %v6987 = vmax.f32 %v6985, %v6986
      %v6988 = vrot.slane %v6987, 1
      %v6989 = vmax.f32 %v6987, %v6988
      %v6990 = vsel %vm5414, %v5198, -inf
      %v6991 = vrot.slane %v6990, 4
      %v6992 = vmax.f32 %v6990, %v6991
      %v6993 = vrot.slane %v6992, 2
      %v6994 = vmax.f32 %v6992, %v6993
      %v6995 = vrot.slane %v6994, 1
      %v6996 = vmax.f32 %v6994, %v6995
      %v6997 = vsel %vm5414, %v5199, -inf
      %v6998 = vrot.slane %v6997, 4
      %v6999 = vmax.f32 %v6997, %v6998
      %v7000 = vrot.slane %v6999, 2
      %v7001 = vmax.f32 %v6999, %v7000
      %v7002 = vrot.slane %v7001, 1
      %v7003 = vmax.f32 %v7001, %v7002
      %v7004 = vsel %vm5414, %v5200, -inf
      %v7005 = vrot.slane %v7004, 4
      %v7006 = vmax.f32 %v7004, %v7005
      %v7007 = vrot.slane %v7006, 2
      %v7008 = vmax.f32 %v7006, %v7007
      %v7009 = vrot.slane %v7008, 1
      %v7010 = vmax.f32 %v7008, %v7009
      %v7011 = vsel %vm5414, %v4959, -inf
      %v7012 = vrot.slane %v7011, 4
      %v7013 = vmax.f32 %v7011, %v7012
      %v7014 = vrot.slane %v7013, 2
      %v7015 = vmax.f32 %v7013, %v7014
      %v7016 = vrot.slane %v7015, 1
      %v7017 = vmax.f32 %v7015, %v7016
      %v7018 = vsel %vm5414, %v5201, -inf
      %v7019 = vrot.slane %v7018, 4
      %v7020 = vmax.f32 %v7018, %v7019
      %v7021 = vrot.slane %v7020, 2
      %v7022 = vmax.f32 %v7020, %v7021
      %v7023 = vrot.slane %v7022, 1
      %v7024 = vmax.f32 %v7022, %v7023
      %v7025 = vsel %vm5414, %v5202, -inf
      %v7026 = vrot.slane %v7025, 4
      %v7027 = vmax.f32 %v7025, %v7026
      %v7028 = vrot.slane %v7027, 2
      %v7029 = vmax.f32 %v7027, %v7028
      %v7030 = vrot.slane %v7029, 1
      %v7031 = vmax.f32 %v7029, %v7030
      %v7032 = vsel %vm5414, %v5203, -inf
      %v7033 = vrot.slane %v7032, 4
      %v7034 = vmax.f32 %v7032, %v7033
      %v7035 = vrot.slane %v7034, 2
      %v7036 = vmax.f32 %v7034, %v7035
      %v7037 = vrot.slane %v7036, 1
      %v7038 = vmax.f32 %v7036, %v7037
      %v7039 = vsel %vm5414, %v4960, -inf
      %v7040 = vrot.slane %v7039, 4
      %v7041 = vmax.f32 %v7039, %v7040
      %v7042 = vrot.slane %v7041, 2
      %v7043 = vmax.f32 %v7041, %v7042
      %v7044 = vrot.slane %v7043, 1
      %v7045 = vmax.f32 %v7043, %v7044
      %v7046 = vsel %vm5414, %v5204, -inf
      %v7047 = vrot.slane %v7046, 4
      %v7048 = vmax.f32 %v7046, %v7047
      %v7049 = vrot.slane %v7048, 2
      %v7050 = vmax.f32 %v7048, %v7049
      %v7051 = vrot.slane %v7050, 1
      %v7052 = vmax.f32 %v7050, %v7051
      %v7053 = vsel %vm5414, %v5205, -inf
      %v7054 = vrot.slane %v7053, 4
      %v7055 = vmax.f32 %v7053, %v7054
      %v7056 = vrot.slane %v7055, 2
      %v7057 = vmax.f32 %v7055, %v7056
      %v7058 = vrot.slane %v7057, 1
      %v7059 = vmax.f32 %v7057, %v7058
      %v7060 = vsel %vm5414, %v5206, -inf
      %v7061 = vrot.slane %v7060, 4
      %v7062 = vmax.f32 %v7060, %v7061
      %v7063 = vrot.slane %v7062, 2
      %v7064 = vmax.f32 %v7062, %v7063
      %v7065 = vrot.slane %v7064, 1
      %v7066 = vmax.f32 %v7064, %v7065
      %v7067 = vsel %vm5414, %v4961, -inf
      %v7068 = vrot.slane %v7067, 4
      %v7069 = vmax.f32 %v7067, %v7068
      %v7070 = vrot.slane %v7069, 2
      %v7071 = vmax.f32 %v7069, %v7070
      %v7072 = vrot.slane %v7071, 1
      %v7073 = vmax.f32 %v7071, %v7072
      %v7074 = vsel %vm5414, %v5207, -inf
      %v7075 = vrot.slane %v7074, 4
      %v7076 = vmax.f32 %v7074, %v7075
      %v7077 = vrot.slane %v7076, 2
      %v7078 = vmax.f32 %v7076, %v7077
      %v7079 = vrot.slane %v7078, 1
      %v7080 = vmax.f32 %v7078, %v7079
      %v7081 = vsel %vm5414, %v5208, -inf
      %v7082 = vrot.slane %v7081, 4
      %v7083 = vmax.f32 %v7081, %v7082
      %v7084 = vrot.slane %v7083, 2
      %v7085 = vmax.f32 %v7083, %v7084
      %v7086 = vrot.slane %v7085, 1
      %v7087 = vmax.f32 %v7085, %v7086
      %v7088 = vsel %vm5414, %v5209, -inf
      %v7089 = vrot.slane %v7088, 4
      %v7090 = vmax.f32 %v7088, %v7089
      %v7091 = vrot.slane %v7090, 2
      %v7092 = vmax.f32 %v7090, %v7091
      %v7093 = vrot.slane %v7092, 1
      %v7094 = vmax.f32 %v7092, %v7093
      %v7095 = vsel %vm5414, %v4962, -inf
      %v7096 = vrot.slane %v7095, 4
      %v7097 = vmax.f32 %v7095, %v7096
      %v7098 = vrot.slane %v7097, 2
      %v7099 = vmax.f32 %v7097, %v7098
      %v7100 = vrot.slane %v7099, 1
      %v7101 = vmax.f32 %v7099, %v7100
      %v7102 = vsel %vm5414, %v5210, -inf
      %v7103 = vrot.slane %v7102, 4
      %v7104 = vmax.f32 %v7102, %v7103
      %v7105 = vrot.slane %v7104, 2
      %v7106 = vmax.f32 %v7104, %v7105
      %v7107 = vrot.slane %v7106, 1
      %v7108 = vmax.f32 %v7106, %v7107
      %v7109 = vsel %vm5414, %v5211, -inf
      %v7110 = vrot.slane %v7109, 4
      %v7111 = vmax.f32 %v7109, %v7110
      %v7112 = vrot.slane %v7111, 2
      %v7113 = vmax.f32 %v7111, %v7112
      %v7114 = vrot.slane %v7113, 1
      %v7115 = vmax.f32 %v7113, %v7114
      %v7116 = vsel %vm5414, %v5212, -inf
      %v7117 = vrot.slane %v7116, 4
      %v7118 = vmax.f32 %v7116, %v7117
      %v7119 = vrot.slane %v7118, 2
      %v7120 = vmax.f32 %v7118, %v7119
      %v7121 = vrot.slane %v7120, 1
      %v7122 = vmax.f32 %v7120, %v7121
      %v7123 = vsel %vm5414, %v4963, -inf
      %v7124 = vrot.slane %v7123, 4
      %v7125 = vmax.f32 %v7123, %v7124
      %v7126 = vrot.slane %v7125, 2
      %v7127 = vmax.f32 %v7125, %v7126
      %v7128 = vrot.slane %v7127, 1
      %v7129 = vmax.f32 %v7127, %v7128
      %v7130 = vsel %vm5414, %v5213, -inf
      %v7131 = vrot.slane %v7130, 4
      %v7132 = vmax.f32 %v7130, %v7131
      %v7133 = vrot.slane %v7132, 2
      %v7134 = vmax.f32 %v7132, %v7133
      %v7135 = vrot.slane %v7134, 1
      %v7136 = vmax.f32 %v7134, %v7135
      %v7137 = vsel %vm5414, %v5214, -inf
      %v7138 = vrot.slane %v7137, 4
      %v7139 = vmax.f32 %v7137, %v7138
      %v7140 = vrot.slane %v7139, 2
      %v7141 = vmax.f32 %v7139, %v7140
      %v7142 = vrot.slane %v7141, 1
      %v7143 = vmax.f32 %v7141, %v7142
      %v7144 = vsel %vm5414, %v5215, -inf
      %v7145 = vrot.slane %v7144, 4
      %v7146 = vmax.f32 %v7144, %v7145
      %v7147 = vrot.slane %v7146, 2
      %v7148 = vmax.f32 %v7146, %v7147
      %v7149 = vrot.slane %v7148, 1
      %v7150 = vmax.f32 %v7148, %v7149
      %v7151 = vsel %vm5414, %v4964, -inf
      %v7152 = vrot.slane %v7151, 4
      %v7153 = vmax.f32 %v7151, %v7152
      %v7154 = vrot.slane %v7153, 2
      %v7155 = vmax.f32 %v7153, %v7154
      %v7156 = vrot.slane %v7155, 1
      %v7157 = vmax.f32 %v7155, %v7156
      %v7158 = vsel %vm5414, %v5216, -inf
      %v7159 = vrot.slane %v7158, 4
      %v7160 = vmax.f32 %v7158, %v7159
      %v7161 = vrot.slane %v7160, 2
      %v7162 = vmax.f32 %v7160, %v7161
      %v7163 = vrot.slane %v7162, 1
      %v7164 = vmax.f32 %v7162, %v7163
      %v7165 = vsel %vm5414, %v5217, -inf
      %v7166 = vrot.slane %v7165, 4
      %v7167 = vmax.f32 %v7165, %v7166
      %v7168 = vrot.slane %v7167, 2
      %v7169 = vmax.f32 %v7167, %v7168
      %v7170 = vrot.slane %v7169, 1
      %v7171 = vmax.f32 %v7169, %v7170
      %v7172 = vsel %vm5414, %v5218, -inf
      %v7173 = vrot.slane %v7172, 4
      %v7174 = vmax.f32 %v7172, %v7173
      %v7175 = vrot.slane %v7174, 2
      %v7176 = vmax.f32 %v7174, %v7175
      %v7177 = vrot.slane %v7176, 1
      %v7178 = vmax.f32 %v7176, %v7177
      %v7179 = vsel %vm5414, %v4965, -inf
      %v7180 = vrot.slane %v7179, 4
      %v7181 = vmax.f32 %v7179, %v7180
      %v7182 = vrot.slane %v7181, 2
      %v7183 = vmax.f32 %v7181, %v7182
      %v7184 = vrot.slane %v7183, 1
      %v7185 = vmax.f32 %v7183, %v7184
      %v7186 = vsel %vm5414, %v5219, -inf
      %v7187 = vrot.slane %v7186, 4
      %v7188 = vmax.f32 %v7186, %v7187
      %v7189 = vrot.slane %v7188, 2
      %v7190 = vmax.f32 %v7188, %v7189
      %v7191 = vrot.slane %v7190, 1
      %v7192 = vmax.f32 %v7190, %v7191
      %v7193 = vsel %vm5414, %v5220, -inf
      %v7194 = vrot.slane %v7193, 4
      %v7195 = vmax.f32 %v7193, %v7194
      %v7196 = vrot.slane %v7195, 2
      %v7197 = vmax.f32 %v7195, %v7196
      %v7198 = vrot.slane %v7197, 1
      %v7199 = vmax.f32 %v7197, %v7198
      %v7200 = vsel %vm5414, %v5221, -inf
      %v7201 = vrot.slane %v7200, 4
      %v7202 = vmax.f32 %v7200, %v7201
      %v7203 = vrot.slane %v7202, 2
      %v7204 = vmax.f32 %v7202, %v7203
      %v7205 = vrot.slane %v7204, 1
      %v7206 = vmax.f32 %v7204, %v7205
      %vm7207 = vcmask 261120
      %v7208 = vsel %vm7207, %v5421, -inf
      %v7209 = vsel %vm7207, %v5477, -inf
      %v7210 = vmax.f32 %v7208, %v7209
      %v7211 = vsel %vm7207, %v5428, -inf
      %v7212 = vsel %vm7207, %v5484, -inf
      %v7213 = vmax.f32 %v7211, %v7212
      %v7214 = vsel %vm7207, %v5435, -inf
      %v7215 = vsel %vm7207, %v5491, -inf
      %v7216 = vmax.f32 %v7214, %v7215
      %v7217 = vsel %vm7207, %v5442, -inf
      %v7218 = vsel %vm7207, %v5498, -inf
      %v7219 = vmax.f32 %v7217, %v7218
      %v7220 = vsel %vm7207, %v5449, -inf
      %v7221 = vsel %vm7207, %v5505, -inf
      %v7222 = vmax.f32 %v7220, %v7221
      %v7223 = vsel %vm7207, %v5456, -inf
      %v7224 = vsel %vm7207, %v5512, -inf
      %v7225 = vmax.f32 %v7223, %v7224
      %v7226 = vsel %vm7207, %v5463, -inf
      %v7227 = vsel %vm7207, %v5519, -inf
      %v7228 = vmax.f32 %v7226, %v7227
      %v7229 = vsel %vm7207, %v5470, -inf
      %v7230 = vsel %vm7207, %v5526, -inf
      %v7231 = vmax.f32 %v7229, %v7230
      %v7232 = vsel %vm7207, %v5533, -inf
      %v7233 = vsel %vm7207, %v5589, -inf
      %v7234 = vmax.f32 %v7232, %v7233
      %v7235 = vsel %vm7207, %v5540, -inf
      %v7236 = vsel %vm7207, %v5596, -inf
      %v7237 = vmax.f32 %v7235, %v7236
      %v7238 = vsel %vm7207, %v5547, -inf
      %v7239 = vsel %vm7207, %v5603, -inf
      %v7240 = vmax.f32 %v7238, %v7239
      %v7241 = vsel %vm7207, %v5554, -inf
      %v7242 = vsel %vm7207, %v5610, -inf
      %v7243 = vmax.f32 %v7241, %v7242
      %v7244 = vsel %vm7207, %v5561, -inf
      %v7245 = vsel %vm7207, %v5617, -inf
      %v7246 = vmax.f32 %v7244, %v7245
      %v7247 = vsel %vm7207, %v5568, -inf
      %v7248 = vsel %vm7207, %v5624, -inf
      %v7249 = vmax.f32 %v7247, %v7248
      %v7250 = vsel %vm7207, %v5575, -inf
      %v7251 = vsel %vm7207, %v5631, -inf
      %v7252 = vmax.f32 %v7250, %v7251
      %v7253 = vsel %vm7207, %v5582, -inf
      %v7254 = vsel %vm7207, %v5638, -inf
      %v7255 = vmax.f32 %v7253, %v7254
      %v7256 = vsel %vm7207, %v5645, -inf
      %v7257 = vsel %vm7207, %v5701, -inf
      %v7258 = vmax.f32 %v7256, %v7257
      %v7259 = vsel %vm7207, %v5652, -inf
      %v7260 = vsel %vm7207, %v5708, -inf
      %v7261 = vmax.f32 %v7259, %v7260
      %v7262 = vsel %vm7207, %v5659, -inf
      %v7263 = vsel %vm7207, %v5715, -inf
      %v7264 = vmax.f32 %v7262, %v7263
      %v7265 = vsel %vm7207, %v5666, -inf
      %v7266 = vsel %vm7207, %v5722, -inf
      %v7267 = vmax.f32 %v7265, %v7266
      %v7268 = vsel %vm7207, %v5673, -inf
      %v7269 = vsel %vm7207, %v5729, -inf
      %v7270 = vmax.f32 %v7268, %v7269
      %v7271 = vsel %vm7207, %v5680, -inf
      %v7272 = vsel %vm7207, %v5736, -inf
      %v7273 = vmax.f32 %v7271, %v7272
      %v7274 = vsel %vm7207, %v5687, -inf
      %v7275 = vsel %vm7207, %v5743, -inf
      %v7276 = vmax.f32 %v7274, %v7275
      %v7277 = vsel %vm7207, %v5694, -inf
      %v7278 = vsel %vm7207, %v5750, -inf
      %v7279 = vmax.f32 %v7277, %v7278
      %v7280 = vsel %vm7207, %v5757, -inf
      %v7281 = vsel %vm7207, %v5813, -inf
      %v7282 = vmax.f32 %v7280, %v7281
      %v7283 = vsel %vm7207, %v5764, -inf
      %v7284 = vsel %vm7207, %v5820, -inf
      %v7285 = vmax.f32 %v7283, %v7284
      %v7286 = vsel %vm7207, %v5771, -inf
      %v7287 = vsel %vm7207, %v5827, -inf
      %v7288 = vmax.f32 %v7286, %v7287
      %v7289 = vsel %vm7207, %v5778, -inf
      %v7290 = vsel %vm7207, %v5834, -inf
      %v7291 = vmax.f32 %v7289, %v7290
      %v7292 = vsel %vm7207, %v5785, -inf
      %v7293 = vsel %vm7207, %v5841, -inf
      %v7294 = vmax.f32 %v7292, %v7293
      %v7295 = vsel %vm7207, %v5792, -inf
      %v7296 = vsel %vm7207, %v5848, -inf
      %v7297 = vmax.f32 %v7295, %v7296
      %v7298 = vsel %vm7207, %v5799, -inf
      %v7299 = vsel %vm7207, %v5855, -inf
      %v7300 = vmax.f32 %v7298, %v7299
      %v7301 = vsel %vm7207, %v5806, -inf
      %v7302 = vsel %vm7207, %v5862, -inf
      %v7303 = vmax.f32 %v7301, %v7302
      %v7304 = vsel %vm7207, %v5869, -inf
      %v7305 = vsel %vm7207, %v5925, -inf
      %v7306 = vmax.f32 %v7304, %v7305
      %v7307 = vsel %vm7207, %v5876, -inf
      %v7308 = vsel %vm7207, %v5932, -inf
      %v7309 = vmax.f32 %v7307, %v7308
      %v7310 = vsel %vm7207, %v5883, -inf
      %v7311 = vsel %vm7207, %v5939, -inf
      %v7312 = vmax.f32 %v7310, %v7311
      %v7313 = vsel %vm7207, %v5890, -inf
      %v7314 = vsel %vm7207, %v5946, -inf
      %v7315 = vmax.f32 %v7313, %v7314
      %v7316 = vsel %vm7207, %v5897, -inf
      %v7317 = vsel %vm7207, %v5953, -inf
      %v7318 = vmax.f32 %v7316, %v7317
      %v7319 = vsel %vm7207, %v5904, -inf
      %v7320 = vsel %vm7207, %v5960, -inf
      %v7321 = vmax.f32 %v7319, %v7320
      %v7322 = vsel %vm7207, %v5911, -inf
      %v7323 = vsel %vm7207, %v5967, -inf
      %v7324 = vmax.f32 %v7322, %v7323
      %v7325 = vsel %vm7207, %v5918, -inf
      %v7326 = vsel %vm7207, %v5974, -inf
      %v7327 = vmax.f32 %v7325, %v7326
      %v7328 = vsel %vm7207, %v5981, -inf
      %v7329 = vsel %vm7207, %v6037, -inf
      %v7330 = vmax.f32 %v7328, %v7329
      %v7331 = vsel %vm7207, %v5988, -inf
      %v7332 = vsel %vm7207, %v6044, -inf
      %v7333 = vmax.f32 %v7331, %v7332
      %v7334 = vsel %vm7207, %v5995, -inf
      %v7335 = vsel %vm7207, %v6051, -inf
      %v7336 = vmax.f32 %v7334, %v7335
      %v7337 = vsel %vm7207, %v6002, -inf
      %v7338 = vsel %vm7207, %v6058, -inf
      %v7339 = vmax.f32 %v7337, %v7338
      %v7340 = vsel %vm7207, %v6009, -inf
      %v7341 = vsel %vm7207, %v6065, -inf
      %v7342 = vmax.f32 %v7340, %v7341
      %v7343 = vsel %vm7207, %v6016, -inf
      %v7344 = vsel %vm7207, %v6072, -inf
      %v7345 = vmax.f32 %v7343, %v7344
      %v7346 = vsel %vm7207, %v6023, -inf
      %v7347 = vsel %vm7207, %v6079, -inf
      %v7348 = vmax.f32 %v7346, %v7347
      %v7349 = vsel %vm7207, %v6030, -inf
      %v7350 = vsel %vm7207, %v6086, -inf
      %v7351 = vmax.f32 %v7349, %v7350
      %v7352 = vsel %vm7207, %v6093, -inf
      %v7353 = vsel %vm7207, %v6149, -inf
      %v7354 = vmax.f32 %v7352, %v7353
      %v7355 = vsel %vm7207, %v6100, -inf
      %v7356 = vsel %vm7207, %v6156, -inf
      %v7357 = vmax.f32 %v7355, %v7356
      %v7358 = vsel %vm7207, %v6107, -inf
      %v7359 = vsel %vm7207, %v6163, -inf
      %v7360 = vmax.f32 %v7358, %v7359
      %v7361 = vsel %vm7207, %v6114, -inf
      %v7362 = vsel %vm7207, %v6170, -inf
      %v7363 = vmax.f32 %v7361, %v7362
      %v7364 = vsel %vm7207, %v6121, -inf
      %v7365 = vsel %vm7207, %v6177, -inf
      %v7366 = vmax.f32 %v7364, %v7365
      %v7367 = vsel %vm7207, %v6128, -inf
      %v7368 = vsel %vm7207, %v6184, -inf
      %v7369 = vmax.f32 %v7367, %v7368
      %v7370 = vsel %vm7207, %v6135, -inf
      %v7371 = vsel %vm7207, %v6191, -inf
      %v7372 = vmax.f32 %v7370, %v7371
      %v7373 = vsel %vm7207, %v6142, -inf
      %v7374 = vsel %vm7207, %v6198, -inf
      %v7375 = vmax.f32 %v7373, %v7374
      %v7376 = vsel %vm7207, %v6205, -inf
      %v7377 = vsel %vm7207, %v6261, -inf
      %v7378 = vmax.f32 %v7376, %v7377
      %v7379 = vsel %vm7207, %v6212, -inf
      %v7380 = vsel %vm7207, %v6268, -inf
      %v7381 = vmax.f32 %v7379, %v7380
      %v7382 = vsel %vm7207, %v6219, -inf
      %v7383 = vsel %vm7207, %v6275, -inf
      %v7384 = vmax.f32 %v7382, %v7383
      %v7385 = vsel %vm7207, %v6226, -inf
      %v7386 = vsel %vm7207, %v6282, -inf
      %v7387 = vmax.f32 %v7385, %v7386
      %v7388 = vsel %vm7207, %v6233, -inf
      %v7389 = vsel %vm7207, %v6289, -inf
      %v7390 = vmax.f32 %v7388, %v7389
      %v7391 = vsel %vm7207, %v6240, -inf
      %v7392 = vsel %vm7207, %v6296, -inf
      %v7393 = vmax.f32 %v7391, %v7392
      %v7394 = vsel %vm7207, %v6247, -inf
      %v7395 = vsel %vm7207, %v6303, -inf
      %v7396 = vmax.f32 %v7394, %v7395
      %v7397 = vsel %vm7207, %v6254, -inf
      %v7398 = vsel %vm7207, %v6310, -inf
      %v7399 = vmax.f32 %v7397, %v7398
      %v7400 = vsel %vm7207, %v6317, -inf
      %v7401 = vsel %vm7207, %v6373, -inf
      %v7402 = vmax.f32 %v7400, %v7401
      %v7403 = vsel %vm7207, %v6324, -inf
      %v7404 = vsel %vm7207, %v6380, -inf
      %v7405 = vmax.f32 %v7403, %v7404
      %v7406 = vsel %vm7207, %v6331, -inf
      %v7407 = vsel %vm7207, %v6387, -inf
      %v7408 = vmax.f32 %v7406, %v7407
      %v7409 = vsel %vm7207, %v6338, -inf
      %v7410 = vsel %vm7207, %v6394, -inf
      %v7411 = vmax.f32 %v7409, %v7410
      %v7412 = vsel %vm7207, %v6345, -inf
      %v7413 = vsel %vm7207, %v6401, -inf
      %v7414 = vmax.f32 %v7412, %v7413
      %v7415 = vsel %vm7207, %v6352, -inf
      %v7416 = vsel %vm7207, %v6408, -inf
      %v7417 = vmax.f32 %v7415, %v7416
      %v7418 = vsel %vm7207, %v6359, -inf
      %v7419 = vsel %vm7207, %v6415, -inf
      %v7420 = vmax.f32 %v7418, %v7419
      %v7421 = vsel %vm7207, %v6366, -inf
      %v7422 = vsel %vm7207, %v6422, -inf
      %v7423 = vmax.f32 %v7421, %v7422
      %v7424 = vsel %vm7207, %v6429, -inf
      %v7425 = vsel %vm7207, %v6485, -inf
      %v7426 = vmax.f32 %v7424, %v7425
      %v7427 = vsel %vm7207, %v6436, -inf
      %v7428 = vsel %vm7207, %v6492, -inf
      %v7429 = vmax.f32 %v7427, %v7428
      %v7430 = vsel %vm7207, %v6443, -inf
      %v7431 = vsel %vm7207, %v6499, -inf
      %v7432 = vmax.f32 %v7430, %v7431
      %v7433 = vsel %vm7207, %v6450, -inf
      %v7434 = vsel %vm7207, %v6506, -inf
      %v7435 = vmax.f32 %v7433, %v7434
      %v7436 = vsel %vm7207, %v6457, -inf
      %v7437 = vsel %vm7207, %v6513, -inf
      %v7438 = vmax.f32 %v7436, %v7437
      %v7439 = vsel %vm7207, %v6464, -inf
      %v7440 = vsel %vm7207, %v6520, -inf
      %v7441 = vmax.f32 %v7439, %v7440
      %v7442 = vsel %vm7207, %v6471, -inf
      %v7443 = vsel %vm7207, %v6527, -inf
      %v7444 = vmax.f32 %v7442, %v7443
      %v7445 = vsel %vm7207, %v6478, -inf
      %v7446 = vsel %vm7207, %v6534, -inf
      %v7447 = vmax.f32 %v7445, %v7446
      %v7448 = vsel %vm7207, %v6541, -inf
      %v7449 = vsel %vm7207, %v6597, -inf
      %v7450 = vmax.f32 %v7448, %v7449
      %v7451 = vsel %vm7207, %v6548, -inf
      %v7452 = vsel %vm7207, %v6604, -inf
      %v7453 = vmax.f32 %v7451, %v7452
      %v7454 = vsel %vm7207, %v6555, -inf
      %v7455 = vsel %vm7207, %v6611, -inf
      %v7456 = vmax.f32 %v7454, %v7455
      %v7457 = vsel %vm7207, %v6562, -inf
      %v7458 = vsel %vm7207, %v6618, -inf
      %v7459 = vmax.f32 %v7457, %v7458
      %v7460 = vsel %vm7207, %v6569, -inf
      %v7461 = vsel %vm7207, %v6625, -inf
      %v7462 = vmax.f32 %v7460, %v7461
      %v7463 = vsel %vm7207, %v6576, -inf
      %v7464 = vsel %vm7207, %v6632, -inf
      %v7465 = vmax.f32 %v7463, %v7464
      %v7466 = vsel %vm7207, %v6583, -inf
      %v7467 = vsel %vm7207, %v6639, -inf
      %v7468 = vmax.f32 %v7466, %v7467
      %v7469 = vsel %vm7207, %v6590, -inf
      %v7470 = vsel %vm7207, %v6646, -inf
      %v7471 = vmax.f32 %v7469, %v7470
      %v7472 = vsel %vm7207, %v6653, -inf
      %v7473 = vsel %vm7207, %v6709, -inf
      %v7474 = vmax.f32 %v7472, %v7473
      %v7475 = vsel %vm7207, %v6660, -inf
      %v7476 = vsel %vm7207, %v6716, -inf
      %v7477 = vmax.f32 %v7475, %v7476
      %v7478 = vsel %vm7207, %v6667, -inf
      %v7479 = vsel %vm7207, %v6723, -inf
      %v7480 = vmax.f32 %v7478, %v7479
      %v7481 = vsel %vm7207, %v6674, -inf
      %v7482 = vsel %vm7207, %v6730, -inf
      %v7483 = vmax.f32 %v7481, %v7482
      %v7484 = vsel %vm7207, %v6681, -inf
      %v7485 = vsel %vm7207, %v6737, -inf
      %v7486 = vmax.f32 %v7484, %v7485
      %v7487 = vsel %vm7207, %v6688, -inf
      %v7488 = vsel %vm7207, %v6744, -inf
      %v7489 = vmax.f32 %v7487, %v7488
      %v7490 = vsel %vm7207, %v6695, -inf
      %v7491 = vsel %vm7207, %v6751, -inf
      %v7492 = vmax.f32 %v7490, %v7491
      %v7493 = vsel %vm7207, %v6702, -inf
      %v7494 = vsel %vm7207, %v6758, -inf
      %v7495 = vmax.f32 %v7493, %v7494
      %v7496 = vsel %vm7207, %v6765, -inf
      %v7497 = vsel %vm7207, %v6821, -inf
      %v7498 = vmax.f32 %v7496, %v7497
      %v7499 = vsel %vm7207, %v6772, -inf
      %v7500 = vsel %vm7207, %v6828, -inf
      %v7501 = vmax.f32 %v7499, %v7500
      %v7502 = vsel %vm7207, %v6779, -inf
      %v7503 = vsel %vm7207, %v6835, -inf
      %v7504 = vmax.f32 %v7502, %v7503
      %v7505 = vsel %vm7207, %v6786, -inf
      %v7506 = vsel %vm7207, %v6842, -inf
      %v7507 = vmax.f32 %v7505, %v7506
      %v7508 = vsel %vm7207, %v6793, -inf
      %v7509 = vsel %vm7207, %v6849, -inf
      %v7510 = vmax.f32 %v7508, %v7509
      %v7511 = vsel %vm7207, %v6800, -inf
      %v7512 = vsel %vm7207, %v6856, -inf
      %v7513 = vmax.f32 %v7511, %v7512
      %v7514 = vsel %vm7207, %v6807, -inf
      %v7515 = vsel %vm7207, %v6863, -inf
      %v7516 = vmax.f32 %v7514, %v7515
      %v7517 = vsel %vm7207, %v6814, -inf
      %v7518 = vsel %vm7207, %v6870, -inf
      %v7519 = vmax.f32 %v7517, %v7518
      %v7520 = vsel %vm7207, %v6877, -inf
      %v7521 = vsel %vm7207, %v6933, -inf
      %v7522 = vmax.f32 %v7520, %v7521
      %v7523 = vsel %vm7207, %v6884, -inf
      %v7524 = vsel %vm7207, %v6940, -inf
      %v7525 = vmax.f32 %v7523, %v7524
      %v7526 = vsel %vm7207, %v6891, -inf
      %v7527 = vsel %vm7207, %v6947, -inf
      %v7528 = vmax.f32 %v7526, %v7527
      %v7529 = vsel %vm7207, %v6898, -inf
      %v7530 = vsel %vm7207, %v6954, -inf
      %v7531 = vmax.f32 %v7529, %v7530
      %v7532 = vsel %vm7207, %v6905, -inf
      %v7533 = vsel %vm7207, %v6961, -inf
      %v7534 = vmax.f32 %v7532, %v7533
      %v7535 = vsel %vm7207, %v6912, -inf
      %v7536 = vsel %vm7207, %v6968, -inf
      %v7537 = vmax.f32 %v7535, %v7536
      %v7538 = vsel %vm7207, %v6919, -inf
      %v7539 = vsel %vm7207, %v6975, -inf
      %v7540 = vmax.f32 %v7538, %v7539
      %v7541 = vsel %vm7207, %v6926, -inf
      %v7542 = vsel %vm7207, %v6982, -inf
      %v7543 = vmax.f32 %v7541, %v7542
      %v7544 = vsel %vm7207, %v6989, -inf
      %v7545 = vsel %vm7207, %v7045, -inf
      %v7546 = vmax.f32 %v7544, %v7545
      %v7547 = vsel %vm7207, %v6996, -inf
      %v7548 = vsel %vm7207, %v7052, -inf
      %v7549 = vmax.f32 %v7547, %v7548
      %v7550 = vsel %vm7207, %v7003, -inf
      %v7551 = vsel %vm7207, %v7059, -inf
      %v7552 = vmax.f32 %v7550, %v7551
      %v7553 = vsel %vm7207, %v7010, -inf
      %v7554 = vsel %vm7207, %v7066, -inf
      %v7555 = vmax.f32 %v7553, %v7554
      %v7556 = vsel %vm7207, %v7017, -inf
      %v7557 = vsel %vm7207, %v7073, -inf
      %v7558 = vmax.f32 %v7556, %v7557
      %v7559 = vsel %vm7207, %v7024, -inf
      %v7560 = vsel %vm7207, %v7080, -inf
      %v7561 = vmax.f32 %v7559, %v7560
      %v7562 = vsel %vm7207, %v7031, -inf
      %v7563 = vsel %vm7207, %v7087, -inf
      %v7564 = vmax.f32 %v7562, %v7563
      %v7565 = vsel %vm7207, %v7038, -inf
      %v7566 = vsel %vm7207, %v7094, -inf
      %v7567 = vmax.f32 %v7565, %v7566
      %v7568 = vsel %vm7207, %v7101, -inf
      %v7569 = vsel %vm7207, %v7157, -inf
      %v7570 = vmax.f32 %v7568, %v7569
      %v7571 = vsel %vm7207, %v7108, -inf
      %v7572 = vsel %vm7207, %v7164, -inf
      %v7573 = vmax.f32 %v7571, %v7572
      %v7574 = vsel %vm7207, %v7115, -inf
      %v7575 = vsel %vm7207, %v7171, -inf
      %v7576 = vmax.f32 %v7574, %v7575
      %v7577 = vsel %vm7207, %v7122, -inf
      %v7578 = vsel %vm7207, %v7178, -inf
      %v7579 = vmax.f32 %v7577, %v7578
      %v7580 = vsel %vm7207, %v7129, -inf
      %v7581 = vsel %vm7207, %v7185, -inf
      %v7582 = vmax.f32 %v7580, %v7581
      %v7583 = vsel %vm7207, %v7136, -inf
      %v7584 = vsel %vm7207, %v7192, -inf
      %v7585 = vmax.f32 %v7583, %v7584
      %v7586 = vsel %vm7207, %v7143, -inf
      %v7587 = vsel %vm7207, %v7199, -inf
      %v7588 = vmax.f32 %v7586, %v7587
      %v7589 = vsel %vm7207, %v7150, -inf
      %v7590 = vsel %vm7207, %v7206, -inf
      %v7591 = vmax.f32 %v7589, %v7590
      %7592 = vst.msk [vmem:[#allocation3] sm:$0xff] %vm7207, 0.0
      %7593 = vst.msk [vmem:[#allocation3 + $0x8] sm:$0x3] %vm5414, 0.0
      %7594 = vst.msk [vmem:[#allocation3 + $0x10] sm:$0xff] %vm7207, 0.0
      %7595 = vst.msk [vmem:[#allocation3 + $0x18] sm:$0x3] %vm5414, 0.0
      %7596 = vst.msk [vmem:[#allocation3 + $0x20] sm:$0xff] %vm7207, 0.0
      %7597 = vst.msk [vmem:[#allocation3 + $0x28] sm:$0x3] %vm5414, 0.0
      %7598 = vst.msk [vmem:[#allocation3 + $0x30] sm:$0xff] %vm7207, 0.0
      %7599 = vst.msk [vmem:[#allocation3 + $0x38] sm:$0x3] %vm5414, 0.0
      %7600 = vst.msk [vmem:[#allocation3 + $0x40] sm:$0xff] %vm7207, 0.0
      %7601 = vst.msk [vmem:[#allocation3 + $0x48] sm:$0x3] %vm5414, 0.0
      %7602 = vst.msk [vmem:[#allocation3 + $0x50] sm:$0xff] %vm7207, 0.0
      %7603 = vst.msk [vmem:[#allocation3 + $0x58] sm:$0x3] %vm5414, 0.0
      %7604 = vst.msk [vmem:[#allocation3 + $0x60] sm:$0xff] %vm7207, 0.0
      %7605 = vst.msk [vmem:[#allocation3 + $0x68] sm:$0x3] %vm5414, 0.0
      %7606 = vst.msk [vmem:[#allocation3 + $0x70] sm:$0xff] %vm7207, 0.0
      %7607 = vst.msk [vmem:[#allocation3 + $0x78] sm:$0x3] %vm5414, 0.0
      %7608 = vst.msk [vmem:[#allocation3 + $0x80] sm:$0xff] %vm7207, 0.0
      %7609 = vst.msk [vmem:[#allocation3 + $0x88] sm:$0x3] %vm5414, 0.0
      %7610 = vst.msk [vmem:[#allocation3 + $0x90] sm:$0xff] %vm7207, 0.0
      %7611 = vst.msk [vmem:[#allocation3 + $0x98] sm:$0x3] %vm5414, 0.0
      %7612 = vst.msk [vmem:[#allocation3 + $0xa0] sm:$0xff] %vm7207, 0.0
      %7613 = vst.msk [vmem:[#allocation3 + $0xa8] sm:$0x3] %vm5414, 0.0
      %7614 = vst.msk [vmem:[#allocation3 + $0xb0] sm:$0xff] %vm7207, 0.0
      %7615 = vst.msk [vmem:[#allocation3 + $0xb8] sm:$0x3] %vm5414, 0.0
      %7616 = vst.msk [vmem:[#allocation3 + $0xc0] sm:$0xff] %vm7207, 0.0
      %7617 = vst.msk [vmem:[#allocation3 + $0xc8] sm:$0x3] %vm5414, 0.0
      %7618 = vst.msk [vmem:[#allocation3 + $0xd0] sm:$0xff] %vm7207, 0.0
      %7619 = vst.msk [vmem:[#allocation3 + $0xd8] sm:$0x3] %vm5414, 0.0
      %7620 = vst.msk [vmem:[#allocation3 + $0xe0] sm:$0xff] %vm7207, 0.0
      %7621 = vst.msk [vmem:[#allocation3 + $0xe8] sm:$0x3] %vm5414, 0.0
      %7622 = vst.msk [vmem:[#allocation3 + $0xf0] sm:$0xff] %vm7207, 0.0
      %7623 = vst.msk [vmem:[#allocation3 + $0xf8] sm:$0x3] %vm5414, 0.0
      %7624 = vst.msk [vmem:[#allocation3 + $0x100] sm:$0xff] %vm7207, 0.0
      %7625 = vst.msk [vmem:[#allocation3 + $0x108] sm:$0x3] %vm5414, 0.0
      %7626 = vst.msk [vmem:[#allocation3 + $0x110] sm:$0xff] %vm7207, 0.0
      %7627 = vst.msk [vmem:[#allocation3 + $0x118] sm:$0x3] %vm5414, 0.0
      %7628 = vst.msk [vmem:[#allocation3 + $0x120] sm:$0xff] %vm7207, 0.0
      %7629 = vst.msk [vmem:[#allocation3 + $0x128] sm:$0x3] %vm5414, 0.0
      %7630 = vst.msk [vmem:[#allocation3 + $0x130] sm:$0xff] %vm7207, 0.0
      %7631 = vst.msk [vmem:[#allocation3 + $0x138] sm:$0x3] %vm5414, 0.0
      %vm7760 = vcmask 1041409
      %v7761 = vsel %vm7760, %v7213, %v7210
      %vm7762 = vcmask 1042434
      %v7763 = vsel %vm7762, %v7216, %v7761
      %vm7764 = vcmask 1043459
      %v7765 = vsel %vm7764, %v7219, %v7763
      %vm7766 = vcmask 1044484
      %v7767 = vsel %vm7766, %v7222, %v7765
      %vm7768 = vcmask 1045509
      %v7769 = vsel %vm7768, %v7225, %v7767
      %vm7770 = vcmask 1046534
      %v7771 = vsel %vm7770, %v7228, %v7769
      %vm7772 = vcmask 1047559
      %v7773 = vsel %vm7772, %v7231, %v7771
      %v7774 = vsel %vm7760, %v7237, %v7234
      %v7775 = vsel %vm7762, %v7240, %v7774
      %v7776 = vsel %vm7764, %v7243, %v7775
      %v7777 = vsel %vm7766, %v7246, %v7776
      %v7778 = vsel %vm7768, %v7249, %v7777
      %v7779 = vsel %vm7770, %v7252, %v7778
      %v7780 = vsel %vm7772, %v7255, %v7779
      %v7781 = vsel %vm7760, %v7261, %v7258
      %v7782 = vsel %vm7762, %v7264, %v7781
      %v7783 = vsel %vm7764, %v7267, %v7782
      %v7784 = vsel %vm7766, %v7270, %v7783
      %v7785 = vsel %vm7768, %v7273, %v7784
      %v7786 = vsel %vm7770, %v7276, %v7785
      %v7787 = vsel %vm7772, %v7279, %v7786
      %v7788 = vsel %vm7760, %v7285, %v7282
      %v7789 = vsel %vm7762, %v7288, %v7788
      %v7790 = vsel %vm7764, %v7291, %v7789
      %v7791 = vsel %vm7766, %v7294, %v7790
      %v7792 = vsel %vm7768, %v7297, %v7791
      %v7793 = vsel %vm7770, %v7300, %v7792
      %v7794 = vsel %vm7772, %v7303, %v7793
      %v7795 = vsel %vm7760, %v7309, %v7306
      %v7796 = vsel %vm7762, %v7312, %v7795
      %v7797 = vsel %vm7764, %v7315, %v7796
      %v7798 = vsel %vm7766, %v7318, %v7797
      %v7799 = vsel %vm7768, %v7321, %v7798
      %v7800 = vsel %vm7770, %v7324, %v7799
      %v7801 = vsel %vm7772, %v7327, %v7800
      %v7802 = vsel %vm7760, %v7333, %v7330
      %v7803 = vsel %vm7762, %v7336, %v7802
      %v7804 = vsel %vm7764, %v7339, %v7803
      %v7805 = vsel %vm7766, %v7342, %v7804
      %v7806 = vsel %vm7768, %v7345, %v7805
      %v7807 = vsel %vm7770, %v7348, %v7806
      %v7808 = vsel %vm7772, %v7351, %v7807
      %v7809 = vsel %vm7760, %v7357, %v7354
      %v7810 = vsel %vm7762, %v7360, %v7809
      %v7811 = vsel %vm7764, %v7363, %v7810
      %v7812 = vsel %vm7766, %v7366, %v7811
      %v7813 = vsel %vm7768, %v7369, %v7812
      %v7814 = vsel %vm7770, %v7372, %v7813
      %v7815 = vsel %vm7772, %v7375, %v7814
      %v7816 = vsel %vm7760, %v7381, %v7378
      %v7817 = vsel %vm7762, %v7384, %v7816
      %v7818 = vsel %vm7764, %v7387, %v7817
      %v7819 = vsel %vm7766, %v7390, %v7818
      %v7820 = vsel %vm7768, %v7393, %v7819
      %v7821 = vsel %vm7770, %v7396, %v7820
      %v7822 = vsel %vm7772, %v7399, %v7821
      %v7823 = vsel %vm7760, %v7405, %v7402
      %v7824 = vsel %vm7762, %v7408, %v7823
      %v7825 = vsel %vm7764, %v7411, %v7824
      %v7826 = vsel %vm7766, %v7414, %v7825
      %v7827 = vsel %vm7768, %v7417, %v7826
      %v7828 = vsel %vm7770, %v7420, %v7827
      %v7829 = vsel %vm7772, %v7423, %v7828
      %v7830 = vsel %vm7760, %v7429, %v7426
      %v7831 = vsel %vm7762, %v7432, %v7830
      %v7832 = vsel %vm7764, %v7435, %v7831
      %v7833 = vsel %vm7766, %v7438, %v7832
      %v7834 = vsel %vm7768, %v7441, %v7833
      %v7835 = vsel %vm7770, %v7444, %v7834
      %v7836 = vsel %vm7772, %v7447, %v7835
      %v7837 = vsel %vm7760, %v7453, %v7450
      %v7838 = vsel %vm7762, %v7456, %v7837
      %v7839 = vsel %vm7764, %v7459, %v7838
      %v7840 = vsel %vm7766, %v7462, %v7839
      %v7841 = vsel %vm7768, %v7465, %v7840
      %v7842 = vsel %vm7770, %v7468, %v7841
      %v7843 = vsel %vm7772, %v7471, %v7842
      %v7844 = vsel %vm7760, %v7477, %v7474
      %v7845 = vsel %vm7762, %v7480, %v7844
      %v7846 = vsel %vm7764, %v7483, %v7845
      %v7847 = vsel %vm7766, %v7486, %v7846
      %v7848 = vsel %vm7768, %v7489, %v7847
      %v7849 = vsel %vm7770, %v7492, %v7848
      %v7850 = vsel %vm7772, %v7495, %v7849
      %v7851 = vsel %vm7760, %v7501, %v7498
      %v7852 = vsel %vm7762, %v7504, %v7851
      %v7853 = vsel %vm7764, %v7507, %v7852
      %v7854 = vsel %vm7766, %v7510, %v7853
      %v7855 = vsel %vm7768, %v7513, %v7854
      %v7856 = vsel %vm7770, %v7516, %v7855
      %v7857 = vsel %vm7772, %v7519, %v7856
      %v7858 = vsel %vm7760, %v7525, %v7522
      %v7859 = vsel %vm7762, %v7528, %v7858
      %v7860 = vsel %vm7764, %v7531, %v7859
      %v7861 = vsel %vm7766, %v7534, %v7860
      %v7862 = vsel %vm7768, %v7537, %v7861
      %v7863 = vsel %vm7770, %v7540, %v7862
      %v7864 = vsel %vm7772, %v7543, %v7863
      %v7865 = vsel %vm7760, %v7549, %v7546
      %v7866 = vsel %vm7762, %v7552, %v7865
      %v7867 = vsel %vm7764, %v7555, %v7866
      %v7868 = vsel %vm7766, %v7558, %v7867
      %v7869 = vsel %vm7768, %v7561, %v7868
      %v7870 = vsel %vm7770, %v7564, %v7869
      %v7871 = vsel %vm7772, %v7567, %v7870
      %v7872 = vsel %vm7760, %v7573, %v7570
      %v7873 = vsel %vm7762, %v7576, %v7872
      %v7874 = vsel %vm7764, %v7579, %v7873
      %v7875 = vsel %vm7766, %v7582, %v7874
      %v7876 = vsel %vm7768, %v7585, %v7875
      %v7877 = vsel %vm7770, %v7588, %v7876
      %v7878 = vsel %vm7772, %v7591, %v7877
      %s7895 = scalar_lea.vmem [#allocation3], 16
      %7896 = vst.msk [vmem:[%s7895 + $0x1] sm:$0xff] %vm7207, %v7773
      %7897 = vst.msk [vmem:[%s7895 + $0x11] sm:$0xff] %vm7207, %v7780
      %7898 = vst.msk [vmem:[%s7895 + $0x21] sm:$0xff] %vm7207, %v7787
      %7899 = vst.msk [vmem:[%s7895 + $0x31] sm:$0xff] %vm7207, %v7794
      %7900 = vst.msk [vmem:[%s7895 + $0x41] sm:$0xff] %vm7207, %v7801
      %7901 = vst.msk [vmem:[%s7895 + $0x51] sm:$0xff] %vm7207, %v7808
      %7902 = vst.msk [vmem:[%s7895 + $0x61] sm:$0xff] %vm7207, %v7815
      %7903 = vst.msk [vmem:[%s7895 + $0x71] sm:$0xff] %vm7207, %v7822
      %7904 = vst.msk [vmem:[%s7895 + $0xa1] sm:$0xff] %vm7207, %v7829
      %7905 = vst.msk [vmem:[%s7895 + $0xb1] sm:$0xff] %vm7207, %v7836
      %7906 = vst.msk [vmem:[%s7895 + $0xc1] sm:$0xff] %vm7207, %v7843
      %7907 = vst.msk [vmem:[%s7895 + $0xd1] sm:$0xff] %vm7207, %v7850
      %7908 = vst.msk [vmem:[%s7895 + $0xe1] sm:$0xff] %vm7207, %v7857
      %7909 = vst.msk [vmem:[%s7895 + $0xf1] sm:$0xff] %vm7207, %v7864
      %7910 = vst.msk [vmem:[%s7895 + $0x101] sm:$0xff] %vm7207, %v7871
      %7911 = vst.msk [vmem:[%s7895 + $0x111] sm:$0xff] %vm7207, %v7878
      %v7912 = vld [vmem:[#allocation3] sm:$0xff]
      %v7913 = vld [vmem:[#allocation3 + $0x8] sm:$0x3]
      %v7914 = vld [vmem:[#allocation3 + $0x10] sm:$0xff]
      %v7915 = vld [vmem:[#allocation3 + $0x18] sm:$0x3]
      %v7916 = vld [vmem:[#allocation3 + $0x20] sm:$0xff]
      %v7917 = vld [vmem:[#allocation3 + $0x28] sm:$0x3]
      %v7918 = vld [vmem:[#allocation3 + $0x30] sm:$0xff]
      %v7919 = vld [vmem:[#allocation3 + $0x38] sm:$0x3]
      %v7920 = vld [vmem:[#allocation3 + $0x40] sm:$0xff]
      %v7921 = vld [vmem:[#allocation3 + $0x48] sm:$0x3]
      %v7922 = vld [vmem:[#allocation3 + $0x50] sm:$0xff]
      %v7923 = vld [vmem:[#allocation3 + $0x58] sm:$0x3]
      %v7924 = vld [vmem:[#allocation3 + $0x60] sm:$0xff]
      %v7925 = vld [vmem:[#allocation3 + $0x68] sm:$0x3]
      %v7926 = vld [vmem:[#allocation3 + $0x70] sm:$0xff]
      %v7927 = vld [vmem:[#allocation3 + $0x78] sm:$0x3]
      %v7928 = vld [vmem:[#allocation3 + $0x80] sm:$0xff]
      %v7929 = vld [vmem:[#allocation3 + $0x88] sm:$0x3]
      %v7930 = vld [vmem:[#allocation3 + $0x90] sm:$0xff]
      %v7931 = vld [vmem:[#allocation3 + $0x98] sm:$0x3]
      %v7932 = vld [vmem:[#allocation3 + $0xa0] sm:$0xff]
      %v7933 = vld [vmem:[#allocation3 + $0xa8] sm:$0x3]
      %v7934 = vld [vmem:[#allocation3 + $0xb0] sm:$0xff]
      %v7935 = vld [vmem:[#allocation3 + $0xb8] sm:$0x3]
      %v7936 = vld [vmem:[#allocation3 + $0xc0] sm:$0xff]
      %v7937 = vld [vmem:[#allocation3 + $0xc8] sm:$0x3]
      %v7938 = vld [vmem:[#allocation3 + $0xd0] sm:$0xff]
      %v7939 = vld [vmem:[#allocation3 + $0xd8] sm:$0x3]
      %v7940 = vld [vmem:[#allocation3 + $0xe0] sm:$0xff]
      %v7941 = vld [vmem:[#allocation3 + $0xe8] sm:$0x3]
      %v7942 = vld [vmem:[#allocation3 + $0xf0] sm:$0xff]
      %v7943 = vld [vmem:[#allocation3 + $0xf8] sm:$0x3]
      %v7944 = vld [vmem:[#allocation3 + $0x100] sm:$0xff]
      %v7945 = vld [vmem:[#allocation3 + $0x108] sm:$0x3]
      %v7946 = vld [vmem:[#allocation3 + $0x110] sm:$0xff]
      %v7947 = vld [vmem:[#allocation3 + $0x118] sm:$0x3]
      %v7948 = vld [vmem:[#allocation3 + $0x120] sm:$0xff]
      %v7949 = vld [vmem:[#allocation3 + $0x128] sm:$0x3]
      %v7950 = vld [vmem:[#allocation3 + $0x130] sm:$0xff]
      %v7951 = vld [vmem:[#allocation3 + $0x138] sm:$0x3]
      %7952 = vst.msk [vmem:[#allocation6] sm:$0xff] %vm7207, %v7912
      %7953 = vst.msk [vmem:[#allocation6 + $0x18] sm:$0xff] %vm7207, %v7914
      %7954 = vst.msk [vmem:[#allocation6 + $0x30] sm:$0xff] %vm7207, %v7916
      %7955 = vst.msk [vmem:[#allocation6 + $0x48] sm:$0xff] %vm7207, %v7918
      %7956 = vst.msk [vmem:[#allocation6 + $0x60] sm:$0xff] %vm7207, %v7920
      %7957 = vst.msk [vmem:[#allocation6 + $0x78] sm:$0xff] %vm7207, %v7922
      %7958 = vst.msk [vmem:[#allocation6 + $0x90] sm:$0xff] %vm7207, %v7924
      %7959 = vst.msk [vmem:[#allocation6 + $0xa8] sm:$0xff] %vm7207, %v7926
      %7960 = vst.msk [vmem:[#allocation6 + $0xc0] sm:$0xff] %vm7207, %v7932
      %7961 = vst.msk [vmem:[#allocation6 + $0xd8] sm:$0xff] %vm7207, %v7934
      %7962 = vst.msk [vmem:[#allocation6 + $0xf0] sm:$0xff] %vm7207, %v7936
      %7963 = vst.msk [vmem:[#allocation6 + $0x108] sm:$0xff] %vm7207, %v7938
      %7964 = vst.msk [vmem:[#allocation6 + $0x120] sm:$0xff] %vm7207, %v7940
      %7965 = vst.msk [vmem:[#allocation6 + $0x138] sm:$0xff] %vm7207, %v7942
      %7966 = vst.msk [vmem:[#allocation6 + $0x150] sm:$0xff] %vm7207, %v7944
      %7967 = vst.msk [vmem:[#allocation6 + $0x168] sm:$0xff] %vm7207, %v7946
      %v8000 = vrot.slane %v7912, 1
      %v8001 = vrot.slane %v7913, 1
      %v8002 = vsel %vm1746, %v8000, %v8001
      %v8003 = vrot.slane %v7914, 1
      %v8004 = vrot.slane %v7915, 1
      %v8005 = vsel %vm1746, %v8003, %v8004
      %v8006 = vrot.slane %v7916, 1
      %v8007 = vrot.slane %v7917, 1
      %v8008 = vsel %vm1746, %v8006, %v8007
      %v8009 = vrot.slane %v7918, 1
      %v8010 = vrot.slane %v7919, 1
      %v8011 = vsel %vm1746, %v8009, %v8010
      %v8012 = vrot.slane %v7920, 1
      %v8013 = vrot.slane %v7921, 1
      %v8014 = vsel %vm1746, %v8012, %v8013
      %v8015 = vrot.slane %v7922, 1
      %v8016 = vrot.slane %v7923, 1
      %v8017 = vsel %vm1746, %v8015, %v8016
      %v8018 = vrot.slane %v7924, 1
      %v8019 = vrot.slane %v7925, 1
      %v8020 = vsel %vm1746, %v8018, %v8019
      %v8021 = vrot.slane %v7926, 1
      %v8022 = vrot.slane %v7927, 1
      %v8023 = vsel %vm1746, %v8021, %v8022
      %v8024 = vrot.slane %v7932, 1
      %v8025 = vrot.slane %v7933, 1
      %v8026 = vsel %vm1746, %v8024, %v8025
      %v8027 = vrot.slane %v7934, 1
      %v8028 = vrot.slane %v7935, 1
      %v8029 = vsel %vm1746, %v8027, %v8028
      %v8030 = vrot.slane %v7936, 1
      %v8031 = vrot.slane %v7937, 1
      %v8032 = vsel %vm1746, %v8030, %v8031
      %v8033 = vrot.slane %v7938, 1
      %v8034 = vrot.slane %v7939, 1
      %v8035 = vsel %vm1746, %v8033, %v8034
      %v8036 = vrot.slane %v7940, 1
      %v8037 = vrot.slane %v7941, 1
      %v8038 = vsel %vm1746, %v8036, %v8037
      %v8039 = vrot.slane %v7942, 1
      %v8040 = vrot.slane %v7943, 1
      %v8041 = vsel %vm1746, %v8039, %v8040
      %v8042 = vrot.slane %v7944, 1
      %v8043 = vrot.slane %v7945, 1
      %v8044 = vsel %vm1746, %v8042, %v8043
      %v8045 = vrot.slane %v7946, 1
      %v8046 = vrot.slane %v7947, 1
      %v8047 = vsel %vm1746, %v8045, %v8046
      %8048 = vrot.lane.b32.xlu0 %v8002, 32
      %v8049 = vpop.permute.xlu0 %8048
      %8050 = vrot.lane.b32.xlu0 %v8005, 32
      %v8051 = vpop.permute.xlu0 %8050
      %8052 = vrot.lane.b32.xlu0 %v8008, 32
      %v8053 = vpop.permute.xlu0 %8052
      %8054 = vrot.lane.b32.xlu0 %v8011, 32
      %v8055 = vpop.permute.xlu0 %8054
      %8056 = vrot.lane.b32.xlu0 %v8014, 32
      %v8057 = vpop.permute.xlu0 %8056
      %8058 = vrot.lane.b32.xlu0 %v8017, 32
      %v8059 = vpop.permute.xlu0 %8058
      %8060 = vrot.lane.b32.xlu0 %v8020, 32
      %v8061 = vpop.permute.xlu0 %8060
      %8062 = vrot.lane.b32.xlu0 %v8023, 32
      %v8063 = vpop.permute.xlu0 %8062
      %8064 = vrot.lane.b32.xlu0 %v8026, 32
      %v8065 = vpop.permute.xlu0 %8064
      %8066 = vrot.lane.b32.xlu0 %v8029, 32
      %v8067 = vpop.permute.xlu0 %8066
      %8068 = vrot.lane.b32.xlu0 %v8032, 32
      %v8069 = vpop.permute.xlu0 %8068
      %8070 = vrot.lane.b32.xlu0 %v8035, 32
      %v8071 = vpop.permute.xlu0 %8070
      %8072 = vrot.lane.b32.xlu0 %v8038, 32
      %v8073 = vpop.permute.xlu0 %8072
      %8074 = vrot.lane.b32.xlu0 %v8041, 32
      %v8075 = vpop.permute.xlu0 %8074
      %8076 = vrot.lane.b32.xlu0 %v8044, 32
      %v8077 = vpop.permute.xlu0 %8076
      %8078 = vrot.lane.b32.xlu0 %v8047, 32
      %v8079 = vpop.permute.xlu0 %8078
      %vm8096 = vcmask 523520
      %8097 = vst.msk [vmem:[#allocation6] sm:$0xff] %vm8096, %v8049
      %8098 = vst.msk [vmem:[#allocation6 + $0x18] sm:$0xff] %vm8096, %v8051
      %8099 = vst.msk [vmem:[#allocation6 + $0x30] sm:$0xff] %vm8096, %v8053
      %8100 = vst.msk [vmem:[#allocation6 + $0x48] sm:$0xff] %vm8096, %v8055
      %8101 = vst.msk [vmem:[#allocation6 + $0x60] sm:$0xff] %vm8096, %v8057
      %8102 = vst.msk [vmem:[#allocation6 + $0x78] sm:$0xff] %vm8096, %v8059
      %8103 = vst.msk [vmem:[#allocation6 + $0x90] sm:$0xff] %vm8096, %v8061
      %8104 = vst.msk [vmem:[#allocation6 + $0xa8] sm:$0xff] %vm8096, %v8063
      %8105 = vst.msk [vmem:[#allocation6 + $0xc0] sm:$0xff] %vm8096, %v8065
      %8106 = vst.msk [vmem:[#allocation6 + $0xd8] sm:$0xff] %vm8096, %v8067
      %8107 = vst.msk [vmem:[#allocation6 + $0xf0] sm:$0xff] %vm8096, %v8069
      %8108 = vst.msk [vmem:[#allocation6 + $0x108] sm:$0xff] %vm8096, %v8071
      %8109 = vst.msk [vmem:[#allocation6 + $0x120] sm:$0xff] %vm8096, %v8073
      %8110 = vst.msk [vmem:[#allocation6 + $0x138] sm:$0xff] %vm8096, %v8075
      %8111 = vst.msk [vmem:[#allocation6 + $0x150] sm:$0xff] %vm8096, %v8077
      %8112 = vst.msk [vmem:[#allocation6 + $0x168] sm:$0xff] %vm8096, %v8079
      %v8113 = vrot.slane %v7912, 2
      %v8114 = vrot.slane %v7913, 2
      %v8115 = vsel %vm2229, %v8113, %v8114
      %v8116 = vrot.slane %v7914, 2
      %v8117 = vrot.slane %v7915, 2
      %v8118 = vsel %vm2229, %v8116, %v8117
      %v8119 = vrot.slane %v7916, 2
      %v8120 = vrot.slane %v7917, 2
      %v8121 = vsel %vm2229, %v8119, %v8120
      %v8122 = vrot.slane %v7918, 2
      %v8123 = vrot.slane %v7919, 2
      %v8124 = vsel %vm2229, %v8122, %v8123
      %v8125 = vrot.slane %v7920, 2
      %v8126 = vrot.slane %v7921, 2
      %v8127 = vsel %vm2229, %v8125, %v8126
      %v8128 = vrot.slane %v7922, 2
      %v8129 = vrot.slane %v7923, 2
      %v8130 = vsel %vm2229, %v8128, %v8129
      %v8131 = vrot.slane %v7924, 2
      %v8132 = vrot.slane %v7925, 2
      %v8133 = vsel %vm2229, %v8131, %v8132
      %v8134 = vrot.slane %v7926, 2
      %v8135 = vrot.slane %v7927, 2
      %v8136 = vsel %vm2229, %v8134, %v8135
      %v8137 = vrot.slane %v7932, 2
      %v8138 = vrot.slane %v7933, 2
      %v8139 = vsel %vm2229, %v8137, %v8138
      %v8140 = vrot.slane %v7934, 2
      %v8141 = vrot.slane %v7935, 2
      %v8142 = vsel %vm2229, %v8140, %v8141
      %v8143 = vrot.slane %v7936, 2
      %v8144 = vrot.slane %v7937, 2
      %v8145 = vsel %vm2229, %v8143, %v8144
      %v8146 = vrot.slane %v7938, 2
      %v8147 = vrot.slane %v7939, 2
      %v8148 = vsel %vm2229, %v8146, %v8147
      %v8149 = vrot.slane %v7940, 2
      %v8150 = vrot.slane %v7941, 2
      %v8151 = vsel %vm2229, %v8149, %v8150
      %v8152 = vrot.slane %v7942, 2
      %v8153 = vrot.slane %v7943, 2
      %v8154 = vsel %vm2229, %v8152, %v8153
      %v8155 = vrot.slane %v7944, 2
      %v8156 = vrot.slane %v7945, 2
      %v8157 = vsel %vm2229, %v8155, %v8156
      %v8158 = vrot.slane %v7946, 2
      %v8159 = vrot.slane %v7947, 2
      %v8160 = vsel %vm2229, %v8158, %v8159
      %8161 = vrot.lane.b32.xlu0 %v8115, 64
      %v8162 = vpop.permute.xlu0 %8161
      %8163 = vrot.lane.b32.xlu0 %v8118, 64
      %v8164 = vpop.permute.xlu0 %8163
      %8165 = vrot.lane.b32.xlu0 %v8121, 64
      %v8166 = vpop.permute.xlu0 %8165
      %8167 = vrot.lane.b32.xlu0 %v8124, 64
      %v8168 = vpop.permute.xlu0 %8167
      %8169 = vrot.lane.b32.xlu0 %v8127, 64
      %v8170 = vpop.permute.xlu0 %8169
      %8171 = vrot.lane.b32.xlu0 %v8130, 64
      %v8172 = vpop.permute.xlu0 %8171
      %8173 = vrot.lane.b32.xlu0 %v8133, 64
      %v8174 = vpop.permute.xlu0 %8173
      %8175 = vrot.lane.b32.xlu0 %v8136, 64
      %v8176 = vpop.permute.xlu0 %8175
      %8177 = vrot.lane.b32.xlu0 %v8139, 64
      %v8178 = vpop.permute.xlu0 %8177
      %8179 = vrot.lane.b32.xlu0 %v8142, 64
      %v8180 = vpop.permute.xlu0 %8179
      %8181 = vrot.lane.b32.xlu0 %v8145, 64
      %v8182 = vpop.permute.xlu0 %8181
      %8183 = vrot.lane.b32.xlu0 %v8148, 64
      %v8184 = vpop.permute.xlu0 %8183
      %8185 = vrot.lane.b32.xlu0 %v8151, 64
      %v8186 = vpop.permute.xlu0 %8185
      %8187 = vrot.lane.b32.xlu0 %v8154, 64
      %v8188 = vpop.permute.xlu0 %8187
      %8189 = vrot.lane.b32.xlu0 %v8157, 64
      %v8190 = vpop.permute.xlu0 %8189
      %8191 = vrot.lane.b32.xlu0 %v8160, 64
      %v8192 = vpop.permute.xlu0 %8191
      %vm8209 = vcmask 785920
      %8210 = vst.msk [vmem:[#allocation6] sm:$0xff] %vm8209, %v8162
      %8211 = vst.msk [vmem:[#allocation6 + $0x18] sm:$0xff] %vm8209, %v8164
      %8212 = vst.msk [vmem:[#allocation6 + $0x30] sm:$0xff] %vm8209, %v8166
      %8213 = vst.msk [vmem:[#allocation6 + $0x48] sm:$0xff] %vm8209, %v8168
      %8214 = vst.msk [vmem:[#allocation6 + $0x60] sm:$0xff] %vm8209, %v8170
      %8215 = vst.msk [vmem:[#allocation6 + $0x78] sm:$0xff] %vm8209, %v8172
      %8216 = vst.msk [vmem:[#allocation6 + $0x90] sm:$0xff] %vm8209, %v8174
      %8217 = vst.msk [vmem:[#allocation6 + $0xa8] sm:$0xff] %vm8209, %v8176
      %8218 = vst.msk [vmem:[#allocation6 + $0xc0] sm:$0xff] %vm8209, %v8178
      %8219 = vst.msk [vmem:[#allocation6 + $0xd8] sm:$0xff] %vm8209, %v8180
      %8220 = vst.msk [vmem:[#allocation6 + $0xf0] sm:$0xff] %vm8209, %v8182
      %8221 = vst.msk [vmem:[#allocation6 + $0x108] sm:$0xff] %vm8209, %v8184
      %8222 = vst.msk [vmem:[#allocation6 + $0x120] sm:$0xff] %vm8209, %v8186
      %8223 = vst.msk [vmem:[#allocation6 + $0x138] sm:$0xff] %vm8209, %v8188
      %8224 = vst.msk [vmem:[#allocation6 + $0x150] sm:$0xff] %vm8209, %v8190
      %8225 = vst.msk [vmem:[#allocation6 + $0x168] sm:$0xff] %vm8209, %v8192
      %8228 = vrot.lane.b32.xlu0 %v7914, 96
      %v8229 = vpop.permute.xlu0 %8228
      %8230 = vrot.lane.b32.xlu0 %v7916, 96
      %v8231 = vpop.permute.xlu0 %8230
      %8232 = vrot.lane.b32.xlu0 %v7918, 96
      %v8233 = vpop.permute.xlu0 %8232
      %8234 = vrot.lane.b32.xlu0 %v7920, 96
      %v8235 = vpop.permute.xlu0 %8234
      %8236 = vrot.lane.b32.xlu0 %v7922, 96
      %v8237 = vpop.permute.xlu0 %8236
      %8238 = vrot.lane.b32.xlu0 %v7924, 96
      %v8239 = vpop.permute.xlu0 %8238
      %8240 = vrot.lane.b32.xlu0 %v7926, 96
      %v8241 = vpop.permute.xlu0 %8240
      %8242 = vrot.lane.b32.xlu0 %v7928, 96
      %v8243 = vpop.permute.xlu0 %8242
      %8244 = vrot.lane.b32.xlu0 %v7934, 96
      %v8245 = vpop.permute.xlu0 %8244
      %8246 = vrot.lane.b32.xlu0 %v7936, 96
      %v8247 = vpop.permute.xlu0 %8246
      %8248 = vrot.lane.b32.xlu0 %v7938, 96
      %v8249 = vpop.permute.xlu0 %8248
      %8250 = vrot.lane.b32.xlu0 %v7940, 96
      %v8251 = vpop.permute.xlu0 %8250
      %8252 = vrot.lane.b32.xlu0 %v7942, 96
      %v8253 = vpop.permute.xlu0 %8252
      %8254 = vrot.lane.b32.xlu0 %v7944, 96
      %v8255 = vpop.permute.xlu0 %8254
      %8256 = vrot.lane.b32.xlu0 %v7946, 96
      %v8257 = vpop.permute.xlu0 %8256
      %8258 = vrot.lane.b32.xlu0 %v7948, 96
      %v8259 = vpop.permute.xlu0 %8258
      %vm8276 = vcmask 1048320
      %8277 = vst.msk [vmem:[#allocation6] sm:$0xff] %vm8276, %v8229
      %8278 = vst.msk [vmem:[#allocation6 + $0x18] sm:$0xff] %vm8276, %v8231
      %8279 = vst.msk [vmem:[#allocation6 + $0x30] sm:$0xff] %vm8276, %v8233
      %8280 = vst.msk [vmem:[#allocation6 + $0x48] sm:$0xff] %vm8276, %v8235
      %8281 = vst.msk [vmem:[#allocation6 + $0x60] sm:$0xff] %vm8276, %v8237
      %8282 = vst.msk [vmem:[#allocation6 + $0x78] sm:$0xff] %vm8276, %v8239
      %8283 = vst.msk [vmem:[#allocation6 + $0x90] sm:$0xff] %vm8276, %v8241
      %8284 = vst.msk [vmem:[#allocation6 + $0xa8] sm:$0xff] %vm8276, %v8243
      %8285 = vst.msk [vmem:[#allocation6 + $0xc0] sm:$0xff] %vm8276, %v8245
      %8286 = vst.msk [vmem:[#allocation6 + $0xd8] sm:$0xff] %vm8276, %v8247
      %8287 = vst.msk [vmem:[#allocation6 + $0xf0] sm:$0xff] %vm8276, %v8249
      %8288 = vst.msk [vmem:[#allocation6 + $0x108] sm:$0xff] %vm8276, %v8251
      %8289 = vst.msk [vmem:[#allocation6 + $0x120] sm:$0xff] %vm8276, %v8253
      %8290 = vst.msk [vmem:[#allocation6 + $0x138] sm:$0xff] %vm8276, %v8255
      %8291 = vst.msk [vmem:[#allocation6 + $0x150] sm:$0xff] %vm8276, %v8257
      %8292 = vst.msk [vmem:[#allocation6 + $0x168] sm:$0xff] %vm8276, %v8259
      %v8295 = vrot.slane %v7928, 1
      %v8296 = vrot.slane %v7929, 1
      %v8297 = vsel %vm1746, %v8295, %v8296
      %v8298 = vrot.slane %v7948, 1
      %v8299 = vrot.slane %v7949, 1
      %v8300 = vsel %vm1746, %v8298, %v8299
      %8317 = vst.msk [vmem:[#allocation6 + $0x8] sm:$0xff] %vm7207, %v8005
      %8318 = vst.msk [vmem:[#allocation6 + $0x20] sm:$0xff] %vm7207, %v8008
      %8319 = vst.msk [vmem:[#allocation6 + $0x38] sm:$0xff] %vm7207, %v8011
      %8320 = vst.msk [vmem:[#allocation6 + $0x50] sm:$0xff] %vm7207, %v8014
      %8321 = vst.msk [vmem:[#allocation6 + $0x68] sm:$0xff] %vm7207, %v8017
      %8322 = vst.msk [vmem:[#allocation6 + $0x80] sm:$0xff] %vm7207, %v8020
      %8323 = vst.msk [vmem:[#allocation6 + $0x98] sm:$0xff] %vm7207, %v8023
      %8324 = vst.msk [vmem:[#allocation6 + $0xb0] sm:$0xff] %vm7207, %v8297
      %8325 = vst.msk [vmem:[#allocation6 + $0xc8] sm:$0xff] %vm7207, %v8029
      %8326 = vst.msk [vmem:[#allocation6 + $0xe0] sm:$0xff] %vm7207, %v8032
      %8327 = vst.msk [vmem:[#allocation6 + $0xf8] sm:$0xff] %vm7207, %v8035
      %8328 = vst.msk [vmem:[#allocation6 + $0x110] sm:$0xff] %vm7207, %v8038
      %8329 = vst.msk [vmem:[#allocation6 + $0x128] sm:$0xff] %vm7207, %v8041
      %8330 = vst.msk [vmem:[#allocation6 + $0x140] sm:$0xff] %vm7207, %v8044
      %8331 = vst.msk [vmem:[#allocation6 + $0x158] sm:$0xff] %vm7207, %v8047
      %8332 = vst.msk [vmem:[#allocation6 + $0x170] sm:$0xff] %vm7207, %v8300
      %v8333 = vrot.slane %v7928, 2
      %v8334 = vrot.slane %v7929, 2
      %v8335 = vsel %vm2229, %v8333, %v8334
      %v8336 = vrot.slane %v7948, 2
      %v8337 = vrot.slane %v7949, 2
      %v8338 = vsel %vm2229, %v8336, %v8337
      %8339 = vrot.lane.b32.xlu0 %v8118, 32
      %v8340 = vpop.permute.xlu0 %8339
      %8341 = vrot.lane.b32.xlu0 %v8121, 32
      %v8342 = vpop.permute.xlu0 %8341
      %8343 = vrot.lane.b32.xlu0 %v8124, 32
      %v8344 = vpop.permute.xlu0 %8343
      %8345 = vrot.lane.b32.xlu0 %v8127, 32
      %v8346 = vpop.permute.xlu0 %8345
      %8347 = vrot.lane.b32.xlu0 %v8130, 32
      %v8348 = vpop.permute.xlu0 %8347
      %8349 = vrot.lane.b32.xlu0 %v8133, 32
      %v8350 = vpop.permute.xlu0 %8349
      %8351 = vrot.lane.b32.xlu0 %v8136, 32
      %v8352 = vpop.permute.xlu0 %8351
      %8353 = vrot.lane.b32.xlu0 %v8335, 32
      %v8354 = vpop.permute.xlu0 %8353
      %8355 = vrot.lane.b32.xlu0 %v8142, 32
      %v8356 = vpop.permute.xlu0 %8355
      %8357 = vrot.lane.b32.xlu0 %v8145, 32
      %v8358 = vpop.permute.xlu0 %8357
      %8359 = vrot.lane.b32.xlu0 %v8148, 32
      %v8360 = vpop.permute.xlu0 %8359
      %8361 = vrot.lane.b32.xlu0 %v8151, 32
      %v8362 = vpop.permute.xlu0 %8361
      %8363 = vrot.lane.b32.xlu0 %v8154, 32
      %v8364 = vpop.permute.xlu0 %8363
      %8365 = vrot.lane.b32.xlu0 %v8157, 32
      %v8366 = vpop.permute.xlu0 %8365
      %8367 = vrot.lane.b32.xlu0 %v8160, 32
      %v8368 = vpop.permute.xlu0 %8367
      %8369 = vrot.lane.b32.xlu0 %v8338, 32
      %v8370 = vpop.permute.xlu0 %8369
      %8387 = vst.msk [vmem:[#allocation6 + $0x8] sm:$0xff] %vm8096, %v8340
      %8388 = vst.msk [vmem:[#allocation6 + $0x20] sm:$0xff] %vm8096, %v8342
      %8389 = vst.msk [vmem:[#allocation6 + $0x38] sm:$0xff] %vm8096, %v8344
      %8390 = vst.msk [vmem:[#allocation6 + $0x50] sm:$0xff] %vm8096, %v8346
      %8391 = vst.msk [vmem:[#allocation6 + $0x68] sm:$0xff] %vm8096, %v8348
      %8392 = vst.msk [vmem:[#allocation6 + $0x80] sm:$0xff] %vm8096, %v8350
      %8393 = vst.msk [vmem:[#allocation6 + $0x98] sm:$0xff] %vm8096, %v8352
      %8394 = vst.msk [vmem:[#allocation6 + $0xb0] sm:$0xff] %vm8096, %v8354
      %8395 = vst.msk [vmem:[#allocation6 + $0xc8] sm:$0xff] %vm8096, %v8356
      %8396 = vst.msk [vmem:[#allocation6 + $0xe0] sm:$0xff] %vm8096, %v8358
      %8397 = vst.msk [vmem:[#allocation6 + $0xf8] sm:$0xff] %vm8096, %v8360
      %8398 = vst.msk [vmem:[#allocation6 + $0x110] sm:$0xff] %vm8096, %v8362
      %8399 = vst.msk [vmem:[#allocation6 + $0x128] sm:$0xff] %vm8096, %v8364
      %8400 = vst.msk [vmem:[#allocation6 + $0x140] sm:$0xff] %vm8096, %v8366
      %8401 = vst.msk [vmem:[#allocation6 + $0x158] sm:$0xff] %vm8096, %v8368
      %8402 = vst.msk [vmem:[#allocation6 + $0x170] sm:$0xff] %vm8096, %v8370
      %8405 = vrot.lane.b32.xlu0 %v7916, 64
      %v8406 = vpop.permute.xlu0 %8405
      %8407 = vrot.lane.b32.xlu0 %v7918, 64
      %v8408 = vpop.permute.xlu0 %8407
      %8409 = vrot.lane.b32.xlu0 %v7920, 64
      %v8410 = vpop.permute.xlu0 %8409
      %8411 = vrot.lane.b32.xlu0 %v7922, 64
      %v8412 = vpop.permute.xlu0 %8411
      %8413 = vrot.lane.b32.xlu0 %v7924, 64
      %v8414 = vpop.permute.xlu0 %8413
      %8415 = vrot.lane.b32.xlu0 %v7926, 64
      %v8416 = vpop.permute.xlu0 %8415
      %8417 = vrot.lane.b32.xlu0 %v7928, 64
      %v8418 = vpop.permute.xlu0 %8417
      %8419 = vrot.lane.b32.xlu0 %v7930, 64
      %v8420 = vpop.permute.xlu0 %8419
      %8421 = vrot.lane.b32.xlu0 %v7936, 64
      %v8422 = vpop.permute.xlu0 %8421
      %8423 = vrot.lane.b32.xlu0 %v7938, 64
      %v8424 = vpop.permute.xlu0 %8423
      %8425 = vrot.lane.b32.xlu0 %v7940, 64
      %v8426 = vpop.permute.xlu0 %8425
      %8427 = vrot.lane.b32.xlu0 %v7942, 64
      %v8428 = vpop.permute.xlu0 %8427
      %8429 = vrot.lane.b32.xlu0 %v7944, 64
      %v8430 = vpop.permute.xlu0 %8429
      %8431 = vrot.lane.b32.xlu0 %v7946, 64
      %v8432 = vpop.permute.xlu0 %8431
      %8433 = vrot.lane.b32.xlu0 %v7948, 64
      %v8434 = vpop.permute.xlu0 %8433
      %8435 = vrot.lane.b32.xlu0 %v7950, 64
      %v8436 = vpop.permute.xlu0 %8435
      %8453 = vst.msk [vmem:[#allocation6 + $0x8] sm:$0xff] %vm8209, %v8406
      %8454 = vst.msk [vmem:[#allocation6 + $0x20] sm:$0xff] %vm8209, %v8408
      %8455 = vst.msk [vmem:[#allocation6 + $0x38] sm:$0xff] %vm8209, %v8410
      %8456 = vst.msk [vmem:[#allocation6 + $0x50] sm:$0xff] %vm8209, %v8412
      %8457 = vst.msk [vmem:[#allocation6 + $0x68] sm:$0xff] %vm8209, %v8414
      %8458 = vst.msk [vmem:[#allocation6 + $0x80] sm:$0xff] %vm8209, %v8416
      %8459 = vst.msk [vmem:[#allocation6 + $0x98] sm:$0xff] %vm8209, %v8418
      %8460 = vst.msk [vmem:[#allocation6 + $0xb0] sm:$0xff] %vm8209, %v8420
      %8461 = vst.msk [vmem:[#allocation6 + $0xc8] sm:$0xff] %vm8209, %v8422
      %8462 = vst.msk [vmem:[#allocation6 + $0xe0] sm:$0xff] %vm8209, %v8424
      %8463 = vst.msk [vmem:[#allocation6 + $0xf8] sm:$0xff] %vm8209, %v8426
      %8464 = vst.msk [vmem:[#allocation6 + $0x110] sm:$0xff] %vm8209, %v8428
      %8465 = vst.msk [vmem:[#allocation6 + $0x128] sm:$0xff] %vm8209, %v8430
      %8466 = vst.msk [vmem:[#allocation6 + $0x140] sm:$0xff] %vm8209, %v8432
      %8467 = vst.msk [vmem:[#allocation6 + $0x158] sm:$0xff] %vm8209, %v8434
      %8468 = vst.msk [vmem:[#allocation6 + $0x170] sm:$0xff] %vm8209, %v8436
      %v8471 = vrot.slane %v7930, 1
      %v8472 = vrot.slane %v7931, 1
      %v8473 = vsel %vm1746, %v8471, %v8472
      %v8474 = vrot.slane %v7950, 1
      %v8475 = vrot.slane %v7951, 1
      %v8476 = vsel %vm1746, %v8474, %v8475
      %8477 = vrot.lane.b32.xlu0 %v8008, 96
      %v8478 = vpop.permute.xlu0 %8477
      %8479 = vrot.lane.b32.xlu0 %v8011, 96
      %v8480 = vpop.permute.xlu0 %8479
      %8481 = vrot.lane.b32.xlu0 %v8014, 96
      %v8482 = vpop.permute.xlu0 %8481
      %8483 = vrot.lane.b32.xlu0 %v8017, 96
      %v8484 = vpop.permute.xlu0 %8483
      %8485 = vrot.lane.b32.xlu0 %v8020, 96
      %v8486 = vpop.permute.xlu0 %8485
      %8487 = vrot.lane.b32.xlu0 %v8023, 96
      %v8488 = vpop.permute.xlu0 %8487
      %8489 = vrot.lane.b32.xlu0 %v8297, 96
      %v8490 = vpop.permute.xlu0 %8489
      %8491 = vrot.lane.b32.xlu0 %v8473, 96
      %v8492 = vpop.permute.xlu0 %8491
      %8493 = vrot.lane.b32.xlu0 %v8032, 96
      %v8494 = vpop.permute.xlu0 %8493
      %8495 = vrot.lane.b32.xlu0 %v8035, 96
      %v8496 = vpop.permute.xlu0 %8495
      %8497 = vrot.lane.b32.xlu0 %v8038, 96
      %v8498 = vpop.permute.xlu0 %8497
      %8499 = vrot.lane.b32.xlu0 %v8041, 96
      %v8500 = vpop.permute.xlu0 %8499
      %8501 = vrot.lane.b32.xlu0 %v8044, 96
      %v8502 = vpop.permute.xlu0 %8501
      %8503 = vrot.lane.b32.xlu0 %v8047, 96
      %v8504 = vpop.permute.xlu0 %8503
      %8505 = vrot.lane.b32.xlu0 %v8300, 96
      %v8506 = vpop.permute.xlu0 %8505
      %8507 = vrot.lane.b32.xlu0 %v8476, 96
      %v8508 = vpop.permute.xlu0 %8507
      %8525 = vst.msk [vmem:[#allocation6 + $0x8] sm:$0xff] %vm8276, %v8478
      %8526 = vst.msk [vmem:[#allocation6 + $0x20] sm:$0xff] %vm8276, %v8480
      %8527 = vst.msk [vmem:[#allocation6 + $0x38] sm:$0xff] %vm8276, %v8482
      %8528 = vst.msk [vmem:[#allocation6 + $0x50] sm:$0xff] %vm8276, %v8484
      %8529 = vst.msk [vmem:[#allocation6 + $0x68] sm:$0xff] %vm8276, %v8486
      %8530 = vst.msk [vmem:[#allocation6 + $0x80] sm:$0xff] %vm8276, %v8488
      %8531 = vst.msk [vmem:[#allocation6 + $0x98] sm:$0xff] %vm8276, %v8490
      %8532 = vst.msk [vmem:[#allocation6 + $0xb0] sm:$0xff] %vm8276, %v8492
      %8533 = vst.msk [vmem:[#allocation6 + $0xc8] sm:$0xff] %vm8276, %v8494
      %8534 = vst.msk [vmem:[#allocation6 + $0xe0] sm:$0xff] %vm8276, %v8496
      %8535 = vst.msk [vmem:[#allocation6 + $0xf8] sm:$0xff] %vm8276, %v8498
      %8536 = vst.msk [vmem:[#allocation6 + $0x110] sm:$0xff] %vm8276, %v8500
      %8537 = vst.msk [vmem:[#allocation6 + $0x128] sm:$0xff] %vm8276, %v8502
      %8538 = vst.msk [vmem:[#allocation6 + $0x140] sm:$0xff] %vm8276, %v8504
      %8539 = vst.msk [vmem:[#allocation6 + $0x158] sm:$0xff] %vm8276, %v8506
      %8540 = vst.msk [vmem:[#allocation6 + $0x170] sm:$0xff] %vm8276, %v8508
      %v8541 = vrot.slane %v7930, 2
      %v8542 = vrot.slane %v7931, 2
      %v8543 = vsel %vm2229, %v8541, %v8542
      %v8544 = vrot.slane %v7950, 2
      %v8545 = vrot.slane %v7951, 2
      %v8546 = vsel %vm2229, %v8544, %v8545
      %8563 = vst.msk [vmem:[#allocation6 + $0x10] sm:$0xff] %vm7207, %v8121
      %8564 = vst.msk [vmem:[#allocation6 + $0x28] sm:$0xff] %vm7207, %v8124
      %8565 = vst.msk [vmem:[#allocation6 + $0x40] sm:$0xff] %vm7207, %v8127
      %8566 = vst.msk [vmem:[#allocation6 + $0x58] sm:$0xff] %vm7207, %v8130
      %8567 = vst.msk [vmem:[#allocation6 + $0x70] sm:$0xff] %vm7207, %v8133
      %8568 = vst.msk [vmem:[#allocation6 + $0x88] sm:$0xff] %vm7207, %v8136
      %8569 = vst.msk [vmem:[#allocation6 + $0xa0] sm:$0xff] %vm7207, %v8335
      %8570 = vst.msk [vmem:[#allocation6 + $0xb8] sm:$0xff] %vm7207, %v8543
      %8571 = vst.msk [vmem:[#allocation6 + $0xd0] sm:$0xff] %vm7207, %v8145
      %8572 = vst.msk [vmem:[#allocation6 + $0xe8] sm:$0xff] %vm7207, %v8148
      %8573 = vst.msk [vmem:[#allocation6 + $0x100] sm:$0xff] %vm7207, %v8151
      %8574 = vst.msk [vmem:[#allocation6 + $0x118] sm:$0xff] %vm7207, %v8154
      %8575 = vst.msk [vmem:[#allocation6 + $0x130] sm:$0xff] %vm7207, %v8157
      %8576 = vst.msk [vmem:[#allocation6 + $0x148] sm:$0xff] %vm7207, %v8160
      %8577 = vst.msk [vmem:[#allocation6 + $0x160] sm:$0xff] %vm7207, %v8338
      %8578 = vst.msk [vmem:[#allocation6 + $0x178] sm:$0xff] %vm7207, %v8546
      %v8579 = vld [vmem:[#allocation6] sm:$0xff]
      %v8580 = vld [vmem:[#allocation6 + $0x8] sm:$0xff]
      %v8581 = vld [vmem:[#allocation6 + $0x10] sm:$0xff]
      %v8582 = vld [vmem:[#allocation6 + $0x18] sm:$0xff]
      %v8583 = vld [vmem:[#allocation6 + $0x20] sm:$0xff]
      %v8584 = vld [vmem:[#allocation6 + $0x28] sm:$0xff]
      %v8585 = vld [vmem:[#allocation6 + $0x30] sm:$0xff]
      %v8586 = vld [vmem:[#allocation6 + $0x38] sm:$0xff]
      %v8587 = vld [vmem:[#allocation6 + $0x40] sm:$0xff]
      %v8588 = vld [vmem:[#allocation6 + $0x48] sm:$0xff]
      %v8589 = vld [vmem:[#allocation6 + $0x50] sm:$0xff]
      %v8590 = vld [vmem:[#allocation6 + $0x58] sm:$0xff]
      %v8591 = vld [vmem:[#allocation6 + $0x60] sm:$0xff]
      %v8592 = vld [vmem:[#allocation6 + $0x68] sm:$0xff]
      %v8593 = vld [vmem:[#allocation6 + $0x70] sm:$0xff]
      %v8594 = vld [vmem:[#allocation6 + $0x78] sm:$0xff]
      %v8595 = vld [vmem:[#allocation6 + $0x80] sm:$0xff]
      %v8596 = vld [vmem:[#allocation6 + $0x88] sm:$0xff]
      %v8597 = vld [vmem:[#allocation6 + $0x90] sm:$0xff]
      %v8598 = vld [vmem:[#allocation6 + $0x98] sm:$0xff]
      %v8599 = vld [vmem:[#allocation6 + $0xa0] sm:$0xff]
      %v8600 = vld [vmem:[#allocation6 + $0xa8] sm:$0xff]
      %v8601 = vld [vmem:[#allocation6 + $0xb0] sm:$0xff]
      %v8602 = vld [vmem:[#allocation6 + $0xb8] sm:$0xff]
      %v8603 = vld [vmem:[#allocation6 + $0xc0] sm:$0xff]
      %v8604 = vld [vmem:[#allocation6 + $0xc8] sm:$0xff]
      %v8605 = vld [vmem:[#allocation6 + $0xd0] sm:$0xff]
      %v8606 = vld [vmem:[#allocation6 + $0xd8] sm:$0xff]
      %v8607 = vld [vmem:[#allocation6 + $0xe0] sm:$0xff]
      %v8608 = vld [vmem:[#allocation6 + $0xe8] sm:$0xff]
      %v8609 = vld [vmem:[#allocation6 + $0xf0] sm:$0xff]
      %v8610 = vld [vmem:[#allocation6 + $0xf8] sm:$0xff]
      %v8611 = vld [vmem:[#allocation6 + $0x100] sm:$0xff]
      %v8612 = vld [vmem:[#allocation6 + $0x108] sm:$0xff]
      %v8613 = vld [vmem:[#allocation6 + $0x110] sm:$0xff]
      %v8614 = vld [vmem:[#allocation6 + $0x118] sm:$0xff]
      %v8615 = vld [vmem:[#allocation6 + $0x120] sm:$0xff]
      %v8616 = vld [vmem:[#allocation6 + $0x128] sm:$0xff]
      %v8617 = vld [vmem:[#allocation6 + $0x130] sm:$0xff]
      %v8618 = vld [vmem:[#allocation6 + $0x138] sm:$0xff]
      %v8619 = vld [vmem:[#allocation6 + $0x140] sm:$0xff]
      %v8620 = vld [vmem:[#allocation6 + $0x148] sm:$0xff]
      %v8621 = vld [vmem:[#allocation6 + $0x150] sm:$0xff]
      %v8622 = vld [vmem:[#allocation6 + $0x158] sm:$0xff]
      %v8623 = vld [vmem:[#allocation6 + $0x160] sm:$0xff]
      %v8624 = vld [vmem:[#allocation6 + $0x168] sm:$0xff]
      %v8625 = vld [vmem:[#allocation6 + $0x170] sm:$0xff]
      %v8626 = vld [vmem:[#allocation6 + $0x178] sm:$0xff]
      %v8627 = vld [vmem:[%s5] sm:$0xff]
      %v8628 = vld [vmem:[%s5 + $0x8] sm:$0xff]
      %v8629 = vld [vmem:[%s5 + $0x10] sm:$0xff]
      %v8630 = vld [vmem:[%s5 + $0x18] sm:$0xff]
      %v8631 = vld [vmem:[%s5 + $0x20] sm:$0xff]
      %v8632 = vld [vmem:[%s5 + $0x28] sm:$0xff]
      %v8633 = vld [vmem:[%s5 + $0x30] sm:$0xff]
      %v8634 = vld [vmem:[%s5 + $0x38] sm:$0xff]
      %v8635 = vld [vmem:[%s5 + $0x40] sm:$0xff]
      %v8636 = vld [vmem:[%s5 + $0x48] sm:$0xff]
      %v8637 = vld [vmem:[%s5 + $0x50] sm:$0xff]
      %v8638 = vld [vmem:[%s5 + $0x58] sm:$0xff]
      %v8639 = vld [vmem:[%s5 + $0x60] sm:$0xff]
      %v8640 = vld [vmem:[%s5 + $0x68] sm:$0xff]
      %v8641 = vld [vmem:[%s5 + $0x70] sm:$0xff]
      %v8642 = vld [vmem:[%s5 + $0x78] sm:$0xff]
      %v8643 = vld [vmem:[%s5 + $0x80] sm:$0xff]
      %v8644 = vld [vmem:[%s5 + $0x88] sm:$0xff]
      %v8645 = vld [vmem:[%s5 + $0x90] sm:$0xff]
      %v8646 = vld [vmem:[%s5 + $0x98] sm:$0xff]
      %v8647 = vld [vmem:[%s5 + $0xa0] sm:$0xff]
      %v8648 = vld [vmem:[%s5 + $0xa8] sm:$0xff]
      %v8649 = vld [vmem:[%s5 + $0xb0] sm:$0xff]
      %v8650 = vld [vmem:[%s5 + $0xb8] sm:$0xff]
      %v8651 = vld [vmem:[%s5 + $0xc0] sm:$0xff]
      %v8652 = vld [vmem:[%s5 + $0xc8] sm:$0xff]
      %v8653 = vld [vmem:[%s5 + $0xd0] sm:$0xff]
      %v8654 = vld [vmem:[%s5 + $0xd8] sm:$0xff]
      %v8655 = vld [vmem:[%s5 + $0xe0] sm:$0xff]
      %v8656 = vld [vmem:[%s5 + $0xe8] sm:$0xff]
      %v8657 = vld [vmem:[%s5 + $0xf0] sm:$0xff]
      %v8658 = vld [vmem:[%s5 + $0xf8] sm:$0xff]
      %v8659 = vld [vmem:[%s5 + $0x100] sm:$0xff]
      %v8660 = vld [vmem:[%s5 + $0x108] sm:$0xff]
      %v8661 = vld [vmem:[%s5 + $0x110] sm:$0xff]
      %v8662 = vld [vmem:[%s5 + $0x118] sm:$0xff]
      %v8664 = vsel %vm7207, %v8581, 0
      %v8667 = vsel %vm7207, %v8584, 0
      %v8670 = vsel %vm7207, %v8587, 0
      %v8673 = vsel %vm7207, %v8590, 0
      %v8676 = vsel %vm7207, %v8593, 0
      %v8679 = vsel %vm7207, %v8596, 0
      %v8682 = vsel %vm7207, %v8599, 0
      %v8685 = vsel %vm7207, %v8602, 0
      %v8688 = vsel %vm7207, %v8605, 0
      %v8691 = vsel %vm7207, %v8608, 0
      %v8694 = vsel %vm7207, %v8611, 0
      %v8697 = vsel %vm7207, %v8614, 0
      %v8700 = vsel %vm7207, %v8617, 0
      %v8703 = vsel %vm7207, %v8620, 0
      %v8706 = vsel %vm7207, %v8623, 0
      %v8709 = vsel %vm7207, %v8626, 0
      %8711 = vmatpush.msra.mxu0 %v8642
      %8712 = vmatpush.msra.mxu0 %v8641
      %8713 = vmatpush.msra.mxu0 %v8640
      %8714 = vmatpush.msra.mxu0 %v8639
      %8715 = vmatpush.msra.mxu0 %v8638
      %8716 = vmatpush.msra.mxu0 %v8637
      %8717 = vmatpush.msra.mxu0 %v8636
      %8718 = vmatpush.msra.mxu0 %v8635
      %8719 = vmatpush.msra.mxu0 %v8634
      %8720 = vmatpush.msra.mxu0 %v8633
      %8721 = vmatpush.msra.mxu0 %v8632
      %8722 = vmatpush.msra.mxu0 %v8631
      %8723 = vmatpush.msra.mxu0 %v8630
      %8724 = vmatpush.msra.mxu0 %v8629
      %8725 = vmatpush.msra.mxu0 %v8628
      %8726 = vmatpush.msra.mxu0 %v8627
      %8727 = vmatmul.f32.gmra.mxu0 %v8579
      %v8728 = vpop.f32.mrf.mxu0
      %v8729 = vadd.f32 0.0, %v8728
      %8730 = vmatmul.f32.gmra.mxu0 %v8582
      %v8731 = vpop.f32.mrf.mxu0
      %v8732 = vadd.f32 0.0, %v8731
      %8733 = vmatmul.f32.gmra.mxu0 %v8585
      %v8734 = vpop.f32.mrf.mxu0
      %v8735 = vadd.f32 0.0, %v8734
      %8736 = vmatmul.f32.gmra.mxu0 %v8588
      %v8737 = vpop.f32.mrf.mxu0
      %v8738 = vadd.f32 0.0, %v8737
      %8739 = vmatmul.f32.gmra.mxu0 %v8591
      %v8740 = vpop.f32.mrf.mxu0
      %v8741 = vadd.f32 0.0, %v8740
      %8742 = vmatmul.f32.gmra.mxu0 %v8594
      %v8743 = vpop.f32.mrf.mxu0
      %v8744 = vadd.f32 0.0, %v8743
      %8745 = vmatmul.f32.gmra.mxu0 %v8597
      %v8746 = vpop.f32.mrf.mxu0
      %v8747 = vadd.f32 0.0, %v8746
      %8748 = vmatmul.f32.gmra.mxu0 %v8600
      %v8749 = vpop.f32.mrf.mxu0
      %v8750 = vadd.f32 0.0, %v8749
      %8751 = vmatmul.f32.gmra.mxu0 %v8603
      %v8752 = vpop.f32.mrf.mxu0
      %v8753 = vadd.f32 0.0, %v8752
      %8754 = vmatmul.f32.gmra.mxu0 %v8606
      %v8755 = vpop.f32.mrf.mxu0
      %v8756 = vadd.f32 0.0, %v8755
      %8757 = vmatmul.f32.gmra.mxu0 %v8609
      %v8758 = vpop.f32.mrf.mxu0
      %v8759 = vadd.f32 0.0, %v8758
      %8760 = vmatmul.f32.gmra.mxu0 %v8612
      %v8761 = vpop.f32.mrf.mxu0
      %v8762 = vadd.f32 0.0, %v8761
      %8763 = vmatmul.f32.gmra.mxu0 %v8615
      %v8764 = vpop.f32.mrf.mxu0
      %v8765 = vadd.f32 0.0, %v8764
      %8766 = vmatmul.f32.gmra.mxu0 %v8618
      %v8767 = vpop.f32.mrf.mxu0
      %v8768 = vadd.f32 0.0, %v8767
      %8769 = vmatmul.f32.gmra.mxu0 %v8621
      %v8770 = vpop.f32.mrf.mxu0
      %v8771 = vadd.f32 0.0, %v8770
      %8772 = vmatmul.f32.gmra.mxu0 %v8624
      %v8773 = vpop.f32.mrf.mxu0
      %v8774 = vadd.f32 0.0, %v8773
      %8775 = vdwg.mxu0
      %8776 = vmatpush.msra.mxu0 %v8658
      %8777 = vmatpush.msra.mxu0 %v8657
      %8778 = vmatpush.msra.mxu0 %v8656
      %8779 = vmatpush.msra.mxu0 %v8655
      %8780 = vmatpush.msra.mxu0 %v8654
      %8781 = vmatpush.msra.mxu0 %v8653
      %8782 = vmatpush.msra.mxu0 %v8652
      %8783 = vmatpush.msra.mxu0 %v8651
      %8784 = vmatpush.msra.mxu0 %v8650
      %8785 = vmatpush.msra.mxu0 %v8649
      %8786 = vmatpush.msra.mxu0 %v8648
      %8787 = vmatpush.msra.mxu0 %v8647
      %8788 = vmatpush.msra.mxu0 %v8646
      %8789 = vmatpush.msra.mxu0 %v8645
      %8790 = vmatpush.msra.mxu0 %v8644
      %8791 = vmatpush.msra.mxu0 %v8643
      %8792 = vmatmul.f32.gmra.mxu0 %v8580
      %v8793 = vpop.f32.mrf.mxu0
      %v8794 = vadd.f32 %v8729, %v8793
      %8795 = vmatmul.f32.gmra.mxu0 %v8583
      %v8796 = vpop.f32.mrf.mxu0
      %v8797 = vadd.f32 %v8732, %v8796
      %8798 = vmatmul.f32.gmra.mxu0 %v8586
      %v8799 = vpop.f32.mrf.mxu0
      %v8800 = vadd.f32 %v8735, %v8799
      %8801 = vmatmul.f32.gmra.mxu0 %v8589
      %v8802 = vpop.f32.mrf.mxu0
      %v8803 = vadd.f32 %v8738, %v8802
      %8804 = vmatmul.f32.gmra.mxu0 %v8592
      %v8805 = vpop.f32.mrf.mxu0
      %v8806 = vadd.f32 %v8741, %v8805
      %8807 = vmatmul.f32.gmra.mxu0 %v8595
      %v8808 = vpop.f32.mrf.mxu0
      %v8809 = vadd.f32 %v8744, %v8808
      %8810 = vmatmul.f32.gmra.mxu0 %v8598
      %v8811 = vpop.f32.mrf.mxu0
      %v8812 = vadd.f32 %v8747, %v8811
      %8813 = vmatmul.f32.gmra.mxu0 %v8601
      %v8814 = vpop.f32.mrf.mxu0
      %v8815 = vadd.f32 %v8750, %v8814
      %8816 = vmatmul.f32.gmra.mxu0 %v8604
      %v8817 = vpop.f32.mrf.mxu0
      %v8818 = vadd.f32 %v8753, %v8817
      %8819 = vmatmul.f32.gmra.mxu0 %v8607
      %v8820 = vpop.f32.mrf.mxu0
      %v8821 = vadd.f32 %v8756, %v8820
      %8822 = vmatmul.f32.gmra.mxu0 %v8610
      %v8823 = vpop.f32.mrf.mxu0
      %v8824 = vadd.f32 %v8759, %v8823
      %8825 = vmatmul.f32.gmra.mxu0 %v8613
      %v8826 = vpop.f32.mrf.mxu0
      %v8827 = vadd.f32 %v8762, %v8826
      %8828 = vmatmul.f32.gmra.mxu0 %v8616
      %v8829 = vpop.f32.mrf.mxu0
      %v8830 = vadd.f32 %v8765, %v8829
      %8831 = vmatmul.f32.gmra.mxu0 %v8619
      %v8832 = vpop.f32.mrf.mxu0
      %v8833 = vadd.f32 %v8768, %v8832
      %8834 = vmatmul.f32.gmra.mxu0 %v8622
      %v8835 = vpop.f32.mrf.mxu0
      %v8836 = vadd.f32 %v8771, %v8835
      %8837 = vmatmul.f32.gmra.mxu0 %v8625
      %v8838 = vpop.f32.mrf.mxu0
      %v8839 = vadd.f32 %v8774, %v8838
      %8840 = vdwg.mxu0
      %8841 = vmatpush.msra.mxu0 0.0
      %8842 = vmatpush.msra.mxu0 0.0
      %8843 = vmatpush.msra.mxu0 0.0
      %8844 = vmatpush.msra.mxu0 0.0
      %8845 = vmatpush.msra.mxu0 0.0
      %8846 = vmatpush.msra.mxu0 0.0
      %8847 = vmatpush.msra.mxu0 0.0
      %8848 = vmatpush.msra.mxu0 0.0
      %8849 = vmatpush.msra.mxu0 0.0
      %8850 = vmatpush.msra.mxu0 0.0
      %8851 = vmatpush.msra.mxu0 0.0
      %8852 = vmatpush.msra.mxu0 0.0
      %8853 = vmatpush.msra.mxu0 %v8662
      %8854 = vmatpush.msra.mxu0 %v8661
      %8855 = vmatpush.msra.mxu0 %v8660
      %8856 = vmatpush.msra.mxu0 %v8659
      %8857 = vmatmul.f32.gmra.mxu0 %v8664
      %v8858 = vpop.f32.mrf.mxu0
      %v8859 = vadd.f32 %v8794, %v8858
      %8860 = vmatmul.f32.gmra.mxu0 %v8667
      %v8861 = vpop.f32.mrf.mxu0
      %v8862 = vadd.f32 %v8797, %v8861
      %8863 = vmatmul.f32.gmra.mxu0 %v8670
      %v8864 = vpop.f32.mrf.mxu0
      %v8865 = vadd.f32 %v8800, %v8864
      %8866 = vmatmul.f32.gmra.mxu0 %v8673
      %v8867 = vpop.f32.mrf.mxu0
      %v8868 = vadd.f32 %v8803, %v8867
      %8869 = vmatmul.f32.gmra.mxu0 %v8676
      %v8870 = vpop.f32.mrf.mxu0
      %v8871 = vadd.f32 %v8806, %v8870
      %8872 = vmatmul.f32.gmra.mxu0 %v8679
      %v8873 = vpop.f32.mrf.mxu0
      %v8874 = vadd.f32 %v8809, %v8873
      %8875 = vmatmul.f32.gmra.mxu0 %v8682
      %v8876 = vpop.f32.mrf.mxu0
      %v8877 = vadd.f32 %v8812, %v8876
      %8878 = vmatmul.f32.gmra.mxu0 %v8685
      %v8879 = vpop.f32.mrf.mxu0
      %v8880 = vadd.f32 %v8815, %v8879
      %8881 = vmatmul.f32.gmra.mxu0 %v8688
      %v8882 = vpop.f32.mrf.mxu0
      %v8883 = vadd.f32 %v8818, %v8882
      %8884 = vmatmul.f32.gmra.mxu0 %v8691
      %v8885 = vpop.f32.mrf.mxu0
      %v8886 = vadd.f32 %v8821, %v8885
      %8887 = vmatmul.f32.gmra.mxu0 %v8694
      %v8888 = vpop.f32.mrf.mxu0
      %v8889 = vadd.f32 %v8824, %v8888
      %8890 = vmatmul.f32.gmra.mxu0 %v8697
      %v8891 = vpop.f32.mrf.mxu0
      %v8892 = vadd.f32 %v8827, %v8891
      %8893 = vmatmul.f32.gmra.mxu0 %v8700
      %v8894 = vpop.f32.mrf.mxu0
      %v8895 = vadd.f32 %v8830, %v8894
      %8896 = vmatmul.f32.gmra.mxu0 %v8703
      %v8897 = vpop.f32.mrf.mxu0
      %v8898 = vadd.f32 %v8833, %v8897
      %8899 = vmatmul.f32.gmra.mxu0 %v8706
      %v8900 = vpop.f32.mrf.mxu0
      %v8901 = vadd.f32 %v8836, %v8900
      %8902 = vmatmul.f32.gmra.mxu0 %v8709
      %v8903 = vpop.f32.mrf.mxu0
      %v8904 = vadd.f32 %v8839, %v8903
      %8905 = vdwg.mxu0
      %v8906 = vld [vmem:[%s6] sm:$0x1]
      %v8908 = vperm.slane %v8906, 0
      %v8910 = vmul.f32 %v8859, %v8908
      %v8911 = vmul.f32 %v8862, %v8908
      %v8912 = vmul.f32 %v8865, %v8908
      %v8913 = vmul.f32 %v8868, %v8908
      %v8914 = vmul.f32 %v8871, %v8908
      %v8915 = vmul.f32 %v8874, %v8908
      %v8916 = vmul.f32 %v8877, %v8908
      %v8917 = vmul.f32 %v8880, %v8908
      %v8918 = vmul.f32 %v8883, %v8908
      %v8919 = vmul.f32 %v8886, %v8908
      %v8920 = vmul.f32 %v8889, %v8908
      %v8921 = vmul.f32 %v8892, %v8908
      %v8922 = vmul.f32 %v8895, %v8908
      %v8923 = vmul.f32 %v8898, %v8908
      %v8924 = vmul.f32 %v8901, %v8908
      %v8925 = vmul.f32 %v8904, %v8908
      %v8926 = vld [vmem:[%s7] sm:$0x1]
      %v8928 = vperm.slane %v8926, 0
      %v8930 = vadd.f32 %v8910, %v8928
      %v8931 = vadd.f32 %v8911, %v8928
      %v8932 = vadd.f32 %v8912, %v8928
      %v8933 = vadd.f32 %v8913, %v8928
      %v8934 = vadd.f32 %v8914, %v8928
      %v8935 = vadd.f32 %v8915, %v8928
      %v8936 = vadd.f32 %v8916, %v8928
      %v8937 = vadd.f32 %v8917, %v8928
      %v8938 = vadd.f32 %v8918, %v8928
      %v8939 = vadd.f32 %v8919, %v8928
      %v8940 = vadd.f32 %v8920, %v8928
      %v8941 = vadd.f32 %v8921, %v8928
      %v8942 = vadd.f32 %v8922, %v8928
      %v8943 = vadd.f32 %v8923, %v8928
      %v8944 = vadd.f32 %v8924, %v8928
      %v8945 = vadd.f32 %v8925, %v8928
      %v8946 = vmax.f32 %v8930, 0.0
      %v8947 = vmax.f32 %v8931, 0.0
      %v8948 = vmax.f32 %v8932, 0.0
      %v8949 = vmax.f32 %v8933, 0.0
      %v8950 = vmax.f32 %v8934, 0.0
      %v8951 = vmax.f32 %v8935, 0.0
      %v8952 = vmax.f32 %v8936, 0.0
      %v8953 = vmax.f32 %v8937, 0.0
      %v8954 = vmax.f32 %v8938, 0.0
      %v8955 = vmax.f32 %v8939, 0.0
      %v8956 = vmax.f32 %v8940, 0.0
      %v8957 = vmax.f32 %v8941, 0.0
      %v8958 = vmax.f32 %v8942, 0.0
      %v8959 = vmax.f32 %v8943, 0.0
      %v8960 = vmax.f32 %v8944, 0.0
      %v8961 = vmax.f32 %v8945, 0.0
      %v8978 = vrot.slane %v8946, 2
      %v8979 = vrot.slane %v8946, 4
      %v8980 = vrot.slane %v8946, 6
      %v8981 = vrot.slane %v8947, 2
      %v8982 = vrot.slane %v8947, 4
      %v8983 = vrot.slane %v8947, 6
      %v8984 = vrot.slane %v8948, 2
      %v8985 = vrot.slane %v8948, 4
      %v8986 = vrot.slane %v8948, 6
      %v8987 = vrot.slane %v8949, 2
      %v8988 = vrot.slane %v8949, 4
      %v8989 = vrot.slane %v8949, 6
      %v8990 = vrot.slane %v8950, 2
      %v8991 = vrot.slane %v8950, 4
      %v8992 = vrot.slane %v8950, 6
      %v8993 = vrot.slane %v8951, 2
      %v8994 = vrot.slane %v8951, 4
      %v8995 = vrot.slane %v8951, 6
      %v8996 = vrot.slane %v8952, 2
      %v8997 = vrot.slane %v8952, 4
      %v8998 = vrot.slane %v8952, 6
      %v8999 = vrot.slane %v8953, 2
      %v9000 = vrot.slane %v8953, 4
      %v9001 = vrot.slane %v8953, 6
      %v9002 = vrot.slane %v8954, 2
      %v9003 = vrot.slane %v8954, 4
      %v9004 = vrot.slane %v8954, 6
      %v9005 = vrot.slane %v8955, 2
      %v9006 = vrot.slane %v8955, 4
      %v9007 = vrot.slane %v8955, 6
      %v9008 = vrot.slane %v8956, 2
      %v9009 = vrot.slane %v8956, 4
      %v9010 = vrot.slane %v8956, 6
      %v9011 = vrot.slane %v8957, 2
      %v9012 = vrot.slane %v8957, 4
      %v9013 = vrot.slane %v8957, 6
      %v9014 = vrot.slane %v8958, 2
      %v9015 = vrot.slane %v8958, 4
      %v9016 = vrot.slane %v8958, 6
      %v9017 = vrot.slane %v8959, 2
      %v9018 = vrot.slane %v8959, 4
      %v9019 = vrot.slane %v8959, 6
      %v9020 = vrot.slane %v8960, 2
      %v9021 = vrot.slane %v8960, 4
      %v9022 = vrot.slane %v8960, 6
      %v9023 = vrot.slane %v8961, 2
      %v9024 = vrot.slane %v8961, 4
      %v9025 = vrot.slane %v8961, 6
      %v9074 = vsel %vm5414, %v8946, -inf
      %v9075 = vrot.slane %v9074, 4
      %v9076 = vmax.f32 %v9074, %v9075
      %v9077 = vrot.slane %v9076, 2
      %v9078 = vmax.f32 %v9076, %v9077
      %v9079 = vrot.slane %v9078, 1
      %v9080 = vmax.f32 %v9078, %v9079
      %v9081 = vsel %vm5414, %v8978, -inf
      %v9082 = vrot.slane %v9081, 4
      %v9083 = vmax.f32 %v9081, %v9082
      %v9084 = vrot.slane %v9083, 2
      %v9085 = vmax.f32 %v9083, %v9084
      %v9086 = vrot.slane %v9085, 1
      %v9087 = vmax.f32 %v9085, %v9086
      %v9088 = vsel %vm5414, %v8979, -inf
      %v9089 = vrot.slane %v9088, 4
      %v9090 = vmax.f32 %v9088, %v9089
      %v9091 = vrot.slane %v9090, 2
      %v9092 = vmax.f32 %v9090, %v9091
      %v9093 = vrot.slane %v9092, 1
      %v9094 = vmax.f32 %v9092, %v9093
      %v9095 = vsel %vm5414, %v8980, -inf
      %v9096 = vrot.slane %v9095, 4
      %v9097 = vmax.f32 %v9095, %v9096
      %v9098 = vrot.slane %v9097, 2
      %v9099 = vmax.f32 %v9097, %v9098
      %v9100 = vrot.slane %v9099, 1
      %v9101 = vmax.f32 %v9099, %v9100
      %v9102 = vsel %vm5414, %v8947, -inf
      %v9103 = vrot.slane %v9102, 4
      %v9104 = vmax.f32 %v9102, %v9103
      %v9105 = vrot.slane %v9104, 2
      %v9106 = vmax.f32 %v9104, %v9105
      %v9107 = vrot.slane %v9106, 1
      %v9108 = vmax.f32 %v9106, %v9107
      %v9109 = vsel %vm5414, %v8981, -inf
      %v9110 = vrot.slane %v9109, 4
      %v9111 = vmax.f32 %v9109, %v9110
      %v9112 = vrot.slane %v9111, 2
      %v9113 = vmax.f32 %v9111, %v9112
      %v9114 = vrot.slane %v9113, 1
      %v9115 = vmax.f32 %v9113, %v9114
      %v9116 = vsel %vm5414, %v8982, -inf
      %v9117 = vrot.slane %v9116, 4
      %v9118 = vmax.f32 %v9116, %v9117
      %v9119 = vrot.slane %v9118, 2
      %v9120 = vmax.f32 %v9118, %v9119
      %v9121 = vrot.slane %v9120, 1
      %v9122 = vmax.f32 %v9120, %v9121
      %v9123 = vsel %vm5414, %v8983, -inf
      %v9124 = vrot.slane %v9123, 4
      %v9125 = vmax.f32 %v9123, %v9124
      %v9126 = vrot.slane %v9125, 2
      %v9127 = vmax.f32 %v9125, %v9126
      %v9128 = vrot.slane %v9127, 1
      %v9129 = vmax.f32 %v9127, %v9128
      %v9130 = vsel %vm5414, %v8948, -inf
      %v9131 = vrot.slane %v9130, 4
      %v9132 = vmax.f32 %v9130, %v9131
      %v9133 = vrot.slane %v9132, 2
      %v9134 = vmax.f32 %v9132, %v9133
      %v9135 = vrot.slane %v9134, 1
      %v9136 = vmax.f32 %v9134, %v9135
      %v9137 = vsel %vm5414, %v8984, -inf
      %v9138 = vrot.slane %v9137, 4
      %v9139 = vmax.f32 %v9137, %v9138
      %v9140 = vrot.slane %v9139, 2
      %v9141 = vmax.f32 %v9139, %v9140
      %v9142 = vrot.slane %v9141, 1
      %v9143 = vmax.f32 %v9141, %v9142
      %v9144 = vsel %vm5414, %v8985, -inf
      %v9145 = vrot.slane %v9144, 4
      %v9146 = vmax.f32 %v9144, %v9145
      %v9147 = vrot.slane %v9146, 2
      %v9148 = vmax.f32 %v9146, %v9147
      %v9149 = vrot.slane %v9148, 1
      %v9150 = vmax.f32 %v9148, %v9149
      %v9151 = vsel %vm5414, %v8986, -inf
      %v9152 = vrot.slane %v9151, 4
      %v9153 = vmax.f32 %v9151, %v9152
      %v9154 = vrot.slane %v9153, 2
      %v9155 = vmax.f32 %v9153, %v9154
      %v9156 = vrot.slane %v9155, 1
      %v9157 = vmax.f32 %v9155, %v9156
      %v9158 = vsel %vm5414, %v8949, -inf
      %v9159 = vrot.slane %v9158, 4
      %v9160 = vmax.f32 %v9158, %v9159
      %v9161 = vrot.slane %v9160, 2
      %v9162 = vmax.f32 %v9160, %v9161
      %v9163 = vrot.slane %v9162, 1
      %v9164 = vmax.f32 %v9162, %v9163
      %v9165 = vsel %vm5414, %v8987, -inf
      %v9166 = vrot.slane %v9165, 4
      %v9167 = vmax.f32 %v9165, %v9166
      %v9168 = vrot.slane %v9167, 2
      %v9169 = vmax.f32 %v9167, %v9168
      %v9170 = vrot.slane %v9169, 1
      %v9171 = vmax.f32 %v9169, %v9170
      %v9172 = vsel %vm5414, %v8988, -inf
      %v9173 = vrot.slane %v9172, 4
      %v9174 = vmax.f32 %v9172, %v9173
      %v9175 = vrot.slane %v9174, 2
      %v9176 = vmax.f32 %v9174, %v9175
      %v9177 = vrot.slane %v9176, 1
      %v9178 = vmax.f32 %v9176, %v9177
      %v9179 = vsel %vm5414, %v8989, -inf
      %v9180 = vrot.slane %v9179, 4
      %v9181 = vmax.f32 %v9179, %v9180
      %v9182 = vrot.slane %v9181, 2
      %v9183 = vmax.f32 %v9181, %v9182
      %v9184 = vrot.slane %v9183, 1
      %v9185 = vmax.f32 %v9183, %v9184
      %v9186 = vsel %vm5414, %v8950, -inf
      %v9187 = vrot.slane %v9186, 4
      %v9188 = vmax.f32 %v9186, %v9187
      %v9189 = vrot.slane %v9188, 2
      %v9190 = vmax.f32 %v9188, %v9189
      %v9191 = vrot.slane %v9190, 1
      %v9192 = vmax.f32 %v9190, %v9191
      %v9193 = vsel %vm5414, %v8990, -inf
      %v9194 = vrot.slane %v9193, 4
      %v9195 = vmax.f32 %v9193, %v9194
      %v9196 = vrot.slane %v9195, 2
      %v9197 = vmax.f32 %v9195, %v9196
      %v9198 = vrot.slane %v9197, 1
      %v9199 = vmax.f32 %v9197, %v9198
      %v9200 = vsel %vm5414, %v8991, -inf
      %v9201 = vrot.slane %v9200, 4
      %v9202 = vmax.f32 %v9200, %v9201
      %v9203 = vrot.slane %v9202, 2
      %v9204 = vmax.f32 %v9202, %v9203
      %v9205 = vrot.slane %v9204, 1
      %v9206 = vmax.f32 %v9204, %v9205
      %v9207 = vsel %vm5414, %v8992, -inf
      %v9208 = vrot.slane %v9207, 4
      %v9209 = vmax.f32 %v9207, %v9208
      %v9210 = vrot.slane %v9209, 2
      %v9211 = vmax.f32 %v9209, %v9210
      %v9212 = vrot.slane %v9211, 1
      %v9213 = vmax.f32 %v9211, %v9212
      %v9214 = vsel %vm5414, %v8951, -inf
      %v9215 = vrot.slane %v9214, 4
      %v9216 = vmax.f32 %v9214, %v9215
      %v9217 = vrot.slane %v9216, 2
      %v9218 = vmax.f32 %v9216, %v9217
      %v9219 = vrot.slane %v9218, 1
      %v9220 = vmax.f32 %v9218, %v9219
      %v9221 = vsel %vm5414, %v8993, -inf
      %v9222 = vrot.slane %v9221, 4
      %v9223 = vmax.f32 %v9221, %v9222
      %v9224 = vrot.slane %v9223, 2
      %v9225 = vmax.f32 %v9223, %v9224
      %v9226 = vrot.slane %v9225, 1
      %v9227 = vmax.f32 %v9225, %v9226
      %v9228 = vsel %vm5414, %v8994, -inf
      %v9229 = vrot.slane %v9228, 4
      %v9230 = vmax.f32 %v9228, %v9229
      %v9231 = vrot.slane %v9230, 2
      %v9232 = vmax.f32 %v9230, %v9231
      %v9233 = vrot.slane %v9232, 1
      %v9234 = vmax.f32 %v9232, %v9233
      %v9235 = vsel %vm5414, %v8995, -inf
      %v9236 = vrot.slane %v9235, 4
      %v9237 = vmax.f32 %v9235, %v9236
      %v9238 = vrot.slane %v9237, 2
      %v9239 = vmax.f32 %v9237, %v9238
      %v9240 = vrot.slane %v9239, 1
      %v9241 = vmax.f32 %v9239, %v9240
      %v9242 = vsel %vm5414, %v8952, -inf
      %v9243 = vrot.slane %v9242, 4
      %v9244 = vmax.f32 %v9242, %v9243
      %v9245 = vrot.slane %v9244, 2
      %v9246 = vmax.f32 %v9244, %v9245
      %v9247 = vrot.slane %v9246, 1
      %v9248 = vmax.f32 %v9246, %v9247
      %v9249 = vsel %vm5414, %v8996, -inf
      %v9250 = vrot.slane %v9249, 4
      %v9251 = vmax.f32 %v9249, %v9250
      %v9252 = vrot.slane %v9251, 2
      %v9253 = vmax.f32 %v9251, %v9252
      %v9254 = vrot.slane %v9253, 1
      %v9255 = vmax.f32 %v9253, %v9254
      %v9256 = vsel %vm5414, %v8997, -inf
      %v9257 = vrot.slane %v9256, 4
      %v9258 = vmax.f32 %v9256, %v9257
      %v9259 = vrot.slane %v9258, 2
      %v9260 = vmax.f32 %v9258, %v9259
      %v9261 = vrot.slane %v9260, 1
      %v9262 = vmax.f32 %v9260, %v9261
      %v9263 = vsel %vm5414, %v8998, -inf
      %v9264 = vrot.slane %v9263, 4
      %v9265 = vmax.f32 %v9263, %v9264
      %v9266 = vrot.slane %v9265, 2
      %v9267 = vmax.f32 %v9265, %v9266
      %v9268 = vrot.slane %v9267, 1
      %v9269 = vmax.f32 %v9267, %v9268
      %v9270 = vsel %vm5414, %v8953, -inf
      %v9271 = vrot.slane %v9270, 4
      %v9272 = vmax.f32 %v9270, %v9271
      %v9273 = vrot.slane %v9272, 2
      %v9274 = vmax.f32 %v9272, %v9273
      %v9275 = vrot.slane %v9274, 1
      %v9276 = vmax.f32 %v9274, %v9275
      %v9277 = vsel %vm5414, %v8999, -inf
      %v9278 = vrot.slane %v9277, 4
      %v9279 = vmax.f32 %v9277, %v9278
      %v9280 = vrot.slane %v9279, 2
      %v9281 = vmax.f32 %v9279, %v9280
      %v9282 = vrot.slane %v9281, 1
      %v9283 = vmax.f32 %v9281, %v9282
      %v9284 = vsel %vm5414, %v9000, -inf
      %v9285 = vrot.slane %v9284, 4
      %v9286 = vmax.f32 %v9284, %v9285
      %v9287 = vrot.slane %v9286, 2
      %v9288 = vmax.f32 %v9286, %v9287
      %v9289 = vrot.slane %v9288, 1
      %v9290 = vmax.f32 %v9288, %v9289
      %v9291 = vsel %vm5414, %v9001, -inf
      %v9292 = vrot.slane %v9291, 4
      %v9293 = vmax.f32 %v9291, %v9292
      %v9294 = vrot.slane %v9293, 2
      %v9295 = vmax.f32 %v9293, %v9294
      %v9296 = vrot.slane %v9295, 1
      %v9297 = vmax.f32 %v9295, %v9296
      %v9298 = vsel %vm5414, %v8954, -inf
      %v9299 = vrot.slane %v9298, 4
      %v9300 = vmax.f32 %v9298, %v9299
      %v9301 = vrot.slane %v9300, 2
      %v9302 = vmax.f32 %v9300, %v9301
      %v9303 = vrot.slane %v9302, 1
      %v9304 = vmax.f32 %v9302, %v9303
      %v9305 = vsel %vm5414, %v9002, -inf
      %v9306 = vrot.slane %v9305, 4
      %v9307 = vmax.f32 %v9305, %v9306
      %v9308 = vrot.slane %v9307, 2
      %v9309 = vmax.f32 %v9307, %v9308
      %v9310 = vrot.slane %v9309, 1
      %v9311 = vmax.f32 %v9309, %v9310
      %v9312 = vsel %vm5414, %v9003, -inf
      %v9313 = vrot.slane %v9312, 4
      %v9314 = vmax.f32 %v9312, %v9313
      %v9315 = vrot.slane %v9314, 2
      %v9316 = vmax.f32 %v9314, %v9315
      %v9317 = vrot.slane %v9316, 1
      %v9318 = vmax.f32 %v9316, %v9317
      %v9319 = vsel %vm5414, %v9004, -inf
      %v9320 = vrot.slane %v9319, 4
      %v9321 = vmax.f32 %v9319, %v9320
      %v9322 = vrot.slane %v9321, 2
      %v9323 = vmax.f32 %v9321, %v9322
      %v9324 = vrot.slane %v9323, 1
      %v9325 = vmax.f32 %v9323, %v9324
      %v9326 = vsel %vm5414, %v8955, -inf
      %v9327 = vrot.slane %v9326, 4
      %v9328 = vmax.f32 %v9326, %v9327
      %v9329 = vrot.slane %v9328, 2
      %v9330 = vmax.f32 %v9328, %v9329
      %v9331 = vrot.slane %v9330, 1
      %v9332 = vmax.f32 %v9330, %v9331
      %v9333 = vsel %vm5414, %v9005, -inf
      %v9334 = vrot.slane %v9333, 4
      %v9335 = vmax.f32 %v9333, %v9334
      %v9336 = vrot.slane %v9335, 2
      %v9337 = vmax.f32 %v9335, %v9336
      %v9338 = vrot.slane %v9337, 1
      %v9339 = vmax.f32 %v9337, %v9338
      %v9340 = vsel %vm5414, %v9006, -inf
      %v9341 = vrot.slane %v9340, 4
      %v9342 = vmax.f32 %v9340, %v9341
      %v9343 = vrot.slane %v9342, 2
      %v9344 = vmax.f32 %v9342, %v9343
      %v9345 = vrot.slane %v9344, 1
      %v9346 = vmax.f32 %v9344, %v9345
      %v9347 = vsel %vm5414, %v9007, -inf
      %v9348 = vrot.slane %v9347, 4
      %v9349 = vmax.f32 %v9347, %v9348
      %v9350 = vrot.slane %v9349, 2
      %v9351 = vmax.f32 %v9349, %v9350
      %v9352 = vrot.slane %v9351, 1
      %v9353 = vmax.f32 %v9351, %v9352
      %v9354 = vsel %vm5414, %v8956, -inf
      %v9355 = vrot.slane %v9354, 4
      %v9356 = vmax.f32 %v9354, %v9355
      %v9357 = vrot.slane %v9356, 2
      %v9358 = vmax.f32 %v9356, %v9357
      %v9359 = vrot.slane %v9358, 1
      %v9360 = vmax.f32 %v9358, %v9359
      %v9361 = vsel %vm5414, %v9008, -inf
      %v9362 = vrot.slane %v9361, 4
      %v9363 = vmax.f32 %v9361, %v9362
      %v9364 = vrot.slane %v9363, 2
      %v9365 = vmax.f32 %v9363, %v9364
      %v9366 = vrot.slane %v9365, 1
      %v9367 = vmax.f32 %v9365, %v9366
      %v9368 = vsel %vm5414, %v9009, -inf
      %v9369 = vrot.slane %v9368, 4
      %v9370 = vmax.f32 %v9368, %v9369
      %v9371 = vrot.slane %v9370, 2
      %v9372 = vmax.f32 %v9370, %v9371
      %v9373 = vrot.slane %v9372, 1
      %v9374 = vmax.f32 %v9372, %v9373
      %v9375 = vsel %vm5414, %v9010, -inf
      %v9376 = vrot.slane %v9375, 4
      %v9377 = vmax.f32 %v9375, %v9376
      %v9378 = vrot.slane %v9377, 2
      %v9379 = vmax.f32 %v9377, %v9378
      %v9380 = vrot.slane %v9379, 1
      %v9381 = vmax.f32 %v9379, %v9380
      %v9382 = vsel %vm5414, %v8957, -inf
      %v9383 = vrot.slane %v9382, 4
      %v9384 = vmax.f32 %v9382, %v9383
      %v9385 = vrot.slane %v9384, 2
      %v9386 = vmax.f32 %v9384, %v9385
      %v9387 = vrot.slane %v9386, 1
      %v9388 = vmax.f32 %v9386, %v9387
      %v9389 = vsel %vm5414, %v9011, -inf
      %v9390 = vrot.slane %v9389, 4
      %v9391 = vmax.f32 %v9389, %v9390
      %v9392 = vrot.slane %v9391, 2
      %v9393 = vmax.f32 %v9391, %v9392
      %v9394 = vrot.slane %v9393, 1
      %v9395 = vmax.f32 %v9393, %v9394
      %v9396 = vsel %vm5414, %v9012, -inf
      %v9397 = vrot.slane %v9396, 4
      %v9398 = vmax.f32 %v9396, %v9397
      %v9399 = vrot.slane %v9398, 2
      %v9400 = vmax.f32 %v9398, %v9399
      %v9401 = vrot.slane %v9400, 1
      %v9402 = vmax.f32 %v9400, %v9401
      %v9403 = vsel %vm5414, %v9013, -inf
      %v9404 = vrot.slane %v9403, 4
      %v9405 = vmax.f32 %v9403, %v9404
      %v9406 = vrot.slane %v9405, 2
      %v9407 = vmax.f32 %v9405, %v9406
      %v9408 = vrot.slane %v9407, 1
      %v9409 = vmax.f32 %v9407, %v9408
      %v9410 = vsel %vm5414, %v8958, -inf
      %v9411 = vrot.slane %v9410, 4
      %v9412 = vmax.f32 %v9410, %v9411
      %v9413 = vrot.slane %v9412, 2
      %v9414 = vmax.f32 %v9412, %v9413
      %v9415 = vrot.slane %v9414, 1
      %v9416 = vmax.f32 %v9414, %v9415
      %v9417 = vsel %vm5414, %v9014, -inf
      %v9418 = vrot.slane %v9417, 4
      %v9419 = vmax.f32 %v9417, %v9418
      %v9420 = vrot.slane %v9419, 2
      %v9421 = vmax.f32 %v9419, %v9420
      %v9422 = vrot.slane %v9421, 1
      %v9423 = vmax.f32 %v9421, %v9422
      %v9424 = vsel %vm5414, %v9015, -inf
      %v9425 = vrot.slane %v9424, 4
      %v9426 = vmax.f32 %v9424, %v9425
      %v9427 = vrot.slane %v9426, 2
      %v9428 = vmax.f32 %v9426, %v9427
      %v9429 = vrot.slane %v9428, 1
      %v9430 = vmax.f32 %v9428, %v9429
      %v9431 = vsel %vm5414, %v9016, -inf
      %v9432 = vrot.slane %v9431, 4
      %v9433 = vmax.f32 %v9431, %v9432
      %v9434 = vrot.slane %v9433, 2
      %v9435 = vmax.f32 %v9433, %v9434
      %v9436 = vrot.slane %v9435, 1
      %v9437 = vmax.f32 %v9435, %v9436
      %v9438 = vsel %vm5414, %v8959, -inf
      %v9439 = vrot.slane %v9438, 4
      %v9440 = vmax.f32 %v9438, %v9439
      %v9441 = vrot.slane %v9440, 2
      %v9442 = vmax.f32 %v9440, %v9441
      %v9443 = vrot.slane %v9442, 1
      %v9444 = vmax.f32 %v9442, %v9443
      %v9445 = vsel %vm5414, %v9017, -inf
      %v9446 = vrot.slane %v9445, 4
      %v9447 = vmax.f32 %v9445, %v9446
      %v9448 = vrot.slane %v9447, 2
      %v9449 = vmax.f32 %v9447, %v9448
      %v9450 = vrot.slane %v9449, 1
      %v9451 = vmax.f32 %v9449, %v9450
      %v9452 = vsel %vm5414, %v9018, -inf
      %v9453 = vrot.slane %v9452, 4
      %v9454 = vmax.f32 %v9452, %v9453
      %v9455 = vrot.slane %v9454, 2
      %v9456 = vmax.f32 %v9454, %v9455
      %v9457 = vrot.slane %v9456, 1
      %v9458 = vmax.f32 %v9456, %v9457
      %v9459 = vsel %vm5414, %v9019, -inf
      %v9460 = vrot.slane %v9459, 4
      %v9461 = vmax.f32 %v9459, %v9460
      %v9462 = vrot.slane %v9461, 2
      %v9463 = vmax.f32 %v9461, %v9462
      %v9464 = vrot.slane %v9463, 1
      %v9465 = vmax.f32 %v9463, %v9464
      %v9466 = vsel %vm5414, %v8960, -inf
      %v9467 = vrot.slane %v9466, 4
      %v9468 = vmax.f32 %v9466, %v9467
      %v9469 = vrot.slane %v9468, 2
      %v9470 = vmax.f32 %v9468, %v9469
      %v9471 = vrot.slane %v9470, 1
      %v9472 = vmax.f32 %v9470, %v9471
      %v9473 = vsel %vm5414, %v9020, -inf
      %v9474 = vrot.slane %v9473, 4
      %v9475 = vmax.f32 %v9473, %v9474
      %v9476 = vrot.slane %v9475, 2
      %v9477 = vmax.f32 %v9475, %v9476
      %v9478 = vrot.slane %v9477, 1
      %v9479 = vmax.f32 %v9477, %v9478
      %v9480 = vsel %vm5414, %v9021, -inf
      %v9481 = vrot.slane %v9480, 4
      %v9482 = vmax.f32 %v9480, %v9481
      %v9483 = vrot.slane %v9482, 2
      %v9484 = vmax.f32 %v9482, %v9483
      %v9485 = vrot.slane %v9484, 1
      %v9486 = vmax.f32 %v9484, %v9485
      %v9487 = vsel %vm5414, %v9022, -inf
      %v9488 = vrot.slane %v9487, 4
      %v9489 = vmax.f32 %v9487, %v9488
      %v9490 = vrot.slane %v9489, 2
      %v9491 = vmax.f32 %v9489, %v9490
      %v9492 = vrot.slane %v9491, 1
      %v9493 = vmax.f32 %v9491, %v9492
      %v9494 = vsel %vm5414, %v8961, -inf
      %v9495 = vrot.slane %v9494, 4
      %v9496 = vmax.f32 %v9494, %v9495
      %v9497 = vrot.slane %v9496, 2
      %v9498 = vmax.f32 %v9496, %v9497
      %v9499 = vrot.slane %v9498, 1
      %v9500 = vmax.f32 %v9498, %v9499
      %v9501 = vsel %vm5414, %v9023, -inf
      %v9502 = vrot.slane %v9501, 4
      %v9503 = vmax.f32 %v9501, %v9502
      %v9504 = vrot.slane %v9503, 2
      %v9505 = vmax.f32 %v9503, %v9504
      %v9506 = vrot.slane %v9505, 1
      %v9507 = vmax.f32 %v9505, %v9506
      %v9508 = vsel %vm5414, %v9024, -inf
      %v9509 = vrot.slane %v9508, 4
      %v9510 = vmax.f32 %v9508, %v9509
      %v9511 = vrot.slane %v9510, 2
      %v9512 = vmax.f32 %v9510, %v9511
      %v9513 = vrot.slane %v9512, 1
      %v9514 = vmax.f32 %v9512, %v9513
      %v9515 = vsel %vm5414, %v9025, -inf
      %v9516 = vrot.slane %v9515, 4
      %v9517 = vmax.f32 %v9515, %v9516
      %v9518 = vrot.slane %v9517, 2
      %v9519 = vmax.f32 %v9517, %v9518
      %v9520 = vrot.slane %v9519, 1
      %v9521 = vmax.f32 %v9519, %v9520
      %v9522 = vsel %vm7207, %v9080, -inf
      %v9523 = vsel %vm7207, %v9108, -inf
      %v9524 = vmax.f32 %v9522, %v9523
      %v9525 = vsel %vm7207, %v9087, -inf
      %v9526 = vsel %vm7207, %v9115, -inf
      %v9527 = vmax.f32 %v9525, %v9526
      %v9528 = vsel %vm7207, %v9094, -inf
      %v9529 = vsel %vm7207, %v9122, -inf
      %v9530 = vmax.f32 %v9528, %v9529
      %v9531 = vsel %vm7207, %v9101, -inf
      %v9532 = vsel %vm7207, %v9129, -inf
      %v9533 = vmax.f32 %v9531, %v9532
      %v9534 = vsel %vm7207, %v9136, -inf
      %v9535 = vsel %vm7207, %v9164, -inf
      %v9536 = vmax.f32 %v9534, %v9535
      %v9537 = vsel %vm7207, %v9143, -inf
      %v9538 = vsel %vm7207, %v9171, -inf
      %v9539 = vmax.f32 %v9537, %v9538
      %v9540 = vsel %vm7207, %v9150, -inf
      %v9541 = vsel %vm7207, %v9178, -inf
      %v9542 = vmax.f32 %v9540, %v9541
      %v9543 = vsel %vm7207, %v9157, -inf
      %v9544 = vsel %vm7207, %v9185, -inf
      %v9545 = vmax.f32 %v9543, %v9544
      %v9546 = vsel %vm7207, %v9192, -inf
      %v9547 = vsel %vm7207, %v9220, -inf
      %v9548 = vmax.f32 %v9546, %v9547
      %v9549 = vsel %vm7207, %v9199, -inf
      %v9550 = vsel %vm7207, %v9227, -inf
      %v9551 = vmax.f32 %v9549, %v9550
      %v9552 = vsel %vm7207, %v9206, -inf
      %v9553 = vsel %vm7207, %v9234, -inf
      %v9554 = vmax.f32 %v9552, %v9553
      %v9555 = vsel %vm7207, %v9213, -inf
      %v9556 = vsel %vm7207, %v9241, -inf
      %v9557 = vmax.f32 %v9555, %v9556
      %v9558 = vsel %vm7207, %v9248, -inf
      %v9559 = vsel %vm7207, %v9276, -inf
      %v9560 = vmax.f32 %v9558, %v9559
      %v9561 = vsel %vm7207, %v9255, -inf
      %v9562 = vsel %vm7207, %v9283, -inf
      %v9563 = vmax.f32 %v9561, %v9562
      %v9564 = vsel %vm7207, %v9262, -inf
      %v9565 = vsel %vm7207, %v9290, -inf
      %v9566 = vmax.f32 %v9564, %v9565
      %v9567 = vsel %vm7207, %v9269, -inf
      %v9568 = vsel %vm7207, %v9297, -inf
      %v9569 = vmax.f32 %v9567, %v9568
      %v9570 = vsel %vm7207, %v9304, -inf
      %v9571 = vsel %vm7207, %v9332, -inf
      %v9572 = vmax.f32 %v9570, %v9571
      %v9573 = vsel %vm7207, %v9311, -inf
      %v9574 = vsel %vm7207, %v9339, -inf
      %v9575 = vmax.f32 %v9573, %v9574
      %v9576 = vsel %vm7207, %v9318, -inf
      %v9577 = vsel %vm7207, %v9346, -inf
      %v9578 = vmax.f32 %v9576, %v9577
      %v9579 = vsel %vm7207, %v9325, -inf
      %v9580 = vsel %vm7207, %v9353, -inf
      %v9581 = vmax.f32 %v9579, %v9580
      %v9582 = vsel %vm7207, %v9360, -inf
      %v9583 = vsel %vm7207, %v9388, -inf
      %v9584 = vmax.f32 %v9582, %v9583
      %v9585 = vsel %vm7207, %v9367, -inf
      %v9586 = vsel %vm7207, %v9395, -inf
      %v9587 = vmax.f32 %v9585, %v9586
      %v9588 = vsel %vm7207, %v9374, -inf
      %v9589 = vsel %vm7207, %v9402, -inf
      %v9590 = vmax.f32 %v9588, %v9589
      %v9591 = vsel %vm7207, %v9381, -inf
      %v9592 = vsel %vm7207, %v9409, -inf
      %v9593 = vmax.f32 %v9591, %v9592
      %v9594 = vsel %vm7207, %v9416, -inf
      %v9595 = vsel %vm7207, %v9444, -inf
      %v9596 = vmax.f32 %v9594, %v9595
      %v9597 = vsel %vm7207, %v9423, -inf
      %v9598 = vsel %vm7207, %v9451, -inf
      %v9599 = vmax.f32 %v9597, %v9598
      %v9600 = vsel %vm7207, %v9430, -inf
      %v9601 = vsel %vm7207, %v9458, -inf
      %v9602 = vmax.f32 %v9600, %v9601
      %v9603 = vsel %vm7207, %v9437, -inf
      %v9604 = vsel %vm7207, %v9465, -inf
      %v9605 = vmax.f32 %v9603, %v9604
      %v9606 = vsel %vm7207, %v9472, -inf
      %v9607 = vsel %vm7207, %v9500, -inf
      %v9608 = vmax.f32 %v9606, %v9607
      %v9609 = vsel %vm7207, %v9479, -inf
      %v9610 = vsel %vm7207, %v9507, -inf
      %v9611 = vmax.f32 %v9609, %v9610
      %v9612 = vsel %vm7207, %v9486, -inf
      %v9613 = vsel %vm7207, %v9514, -inf
      %v9614 = vmax.f32 %v9612, %v9613
      %v9615 = vsel %vm7207, %v9493, -inf
      %v9616 = vsel %vm7207, %v9521, -inf
      %v9617 = vmax.f32 %v9615, %v9616
      %vm9618 = vcmask 259072
      %9619 = vst.msk [vmem:[#allocation4] sm:$0x3f] %vm9618, 0.0
      %9620 = vst.msk [vmem:[#allocation4 + $0x8] sm:$0x3f] %vm9618, 0.0
      %9621 = vst.msk [vmem:[#allocation4 + $0x10] sm:$0x3f] %vm9618, 0.0
      %9622 = vst.msk [vmem:[#allocation4 + $0x18] sm:$0x3f] %vm9618, 0.0
      %9623 = vst.msk [vmem:[#allocation4 + $0x20] sm:$0x3f] %vm9618, 0.0
      %9624 = vst.msk [vmem:[#allocation4 + $0x28] sm:$0x3f] %vm9618, 0.0
      %9625 = vst.msk [vmem:[#allocation4 + $0x30] sm:$0x3f] %vm9618, 0.0
      %9626 = vst.msk [vmem:[#allocation4 + $0x38] sm:$0x3f] %vm9618, 0.0
      %9627 = vst.msk [vmem:[#allocation4 + $0x40] sm:$0x3f] %vm9618, 0.0
      %9628 = vst.msk [vmem:[#allocation4 + $0x48] sm:$0x3f] %vm9618, 0.0
      %9629 = vst.msk [vmem:[#allocation4 + $0x50] sm:$0x3f] %vm9618, 0.0
      %9630 = vst.msk [vmem:[#allocation4 + $0x58] sm:$0x3f] %vm9618, 0.0
      %v9663 = vsel %vm7760, %v9527, %v9524
      %v9664 = vsel %vm7762, %v9530, %v9663
      %v9665 = vsel %vm7764, %v9533, %v9664
      %v9666 = vsel %vm7760, %v9539, %v9536
      %v9667 = vsel %vm7762, %v9542, %v9666
      %v9668 = vsel %vm7764, %v9545, %v9667
      %v9669 = vsel %vm7760, %v9551, %v9548
      %v9670 = vsel %vm7762, %v9554, %v9669
      %v9671 = vsel %vm7764, %v9557, %v9670
      %v9672 = vsel %vm7760, %v9563, %v9560
      %v9673 = vsel %vm7762, %v9566, %v9672
      %v9674 = vsel %vm7764, %v9569, %v9673
      %v9675 = vsel %vm7760, %v9575, %v9572
      %v9676 = vsel %vm7762, %v9578, %v9675
      %v9677 = vsel %vm7764, %v9581, %v9676
      %v9678 = vsel %vm7760, %v9587, %v9584
      %v9679 = vsel %vm7762, %v9590, %v9678
      %v9680 = vsel %vm7764, %v9593, %v9679
      %v9681 = vsel %vm7760, %v9599, %v9596
      %v9682 = vsel %vm7762, %v9602, %v9681
      %v9683 = vsel %vm7764, %v9605, %v9682
      %v9684 = vsel %vm7760, %v9611, %v9608
      %v9685 = vsel %vm7762, %v9614, %v9684
      %v9686 = vsel %vm7764, %v9617, %v9685
      %s9695 = scalar_lea.vmem [#allocation4], 8
      %vm9696 = vcmask 257024
      %9697 = vst.msk [vmem:[%s9695 + $0x1] sm:$0xf] %vm9696, %v9665
      %9698 = vst.msk [vmem:[%s9695 + $0x9] sm:$0xf] %vm9696, %v9668
      %9699 = vst.msk [vmem:[%s9695 + $0x11] sm:$0xf] %vm9696, %v9671
      %9700 = vst.msk [vmem:[%s9695 + $0x19] sm:$0xf] %vm9696, %v9674
      %9701 = vst.msk [vmem:[%s9695 + $0x31] sm:$0xf] %vm9696, %v9677
      %9702 = vst.msk [vmem:[%s9695 + $0x39] sm:$0xf] %vm9696, %v9680
      %9703 = vst.msk [vmem:[%s9695 + $0x41] sm:$0xf] %vm9696, %v9683
      %9704 = vst.msk [vmem:[%s9695 + $0x49] sm:$0xf] %vm9696, %v9686
      %v9705 = vld [vmem:[#allocation4] sm:$0x3f]
      %v9706 = vld [vmem:[#allocation4 + $0x8] sm:$0x3f]
      %v9707 = vld [vmem:[#allocation4 + $0x10] sm:$0x3f]
      %v9708 = vld [vmem:[#allocation4 + $0x18] sm:$0x3f]
      %v9709 = vld [vmem:[#allocation4 + $0x20] sm:$0x3f]
      %v9710 = vld [vmem:[#allocation4 + $0x28] sm:$0x3f]
      %v9711 = vld [vmem:[#allocation4 + $0x30] sm:$0x3f]
      %v9712 = vld [vmem:[#allocation4 + $0x38] sm:$0x3f]
      %v9713 = vld [vmem:[#allocation4 + $0x40] sm:$0x3f]
      %v9714 = vld [vmem:[#allocation4 + $0x48] sm:$0x3f]
      %v9715 = vld [vmem:[#allocation4 + $0x50] sm:$0x3f]
      %v9716 = vld [vmem:[#allocation4 + $0x58] sm:$0x3f]
      %9725 = vst [vmem:[#allocation1] ss:$2 sm:$0xff] %v9705
      %s9726 = scalar_lea.vmem [#allocation1], 1
      %9727 = vst [vmem:[%s9726] ss:$2 sm:$0xff] %v9706
      %s9728 = scalar_lea.vmem [#allocation1], 16
      %9729 = vst [vmem:[%s9728] ss:$2 sm:$0xff] %v9707
      %s9730 = scalar_lea.vmem [#allocation1], 17
      %9731 = vst [vmem:[%s9730] ss:$2 sm:$0xff] %v9708
      %s9732 = scalar_lea.vmem [#allocation1], 32
      %9733 = vst [vmem:[%s9732] ss:$2 sm:$0xff] %v9711
      %s9734 = scalar_lea.vmem [#allocation1], 33
      %9735 = vst [vmem:[%s9734] ss:$2 sm:$0xff] %v9712
      %s9736 = scalar_lea.vmem [#allocation1], 48
      %9737 = vst [vmem:[%s9736] ss:$2 sm:$0xff] %v9713
      %s9738 = scalar_lea.vmem [#allocation1], 49
      %9739 = vst [vmem:[%s9738] ss:$2 sm:$0xff] %v9714
      %v9740 = vld.sshfl [vmem:[#allocation1] sm:$0xff pattern:$0x75316420]
      %v9741 = vld.sshfl [vmem:[#allocation1 + $0x10] sm:$0xff pattern:$0x75316420]
      %v9742 = vld.sshfl [vmem:[#allocation1 + $0x20] sm:$0xff pattern:$0x75316420]
      %v9743 = vld.sshfl [vmem:[#allocation1 + $0x30] sm:$0xff pattern:$0x75316420]
      %9748 = vst.msk [vmem:[#allocation6] sm:$0xff] %vm7207, %v9740
      %9749 = vst.msk [vmem:[#allocation6 + $0x18] sm:$0xff] %vm7207, %v9741
      %9750 = vst.msk [vmem:[#allocation6 + $0x30] sm:$0xff] %vm7207, %v9742
      %9751 = vst.msk [vmem:[#allocation6 + $0x48] sm:$0xff] %vm7207, %v9743
      %v9752 = vrot.slane %v9705, 4
      %v9753 = vrot.slane %v9706, 4
      %v9754 = vrot.slane %v9707, 4
      %v9755 = vrot.slane %v9708, 4
      %v9756 = vrot.slane %v9711, 4
      %v9757 = vrot.slane %v9712, 4
      %v9758 = vrot.slane %v9713, 4
      %v9759 = vrot.slane %v9714, 4
      %vm9760 = vcmask 1042432
      %vm9761 = vcmask 1046532
      %vm9762 = vmor %vm9760, %vm9761
      %v9763 = vrot.slane %v9705, 5
      %v9764 = vrot.slane %v9763, 4
      %v9765 = vrot.slane %v9752, 5
      %v9766 = vsel %vm9762, %v9764, %v9765
      %v9767 = vrot.slane %v9706, 5
      %v9768 = vrot.slane %v9767, 4
      %v9769 = vrot.slane %v9753, 5
      %v9770 = vsel %vm9762, %v9768, %v9769
      %v9771 = vrot.slane %v9707, 5
      %v9772 = vrot.slane %v9771, 4
      %v9773 = vrot.slane %v9754, 5
      %v9774 = vsel %vm9762, %v9772, %v9773
      %v9775 = vrot.slane %v9708, 5
      %v9776 = vrot.slane %v9775, 4
      %v9777 = vrot.slane %v9755, 5
      %v9778 = vsel %vm9762, %v9776, %v9777
      %v9779 = vrot.slane %v9711, 5
      %v9780 = vrot.slane %v9779, 4
      %v9781 = vrot.slane %v9756, 5
      %v9782 = vsel %vm9762, %v9780, %v9781
      %v9783 = vrot.slane %v9712, 5
      %v9784 = vrot.slane %v9783, 4
      %v9785 = vrot.slane %v9757, 5
      %v9786 = vsel %vm9762, %v9784, %v9785
      %v9787 = vrot.slane %v9713, 5
      %v9788 = vrot.slane %v9787, 4
      %v9789 = vrot.slane %v9758, 5
      %v9790 = vsel %vm9762, %v9788, %v9789
      %v9791 = vrot.slane %v9714, 5
      %v9792 = vrot.slane %v9791, 4
      %v9793 = vrot.slane %v9759, 5
      %v9794 = vsel %vm9762, %v9792, %v9793
      %9795 = vst [vmem:[#allocation1] ss:$2 sm:$0xff] %v9766
      %s9796 = scalar_lea.vmem [#allocation1], 1
      %9797 = vst [vmem:[%s9796] ss:$2 sm:$0xff] %v9770
      %s9798 = scalar_lea.vmem [#allocation1], 16
      %9799 = vst [vmem:[%s9798] ss:$2 sm:$0xff] %v9774
      %s9800 = scalar_lea.vmem [#allocation1], 17
      %9801 = vst [vmem:[%s9800] ss:$2 sm:$0xff] %v9778
      %s9802 = scalar_lea.vmem [#allocation1], 32
      %9803 = vst [vmem:[%s9802] ss:$2 sm:$0xff] %v9782
      %s9804 = scalar_lea.vmem [#allocation1], 33
      %9805 = vst [vmem:[%s9804] ss:$2 sm:$0xff] %v9786
      %s9806 = scalar_lea.vmem [#allocation1], 48
      %9807 = vst [vmem:[%s9806] ss:$2 sm:$0xff] %v9790
      %s9808 = scalar_lea.vmem [#allocation1], 49
      %9809 = vst [vmem:[%s9808] ss:$2 sm:$0xff] %v9794
      %v9810 = vld.sshfl [vmem:[#allocation1] sm:$0xff pattern:$0x75316420]
      %v9811 = vld.sshfl [vmem:[#allocation1 + $0x10] sm:$0xff pattern:$0x75316420]
      %v9812 = vld.sshfl [vmem:[#allocation1 + $0x20] sm:$0xff pattern:$0x75316420]
      %v9813 = vld.sshfl [vmem:[#allocation1 + $0x30] sm:$0xff pattern:$0x75316420]
      %9814 = vrot.lane.b32.xlu0 %v9810, 32
      %v9815 = vpop.permute.xlu0 %9814
      %9816 = vrot.lane.b32.xlu0 %v9811, 32
      %v9817 = vpop.permute.xlu0 %9816
      %9818 = vrot.lane.b32.xlu0 %v9812, 32
      %v9819 = vpop.permute.xlu0 %9818
      %9820 = vrot.lane.b32.xlu0 %v9813, 32
      %v9821 = vpop.permute.xlu0 %9820
      %9826 = vst.msk [vmem:[#allocation6] sm:$0xff] %vm8096, %v9815
      %9827 = vst.msk [vmem:[#allocation6 + $0x18] sm:$0xff] %vm8096, %v9817
      %9828 = vst.msk [vmem:[#allocation6 + $0x30] sm:$0xff] %vm8096, %v9819
      %9829 = vst.msk [vmem:[#allocation6 + $0x48] sm:$0xff] %vm8096, %v9821
      %vm9830 = vcmask 1041408
      %vm9831 = vcmask 1045508
      %vm9832 = vmor %vm9830, %vm9831
      %v9833 = vrot.slane %v9705, 6
      %v9834 = vrot.slane %v9833, 4
      %v9835 = vrot.slane %v9752, 6
      %v9836 = vsel %vm9832, %v9834, %v9835
      %v9837 = vrot.slane %v9706, 6
      %v9838 = vrot.slane %v9837, 4
      %v9839 = vrot.slane %v9753, 6
      %v9840 = vsel %vm9832, %v9838, %v9839
      %v9841 = vrot.slane %v9707, 6
      %v9842 = vrot.slane %v9841, 4
      %v9843 = vrot.slane %v9754, 6
      %v9844 = vsel %vm9832, %v9842, %v9843
      %v9845 = vrot.slane %v9708, 6
      %v9846 = vrot.slane %v9845, 4
      %v9847 = vrot.slane %v9755, 6
      %v9848 = vsel %vm9832, %v9846, %v9847
      %v9849 = vrot.slane %v9711, 6
      %v9850 = vrot.slane %v9849, 4
      %v9851 = vrot.slane %v9756, 6
      %v9852 = vsel %vm9832, %v9850, %v9851
      %v9853 = vrot.slane %v9712, 6
      %v9854 = vrot.slane %v9853, 4
      %v9855 = vrot.slane %v9757, 6
      %v9856 = vsel %vm9832, %v9854, %v9855
      %v9857 = vrot.slane %v9713, 6
      %v9858 = vrot.slane %v9857, 4
      %v9859 = vrot.slane %v9758, 6
      %v9860 = vsel %vm9832, %v9858, %v9859
      %v9861 = vrot.slane %v9714, 6
      %v9862 = vrot.slane %v9861, 4
      %v9863 = vrot.slane %v9759, 6
      %v9864 = vsel %vm9832, %v9862, %v9863
      %9865 = vst [vmem:[#allocation1] ss:$2 sm:$0xff] %v9836
      %s9866 = scalar_lea.vmem [#allocation1], 1
      %9867 = vst [vmem:[%s9866] ss:$2 sm:$0xff] %v9840
      %s9868 = scalar_lea.vmem [#allocation1], 16
      %9869 = vst [vmem:[%s9868] ss:$2 sm:$0xff] %v9844
      %s9870 = scalar_lea.vmem [#allocation1], 17
      %9871 = vst [vmem:[%s9870] ss:$2 sm:$0xff] %v9848
      %s9872 = scalar_lea.vmem [#allocation1], 32
      %9873 = vst [vmem:[%s9872] ss:$2 sm:$0xff] %v9852
      %s9874 = scalar_lea.vmem [#allocation1], 33
      %9875 = vst [vmem:[%s9874] ss:$2 sm:$0xff] %v9856
      %s9876 = scalar_lea.vmem [#allocation1], 48
      %9877 = vst [vmem:[%s9876] ss:$2 sm:$0xff] %v9860
      %s9878 = scalar_lea.vmem [#allocation1], 49
      %9879 = vst [vmem:[%s9878] ss:$2 sm:$0xff] %v9864
      %v9880 = vld.sshfl [vmem:[#allocation1] sm:$0xff pattern:$0x75316420]
      %v9881 = vld.sshfl [vmem:[#allocation1 + $0x10] sm:$0xff pattern:$0x75316420]
      %v9882 = vld.sshfl [vmem:[#allocation1 + $0x20] sm:$0xff pattern:$0x75316420]
      %v9883 = vld.sshfl [vmem:[#allocation1 + $0x30] sm:$0xff pattern:$0x75316420]
      %9884 = vrot.lane.b32.xlu0 %v9880, 64
      %v9885 = vpop.permute.xlu0 %9884
      %9886 = vrot.lane.b32.xlu0 %v9881, 64
      %v9887 = vpop.permute.xlu0 %9886
      %9888 = vrot.lane.b32.xlu0 %v9882, 64
      %v9889 = vpop.permute.xlu0 %9888
      %9890 = vrot.lane.b32.xlu0 %v9883, 64
      %v9891 = vpop.permute.xlu0 %9890
      %9896 = vst.msk [vmem:[#allocation6] sm:$0xff] %vm8209, %v9885
      %9897 = vst.msk [vmem:[#allocation6 + $0x18] sm:$0xff] %vm8209, %v9887
      %9898 = vst.msk [vmem:[#allocation6 + $0x30] sm:$0xff] %vm8209, %v9889
      %9899 = vst.msk [vmem:[#allocation6 + $0x48] sm:$0xff] %vm8209, %v9891
      %9902 = vst [vmem:[#allocation1] ss:$2 sm:$0xff] %v9706
      %s9903 = scalar_lea.vmem [#allocation1], 1
      %9904 = vst [vmem:[%s9903] ss:$2 sm:$0xff] %v9707
      %s9905 = scalar_lea.vmem [#allocation1], 16
      %9906 = vst [vmem:[%s9905] ss:$2 sm:$0xff] %v9708
      %s9907 = scalar_lea.vmem [#allocation1], 17
      %9908 = vst [vmem:[%s9907] ss:$2 sm:$0xff] %v9709
      %s9909 = scalar_lea.vmem [#allocation1], 32
      %9910 = vst [vmem:[%s9909] ss:$2 sm:$0xff] %v9712
      %s9911 = scalar_lea.vmem [#allocation1], 33
      %9912 = vst [vmem:[%s9911] ss:$2 sm:$0xff] %v9713
      %s9913 = scalar_lea.vmem [#allocation1], 48
      %9914 = vst [vmem:[%s9913] ss:$2 sm:$0xff] %v9714
      %s9915 = scalar_lea.vmem [#allocation1], 49
      %9916 = vst [vmem:[%s9915] ss:$2 sm:$0xff] %v9715
      %v9917 = vld.sshfl [vmem:[#allocation1] sm:$0xff pattern:$0x75316420]
      %v9918 = vld.sshfl [vmem:[#allocation1 + $0x10] sm:$0xff pattern:$0x75316420]
      %v9919 = vld.sshfl [vmem:[#allocation1 + $0x20] sm:$0xff pattern:$0x75316420]
      %v9920 = vld.sshfl [vmem:[#allocation1 + $0x30] sm:$0xff pattern:$0x75316420]
      %9921 = vrot.lane.b32.xlu0 %v9917, 96
      %v9922 = vpop.permute.xlu0 %9921
      %9923 = vrot.lane.b32.xlu0 %v9918, 96
      %v9924 = vpop.permute.xlu0 %9923
      %9925 = vrot.lane.b32.xlu0 %v9919, 96
      %v9926 = vpop.permute.xlu0 %9925
      %9927 = vrot.lane.b32.xlu0 %v9920, 96
      %v9928 = vpop.permute.xlu0 %9927
      %9933 = vst.msk [vmem:[#allocation6] sm:$0xff] %vm8276, %v9922
      %9934 = vst.msk [vmem:[#allocation6 + $0x18] sm:$0xff] %vm8276, %v9924
      %9935 = vst.msk [vmem:[#allocation6 + $0x30] sm:$0xff] %vm8276, %v9926
      %9936 = vst.msk [vmem:[#allocation6 + $0x48] sm:$0xff] %vm8276, %v9928
      %v9937 = vrot.slane %v9709, 4
      %v9938 = vrot.slane %v9715, 4
      %v9939 = vrot.slane %v9709, 5
      %v9940 = vrot.slane %v9939, 4
      %v9941 = vrot.slane %v9937, 5
      %v9942 = vsel %vm9762, %v9940, %v9941
      %v9943 = vrot.slane %v9715, 5
      %v9944 = vrot.slane %v9943, 4
      %v9945 = vrot.slane %v9938, 5
      %v9946 = vsel %vm9762, %v9944, %v9945
      %9947 = vst [vmem:[#allocation1] ss:$2 sm:$0xff] %v9770
      %s9948 = scalar_lea.vmem [#allocation1], 1
      %9949 = vst [vmem:[%s9948] ss:$2 sm:$0xff] %v9774
      %s9950 = scalar_lea.vmem [#allocation1], 16
      %9951 = vst [vmem:[%s9950] ss:$2 sm:$0xff] %v9778
      %s9952 = scalar_lea.vmem [#allocation1], 17
      %9953 = vst [vmem:[%s9952] ss:$2 sm:$0xff] %v9942
      %s9954 = scalar_lea.vmem [#allocation1], 32
      %9955 = vst [vmem:[%s9954] ss:$2 sm:$0xff] %v9786
      %s9956 = scalar_lea.vmem [#allocation1], 33
      %9957 = vst [vmem:[%s9956] ss:$2 sm:$0xff] %v9790
      %s9958 = scalar_lea.vmem [#allocation1], 48
      %9959 = vst [vmem:[%s9958] ss:$2 sm:$0xff] %v9794
      %s9960 = scalar_lea.vmem [#allocation1], 49
      %9961 = vst [vmem:[%s9960] ss:$2 sm:$0xff] %v9946
      %v9962 = vld.sshfl [vmem:[#allocation1] sm:$0xff pattern:$0x75316420]
      %v9963 = vld.sshfl [vmem:[#allocation1 + $0x10] sm:$0xff pattern:$0x75316420]
      %v9964 = vld.sshfl [vmem:[#allocation1 + $0x20] sm:$0xff pattern:$0x75316420]
      %v9965 = vld.sshfl [vmem:[#allocation1 + $0x30] sm:$0xff pattern:$0x75316420]
      %9970 = vst.msk [vmem:[#allocation6 + $0x8] sm:$0xff] %vm7207, %v9962
      %9971 = vst.msk [vmem:[#allocation6 + $0x20] sm:$0xff] %vm7207, %v9963
      %9972 = vst.msk [vmem:[#allocation6 + $0x38] sm:$0xff] %vm7207, %v9964
      %9973 = vst.msk [vmem:[#allocation6 + $0x50] sm:$0xff] %vm7207, %v9965
      %v9974 = vrot.slane %v9709, 6
      %v9975 = vrot.slane %v9974, 4
      %v9976 = vrot.slane %v9937, 6
      %v9977 = vsel %vm9832, %v9975, %v9976
      %v9978 = vrot.slane %v9715, 6
      %v9979 = vrot.slane %v9978, 4
      %v9980 = vrot.slane %v9938, 6
      %v9981 = vsel %vm9832, %v9979, %v9980
      %9982 = vst [vmem:[#allocation1] ss:$2 sm:$0xff] %v9840
      %s9983 = scalar_lea.vmem [#allocation1], 1
      %9984 = vst [vmem:[%s9983] ss:$2 sm:$0xff] %v9844
      %s9985 = scalar_lea.vmem [#allocation1], 16
      %9986 = vst [vmem:[%s9985] ss:$2 sm:$0xff] %v9848
      %s9987 = scalar_lea.vmem [#allocation1], 17
      %9988 = vst [vmem:[%s9987] ss:$2 sm:$0xff] %v9977
      %s9989 = scalar_lea.vmem [#allocation1], 32
      %9990 = vst [vmem:[%s9989] ss:$2 sm:$0xff] %v9856
      %s9991 = scalar_lea.vmem [#allocation1], 33
      %9992 = vst [vmem:[%s9991] ss:$2 sm:$0xff] %v9860
      %s9993 = scalar_lea.vmem [#allocation1], 48
      %9994 = vst [vmem:[%s9993] ss:$2 sm:$0xff] %v9864
      %s9995 = scalar_lea.vmem [#allocation1], 49
      %9996 = vst [vmem:[%s9995] ss:$2 sm:$0xff] %v9981
      %v9997 = vld.sshfl [vmem:[#allocation1] sm:$0xff pattern:$0x75316420]
      %v9998 = vld.sshfl [vmem:[#allocation1 + $0x10] sm:$0xff pattern:$0x75316420]
      %v9999 = vld.sshfl [vmem:[#allocation1 + $0x20] sm:$0xff pattern:$0x75316420]
      %v10000 = vld.sshfl [vmem:[#allocation1 + $0x30] sm:$0xff pattern:$0x75316420]
      %10001 = vrot.lane.b32.xlu0 %v9997, 32
      %v10002 = vpop.permute.xlu0 %10001
      %10003 = vrot.lane.b32.xlu0 %v9998, 32
      %v10004 = vpop.permute.xlu0 %10003
      %10005 = vrot.lane.b32.xlu0 %v9999, 32
      %v10006 = vpop.permute.xlu0 %10005
      %10007 = vrot.lane.b32.xlu0 %v10000, 32
      %v10008 = vpop.permute.xlu0 %10007
      %10013 = vst.msk [vmem:[#allocation6 + $0x8] sm:$0xff] %vm8096, %v10002
      %10014 = vst.msk [vmem:[#allocation6 + $0x20] sm:$0xff] %vm8096, %v10004
      %10015 = vst.msk [vmem:[#allocation6 + $0x38] sm:$0xff] %vm8096, %v10006
      %10016 = vst.msk [vmem:[#allocation6 + $0x50] sm:$0xff] %vm8096, %v10008
      %10019 = vst [vmem:[#allocation1] ss:$2 sm:$0xff] %v9707
      %s10020 = scalar_lea.vmem [#allocation1], 1
      %10021 = vst [vmem:[%s10020] ss:$2 sm:$0xff] %v9708
      %s10022 = scalar_lea.vmem [#allocation1], 16
      %10023 = vst [vmem:[%s10022] ss:$2 sm:$0xff] %v9709
      %s10024 = scalar_lea.vmem [#allocation1], 17
      %10025 = vst [vmem:[%s10024] ss:$2 sm:$0xff] %v9710
      %s10026 = scalar_lea.vmem [#allocation1], 32
      %10027 = vst [vmem:[%s10026] ss:$2 sm:$0xff] %v9713
      %s10028 = scalar_lea.vmem [#allocation1], 33
      %10029 = vst [vmem:[%s10028] ss:$2 sm:$0xff] %v9714
      %s10030 = scalar_lea.vmem [#allocation1], 48
      %10031 = vst [vmem:[%s10030] ss:$2 sm:$0xff] %v9715
      %s10032 = scalar_lea.vmem [#allocation1], 49
      %10033 = vst [vmem:[%s10032] ss:$2 sm:$0xff] %v9716
      %v10034 = vld.sshfl [vmem:[#allocation1] sm:$0xff pattern:$0x75316420]
      %v10035 = vld.sshfl [vmem:[#allocation1 + $0x10] sm:$0xff pattern:$0x75316420]
      %v10036 = vld.sshfl [vmem:[#allocation1 + $0x20] sm:$0xff pattern:$0x75316420]
      %v10037 = vld.sshfl [vmem:[#allocation1 + $0x30] sm:$0xff pattern:$0x75316420]
      %10038 = vrot.lane.b32.xlu0 %v10034, 64
      %v10039 = vpop.permute.xlu0 %10038
      %10040 = vrot.lane.b32.xlu0 %v10035, 64
      %v10041 = vpop.permute.xlu0 %10040
      %10042 = vrot.lane.b32.xlu0 %v10036, 64
      %v10043 = vpop.permute.xlu0 %10042
      %10044 = vrot.lane.b32.xlu0 %v10037, 64
      %v10045 = vpop.permute.xlu0 %10044
      %10050 = vst.msk [vmem:[#allocation6 + $0x8] sm:$0xff] %vm8209, %v10039
      %10051 = vst.msk [vmem:[#allocation6 + $0x20] sm:$0xff] %vm8209, %v10041
      %10052 = vst.msk [vmem:[#allocation6 + $0x38] sm:$0xff] %vm8209, %v10043
      %10053 = vst.msk [vmem:[#allocation6 + $0x50] sm:$0xff] %vm8209, %v10045
      %v10054 = vrot.slane %v9710, 4
      %v10055 = vrot.slane %v9716, 4
      %v10056 = vrot.slane %v9710, 5
      %v10057 = vrot.slane %v10056, 4
      %v10058 = vrot.slane %v10054, 5
      %v10059 = vsel %vm9762, %v10057, %v10058
      %v10060 = vrot.slane %v9716, 5
      %v10061 = vrot.slane %v10060, 4
      %v10062 = vrot.slane %v10055, 5
      %v10063 = vsel %vm9762, %v10061, %v10062
      %10064 = vst [vmem:[#allocation1] ss:$2 sm:$0xff] %v9774
      %s10065 = scalar_lea.vmem [#allocation1], 1
      %10066 = vst [vmem:[%s10065] ss:$2 sm:$0xff] %v9778
      %s10067 = scalar_lea.vmem [#allocation1], 16
      %10068 = vst [vmem:[%s10067] ss:$2 sm:$0xff] %v9942
      %s10069 = scalar_lea.vmem [#allocation1], 17
      %10070 = vst [vmem:[%s10069] ss:$2 sm:$0xff] %v10059
      %s10071 = scalar_lea.vmem [#allocation1], 32
      %10072 = vst [vmem:[%s10071] ss:$2 sm:$0xff] %v9790
      %s10073 = scalar_lea.vmem [#allocation1], 33
      %10074 = vst [vmem:[%s10073] ss:$2 sm:$0xff] %v9794
      %s10075 = scalar_lea.vmem [#allocation1], 48
      %10076 = vst [vmem:[%s10075] ss:$2 sm:$0xff] %v9946
      %s10077 = scalar_lea.vmem [#allocation1], 49
      %10078 = vst [vmem:[%s10077] ss:$2 sm:$0xff] %v10063
      %v10079 = vld.sshfl [vmem:[#allocation1] sm:$0xff pattern:$0x75316420]
      %v10080 = vld.sshfl [vmem:[#allocation1 + $0x10] sm:$0xff pattern:$0x75316420]
      %v10081 = vld.sshfl [vmem:[#allocation1 + $0x20] sm:$0xff pattern:$0x75316420]
      %v10082 = vld.sshfl [vmem:[#allocation1 + $0x30] sm:$0xff pattern:$0x75316420]
      %10083 = vrot.lane.b32.xlu0 %v10079, 96
      %v10084 = vpop.permute.xlu0 %10083
      %10085 = vrot.lane.b32.xlu0 %v10080, 96
      %v10086 = vpop.permute.xlu0 %10085
      %10087 = vrot.lane.b32.xlu0 %v10081, 96
      %v10088 = vpop.permute.xlu0 %10087
      %10089 = vrot.lane.b32.xlu0 %v10082, 96
      %v10090 = vpop.permute.xlu0 %10089
      %10095 = vst.msk [vmem:[#allocation6 + $0x8] sm:$0xff] %vm8276, %v10084
      %10096 = vst.msk [vmem:[#allocation6 + $0x20] sm:$0xff] %vm8276, %v10086
      %10097 = vst.msk [vmem:[#allocation6 + $0x38] sm:$0xff] %vm8276, %v10088
      %10098 = vst.msk [vmem:[#allocation6 + $0x50] sm:$0xff] %vm8276, %v10090
      %v10099 = vrot.slane %v9710, 6
      %v10100 = vrot.slane %v10099, 4
      %v10101 = vrot.slane %v10054, 6
      %v10102 = vsel %vm9832, %v10100, %v10101
      %v10103 = vrot.slane %v9716, 6
      %v10104 = vrot.slane %v10103, 4
      %v10105 = vrot.slane %v10055, 6
      %v10106 = vsel %vm9832, %v10104, %v10105
      %10107 = vst [vmem:[#allocation1] ss:$2 sm:$0xff] %v9844
      %s10108 = scalar_lea.vmem [#allocation1], 1
      %10109 = vst [vmem:[%s10108] ss:$2 sm:$0xff] %v9848
      %s10110 = scalar_lea.vmem [#allocation1], 16
      %10111 = vst [vmem:[%s10110] ss:$2 sm:$0xff] %v9977
      %s10112 = scalar_lea.vmem [#allocation1], 17
      %10113 = vst [vmem:[%s10112] ss:$2 sm:$0xff] %v10102
      %s10114 = scalar_lea.vmem [#allocation1], 32
      %10115 = vst [vmem:[%s10114] ss:$2 sm:$0xff] %v9860
      %s10116 = scalar_lea.vmem [#allocation1], 33
      %10117 = vst [vmem:[%s10116] ss:$2 sm:$0xff] %v9864
      %s10118 = scalar_lea.vmem [#allocation1], 48
      %10119 = vst [vmem:[%s10118] ss:$2 sm:$0xff] %v9981
      %s10120 = scalar_lea.vmem [#allocation1], 49
      %10121 = vst [vmem:[%s10120] ss:$2 sm:$0xff] %v10106
      %v10122 = vld.sshfl [vmem:[#allocation1] sm:$0xff pattern:$0x75316420]
      %v10123 = vld.sshfl [vmem:[#allocation1 + $0x10] sm:$0xff pattern:$0x75316420]
      %v10124 = vld.sshfl [vmem:[#allocation1 + $0x20] sm:$0xff pattern:$0x75316420]
      %v10125 = vld.sshfl [vmem:[#allocation1 + $0x30] sm:$0xff pattern:$0x75316420]
      %10130 = vst.msk [vmem:[#allocation6 + $0x10] sm:$0xff] %vm7207, %v10122
      %10131 = vst.msk [vmem:[#allocation6 + $0x28] sm:$0xff] %vm7207, %v10123
      %10132 = vst.msk [vmem:[#allocation6 + $0x40] sm:$0xff] %vm7207, %v10124
      %10133 = vst.msk [vmem:[#allocation6 + $0x58] sm:$0xff] %vm7207, %v10125
      %v10134 = vld [vmem:[#allocation6] sm:$0xff]
      %v10135 = vld [vmem:[#allocation6 + $0x8] sm:$0xff]
      %v10136 = vld [vmem:[#allocation6 + $0x10] sm:$0xff]
      %v10137 = vld [vmem:[#allocation6 + $0x18] sm:$0xff]
      %v10138 = vld [vmem:[#allocation6 + $0x20] sm:$0xff]
      %v10139 = vld [vmem:[#allocation6 + $0x28] sm:$0xff]
      %v10140 = vld [vmem:[#allocation6 + $0x30] sm:$0xff]
      %v10141 = vld [vmem:[#allocation6 + $0x38] sm:$0xff]
      %v10142 = vld [vmem:[#allocation6 + $0x40] sm:$0xff]
      %v10143 = vld [vmem:[#allocation6 + $0x48] sm:$0xff]
      %v10144 = vld [vmem:[#allocation6 + $0x50] sm:$0xff]
      %v10145 = vld [vmem:[#allocation6 + $0x58] sm:$0xff]
      %v10146 = vld [vmem:[%s8] sm:$0xff]
      %v10147 = vld [vmem:[%s8 + $0x8] sm:$0xff]
      %v10148 = vld [vmem:[%s8 + $0x10] sm:$0xff]
      %v10149 = vld [vmem:[%s8 + $0x18] sm:$0xff]
      %v10150 = vld [vmem:[%s8 + $0x20] sm:$0xff]
      %v10151 = vld [vmem:[%s8 + $0x28] sm:$0xff]
      %v10152 = vld [vmem:[%s8 + $0x30] sm:$0xff]
      %v10153 = vld [vmem:[%s8 + $0x38] sm:$0xff]
      %v10154 = vld [vmem:[%s8 + $0x40] sm:$0xff]
      %v10155 = vld [vmem:[%s8 + $0x48] sm:$0xff]
      %v10156 = vld [vmem:[%s8 + $0x50] sm:$0xff]
      %v10157 = vld [vmem:[%s8 + $0x58] sm:$0xff]
      %v10158 = vld [vmem:[%s8 + $0x60] sm:$0xff]
      %v10159 = vld [vmem:[%s8 + $0x68] sm:$0xff]
      %v10160 = vld [vmem:[%s8 + $0x70] sm:$0xff]
      %v10161 = vld [vmem:[%s8 + $0x78] sm:$0xff]
      %v10162 = vld [vmem:[%s8 + $0x80] sm:$0xff]
      %v10163 = vld [vmem:[%s8 + $0x88] sm:$0xff]
      %v10164 = vld [vmem:[%s8 + $0x90] sm:$0xff]
      %v10165 = vld [vmem:[%s8 + $0x98] sm:$0xff]
      %v10166 = vld [vmem:[%s8 + $0xa0] sm:$0xff]
      %v10167 = vld [vmem:[%s8 + $0xa8] sm:$0xff]
      %v10168 = vld [vmem:[%s8 + $0xb0] sm:$0xff]
      %v10169 = vld [vmem:[%s8 + $0xb8] sm:$0xff]
      %v10170 = vld [vmem:[%s8 + $0xc0] sm:$0xff]
      %v10171 = vld [vmem:[%s8 + $0xc8] sm:$0xff]
      %v10172 = vld [vmem:[%s8 + $0xd0] sm:$0xff]
      %v10173 = vld [vmem:[%s8 + $0xd8] sm:$0xff]
      %v10174 = vld [vmem:[%s8 + $0xe0] sm:$0xff]
      %v10175 = vld [vmem:[%s8 + $0xe8] sm:$0xff]
      %v10176 = vld [vmem:[%s8 + $0xf0] sm:$0xff]
      %v10177 = vld [vmem:[%s8 + $0xf8] sm:$0xff]
      %v10178 = vld [vmem:[%s8 + $0x100] sm:$0xff]
      %v10179 = vld [vmem:[%s8 + $0x108] sm:$0xff]
      %v10180 = vld [vmem:[%s8 + $0x110] sm:$0xff]
      %v10181 = vld [vmem:[%s8 + $0x118] sm:$0xff]
      %v10183 = vsel %vm7207, %v10136, 0
      %v10186 = vsel %vm7207, %v10139, 0
      %v10189 = vsel %vm7207, %v10142, 0
      %v10192 = vsel %vm7207, %v10145, 0
      %10194 = vmatpush.msra.mxu0 %v10161
      %10195 = vmatpush.msra.mxu0 %v10160
      %10196 = vmatpush.msra.mxu0 %v10159
      %10197 = vmatpush.msra.mxu0 %v10158
      %10198 = vmatpush.msra.mxu0 %v10157
      %10199 = vmatpush.msra.mxu0 %v10156
      %10200 = vmatpush.msra.mxu0 %v10155
      %10201 = vmatpush.msra.mxu0 %v10154
      %10202 = vmatpush.msra.mxu0 %v10153
      %10203 = vmatpush.msra.mxu0 %v10152
      %10204 = vmatpush.msra.mxu0 %v10151
      %10205 = vmatpush.msra.mxu0 %v10150
      %10206 = vmatpush.msra.mxu0 %v10149
      %10207 = vmatpush.msra.mxu0 %v10148
      %10208 = vmatpush.msra.mxu0 %v10147
      %10209 = vmatpush.msra.mxu0 %v10146
      %10210 = vmatmul.f32.gmra.mxu0 %v10134
      %v10211 = vpop.f32.mrf.mxu0
      %v10212 = vadd.f32 0.0, %v10211
      %10213 = vmatmul.f32.gmra.mxu0 %v10137
      %v10214 = vpop.f32.mrf.mxu0
      %v10215 = vadd.f32 0.0, %v10214
      %10216 = vmatmul.f32.gmra.mxu0 %v10140
      %v10217 = vpop.f32.mrf.mxu0
      %v10218 = vadd.f32 0.0, %v10217
      %10219 = vmatmul.f32.gmra.mxu0 %v10143
      %v10220 = vpop.f32.mrf.mxu0
      %v10221 = vadd.f32 0.0, %v10220
      %10222 = vdwg.mxu0
      %10223 = vmatpush.msra.mxu0 %v10177
      %10224 = vmatpush.msra.mxu0 %v10176
      %10225 = vmatpush.msra.mxu0 %v10175
      %10226 = vmatpush.msra.mxu0 %v10174
      %10227 = vmatpush.msra.mxu0 %v10173
      %10228 = vmatpush.msra.mxu0 %v10172
      %10229 = vmatpush.msra.mxu0 %v10171
      %10230 = vmatpush.msra.mxu0 %v10170
      %10231 = vmatpush.msra.mxu0 %v10169
      %10232 = vmatpush.msra.mxu0 %v10168
      %10233 = vmatpush.msra.mxu0 %v10167
      %10234 = vmatpush.msra.mxu0 %v10166
      %10235 = vmatpush.msra.mxu0 %v10165
      %10236 = vmatpush.msra.mxu0 %v10164
      %10237 = vmatpush.msra.mxu0 %v10163
      %10238 = vmatpush.msra.mxu0 %v10162
      %10239 = vmatmul.f32.gmra.mxu0 %v10135
      %v10240 = vpop.f32.mrf.mxu0
      %v10241 = vadd.f32 %v10212, %v10240
      %10242 = vmatmul.f32.gmra.mxu0 %v10138
      %v10243 = vpop.f32.mrf.mxu0
      %v10244 = vadd.f32 %v10215, %v10243
      %10245 = vmatmul.f32.gmra.mxu0 %v10141
      %v10246 = vpop.f32.mrf.mxu0
      %v10247 = vadd.f32 %v10218, %v10246
      %10248 = vmatmul.f32.gmra.mxu0 %v10144
      %v10249 = vpop.f32.mrf.mxu0
      %v10250 = vadd.f32 %v10221, %v10249
      %10251 = vdwg.mxu0
      %10252 = vmatpush.msra.mxu0 0.0
      %10253 = vmatpush.msra.mxu0 0.0
      %10254 = vmatpush.msra.mxu0 0.0
      %10255 = vmatpush.msra.mxu0 0.0
      %10256 = vmatpush.msra.mxu0 0.0
      %10257 = vmatpush.msra.mxu0 0.0
      %10258 = vmatpush.msra.mxu0 0.0
      %10259 = vmatpush.msra.mxu0 0.0
      %10260 = vmatpush.msra.mxu0 0.0
      %10261 = vmatpush.msra.mxu0 0.0
      %10262 = vmatpush.msra.mxu0 0.0
      %10263 = vmatpush.msra.mxu0 0.0
      %10264 = vmatpush.msra.mxu0 %v10181
      %10265 = vmatpush.msra.mxu0 %v10180
      %10266 = vmatpush.msra.mxu0 %v10179
      %10267 = vmatpush.msra.mxu0 %v10178
      %10268 = vmatmul.f32.gmra.mxu0 %v10183
      %v10269 = vpop.f32.mrf.mxu0
      %v10270 = vadd.f32 %v10241, %v10269
      %10271 = vmatmul.f32.gmra.mxu0 %v10186
      %v10272 = vpop.f32.mrf.mxu0
      %v10273 = vadd.f32 %v10244, %v10272
      %10274 = vmatmul.f32.gmra.mxu0 %v10189
      %v10275 = vpop.f32.mrf.mxu0
      %v10276 = vadd.f32 %v10247, %v10275
      %10277 = vmatmul.f32.gmra.mxu0 %v10192
      %v10278 = vpop.f32.mrf.mxu0
      %v10279 = vadd.f32 %v10250, %v10278
      %10280 = vdwg.mxu0
      %v10281 = vld [vmem:[%s9] sm:$0x1]
      %v10283 = vperm.slane %v10281, 0
      %v10285 = vmul.f32 %v10270, %v10283
      %v10286 = vmul.f32 %v10273, %v10283
      %v10287 = vmul.f32 %v10276, %v10283
      %v10288 = vmul.f32 %v10279, %v10283
      %v10289 = vld [vmem:[%s10] sm:$0x1]
      %v10291 = vperm.slane %v10289, 0
      %v10293 = vadd.f32 %v10285, %v10291
      %v10294 = vadd.f32 %v10286, %v10291
      %v10295 = vadd.f32 %v10287, %v10291
      %v10296 = vadd.f32 %v10288, %v10291
      %v10297 = vmax.f32 %v10293, 0.0
      %v10298 = vmax.f32 %v10294, 0.0
      %v10299 = vmax.f32 %v10295, 0.0
      %v10300 = vmax.f32 %v10296, 0.0
      %v10305 = vrot.slane %v10297, 2
      %v10306 = vrot.slane %v10297, 4
      %v10307 = vrot.slane %v10297, 6
      %v10308 = vrot.slane %v10298, 2
      %v10309 = vrot.slane %v10298, 4
      %v10310 = vrot.slane %v10298, 6
      %v10311 = vrot.slane %v10299, 2
      %v10312 = vrot.slane %v10299, 4
      %v10313 = vrot.slane %v10299, 6
      %v10314 = vrot.slane %v10300, 2
      %v10315 = vrot.slane %v10300, 4
      %v10316 = vrot.slane %v10300, 6
      %v10329 = vsel %vm5414, %v10297, -inf
      %v10330 = vrot.slane %v10329, 4
      %v10331 = vmax.f32 %v10329, %v10330
      %v10332 = vrot.slane %v10331, 2
      %v10333 = vmax.f32 %v10331, %v10332
      %v10334 = vrot.slane %v10333, 1
      %v10335 = vmax.f32 %v10333, %v10334
      %v10336 = vsel %vm5414, %v10305, -inf
      %v10337 = vrot.slane %v10336, 4
      %v10338 = vmax.f32 %v10336, %v10337
      %v10339 = vrot.slane %v10338, 2
      %v10340 = vmax.f32 %v10338, %v10339
      %v10341 = vrot.slane %v10340, 1
      %v10342 = vmax.f32 %v10340, %v10341
      %v10343 = vsel %vm5414, %v10306, -inf
      %v10344 = vrot.slane %v10343, 4
      %v10345 = vmax.f32 %v10343, %v10344
      %v10346 = vrot.slane %v10345, 2
      %v10347 = vmax.f32 %v10345, %v10346
      %v10348 = vrot.slane %v10347, 1
      %v10349 = vmax.f32 %v10347, %v10348
      %v10350 = vsel %vm5414, %v10307, -inf
      %v10351 = vrot.slane %v10350, 4
      %v10352 = vmax.f32 %v10350, %v10351
      %v10353 = vrot.slane %v10352, 2
      %v10354 = vmax.f32 %v10352, %v10353
      %v10355 = vrot.slane %v10354, 1
      %v10356 = vmax.f32 %v10354, %v10355
      %v10357 = vsel %vm5414, %v10298, -inf
      %v10358 = vrot.slane %v10357, 4
      %v10359 = vmax.f32 %v10357, %v10358
      %v10360 = vrot.slane %v10359, 2
      %v10361 = vmax.f32 %v10359, %v10360
      %v10362 = vrot.slane %v10361, 1
      %v10363 = vmax.f32 %v10361, %v10362
      %v10364 = vsel %vm5414, %v10308, -inf
      %v10365 = vrot.slane %v10364, 4
      %v10366 = vmax.f32 %v10364, %v10365
      %v10367 = vrot.slane %v10366, 2
      %v10368 = vmax.f32 %v10366, %v10367
      %v10369 = vrot.slane %v10368, 1
      %v10370 = vmax.f32 %v10368, %v10369
      %v10371 = vsel %vm5414, %v10309, -inf
      %v10372 = vrot.slane %v10371, 4
      %v10373 = vmax.f32 %v10371, %v10372
      %v10374 = vrot.slane %v10373, 2
      %v10375 = vmax.f32 %v10373, %v10374
      %v10376 = vrot.slane %v10375, 1
      %v10377 = vmax.f32 %v10375, %v10376
      %v10378 = vsel %vm5414, %v10310, -inf
      %v10379 = vrot.slane %v10378, 4
      %v10380 = vmax.f32 %v10378, %v10379
      %v10381 = vrot.slane %v10380, 2
      %v10382 = vmax.f32 %v10380, %v10381
      %v10383 = vrot.slane %v10382, 1
      %v10384 = vmax.f32 %v10382, %v10383
      %v10385 = vsel %vm5414, %v10299, -inf
      %v10386 = vrot.slane %v10385, 4
      %v10387 = vmax.f32 %v10385, %v10386
      %v10388 = vrot.slane %v10387, 2
      %v10389 = vmax.f32 %v10387, %v10388
      %v10390 = vrot.slane %v10389, 1
      %v10391 = vmax.f32 %v10389, %v10390
      %v10392 = vsel %vm5414, %v10311, -inf
      %v10393 = vrot.slane %v10392, 4
      %v10394 = vmax.f32 %v10392, %v10393
      %v10395 = vrot.slane %v10394, 2
      %v10396 = vmax.f32 %v10394, %v10395
      %v10397 = vrot.slane %v10396, 1
      %v10398 = vmax.f32 %v10396, %v10397
      %v10399 = vsel %vm5414, %v10312, -inf
      %v10400 = vrot.slane %v10399, 4
      %v10401 = vmax.f32 %v10399, %v10400
      %v10402 = vrot.slane %v10401, 2
      %v10403 = vmax.f32 %v10401, %v10402
      %v10404 = vrot.slane %v10403, 1
      %v10405 = vmax.f32 %v10403, %v10404
      %v10406 = vsel %vm5414, %v10313, -inf
      %v10407 = vrot.slane %v10406, 4
      %v10408 = vmax.f32 %v10406, %v10407
      %v10409 = vrot.slane %v10408, 2
      %v10410 = vmax.f32 %v10408, %v10409
      %v10411 = vrot.slane %v10410, 1
      %v10412 = vmax.f32 %v10410, %v10411
      %v10413 = vsel %vm5414, %v10300, -inf
      %v10414 = vrot.slane %v10413, 4
      %v10415 = vmax.f32 %v10413, %v10414
      %v10416 = vrot.slane %v10415, 2
      %v10417 = vmax.f32 %v10415, %v10416
      %v10418 = vrot.slane %v10417, 1
      %v10419 = vmax.f32 %v10417, %v10418
      %v10420 = vsel %vm5414, %v10314, -inf
      %v10421 = vrot.slane %v10420, 4
      %v10422 = vmax.f32 %v10420, %v10421
      %v10423 = vrot.slane %v10422, 2
      %v10424 = vmax.f32 %v10422, %v10423
      %v10425 = vrot.slane %v10424, 1
      %v10426 = vmax.f32 %v10424, %v10425
      %v10427 = vsel %vm5414, %v10315, -inf
      %v10428 = vrot.slane %v10427, 4
      %v10429 = vmax.f32 %v10427, %v10428
      %v10430 = vrot.slane %v10429, 2
      %v10431 = vmax.f32 %v10429, %v10430
      %v10432 = vrot.slane %v10431, 1
      %v10433 = vmax.f32 %v10431, %v10432
      %v10434 = vsel %vm5414, %v10316, -inf
      %v10435 = vrot.slane %v10434, 4
      %v10436 = vmax.f32 %v10434, %v10435
      %v10437 = vrot.slane %v10436, 2
      %v10438 = vmax.f32 %v10436, %v10437
      %v10439 = vrot.slane %v10438, 1
      %v10440 = vmax.f32 %v10438, %v10439
      %v10441 = vsel %vm7207, %v10335, -inf
      %v10442 = vsel %vm7207, %v10349, -inf
      %v10443 = vmax.f32 %v10441, %v10442
      %v10444 = vsel %vm7207, %v10342, -inf
      %v10445 = vsel %vm7207, %v10356, -inf
      %v10446 = vmax.f32 %v10444, %v10445
      %v10447 = vsel %vm7207, %v10363, -inf
      %v10448 = vsel %vm7207, %v10377, -inf
      %v10449 = vmax.f32 %v10447, %v10448
      %v10450 = vsel %vm7207, %v10370, -inf
      %v10451 = vsel %vm7207, %v10384, -inf
      %v10452 = vmax.f32 %v10450, %v10451
      %v10453 = vsel %vm7207, %v10391, -inf
      %v10454 = vsel %vm7207, %v10405, -inf
      %v10455 = vmax.f32 %v10453, %v10454
      %v10456 = vsel %vm7207, %v10398, -inf
      %v10457 = vsel %vm7207, %v10412, -inf
      %v10458 = vmax.f32 %v10456, %v10457
      %v10459 = vsel %vm7207, %v10419, -inf
      %v10460 = vsel %vm7207, %v10433, -inf
      %v10461 = vmax.f32 %v10459, %v10460
      %v10462 = vsel %vm7207, %v10426, -inf
      %v10463 = vsel %vm7207, %v10440, -inf
      %v10464 = vmax.f32 %v10462, %v10463
      %10465 = vst.msk [vmem:[#allocation5] sm:$0xf] %vm9696, 0.0
      %10466 = vst.msk [vmem:[#allocation5 + $0x4] sm:$0xf] %vm9696, 0.0
      %10467 = vst.msk [vmem:[#allocation5 + $0x8] sm:$0xf] %vm9696, 0.0
      %10468 = vst.msk [vmem:[#allocation5 + $0xc] sm:$0xf] %vm9696, 0.0
      %10469 = vst.msk [vmem:[#allocation5 + $0x10] sm:$0xf] %vm9696, 0.0
      %10470 = vst.msk [vmem:[#allocation5 + $0x14] sm:$0xf] %vm9696, 0.0
      %10471 = vst.msk [vmem:[#allocation5 + $0x18] sm:$0xf] %vm9696, 0.0
      %10472 = vst.msk [vmem:[#allocation5 + $0x1c] sm:$0xf] %vm9696, 0.0
      %v10481 = vsel %vm7760, %v10446, %v10443
      %v10482 = vsel %vm7760, %v10452, %v10449
      %v10483 = vsel %vm7760, %v10458, %v10455
      %v10484 = vsel %vm7760, %v10464, %v10461
      %s10489 = scalar_lea.vmem [#allocation5], 4
      %10490 = vst.msk [vmem:[%s10489 + $0x1] sm:$0x3] %vm5414, %v10481
      %10491 = vst.msk [vmem:[%s10489 + $0x5] sm:$0x3] %vm5414, %v10482
      %10492 = vst.msk [vmem:[%s10489 + $0x11] sm:$0x3] %vm5414, %v10483
      %10493 = vst.msk [vmem:[%s10489 + $0x15] sm:$0x3] %vm5414, %v10484
      %v10494 = vld [vmem:[#allocation5] sm:$0xf]
      %v10495 = vld [vmem:[#allocation5 + $0x4] sm:$0xf]
      %v10496 = vld [vmem:[#allocation5 + $0x8] sm:$0xf]
      %v10497 = vld [vmem:[#allocation5 + $0xc] sm:$0xf]
      %v10498 = vld [vmem:[#allocation5 + $0x10] sm:$0xf]
      %v10499 = vld [vmem:[#allocation5 + $0x14] sm:$0xf]
      %v10500 = vld [vmem:[#allocation5 + $0x18] sm:$0xf]
      %v10501 = vld [vmem:[#allocation5 + $0x1c] sm:$0xf]
      %10506 = vst [vmem:[#allocation1] ss:$4 sm:$0xff] %v10494
      %s10507 = scalar_lea.vmem [#allocation1], 1
      %10508 = vst [vmem:[%s10507] ss:$4 sm:$0xff] %v10495
      %s10509 = scalar_lea.vmem [#allocation1], 2
      %10510 = vst [vmem:[%s10509] ss:$4 sm:$0xff] %v10498
      %s10511 = scalar_lea.vmem [#allocation1], 3
      %10512 = vst [vmem:[%s10511] ss:$4 sm:$0xff] %v10499
      %v10513 = vld.sshfl [vmem:[#allocation1] sm:$0xff pattern:$0x73625140]
      %10515 = vst.msk [vmem:[#allocation6] sm:$0xff] %vm7207, %v10513
      %v10516 = vrot.slane %v10494, 2
      %v10517 = vrot.slane %v10495, 2
      %v10518 = vrot.slane %v10498, 2
      %v10519 = vrot.slane %v10499, 2
      %vm10520 = vcmask 1040384
      %vm10521 = vmor %vm10520, %vm7762
      %vm10522 = vmor %vm10521, %vm7766
      %vm10523 = vmor %vm10522, %vm7770
      %v10524 = vrot.slane %v10494, 7
      %v10525 = vrot.slane %v10524, 2
      %v10526 = vrot.slane %v10516, 7
      %v10527 = vsel %vm10523, %v10525, %v10526
      %v10528 = vrot.slane %v10495, 7
      %v10529 = vrot.slane %v10528, 2
      %v10530 = vrot.slane %v10517, 7
      %v10531 = vsel %vm10523, %v10529, %v10530
      %v10532 = vrot.slane %v10498, 7
      %v10533 = vrot.slane %v10532, 2
      %v10534 = vrot.slane %v10518, 7
      %v10535 = vsel %vm10523, %v10533, %v10534
      %v10536 = vrot.slane %v10499, 7
      %v10537 = vrot.slane %v10536, 2
      %v10538 = vrot.slane %v10519, 7
      %v10539 = vsel %vm10523, %v10537, %v10538
      %10540 = vst [vmem:[#allocation1] ss:$4 sm:$0xff] %v10527
      %s10541 = scalar_lea.vmem [#allocation1], 1
      %10542 = vst [vmem:[%s10541] ss:$4 sm:$0xff] %v10531
      %s10543 = scalar_lea.vmem [#allocation1], 2
      %10544 = vst [vmem:[%s10543] ss:$4 sm:$0xff] %v10535
      %s10545 = scalar_lea.vmem [#allocation1], 3
      %10546 = vst [vmem:[%s10545] ss:$4 sm:$0xff] %v10539
      %v10547 = vld.sshfl [vmem:[#allocation1] sm:$0xff pattern:$0x73625140]
      %10548 = vrot.lane.b32.xlu0 %v10547, 32
      %v10549 = vpop.permute.xlu0 %10548
      %10551 = vst.msk [vmem:[#allocation6] sm:$0xff] %vm8096, %v10549
      %10552 = vst.sshfl [vmem:[#allocation1] sm:$0xff pattern:$0x73625140] %v10494
      %s10553 = scalar_lea.vmem [#allocation1], 1
      %v10554 = vld [vmem:[%s10553] ss:$4 sm:$0xff]
      %10555 = vst.sshfl [vmem:[#allocation1 + $0x20] sm:$0xff pattern:$0x73625140] %v10495
      %s10556 = scalar_lea.vmem [#allocation1], 33
      %v10557 = vld [vmem:[%s10556] ss:$4 sm:$0xff]
      %10558 = vst.sshfl [vmem:[#allocation1] sm:$0xff pattern:$0x73625140] %v10498
      %v10559 = vld [vmem:[%s10553] ss:$4 sm:$0xff]
      %10560 = vst.sshfl [vmem:[#allocation1 + $0x20] sm:$0xff pattern:$0x73625140] %v10499
      %v10561 = vld [vmem:[%s10556] ss:$4 sm:$0xff]
      %10562 = vst [vmem:[#allocation1] ss:$4 sm:$0xff] %v10554
      %s10563 = scalar_lea.vmem [#allocation1], 1
      %10564 = vst [vmem:[%s10563] ss:$4 sm:$0xff] %v10557
      %s10565 = scalar_lea.vmem [#allocation1], 2
      %10566 = vst [vmem:[%s10565] ss:$4 sm:$0xff] %v10559
      %s10567 = scalar_lea.vmem [#allocation1], 3
      %10568 = vst [vmem:[%s10567] ss:$4 sm:$0xff] %v10561
      %v10569 = vld.sshfl [vmem:[#allocation1] sm:$0xff pattern:$0x73625140]
      %10570 = vrot.lane.b32.xlu0 %v10569, 64
      %v10571 = vpop.permute.xlu0 %10570
      %10573 = vst.msk [vmem:[#allocation6] sm:$0xff] %vm8209, %v10571
      %10576 = vst [vmem:[#allocation1] ss:$4 sm:$0xff] %v10495
      %s10577 = scalar_lea.vmem [#allocation1], 1
      %10578 = vst [vmem:[%s10577] ss:$4 sm:$0xff] %v10496
      %s10579 = scalar_lea.vmem [#allocation1], 2
      %10580 = vst [vmem:[%s10579] ss:$4 sm:$0xff] %v10499
      %s10581 = scalar_lea.vmem [#allocation1], 3
      %10582 = vst [vmem:[%s10581] ss:$4 sm:$0xff] %v10500
      %v10583 = vld.sshfl [vmem:[#allocation1] sm:$0xff pattern:$0x73625140]
      %10584 = vrot.lane.b32.xlu0 %v10583, 96
      %v10585 = vpop.permute.xlu0 %10584
      %10587 = vst.msk [vmem:[#allocation6] sm:$0xff] %vm8276, %v10585
      %v10588 = vrot.slane %v10496, 2
      %v10589 = vrot.slane %v10500, 2
      %v10590 = vrot.slane %v10496, 7
      %v10591 = vrot.slane %v10590, 2
      %v10592 = vrot.slane %v10588, 7
      %v10593 = vsel %vm10523, %v10591, %v10592
      %v10594 = vrot.slane %v10500, 7
      %v10595 = vrot.slane %v10594, 2
      %v10596 = vrot.slane %v10589, 7
      %v10597 = vsel %vm10523, %v10595, %v10596
      %10598 = vst [vmem:[#allocation1] ss:$4 sm:$0xff] %v10531
      %s10599 = scalar_lea.vmem [#allocation1], 1
      %10600 = vst [vmem:[%s10599] ss:$4 sm:$0xff] %v10593
      %s10601 = scalar_lea.vmem [#allocation1], 2
      %10602 = vst [vmem:[%s10601] ss:$4 sm:$0xff] %v10539
      %s10603 = scalar_lea.vmem [#allocation1], 3
      %10604 = vst [vmem:[%s10603] ss:$4 sm:$0xff] %v10597
      %v10605 = vld.sshfl [vmem:[#allocation1] sm:$0xff pattern:$0x73625140]
      %10607 = vst.msk [vmem:[#allocation6 + $0x8] sm:$0xff] %vm7207, %v10605
      %10608 = vst.sshfl [vmem:[#allocation1] sm:$0xff pattern:$0x73625140] %v10495
      %s10609 = scalar_lea.vmem [#allocation1], 1
      %v10610 = vld [vmem:[%s10609] ss:$4 sm:$0xff]
      %10611 = vst.sshfl [vmem:[#allocation1 + $0x20] sm:$0xff pattern:$0x73625140] %v10496
      %s10612 = scalar_lea.vmem [#allocation1], 33
      %v10613 = vld [vmem:[%s10612] ss:$4 sm:$0xff]
      %10614 = vst.sshfl [vmem:[#allocation1] sm:$0xff pattern:$0x73625140] %v10499
      %v10615 = vld [vmem:[%s10609] ss:$4 sm:$0xff]
      %10616 = vst.sshfl [vmem:[#allocation1 + $0x20] sm:$0xff pattern:$0x73625140] %v10500
      %v10617 = vld [vmem:[%s10612] ss:$4 sm:$0xff]
      %10618 = vst [vmem:[#allocation1] ss:$4 sm:$0xff] %v10610
      %s10619 = scalar_lea.vmem [#allocation1], 1
      %10620 = vst [vmem:[%s10619] ss:$4 sm:$0xff] %v10613
      %s10621 = scalar_lea.vmem [#allocation1], 2
      %10622 = vst [vmem:[%s10621] ss:$4 sm:$0xff] %v10615
      %s10623 = scalar_lea.vmem [#allocation1], 3
      %10624 = vst [vmem:[%s10623] ss:$4 sm:$0xff] %v10617
      %v10625 = vld.sshfl [vmem:[#allocation1] sm:$0xff pattern:$0x73625140]
      %10626 = vrot.lane.b32.xlu0 %v10625, 32
      %v10627 = vpop.permute.xlu0 %10626
      %10629 = vst.msk [vmem:[#allocation6 + $0x8] sm:$0xff] %vm8096, %v10627
      %10632 = vst [vmem:[#allocation1] ss:$4 sm:$0xff] %v10496
      %s10633 = scalar_lea.vmem [#allocation1], 1
      %10634 = vst [vmem:[%s10633] ss:$4 sm:$0xff] %v10497
      %s10635 = scalar_lea.vmem [#allocation1], 2
      %10636 = vst [vmem:[%s10635] ss:$4 sm:$0xff] %v10500
      %s10637 = scalar_lea.vmem [#allocation1], 3
      %10638 = vst [vmem:[%s10637] ss:$4 sm:$0xff] %v10501
      %v10639 = vld.sshfl [vmem:[#allocation1] sm:$0xff pattern:$0x73625140]
      %10640 = vrot.lane.b32.xlu0 %v10639, 64
      %v10641 = vpop.permute.xlu0 %10640
      %10643 = vst.msk [vmem:[#allocation6 + $0x8] sm:$0xff] %vm8209, %v10641
      %v10644 = vrot.slane %v10497, 2
      %v10645 = vrot.slane %v10501, 2
      %v10646 = vrot.slane %v10497, 7
      %v10647 = vrot.slane %v10646, 2
      %v10648 = vrot.slane %v10644, 7
      %v10649 = vsel %vm10523, %v10647, %v10648
      %v10650 = vrot.slane %v10501, 7
      %v10651 = vrot.slane %v10650, 2
      %v10652 = vrot.slane %v10645, 7
      %v10653 = vsel %vm10523, %v10651, %v10652
      %10654 = vst [vmem:[#allocation1] ss:$4 sm:$0xff] %v10593
      %s10655 = scalar_lea.vmem [#allocation1], 1
      %10656 = vst [vmem:[%s10655] ss:$4 sm:$0xff] %v10649
      %s10657 = scalar_lea.vmem [#allocation1], 2
      %10658 = vst [vmem:[%s10657] ss:$4 sm:$0xff] %v10597
      %s10659 = scalar_lea.vmem [#allocation1], 3
      %10660 = vst [vmem:[%s10659] ss:$4 sm:$0xff] %v10653
      %v10661 = vld.sshfl [vmem:[#allocation1] sm:$0xff pattern:$0x73625140]
      %10662 = vrot.lane.b32.xlu0 %v10661, 96
      %v10663 = vpop.permute.xlu0 %10662
      %10665 = vst.msk [vmem:[#allocation6 + $0x8] sm:$0xff] %vm8276, %v10663
      %10666 = vst.sshfl [vmem:[#allocation1] sm:$0xff pattern:$0x73625140] %v10496
      %s10667 = scalar_lea.vmem [#allocation1], 1
      %v10668 = vld [vmem:[%s10667] ss:$4 sm:$0xff]
      %10669 = vst.sshfl [vmem:[#allocation1 + $0x20] sm:$0xff pattern:$0x73625140] %v10497
      %s10670 = scalar_lea.vmem [#allocation1], 33
      %v10671 = vld [vmem:[%s10670] ss:$4 sm:$0xff]
      %10672 = vst.sshfl [vmem:[#allocation1] sm:$0xff pattern:$0x73625140] %v10500
      %v10673 = vld [vmem:[%s10667] ss:$4 sm:$0xff]
      %10674 = vst.sshfl [vmem:[#allocation1 + $0x20] sm:$0xff pattern:$0x73625140] %v10501
      %v10675 = vld [vmem:[%s10670] ss:$4 sm:$0xff]
      %10676 = vst [vmem:[#allocation1] ss:$4 sm:$0xff] %v10668
      %s10677 = scalar_lea.vmem [#allocation1], 1
      %10678 = vst [vmem:[%s10677] ss:$4 sm:$0xff] %v10671
      %s10679 = scalar_lea.vmem [#allocation1], 2
      %10680 = vst [vmem:[%s10679] ss:$4 sm:$0xff] %v10673
      %s10681 = scalar_lea.vmem [#allocation1], 3
      %10682 = vst [vmem:[%s10681] ss:$4 sm:$0xff] %v10675
      %v10683 = vld.sshfl [vmem:[#allocation1] sm:$0xff pattern:$0x73625140]
      %10685 = vst.msk [vmem:[#allocation6 + $0x10] sm:$0xff] %vm7207, %v10683
      %v10686 = vld [vmem:[#allocation6] sm:$0xff]
      %v10687 = vld [vmem:[#allocation6 + $0x8] sm:$0xff]
      %v10688 = vld [vmem:[#allocation6 + $0x10] sm:$0xff]
      %v10689 = vld [vmem:[%s11] sm:$0xff]
      %v10690 = vld [vmem:[%s11 + $0x8] sm:$0xff]
      %v10691 = vld [vmem:[%s11 + $0x10] sm:$0xff]
      %v10692 = vld [vmem:[%s11 + $0x18] sm:$0xff]
      %v10693 = vld [vmem:[%s11 + $0x20] sm:$0xff]
      %v10694 = vld [vmem:[%s11 + $0x28] sm:$0xff]
      %v10695 = vld [vmem:[%s11 + $0x30] sm:$0xff]
      %v10696 = vld [vmem:[%s11 + $0x38] sm:$0xff]
      %v10697 = vld [vmem:[%s11 + $0x40] sm:$0xff]
      %v10698 = vld [vmem:[%s11 + $0x48] sm:$0xff]
      %v10699 = vld [vmem:[%s11 + $0x50] sm:$0xff]
      %v10700 = vld [vmem:[%s11 + $0x58] sm:$0xff]
      %v10701 = vld [vmem:[%s11 + $0x60] sm:$0xff]
      %v10702 = vld [vmem:[%s11 + $0x68] sm:$0xff]
      %v10703 = vld [vmem:[%s11 + $0x70] sm:$0xff]
      %v10704 = vld [vmem:[%s11 + $0x78] sm:$0xff]
      %v10705 = vld [vmem:[%s11 + $0x80] sm:$0xff]
      %v10706 = vld [vmem:[%s11 + $0x88] sm:$0xff]
      %v10707 = vld [vmem:[%s11 + $0x90] sm:$0xff]
      %v10708 = vld [vmem:[%s11 + $0x98] sm:$0xff]
      %v10709 = vld [vmem:[%s11 + $0xa0] sm:$0xff]
      %v10710 = vld [vmem:[%s11 + $0xa8] sm:$0xff]
      %v10711 = vld [vmem:[%s11 + $0xb0] sm:$0xff]
      %v10712 = vld [vmem:[%s11 + $0xb8] sm:$0xff]
      %v10713 = vld [vmem:[%s11 + $0xc0] sm:$0xff]
      %v10714 = vld [vmem:[%s11 + $0xc8] sm:$0xff]
      %v10715 = vld [vmem:[%s11 + $0xd0] sm:$0xff]
      %v10716 = vld [vmem:[%s11 + $0xd8] sm:$0xff]
      %v10717 = vld [vmem:[%s11 + $0xe0] sm:$0xff]
      %v10718 = vld [vmem:[%s11 + $0xe8] sm:$0xff]
      %v10719 = vld [vmem:[%s11 + $0xf0] sm:$0xff]
      %v10720 = vld [vmem:[%s11 + $0xf8] sm:$0xff]
      %v10721 = vld [vmem:[%s11 + $0x100] sm:$0xff]
      %v10722 = vld [vmem:[%s11 + $0x108] sm:$0xff]
      %v10723 = vld [vmem:[%s11 + $0x110] sm:$0xff]
      %v10724 = vld [vmem:[%s11 + $0x118] sm:$0xff]
      %v10726 = vsel %vm7207, %v10688, 0
      %10728 = vmatpush.msra.mxu0 %v10704
      %10729 = vmatpush.msra.mxu0 %v10703
      %10730 = vmatpush.msra.mxu0 %v10702
      %10731 = vmatpush.msra.mxu0 %v10701
      %10732 = vmatpush.msra.mxu0 %v10700
      %10733 = vmatpush.msra.mxu0 %v10699
      %10734 = vmatpush.msra.mxu0 %v10698
      %10735 = vmatpush.msra.mxu0 %v10697
      %10736 = vmatpush.msra.mxu0 %v10696
      %10737 = vmatpush.msra.mxu0 %v10695
      %10738 = vmatpush.msra.mxu0 %v10694
      %10739 = vmatpush.msra.mxu0 %v10693
      %10740 = vmatpush.msra.mxu0 %v10692
      %10741 = vmatpush.msra.mxu0 %v10691
      %10742 = vmatpush.msra.mxu0 %v10690
      %10743 = vmatpush.msra.mxu0 %v10689
      %10744 = vmatmul.f32.gmra.mxu0 %v10686
      %v10745 = vpop.f32.mrf.mxu0
      %v10746 = vadd.f32 0.0, %v10745
      %10747 = vdwg.mxu0
      %10748 = vmatpush.msra.mxu0 %v10720
      %10749 = vmatpush.msra.mxu0 %v10719
      %10750 = vmatpush.msra.mxu0 %v10718
      %10751 = vmatpush.msra.mxu0 %v10717
      %10752 = vmatpush.msra.mxu0 %v10716
      %10753 = vmatpush.msra.mxu0 %v10715
      %10754 = vmatpush.msra.mxu0 %v10714
      %10755 = vmatpush.msra.mxu0 %v10713
      %10756 = vmatpush.msra.mxu0 %v10712
      %10757 = vmatpush.msra.mxu0 %v10711
      %10758 = vmatpush.msra.mxu0 %v10710
      %10759 = vmatpush.msra.mxu0 %v10709
      %10760 = vmatpush.msra.mxu0 %v10708
      %10761 = vmatpush.msra.mxu0 %v10707
      %10762 = vmatpush.msra.mxu0 %v10706
      %10763 = vmatpush.msra.mxu0 %v10705
      %10764 = vmatmul.f32.gmra.mxu0 %v10687
      %v10765 = vpop.f32.mrf.mxu0
      %v10766 = vadd.f32 %v10746, %v10765
      %10767 = vdwg.mxu0
      %10768 = vmatpush.msra.mxu0 0.0
      %10769 = vmatpush.msra.mxu0 0.0
      %10770 = vmatpush.msra.mxu0 0.0
      %10771 = vmatpush.msra.mxu0 0.0
      %10772 = vmatpush.msra.mxu0 0.0
      %10773 = vmatpush.msra.mxu0 0.0
      %10774 = vmatpush.msra.mxu0 0.0
      %10775 = vmatpush.msra.mxu0 0.0
      %10776 = vmatpush.msra.mxu0 0.0
      %10777 = vmatpush.msra.mxu0 0.0
      %10778 = vmatpush.msra.mxu0 0.0
      %10779 = vmatpush.msra.mxu0 0.0
      %10780 = vmatpush.msra.mxu0 %v10724
      %10781 = vmatpush.msra.mxu0 %v10723
      %10782 = vmatpush.msra.mxu0 %v10722
      %10783 = vmatpush.msra.mxu0 %v10721
      %10784 = vmatmul.f32.gmra.mxu0 %v10726
      %v10785 = vpop.f32.mrf.mxu0
      %v10786 = vadd.f32 %v10766, %v10785
      %10787 = vdwg.mxu0
      %v10788 = vld [vmem:[%s12] sm:$0x1]
      %v10790 = vperm.slane %v10788, 0
      %v10792 = vmul.f32 %v10786, %v10790
      %v10793 = vld [vmem:[%s13] sm:$0x1]
      %v10795 = vperm.slane %v10793, 0
      %v10797 = vadd.f32 %v10792, %v10795
      %v10798 = vmax.f32 %v10797, 0.0
      %v10800 = vrot.slane %v10798, 2
      %v10801 = vrot.slane %v10798, 4
      %v10802 = vrot.slane %v10798, 6
      %v10806 = vsel %vm5414, %v10798, -inf
      %v10807 = vrot.slane %v10806, 4
      %v10808 = vmax.f32 %v10806, %v10807
      %v10809 = vrot.slane %v10808, 2
      %v10810 = vmax.f32 %v10808, %v10809
      %v10811 = vrot.slane %v10810, 1
      %v10812 = vmax.f32 %v10810, %v10811
      %v10813 = vsel %vm5414, %v10800, -inf
      %v10814 = vrot.slane %v10813, 4
      %v10815 = vmax.f32 %v10813, %v10814
      %v10816 = vrot.slane %v10815, 2
      %v10817 = vmax.f32 %v10815, %v10816
      %v10818 = vrot.slane %v10817, 1
      %v10819 = vmax.f32 %v10817, %v10818
      %v10820 = vsel %vm5414, %v10801, -inf
      %v10821 = vrot.slane %v10820, 4
      %v10822 = vmax.f32 %v10820, %v10821
      %v10823 = vrot.slane %v10822, 2
      %v10824 = vmax.f32 %v10822, %v10823
      %v10825 = vrot.slane %v10824, 1
      %v10826 = vmax.f32 %v10824, %v10825
      %v10827 = vsel %vm5414, %v10802, -inf
      %v10828 = vrot.slane %v10827, 4
      %v10829 = vmax.f32 %v10827, %v10828
      %v10830 = vrot.slane %v10829, 2
      %v10831 = vmax.f32 %v10829, %v10830
      %v10832 = vrot.slane %v10831, 1
      %v10833 = vmax.f32 %v10831, %v10832
      %v10834 = vsel %vm7207, %v10812, -inf
      %v10835 = vsel %vm7207, %v10819, -inf
      %v10836 = vmax.f32 %v10834, %v10835
      %v10837 = vsel %vm7207, %v10826, -inf
      %v10838 = vsel %vm7207, %v10833, -inf
      %v10839 = vmax.f32 %v10837, %v10838
      %v10840 = vld [vmem:[%s14] sm:$0xff]
      %v10841 = vld [vmem:[%s14 + $0x8] sm:$0xff]
      %v10842 = vld [vmem:[%s14 + $0x10] sm:$0xff]
      %v10843 = vld [vmem:[%s14 + $0x18] sm:$0xff]
      %v10844 = vld [vmem:[%s15] sm:$0x1]
      %v10846 = vperm.slane %v10844, 0
      %v10850 = vsel %vm7760, %v10839, %v10836
      %v10851 = vsel %vm7207, %v10850, 0
      %10853 = vmatpush.msra.mxu0 0.0
      %10854 = vmatpush.msra.mxu0 0.0
      %10855 = vmatpush.msra.mxu0 0.0
      %10856 = vmatpush.msra.mxu0 0.0
      %10857 = vmatpush.msra.mxu0 0.0
      %10858 = vmatpush.msra.mxu0 0.0
      %10859 = vmatpush.msra.mxu0 0.0
      %10860 = vmatpush.msra.mxu0 0.0
      %10861 = vmatpush.msra.mxu0 0.0
      %10862 = vmatpush.msra.mxu0 0.0
      %10863 = vmatpush.msra.mxu0 0.0
      %10864 = vmatpush.msra.mxu0 0.0
      %10865 = vmatpush.msra.mxu0 %v10843
      %10866 = vmatpush.msra.mxu0 %v10842
      %10867 = vmatpush.msra.mxu0 %v10841
      %10868 = vmatpush.msra.mxu0 %v10840
      %10869 = vmatmul.f32.gmra.mxu0 %v10851
      %v10870 = vpop.f32.mrf.mxu0
      %v10871 = vadd.f32 %v10846, %v10870
      %10872 = vdwg.mxu0
      %v10874 = vrot.slane %v10871, 1
      %v10876 = vsub.f32 %v10871, %v10874
      %v10877 = vmul.f32 %v10876, %v10876
      %v10878 = vld [vmem:[%s16] sm:$0x1]
      %v10879 = vmul.f32 %v10877, %v10878
      %vm10880 = vcmask 57344
      %v10881 = vsel %vm10880, %v10879, 0.0
      %10882 = vadd.xlane.f32.xlu0 %v10881
      %v10883 = vpop.xlane.xlu0 %10882
      %v10884 = vld [vmem:[#allocation7] sm:$0x1]
      %v10885 = vadd.f32 %v10883, %v10884
      %vm10886 = vcmask 0
      %10887 = vst.msk [vmem:[%s593] sm:$0x1] %vm10886, %v10885
      %p10888 = scmp.lt.s32.totalorder %s31, 1
      %s10889 = scalar_select %p10888, %s31, 1
      %s10890 = scalar_lea.vmem %s18, %s10889
      // Predicated region
      $region93: #{_forward.1} parent=91 // pred_check
        %p10891 = pneg %p437
      $region94: #{_forward.1} parent=91 // pred_check_branch
        %10893 = sbr.rel (%p10891) target = $region96
      $region95: #{_forward.1} parent=91 // pred_region
        _
      $region96: #{_forward.1} parent=91 // pred_fallthru
        _
    $region92: #{_forward.1} parent=5 // pred_fallthru
      _
    %p10894 = scmp.le.s32.totalorder 2, %s26
    // Predicated region
    $region97: #{_forward.1} parent=5 // pred_check
      %p10895 = pneg %p10894
    $region98: #{_forward.1} parent=5 // pred_check_branch
      %10897 = sbr.rel (%p10895) target = $region100
    $region99: #{_forward.1} parent=5 // pred_region
      %s10898 = ssub.s32 %s26, 2
      // Predicated region
      $region101: #{_forward.1} parent=99 // pred_check
        %p10899 = pneg %p443
      $region102: #{_forward.1} parent=99 // pred_check_branch
        %10901 = sbr.rel (%p10899) target = $region104
      $region103: #{_forward.1} parent=99 // pred_region
        %p10902 = scmp.lt.s32.totalorder %s32, 1
        %s10903 = scalar_select %p10902, %s32, 1
        %s10904 = scalar_lea.vmem %s18, %s10903
      $region104: #{_forward.1} parent=99 // pred_fallthru
        _
    $region100: #{_forward.1} parent=5 // pred_fallthru
      _
  $region6: #{_forward.1} parent=0 // loop_footer
    %s30 = sadd.s32 1, %s26
  $region7: #{_forward.1} parent=0 // loop_footer_branch
    %25 = sbr.rel target = $region3
  $region8: #{_forward.1} parent=0 // loop_exit
    _

</llo_original>
